<compile_context>
chip_gen: v7x
topology: tpu7x:2x2x1
jax: 0.10.0
libtpu: 0.0.40
codegen_flags: <defaults>
</compile_context>

<pallas_src>
import functools
import math

import jax
import jax.numpy as jnp
from jax.experimental import pallas as pl
from jax.experimental.pallas import tpu as pltpu

# TODO(synk): RMSNorm definition is not in the snippet; assume learnable-scale RMSNorm, eps=1e-6.
EPS = 1e-6


def _rmsnorm(x, w):
    # f32 elementwise.
    ms = jnp.mean(x * x, axis=-1, keepdims=True)
    return x * jax.lax.rsqrt(ms + EPS) * w


def _gelu(x):
    # TODO(synk): MLP definition not shown in the source; assume Linear -> GELU(tanh) -> Linear.
    return jax.nn.gelu(x, approximate=True)


# ---------------------------------------------------------------------------
# Kernel 1: norm1 + qkv projection + qk_norm + MHA in_proj (fused, row-tiled)
# ---------------------------------------------------------------------------
def _proj_kernel(x_ref, w_n1_ref, w_qkn_ref, w_qkv_ref, w_in_ref, b_in_ref,
                 q_ref, k_ref, v_ref, *, dim, n_heads):
    x = x_ref[0].astype(jnp.float32)                       # (tn, D)
    xn = _rmsnorm(x, w_n1_ref[0])
    qkv = jnp.dot(xn.astype(jnp.bfloat16), w_qkv_ref[...],
                  preferred_element_type=jnp.float32)      # (tn, 3D) f32

    qk = _rmsnorm(qkv[:, :2 * dim], w_qkn_ref[0])
    q = qk[:, :dim]
    k = qk[:, dim:]
    v = qkv[:, 2 * dim:]

    w_in = w_in_ref[...]                                   # (D, 3D) bf16
    b_in = b_in_ref[0]                                     # (3D,)  f32
    qp = jnp.dot(q.astype(jnp.bfloat16), w_in[:, :dim],
                 preferred_element_type=jnp.float32) + b_in[:dim]
    kp = jnp.dot(k.astype(jnp.bfloat16), w_in[:, dim:2 * dim],
                 preferred_element_type=jnp.float32) + b_in[dim:2 * dim]
    vp = jnp.dot(v.astype(jnp.bfloat16), w_in[:, 2 * dim:],
                 preferred_element_type=jnp.float32) + b_in[2 * dim:]

    # Fold the 1/sqrt(head_dim) softmax scale into q once (one N*D multiply total).
    qp = qp * (1.0 / math.sqrt(dim // n_heads))

    q_ref[0] = qp.astype(q_ref.dtype)
    k_ref[0] = kp.astype(k_ref.dtype)
    v_ref[0] = vp.astype(v_ref.dtype)


# ---------------------------------------------------------------------------
# Kernel 2: flash-style attention (online softmax over KV tiles, heads batched)
# grid = (B, Nq_tiles, Nkv_tiles); kv axis is "arbitrary" (accumulator).
# ---------------------------------------------------------------------------
def _flash_attn_kernel(q_ref, k_ref, v_ref, o_ref, m_ref, l_ref, acc_ref):
    j = pl.program_id(2)

    @pl.when(j == 0)
    def _():
        m_ref[...] = jnp.full(m_ref.shape, -jnp.inf, dtype=m_ref.dtype)
        l_ref[...] = jnp.zeros(l_ref.shape, dtype=l_ref.dtype)
        acc_ref[...] = jnp.zeros(acc_ref.shape, dtype=acc_ref.dtype)

    q = q_ref[0]                                           # (H, tq, hd) bf16, pre-scaled
    k = k_ref[0]                                           # (H, tk, hd) bf16
    s = jnp.einsum("hqd,hkd->hqk", q, k,
                   preferred_element_type=jnp.float32)     # (H, tq, tk) f32

    m_prev = m_ref[...]
    m_new = jnp.maximum(m_prev, jnp.max(s, axis=-1, keepdims=True))
    alpha = jnp.exp(m_prev - m_new)
    p = jnp.exp(s - m_new)
    l_ref[...] = alpha * l_ref[...] + jnp.sum(p, axis=-1, keepdims=True)
    acc_ref[...] = alpha * acc_ref[...] + jnp.einsum(
        "hqk,hkd->hqd", p.astype(jnp.bfloat16), v_ref[0],
        preferred_element_type=jnp.float32)
    m_ref[...] = m_new

    @pl.when(j == pl.num_programs(2) - 1)
    def _():
        inv_l = pl.reciprocal(l_ref[...], approx=True)     # EUP slot, not VALU divides
        o_ref[0] = (acc_ref[...] * inv_l).astype(o_ref.dtype)


# ---------------------------------------------------------------------------
# Kernel 3: attention out_proj + residual + norm2 + MLP + residual (row-tiled)
# ---------------------------------------------------------------------------
def _out_mlp_kernel(attn_ref, x_ref, w_out_ref, b_out_ref, w_n2_ref,
                    w_f1_ref, b_f1_ref, w_f2_ref, b_f2_ref, o_ref):
    attn = attn_ref[0]                                     # (tn, D) bf16
    resid1 = x_ref[0].astype(jnp.float32)                  # (tn, D) f32

    ao = jnp.dot(attn, w_out_ref[...],
                 preferred_element_type=jnp.float32) + b_out_ref[0]
    x1 = ao + resid1                                       # attn_out + resid_1

    xn2 = _rmsnorm(x1, w_n2_ref[0])
    h1 = jnp.dot(xn2.astype(jnp.bfloat16), w_f1_ref[...],
                 preferred_element_type=jnp.float32) + b_f1_ref[0]
    h1 = _gelu(h1)
    h2 = jnp.dot(h1.astype(jnp.bfloat16), w_f2_ref[...],
                 preferred_element_type=jnp.float32) + b_f2_ref[0]

    o_ref[0] = (h2 + x1).astype(o_ref.dtype)


# ---------------------------------------------------------------------------
# Wrapper
# ---------------------------------------------------------------------------
def _pick_tile(n, preferred=(256, 128, 64, 32, 16, 8)):
    # Prefer 256-row tiles (feeds the 256x256 MXU on v6e/v7x), fall back to divisors of N.
    for t in preferred:
        if t <= n and n % t == 0:
            return t
    return n


def _nbytes(shape, dtype):
    n = jnp.dtype(dtype).itemsize
    for s in shape:
        n *= s
    return n


def _vmem_limit(block_bytes, scratch_bytes=0):
    # Double-buffered blocks + scratch + generous headroom, clamped to a v7x-safe 64 MiB.
    total = 2 * sum(block_bytes) + scratch_bytes
    return int(min(64 << 20, max(2 * total + (16 << 20), 32 << 20)))


def transformer_forward(x, params, n_heads):
    B, N, D = x.shape
    assert D % n_heads == 0, "dim must be divisible by n_heads"
    assert D % 128 == 0, "dim should be a multiple of 128 for lane-dense TPU layout"
    hd = D // n_heads
    dtype = x.dtype
    bf16 = jnp.bfloat16
    f32 = jnp.float32

    tn = _pick_tile(N)          # row tile for projection / MLP kernels
    tq = _pick_tile(N)          # attention query tile
    tk = _pick_tile(N)          # attention kv tile

    w_n1, w_n2, w_qkn = params["w_n1"], params["w_n2"], params["w_qkn"]
    w_qkv_t, w_in_t, b_in = params["w_qkv_t"], params["w_in_t"], params["b_in"]
    w_out_t, b_out = params["w_out_t"], params["b_out"]
    w_f1_t, b_f1 = params["w_f1_t"], params["b_f1"]
    w_f2_t, b_f2 = params["w_f2_t"], params["b_f2"]

    # ---- stage 1: norm1 + qkv + qk_norm + in_proj ------------------------------------
    proj_blocks = [
        _nbytes((1, tn, D), dtype), _nbytes((1, D), f32), _nbytes((1, 2 * D), f32),
        _nbytes((D, 3 * D), bf16), _nbytes((D, 3 * D), bf16), _nbytes((1, 3 * D), f32),
        _nbytes((1, tn, D), bf16) * 3,
    ]
    qp, kp, vp = pl.pallas_call(
        functools.partial(_proj_kernel, dim=D, n_heads=n_heads),
        out_shape=[jax.ShapeDtypeStruct((B, N, D), bf16)] * 3,
        grid_spec=pltpu.PrefetchScalarGridSpec(
            num_scalar_prefetch=0,
            grid=(B, N // tn),
            in_specs=[
                pl.BlockSpec((1, tn, D), lambda b, i: (b, i, 0)),
                pl.BlockSpec((1, D), lambda b, i: (0, 0)),
                pl.BlockSpec((1, 2 * D), lambda b, i: (0, 0)),
                pl.BlockSpec((D, 3 * D), lambda b, i: (0, 0)),
                pl.BlockSpec((D, 3 * D), lambda b, i: (0, 0)),
                pl.BlockSpec((1, 3 * D), lambda b, i: (0, 0)),
            ],
            out_specs=[pl.BlockSpec((1, tn, D), lambda b, i: (b, i, 0))] * 3,
        ),
        compiler_params=pltpu.CompilerParams(
            dimension_semantics=("parallel", "parallel"),
            vmem_limit_bytes=_vmem_limit(proj_blocks),
        ),
    )(x, w_n1, w_qkn, w_qkv_t, w_in_t, b_in)

    # Layout plumbing in the wrapper (cheap XLA transpose): give each head its own axis so
    # the flash kernel sees clean (H, tq, hd)/(H, tk, hd) blocks with no in-kernel concat.
    def to_heads(a):
        return a.reshape(B, N, n_heads, hd).transpose(0, 2, 1, 3)   # (B, H, N, hd)

    q4, k4, v4 = to_heads(qp), to_heads(kp), to_heads(vp)

    # ---- stage 2: flash attention (all heads batched in one block) -------------------
    attn_blocks = [_nbytes((1, n_heads, tq, hd), bf16),
                   _nbytes((1, n_heads, tk, hd), bf16) * 2,
                   _nbytes((1, n_heads, tq, hd), bf16)]
    attn_scratch_bytes = n_heads * (2 * tq + tq * hd) * 4
    attn4 = pl.pallas_call(
        _flash_attn_kernel,
        out_shape=jax.ShapeDtypeStruct((B, n_heads, N, hd), bf16),
        grid_spec=pltpu.PrefetchScalarGridSpec(
            num_scalar_prefetch=0,
            grid=(B, N // tq, N // tk),
            in_specs=[
                pl.BlockSpec((1, n_heads, tq, hd), lambda b, i, j: (b, 0, i, 0)),
                pl.BlockSpec((1, n_heads, tk, hd), lambda b, i, j: (b, 0, j, 0)),
                pl.BlockSpec((1, n_heads, tk, hd), lambda b, i, j: (b, 0, j, 0)),
            ],
            out_specs=pl.BlockSpec((1, n_heads, tq, hd), lambda b, i, j: (b, 0, i, 0)),
            scratch_shapes=[
                pltpu.VMEM((n_heads, tq, 1), f32),       # running max m
                pltpu.VMEM((n_heads, tq, 1), f32),       # running denom l
                pltpu.VMEM((n_heads, tq, hd), f32),      # output accumulator
            ],
        ),
        compiler_params=pltpu.CompilerParams(
            dimension_semantics=("parallel", "parallel", "arbitrary"),
            vmem_limit_bytes=_vmem_limit(attn_blocks, attn_scratch_bytes),
        ),
    )(q4, k4, v4)

    attn = attn4.transpose(0, 2, 1, 3).reshape(B, N, D)     # back to lane-dense (B, N, D)

    # ---- stage 3: out_proj + residual + norm2 + MLP + residual ------------------------
    mlp_blocks = [
        _nbytes((1, tn, D), bf16), _nbytes((1, tn, D), dtype),
        _nbytes((D, D), bf16), _nbytes((1, D), f32), _nbytes((1, D), f32),
        _nbytes((D, 4 * D), bf16), _nbytes((1, 4 * D), f32),
        _nbytes((4 * D, D), bf16), _nbytes((1, D), f32),
        _nbytes((1, tn, D), dtype),
    ]
    out = pl.pallas_call(
        _out_mlp_kernel,
        out_shape=jax.ShapeDtypeStruct((B, N, D), dtype),
        grid_spec=pltpu.PrefetchScalarGridSpec(
            num_scalar_prefetch=0,
            grid=(B, N // tn),
            in_specs=[
                pl.BlockSpec((1, tn, D), lambda b, i: (b, i, 0)),
                pl.BlockSpec((1, tn, D), lambda b, i: (b, i, 0)),
                pl.BlockSpec((D, D), lambda b, i: (0, 0)),
                pl.BlockSpec((1, D), lambda b, i: (0, 0)),
                pl.BlockSpec((1, D), lambda b, i: (0, 0)),
                pl.BlockSpec((D, 4 * D), lambda b, i: (0, 0)),
                pl.BlockSpec((1, 4 * D), lambda b, i: (0, 0)),
                pl.BlockSpec((4 * D, D), lambda b, i: (0, 0)),
                pl.BlockSpec((1, D), lambda b, i: (0, 0)),
            ],
            out_specs=pl.BlockSpec((1, tn, D), lambda b, i: (b, i, 0)),
        ),
        compiler_params=pltpu.CompilerParams(
            dimension_semantics=("parallel", "parallel"),
            vmem_limit_bytes=_vmem_limit(mlp_blocks),
        ),
    )(attn, x, w_out_t, b_out, w_n2, w_f1_t, b_f1, w_f2_t, b_f2)

    return out


# ---------------------------------------------------------------------------
# Params + pure-JAX reference
# ---------------------------------------------------------------------------
def make_params(key, dim):
    """PyTorch-shaped params, pre-transposed to (in, out); matmul weights cast to bf16."""
    ks = jax.random.split(key, 10)
    std = 0.02
    f32, bf16 = jnp.float32, jnp.bfloat16
    w_qkv = jax.random.normal(ks[0], (3 * dim, dim), f32) * std     # qkv.weight
    w_in = jax.random.normal(ks[1], (3 * dim, dim), f32) * std      # attn.in_proj_weight
    b_in = jax.random.normal(ks[2], (3 * dim,), f32) * std          # attn.in_proj_bias
    w_out = jax.random.normal(ks[3], (dim, dim), f32) * std         # attn.out_proj.weight
    b_out = jax.random.normal(ks[4], (dim,), f32) * std             # attn.out_proj.bias
    w_f1 = jax.random.normal(ks[5], (4 * dim, dim), f32) * std      # ffn fc1
    b_f1 = jax.random.normal(ks[6], (4 * dim,), f32) * std
    w_f2 = jax.random.normal(ks[7], (dim, 4 * dim), f32) * std      # ffn fc2
    b_f2 = jax.random.normal(ks[8], (dim,), f32) * std
    return {
        "w_n1": jnp.ones((1, dim), f32),          # RMSNorm scales default to 1
        "w_n2": jnp.ones((1, dim), f32),
        "w_qkn": jnp.ones((1, 2 * dim), f32),
        "w_qkv_t": w_qkv.T.astype(bf16),
        "w_in_t": w_in.T.astype(bf16),
        "b_in": b_in[None, :],
        "w_out_t": w_out.T.astype(bf16),
        "b_out": b_out[None, :],
        "w_f1_t": w_f1.T.astype(bf16),
        "b_f1": b_f1[None, :],
        "w_f2_t": w_f2.T.astype(bf16),
        "b_f2": b_f2[None, :],
    }


def reference_forward(x, params, n_heads):
    """Pure-JAX f32 reference with identical math (weights upcast from bf16)."""
    B, N, D = x.shape
    hd = D // n_heads
    f32 = jnp.float32

    def rms(v, w):
        return v * jax.lax.rsqrt(jnp.mean(v * v, -1, keepdims=True) + EPS) * w

    def dense(a, w_t, b=None):
        y = a.astype(f32) @ w_t.astype(f32)
        return y if b is None else y + b[0]

    resid1 = x
    xn = rms(x, params["w_n1"][0])
    qkv = dense(xn, params["w_qkv_t"])
    qk = rms(qkv[..., :2 * D], params["w_qkn"][0])
    q, k = qk[..., :D], qk[..., D:]
    v = qkv[..., 2 * D:]
    w_in, b_in = params["w_in_t"].astype(f32), params["b_in"][0]
    qp = q @ w_in[:, :D] + b_in[:D]
    kp = k @ w_in[:, D:2 * D] + b_in[D:2 * D]
    vp = v @ w_in[:, 2 * D:] + b_in[2 * D:]
    qp = qp.reshape(B, N, n_heads, hd).transpose(0, 2, 1, 3)
    kp = kp.reshape(B, N, n_heads, hd).transpose(0, 2, 1, 3)
    vp = vp.reshape(B, N, n_heads, hd).transpose(0, 2, 1, 3)
    s = jnp.einsum("bhqd,bhkd->bhqk", qp, kp) / (hd ** 0.5)
    p = jax.nn.softmax(s, axis=-1)
    attn = jnp.einsum("bhqk,bhkd->bhqd", p, vp).transpose(0, 2, 1, 3).reshape(B, N, D)
    attn = dense(attn, params["w_out_t"], params["b_out"])
    x1 = attn + resid1
    resid2 = x1
    xn2 = rms(x1, params["w_n2"][0])
    h1 = _gelu(dense(xn2, params["w_f1_t"], params["b_f1"]))
    h2 = dense(h1, params["w_f2_t"], params["b_f2"])
    return h2 + resid2


if __name__ == "__main__":
    # Small but lane-aligned demo config: D multiple of 128, head_dim=64.
    B, N, D, H = 2, 128, 128, 2
    key = jax.random.PRNGKey(0)
    kx, kw = jax.random.split(key)
    x = jax.random.normal(kx, (B, N, D), jnp.float32)
    params = make_params(kw, D)

    fwd = jax.jit(transformer_forward, static_argnums=(2,))
    out = fwd(x, params, H)
    out = jax.block_until_ready(out)

    ref = reference_forward(x, params, H)
    assert out.shape == (B, N, D)
    max_err = jnp.max(jnp.abs(out - ref))
    assert jnp.allclose(out, ref, rtol=3e-2, atol=3e-2), f"mismatch vs reference (max abs err {max_err})"
    print("KERNEL_OK")
</pallas_src>

<mosaic_0001>
module attributes {stable_mosaic.version = 11 : i64} {
  func.func @_flash_attn_kernel(%arg0: i32, %arg1: i32, %arg2: i32, %arg3: memref<1x2x128x64xbf16, #tpu.memory_space<vmem>>, %arg4: memref<1x2x128x64xbf16, #tpu.memory_space<vmem>>, %arg5: memref<1x2x128x64xbf16, #tpu.memory_space<vmem>>, %arg6: memref<1x2x128x64xbf16, #tpu.memory_space<vmem>>, %arg7: memref<2x128x1xf32, #tpu.memory_space<vmem>>, %arg8: memref<2x128x1xf32, #tpu.memory_space<vmem>>, %arg9: memref<2x128x64xf32, #tpu.memory_space<vmem>>) attributes {dimension_semantics = [#tpu.dimension_semantics<parallel>, #tpu.dimension_semantics<parallel>, #tpu.dimension_semantics<arbitrary>], iteration_bounds = array<i64: 2, 1, 1>, scalar_prefetch = 0 : i64, scratch_operands = 3 : i64, tpu.core_type = #tpu.core_type<tc>, window_params = [{transform_indices = @transform_0, window_bounds = array<i64: 1, 2, 128, 64>}, {transform_indices = @transform_1, window_bounds = array<i64: 1, 2, 128, 64>}, {transform_indices = @transform_2, window_bounds = array<i64: 1, 2, 128, 64>}, {transform_indices = @transform_3, window_bounds = array<i64: 1, 2, 128, 64>}]} {
    %c0_i32 = arith.constant 0 : i32
    %0 = arith.cmpi eq, %arg2, %c0_i32 : i32
    %1 = arith.extui %0 : i1 to i32
    %c0_i32_0 = arith.constant 0 : i32
    %2 = arith.cmpi ne, %1, %c0_i32_0 : i32
    scf.if %2 {
      %cst_35 = arith.constant 0xFF800000 : f32
      %36 = vector.broadcast %cst_35 : f32 to vector<2x128x1xf32>
      %c0_36 = arith.constant 0 : index
      %c0_37 = arith.constant 0 : index
      %c0_38 = arith.constant 0 : index
      %37 = vector.load %arg7[%c0_36, %c0_37, %c0_38] : memref<2x128x1xf32, #tpu.memory_space<vmem>>, vector<2x128x1xf32>
      tpu.vector_store %arg7[%c0_36, %c0_37, %c0_38], %36 {strides = array<i32>} : memref<2x128x1xf32, #tpu.memory_space<vmem>>, vector<2x128x1xf32>,
      %cst_39 = arith.constant 0.000000e+00 : f32
      %38 = vector.broadcast %cst_39 : f32 to vector<2x128x1xf32>
      %c0_40 = arith.constant 0 : index
      %c0_41 = arith.constant 0 : index
      %c0_42 = arith.constant 0 : index
      %39 = vector.load %arg8[%c0_40, %c0_41, %c0_42] : memref<2x128x1xf32, #tpu.memory_space<vmem>>, vector<2x128x1xf32>
      tpu.vector_store %arg8[%c0_40, %c0_41, %c0_42], %38 {strides = array<i32>} : memref<2x128x1xf32, #tpu.memory_space<vmem>>, vector<2x128x1xf32>,
      %cst_43 = arith.constant 0.000000e+00 : f32
      %40 = vector.broadcast %cst_43 : f32 to vector<2x128x64xf32>
      %c0_44 = arith.constant 0 : index
      %c0_45 = arith.constant 0 : index
      %c0_46 = arith.constant 0 : index
      %41 = vector.load %arg9[%c0_44, %c0_45, %c0_46] : memref<2x128x64xf32, #tpu.memory_space<vmem>>, vector<2x128x64xf32>
      tpu.vector_store %arg9[%c0_44, %c0_45, %c0_46], %40 {strides = array<i32>} : memref<2x128x64xf32, #tpu.memory_space<vmem>>, vector<2x128x64xf32>,
    } else {
    }
    %c0 = arith.constant 0 : index
    %c0_1 = arith.constant 0 : index
    %c0_2 = arith.constant 0 : index
    %c0_3 = arith.constant 0 : index
    %3 = vector.load %arg3[%c0, %c0_1, %c0_2, %c0_3] : memref<1x2x128x64xbf16, #tpu.memory_space<vmem>>, vector<1x2x128x64xbf16>
    %4 = vector.shape_cast %3 : vector<1x2x128x64xbf16> to vector<2x128x64xbf16>
    %c0_4 = arith.constant 0 : index
    %c0_5 = arith.constant 0 : index
    %c0_6 = arith.constant 0 : index
    %c0_7 = arith.constant 0 : index
    %5 = vector.load %arg4[%c0_4, %c0_5, %c0_6, %c0_7] : memref<1x2x128x64xbf16, #tpu.memory_space<vmem>>, vector<1x2x128x64xbf16>
    %6 = vector.shape_cast %5 : vector<1x2x128x64xbf16> to vector<2x128x64xbf16>
    "tpu.trace_start"() <{level = 10 : i32, message = "hqd,hkd->hqk"}> : () -> ()
    %cst = arith.constant dense<0.000000e+00> : vector<2x128x128xf32>
    %7 = tpu.matmul %4, %6, %cst {dimension_numbers = #tpu.dot_dimension_numbers<[2], [2], [1], [1], [0, 0, 0, 1, 1, 1], [0], [0]>} : vector<2x128x64xbf16>, vector<2x128x64xbf16>, vector<2x128x128xf32> -> vector<2x128x128xf32>
    "tpu.trace_stop"() : () -> ()
    %c0_8 = arith.constant 0 : index
    %c0_9 = arith.constant 0 : index
    %c0_10 = arith.constant 0 : index
    %8 = vector.load %arg7[%c0_8, %c0_9, %c0_10] : memref<2x128x1xf32, #tpu.memory_space<vmem>>, vector<2x128x1xf32>
    %cst_11 = arith.constant dense<0xFF800000> : vector<2x128xf32>
    %9 = vector.multi_reduction <maximumf>, %7, %cst_11 [2] : vector<2x128x128xf32> to vector<2x128xf32>
    %10 = vector.shape_cast %9 : vector<2x128xf32> to vector<2x128x1xf32>
    %11 = arith.maximumf %8, %10 : vector<2x128x1xf32>
    %12 = arith.subf %8, %11 : vector<2x128x1xf32>
    %13 = math.exp %12 : vector<2x128x1xf32>
    %14 = vector.broadcast %11 : vector<2x128x1xf32> to vector<2x128x128xf32>
    %15 = arith.subf %7, %14 : vector<2x128x128xf32>
    %16 = math.exp %15 : vector<2x128x128xf32>
    %c0_12 = arith.constant 0 : index
    %c0_13 = arith.constant 0 : index
    %c0_14 = arith.constant 0 : index
    %17 = vector.load %arg8[%c0_12, %c0_13, %c0_14] : memref<2x128x1xf32, #tpu.memory_space<vmem>>, vector<2x128x1xf32>
    %18 = arith.mulf %13, %17 : vector<2x128x1xf32>
    %cst_15 = arith.constant dense<0.000000e+00> : vector<2x128xf32>
    %19 = vector.multi_reduction <add>, %16, %cst_15 [2] : vector<2x128x128xf32> to vector<2x128xf32>
    %20 = vector.shape_cast %19 : vector<2x128xf32> to vector<2x128x1xf32>
    %21 = arith.addf %18, %20 : vector<2x128x1xf32>
    %c0_16 = arith.constant 0 : index
    %c0_17 = arith.constant 0 : index
    %c0_18 = arith.constant 0 : index
    %22 = vector.load %arg8[%c0_16, %c0_17, %c0_18] : memref<2x128x1xf32, #tpu.memory_space<vmem>>, vector<2x128x1xf32>
    tpu.vector_store %arg8[%c0_16, %c0_17, %c0_18], %21 {strides = array<i32>} : memref<2x128x1xf32, #tpu.memory_space<vmem>>, vector<2x128x1xf32>,
    %c0_19 = arith.constant 0 : index
    %c0_20 = arith.constant 0 : index
    %c0_21 = arith.constant 0 : index
    %23 = vector.load %arg9[%c0_19, %c0_20, %c0_21] : memref<2x128x64xf32, #tpu.memory_space<vmem>>, vector<2x128x64xf32>
    %24 = vector.broadcast %13 : vector<2x128x1xf32> to vector<2x128x64xf32>
    %25 = arith.mulf %24, %23 : vector<2x128x64xf32>
    %26 = arith.truncf %16 : vector<2x128x128xf32> to vector<2x128x128xbf16>
    %c0_22 = arith.constant 0 : index
    %c0_23 = arith.constant 0 : index
    %c0_24 = arith.constant 0 : index
    %c0_25 = arith.constant 0 : index
    %27 = vector.load %arg5[%c0_22, %c0_23, %c0_24, %c0_25] : memref<1x2x128x64xbf16, #tpu.memory_space<vmem>>, vector<1x2x128x64xbf16>
    %28 = vector.shape_cast %27 : vector<1x2x128x64xbf16> to vector<2x128x64xbf16>
    "tpu.trace_start"() <{level = 10 : i32, message = "hqk,hkd->hqd"}> : () -> ()
    %cst_26 = arith.constant dense<0.000000e+00> : vector<2x128x64xf32>
    %29 = tpu.matmul %26, %28, %cst_26 {dimension_numbers = #tpu.dot_dimension_numbers<[2], [1], [1], [2], [0, 0, 0, 1, 1, 2], [0], [0]>} : vector<2x128x128xbf16>, vector<2x128x64xbf16>, vector<2x128x64xf32> -> vector<2x128x64xf32>
    "tpu.trace_stop"() : () -> ()
    %30 = arith.addf %25, %29 : vector<2x128x64xf32>
    %c0_27 = arith.constant 0 : index
    %c0_28 = arith.constant 0 : index
    %c0_29 = arith.constant 0 : index
    %31 = vector.load %arg9[%c0_27, %c0_28, %c0_29] : memref<2x128x64xf32, #tpu.memory_space<vmem>>, vector<2x128x64xf32>
    tpu.vector_store %arg9[%c0_27, %c0_28, %c0_29], %30 {strides = array<i32>} : memref<2x128x64xf32, #tpu.memory_space<vmem>>, vector<2x128x64xf32>,
    %c0_30 = arith.constant 0 : index
    %c0_31 = arith.constant 0 : index
    %c0_32 = arith.constant 0 : index
    %32 = vector.load %arg7[%c0_30, %c0_31, %c0_32] : memref<2x128x1xf32, #tpu.memory_space<vmem>>, vector<2x128x1xf32>
    tpu.vector_store %arg7[%c0_30, %c0_31, %c0_32], %11 {strides = array<i32>} : memref<2x128x1xf32, #tpu.memory_space<vmem>>, vector<2x128x1xf32>,
    %c0_i32_33 = arith.constant 0 : i32
    %33 = arith.cmpi eq, %arg2, %c0_i32_33 : i32
    %34 = arith.extui %33 : i1 to i32
    %c0_i32_34 = arith.constant 0 : i32
    %35 = arith.cmpi ne, %34, %c0_i32_34 : i32
    scf.if %35 {
      %c0_35 = arith.constant 0 : index
      %c0_36 = arith.constant 0 : index
      %c0_37 = arith.constant 0 : index
      %36 = vector.load %arg8[%c0_35, %c0_36, %c0_37] : memref<2x128x1xf32, #tpu.memory_space<vmem>>, vector<2x128x1xf32>
      %37 = tpu.reciprocal %36 {approx = true} : vector<2x128x1xf32> -> vector<2x128x1xf32>
      %c0_38 = arith.constant 0 : index
      %c0_39 = arith.constant 0 : index
      %c0_40 = arith.constant 0 : index
      %38 = vector.load %arg9[%c0_38, %c0_39, %c0_40] : memref<2x128x64xf32, #tpu.memory_space<vmem>>, vector<2x128x64xf32>
      %39 = vector.broadcast %37 : vector<2x128x1xf32> to vector<2x128x64xf32>
      %40 = arith.mulf %38, %39 : vector<2x128x64xf32>
      %41 = arith.truncf %40 : vector<2x128x64xf32> to vector<2x128x64xbf16>
      %c0_41 = arith.constant 0 : index
      %c0_42 = arith.constant 0 : index
      %c0_43 = arith.constant 0 : index
      %c0_44 = arith.constant 0 : index
      %42 = vector.load %arg6[%c0_41, %c0_42, %c0_43, %c0_44] : memref<1x2x128x64xbf16, #tpu.memory_space<vmem>>, vector<1x2x128x64xbf16>
      %43 = vector.shape_cast %42 : vector<1x2x128x64xbf16> to vector<2x128x64xbf16>
      %44 = vector.shape_cast %41 : vector<2x128x64xbf16> to vector<1x2x128x64xbf16>
      tpu.vector_store %arg6[%c0_41, %c0_42, %c0_43, %c0_44], %44 {strides = array<i32>} : memref<1x2x128x64xbf16, #tpu.memory_space<vmem>>, vector<1x2x128x64xbf16>,
    } else {
    }
    return
  }
  func.func @transform_0(%arg0: i32, %arg1: i32, %arg2: i32) -> (i32, i32, i32, i32) {
    %c0_i32 = arith.constant 0 : i32
    %c0_i32_0 = arith.constant 0 : i32
    %c0_i32_1 = arith.constant 0 : i32
    return %arg0, %c0_i32, %arg1, %c0_i32_0 : i32, i32, i32, i32
  }
  func.func @transform_1(%arg0: i32, %arg1: i32, %arg2: i32) -> (i32, i32, i32, i32) {
    %c0_i32 = arith.constant 0 : i32
    %c0_i32_0 = arith.constant 0 : i32
    %c0_i32_1 = arith.constant 0 : i32
    return %arg0, %c0_i32, %arg2, %c0_i32_0 : i32, i32, i32, i32
  }
  func.func @transform_2(%arg0: i32, %arg1: i32, %arg2: i32) -> (i32, i32, i32, i32) {
    %c0_i32 = arith.constant 0 : i32
    %c0_i32_0 = arith.constant 0 : i32
    %c0_i32_1 = arith.constant 0 : i32
    return %arg0, %c0_i32, %arg2, %c0_i32_0 : i32, i32, i32, i32
  }
  func.func @transform_3(%arg0: i32, %arg1: i32, %arg2: i32) -> (i32, i32, i32, i32) {
    %c0_i32 = arith.constant 0 : i32
    %c0_i32_0 = arith.constant 0 : i32
    %c0_i32_1 = arith.constant 0 : i32
    return %arg0, %c0_i32, %arg1, %c0_i32_0 : i32, i32, i32, i32
  }
}

module attributes {stable_mosaic.version = 11 : i64} {
  func.func @_proj_kernel(%arg0: i32, %arg1: i32, %arg2: memref<1x128x128xf32, #tpu.memory_space<vmem>>, %arg3: memref<1x128xf32, #tpu.memory_space<vmem>>, %arg4: memref<1x256xf32, #tpu.memory_space<vmem>>, %arg5: memref<128x384xbf16, #tpu.memory_space<vmem>>, %arg6: memref<128x384xbf16, #tpu.memory_space<vmem>>, %arg7: memref<1x384xf32, #tpu.memory_space<vmem>>, %arg8: memref<1x128x128xbf16, #tpu.memory_space<vmem>>, %arg9: memref<1x128x128xbf16, #tpu.memory_space<vmem>>, %arg10: memref<1x128x128xbf16, #tpu.memory_space<vmem>>) attributes {dimension_semantics = [#tpu.dimension_semantics<parallel>, #tpu.dimension_semantics<parallel>], iteration_bounds = array<i64: 2, 1>, scalar_prefetch = 0 : i64, scratch_operands = 0 : i64, tpu.core_type = #tpu.core_type<tc>, window_params = [{transform_indices = @transform_0, window_bounds = array<i64: 1, 128, 128>}, {pipeline_mode = #tpu.pipeline_mode<synchronous>, transform_indices = @transform_1, window_bounds = array<i64: 1, 128>}, {pipeline_mode = #tpu.pipeline_mode<synchronous>, transform_indices = @transform_2, window_bounds = array<i64: 1, 256>}, {pipeline_mode = #tpu.pipeline_mode<synchronous>, transform_indices = @transform_3, window_bounds = array<i64: 128, 384>}, {pipeline_mode = #tpu.pipeline_mode<synchronous>, transform_indices = @transform_4, window_bounds = array<i64: 128, 384>}, {pipeline_mode = #tpu.pipeline_mode<synchronous>, transform_indices = @transform_5, window_bounds = array<i64: 1, 384>}, {transform_indices = @transform_6, window_bounds = array<i64: 1, 128, 128>}, {transform_indices = @transform_7, window_bounds = array<i64: 1, 128, 128>}, {transform_indices = @transform_8, window_bounds = array<i64: 1, 128, 128>}]} {
    %c0 = arith.constant 0 : index
    %c0_0 = arith.constant 0 : index
    %c0_1 = arith.constant 0 : index
    %0 = vector.load %arg2[%c0, %c0_0, %c0_1] : memref<1x128x128xf32, #tpu.memory_space<vmem>>, vector<1x128x128xf32>
    %1 = vector.shape_cast %0 : vector<1x128x128xf32> to vector<128x128xf32>
    %c0_2 = arith.constant 0 : index
    %c0_3 = arith.constant 0 : index
    %2 = vector.load %arg3[%c0_2, %c0_3] : memref<1x128xf32, #tpu.memory_space<vmem>>, vector<1x128xf32>
    %3 = vector.shape_cast %2 : vector<1x128xf32> to vector<128xf32>
    %4 = arith.mulf %1, %1 : vector<128x128xf32>
    %cst = arith.constant dense<0.000000e+00> : vector<128xf32>
    %5 = vector.multi_reduction <add>, %4, %cst [1] : vector<128x128xf32> to vector<128xf32>
    %6 = vector.shape_cast %5 : vector<128xf32> to vector<128x1xf32>
    %cst_4 = arith.constant 1.280000e+02 : f32
    %7 = vector.broadcast %cst_4 : f32 to vector<128x1xf32>
    %8 = arith.divf %6, %7 : vector<128x1xf32>
    %cst_5 = arith.constant 9.99999997E-7 : f32
    %9 = vector.broadcast %cst_5 : f32 to vector<128x1xf32>
    %10 = arith.addf %8, %9 : vector<128x1xf32>
    %11 = math.rsqrt %10 : vector<128x1xf32>
    %12 = vector.broadcast %11 : vector<128x1xf32> to vector<128x128xf32>
    %13 = arith.mulf %1, %12 : vector<128x128xf32>
    %14 = vector.shape_cast %3 : vector<128xf32> to vector<1x128xf32>
    %15 = vector.broadcast %14 : vector<1x128xf32> to vector<128x128xf32>
    %16 = arith.mulf %13, %15 : vector<128x128xf32>
    %17 = arith.truncf %16 : vector<128x128xf32> to vector<128x128xbf16>
    %c0_6 = arith.constant 0 : index
    %c0_7 = arith.constant 0 : index
    %18 = vector.load %arg5[%c0_6, %c0_7] : memref<128x384xbf16, #tpu.memory_space<vmem>>, vector<128x384xbf16>
    %cst_8 = arith.constant dense<0.000000e+00> : vector<128x384xf32>
    %19 = tpu.matmul %17, %18, %cst_8 {dimension_numbers = #tpu.dot_dimension_numbers<[1], [0], [0], [1], [0, 0, 1, 1], [], []>} : vector<128x128xbf16>, vector<128x384xbf16>, vector<128x384xf32> -> vector<128x384xf32>
    %20 = vector.extract_strided_slice %19 {offsets = [0, 0], sizes = [128, 256], strides = [1, 1]} : vector<128x384xf32> to vector<128x256xf32>
    %c0_9 = arith.constant 0 : index
    %c0_10 = arith.constant 0 : index
    %21 = vector.load %arg4[%c0_9, %c0_10] : memref<1x256xf32, #tpu.memory_space<vmem>>, vector<1x256xf32>
    %22 = vector.shape_cast %21 : vector<1x256xf32> to vector<256xf32>
    %23 = arith.mulf %20, %20 : vector<128x256xf32>
    %cst_11 = arith.constant dense<0.000000e+00> : vector<128xf32>
    %24 = vector.multi_reduction <add>, %23, %cst_11 [1] : vector<128x256xf32> to vector<128xf32>
    %25 = vector.shape_cast %24 : vector<128xf32> to vector<128x1xf32>
    %cst_12 = arith.constant 2.560000e+02 : f32
    %26 = vector.broadcast %cst_12 : f32 to vector<128x1xf32>
    %27 = arith.divf %25, %26 : vector<128x1xf32>
    %cst_13 = arith.constant 9.99999997E-7 : f32
    %28 = vector.broadcast %cst_13 : f32 to vector<128x1xf32>
    %29 = arith.addf %27, %28 : vector<128x1xf32>
    %30 = math.rsqrt %29 : vector<128x1xf32>
    %31 = vector.broadcast %30 : vector<128x1xf32> to vector<128x256xf32>
    %32 = arith.mulf %20, %31 : vector<128x256xf32>
    %33 = vector.shape_cast %22 : vector<256xf32> to vector<1x256xf32>
    %34 = vector.broadcast %33 : vector<1x256xf32> to vector<128x256xf32>
    %35 = arith.mulf %32, %34 : vector<128x256xf32>
    %36 = vector.extract_strided_slice %35 {offsets = [0, 0], sizes = [128, 128], strides = [1, 1]} : vector<128x256xf32> to vector<128x128xf32>
    %37 = vector.extract_strided_slice %35 {offsets = [0, 128], sizes = [128, 128], strides = [1, 1]} : vector<128x256xf32> to vector<128x128xf32>
    %38 = vector.extract_strided_slice %19 {offsets = [0, 256], sizes = [128, 128], strides = [1, 1]} : vector<128x384xf32> to vector<128x128xf32>
    %c0_14 = arith.constant 0 : index
    %c0_15 = arith.constant 0 : index
    %39 = vector.load %arg6[%c0_14, %c0_15] : memref<128x384xbf16, #tpu.memory_space<vmem>>, vector<128x384xbf16>
    %c0_16 = arith.constant 0 : index
    %c0_17 = arith.constant 0 : index
    %40 = vector.load %arg7[%c0_16, %c0_17] : memref<1x384xf32, #tpu.memory_space<vmem>>, vector<1x384xf32>
    %41 = vector.shape_cast %40 : vector<1x384xf32> to vector<384xf32>
    %42 = arith.truncf %36 : vector<128x128xf32> to vector<128x128xbf16>
    %43 = vector.extract_strided_slice %39 {offsets = [0, 0], sizes = [128, 128], strides = [1, 1]} : vector<128x384xbf16> to vector<128x128xbf16>
    %cst_18 = arith.constant dense<0.000000e+00> : vector<128x128xf32>
    %44 = tpu.matmul %42, %43, %cst_18 {dimension_numbers = #tpu.dot_dimension_numbers<[1], [0], [0], [1], [0, 0, 1, 1], [], []>} : vector<128x128xbf16>, vector<128x128xbf16>, vector<128x128xf32> -> vector<128x128xf32>
    %45 = vector.extract_strided_slice %41 {offsets = [0], sizes = [128], strides = [1]} : vector<384xf32> to vector<128xf32>
    %46 = vector.shape_cast %45 : vector<128xf32> to vector<1x128xf32>
    %47 = vector.broadcast %46 : vector<1x128xf32> to vector<128x128xf32>
    %48 = arith.addf %44, %47 : vector<128x128xf32>
    %49 = arith.truncf %37 : vector<128x128xf32> to vector<128x128xbf16>
    %50 = vector.extract_strided_slice %39 {offsets = [0, 128], sizes = [128, 128], strides = [1, 1]} : vector<128x384xbf16> to vector<128x128xbf16>
    %cst_19 = arith.constant dense<0.000000e+00> : vector<128x128xf32>
    %51 = tpu.matmul %49, %50, %cst_19 {dimension_numbers = #tpu.dot_dimension_numbers<[1], [0], [0], [1], [0, 0, 1, 1], [], []>} : vector<128x128xbf16>, vector<128x128xbf16>, vector<128x128xf32> -> vector<128x128xf32>
    %52 = vector.extract_strided_slice %41 {offsets = [128], sizes = [128], strides = [1]} : vector<384xf32> to vector<128xf32>
    %53 = vector.shape_cast %52 : vector<128xf32> to vector<1x128xf32>
    %54 = vector.broadcast %53 : vector<1x128xf32> to vector<128x128xf32>
    %55 = arith.addf %51, %54 : vector<128x128xf32>
    %56 = arith.truncf %38 : vector<128x128xf32> to vector<128x128xbf16>
    %57 = vector.extract_strided_slice %39 {offsets = [0, 256], sizes = [128, 128], strides = [1, 1]} : vector<128x384xbf16> to vector<128x128xbf16>
    %cst_20 = arith.constant dense<0.000000e+00> : vector<128x128xf32>
    %58 = tpu.matmul %56, %57, %cst_20 {dimension_numbers = #tpu.dot_dimension_numbers<[1], [0], [0], [1], [0, 0, 1, 1], [], []>} : vector<128x128xbf16>, vector<128x128xbf16>, vector<128x128xf32> -> vector<128x128xf32>
    %59 = vector.extract_strided_slice %41 {offsets = [256], sizes = [128], strides = [1]} : vector<384xf32> to vector<128xf32>
    %60 = vector.shape_cast %59 : vector<128xf32> to vector<1x128xf32>
    %61 = vector.broadcast %60 : vector<1x128xf32> to vector<128x128xf32>
    %62 = arith.addf %58, %61 : vector<128x128xf32>
    %cst_21 = arith.constant 1.250000e-01 : f32
    %63 = vector.broadcast %cst_21 : f32 to vector<128x128xf32>
    %64 = arith.mulf %48, %63 : vector<128x128xf32>
    %65 = arith.truncf %64 : vector<128x128xf32> to vector<128x128xbf16>
    %c0_22 = arith.constant 0 : index
    %c0_23 = arith.constant 0 : index
    %c0_24 = arith.constant 0 : index
    %66 = vector.load %arg8[%c0_22, %c0_23, %c0_24] : memref<1x128x128xbf16, #tpu.memory_space<vmem>>, vector<1x128x128xbf16>
    %67 = vector.shape_cast %66 : vector<1x128x128xbf16> to vector<128x128xbf16>
    %68 = vector.shape_cast %65 : vector<128x128xbf16> to vector<1x128x128xbf16>
    tpu.vector_store %arg8[%c0_22, %c0_23, %c0_24], %68 {strides = array<i32>} : memref<1x128x128xbf16, #tpu.memory_space<vmem>>, vector<1x128x128xbf16>,
    %69 = arith.truncf %55 : vector<128x128xf32> to vector<128x128xbf16>
    %c0_25 = arith.constant 0 : index
    %c0_26 = arith.constant 0 : index
    %c0_27 = arith.constant 0 : index
    %70 = vector.load %arg9[%c0_25, %c0_26, %c0_27] : memref<1x128x128xbf16, #tpu.memory_space<vmem>>, vector<1x128x128xbf16>
    %71 = vector.shape_cast %70 : vector<1x128x128xbf16> to vector<128x128xbf16>
    %72 = vector.shape_cast %69 : vector<128x128xbf16> to vector<1x128x128xbf16>
    tpu.vector_store %arg9[%c0_25, %c0_26, %c0_27], %72 {strides = array<i32>} : memref<1x128x128xbf16, #tpu.memory_space<vmem>>, vector<1x128x128xbf16>,
    %73 = arith.truncf %62 : vector<128x128xf32> to vector<128x128xbf16>
    %c0_28 = arith.constant 0 : index
    %c0_29 = arith.constant 0 : index
    %c0_30 = arith.constant 0 : index
    %74 = vector.load %arg10[%c0_28, %c0_29, %c0_30] : memref<1x128x128xbf16, #tpu.memory_space<vmem>>, vector<1x128x128xbf16>
    %75 = vector.shape_cast %74 : vector<1x128x128xbf16> to vector<128x128xbf16>
    %76 = vector.shape_cast %73 : vector<128x128xbf16> to vector<1x128x128xbf16>
    tpu.vector_store %arg10[%c0_28, %c0_29, %c0_30], %76 {strides = array<i32>} : memref<1x128x128xbf16, #tpu.memory_space<vmem>>, vector<1x128x128xbf16>,
    return
  }
  func.func @transform_0(%arg0: i32, %arg1: i32) -> (i32, i32, i32) {
    %c0_i32 = arith.constant 0 : i32
    %c0_i32_0 = arith.constant 0 : i32
    return %arg0, %arg1, %c0_i32 : i32, i32, i32
  }
  func.func @transform_1(%arg0: i32, %arg1: i32) -> (i32, i32) {
    %c0_i32 = arith.constant 0 : i32
    %c0_i32_0 = arith.constant 0 : i32
    %c0_i32_1 = arith.constant 0 : i32
    return %c0_i32, %c0_i32_0 : i32, i32
  }
  func.func @transform_2(%arg0: i32, %arg1: i32) -> (i32, i32) {
    %c0_i32 = arith.constant 0 : i32
    %c0_i32_0 = arith.constant 0 : i32
    %c0_i32_1 = arith.constant 0 : i32
    return %c0_i32, %c0_i32_0 : i32, i32
  }
  func.func @transform_3(%arg0: i32, %arg1: i32) -> (i32, i32) {
    %c0_i32 = arith.constant 0 : i32
    %c0_i32_0 = arith.constant 0 : i32
    %c0_i32_1 = arith.constant 0 : i32
    return %c0_i32, %c0_i32_0 : i32, i32
  }
  func.func @transform_4(%arg0: i32, %arg1: i32) -> (i32, i32) {
    %c0_i32 = arith.constant 0 : i32
    %c0_i32_0 = arith.constant 0 : i32
    %c0_i32_1 = arith.constant 0 : i32
    return %c0_i32, %c0_i32_0 : i32, i32
  }
  func.func @transform_5(%arg0: i32, %arg1: i32) -> (i32, i32) {
    %c0_i32 = arith.constant 0 : i32
    %c0_i32_0 = arith.constant 0 : i32
    %c0_i32_1 = arith.constant 0 : i32
    return %c0_i32, %c0_i32_0 : i32, i32
  }
  func.func @transform_6(%arg0: i32, %arg1: i32) -> (i32, i32, i32) {
    %c0_i32 = arith.constant 0 : i32
    %c0_i32_0 = arith.constant 0 : i32
    return %arg0, %arg1, %c0_i32 : i32, i32, i32
  }
  func.func @transform_7(%arg0: i32, %arg1: i32) -> (i32, i32, i32) {
    %c0_i32 = arith.constant 0 : i32
    %c0_i32_0 = arith.constant 0 : i32
    return %arg0, %arg1, %c0_i32 : i32, i32, i32
  }
  func.func @transform_8(%arg0: i32, %arg1: i32) -> (i32, i32, i32) {
    %c0_i32 = arith.constant 0 : i32
    %c0_i32_0 = arith.constant 0 : i32
    return %arg0, %arg1, %c0_i32 : i32, i32, i32
  }
}

module attributes {stable_mosaic.version = 11 : i64} {
  func.func @_out_mlp_kernel(%arg0: i32, %arg1: i32, %arg2: memref<1x128x128xbf16, #tpu.memory_space<vmem>>, %arg3: memref<1x128x128xf32, #tpu.memory_space<vmem>>, %arg4: memref<128x128xbf16, #tpu.memory_space<vmem>>, %arg5: memref<1x128xf32, #tpu.memory_space<vmem>>, %arg6: memref<1x128xf32, #tpu.memory_space<vmem>>, %arg7: memref<128x512xbf16, #tpu.memory_space<vmem>>, %arg8: memref<1x512xf32, #tpu.memory_space<vmem>>, %arg9: memref<512x128xbf16, #tpu.memory_space<vmem>>, %arg10: memref<1x128xf32, #tpu.memory_space<vmem>>, %arg11: memref<1x128x128xf32, #tpu.memory_space<vmem>>) attributes {dimension_semantics = [#tpu.dimension_semantics<parallel>, #tpu.dimension_semantics<parallel>], iteration_bounds = array<i64: 2, 1>, scalar_prefetch = 0 : i64, scratch_operands = 0 : i64, tpu.core_type = #tpu.core_type<tc>, window_params = [{transform_indices = @transform_0, window_bounds = array<i64: 1, 128, 128>}, {transform_indices = @transform_1, window_bounds = array<i64: 1, 128, 128>}, {pipeline_mode = #tpu.pipeline_mode<synchronous>, transform_indices = @transform_2, window_bounds = array<i64: 128, 128>}, {pipeline_mode = #tpu.pipeline_mode<synchronous>, transform_indices = @transform_3, window_bounds = array<i64: 1, 128>}, {pipeline_mode = #tpu.pipeline_mode<synchronous>, transform_indices = @transform_4, window_bounds = array<i64: 1, 128>}, {pipeline_mode = #tpu.pipeline_mode<synchronous>, transform_indices = @transform_5, window_bounds = array<i64: 128, 512>}, {pipeline_mode = #tpu.pipeline_mode<synchronous>, transform_indices = @transform_6, window_bounds = array<i64: 1, 512>}, {pipeline_mode = #tpu.pipeline_mode<synchronous>, transform_indices = @transform_7, window_bounds = array<i64: 512, 128>}, {pipeline_mode = #tpu.pipeline_mode<synchronous>, transform_indices = @transform_8, window_bounds = array<i64: 1, 128>}, {transform_indices = @transform_9, window_bounds = array<i64: 1, 128, 128>}]} {
    %c0 = arith.constant 0 : index
    %c0_0 = arith.constant 0 : index
    %c0_1 = arith.constant 0 : index
    %0 = vector.load %arg2[%c0, %c0_0, %c0_1] : memref<1x128x128xbf16, #tpu.memory_space<vmem>>, vector<1x128x128xbf16>
    %1 = vector.shape_cast %0 : vector<1x128x128xbf16> to vector<128x128xbf16>
    %c0_2 = arith.constant 0 : index
    %c0_3 = arith.constant 0 : index
    %c0_4 = arith.constant 0 : index
    %2 = vector.load %arg3[%c0_2, %c0_3, %c0_4] : memref<1x128x128xf32, #tpu.memory_space<vmem>>, vector<1x128x128xf32>
    %3 = vector.shape_cast %2 : vector<1x128x128xf32> to vector<128x128xf32>
    %c0_5 = arith.constant 0 : index
    %c0_6 = arith.constant 0 : index
    %4 = vector.load %arg4[%c0_5, %c0_6] : memref<128x128xbf16, #tpu.memory_space<vmem>>, vector<128x128xbf16>
    %cst = arith.constant dense<0.000000e+00> : vector<128x128xf32>
    %5 = tpu.matmul %1, %4, %cst {dimension_numbers = #tpu.dot_dimension_numbers<[1], [0], [0], [1], [0, 0, 1, 1], [], []>} : vector<128x128xbf16>, vector<128x128xbf16>, vector<128x128xf32> -> vector<128x128xf32>
    %c0_7 = arith.constant 0 : index
    %c0_8 = arith.constant 0 : index
    %6 = vector.load %arg5[%c0_7, %c0_8] : memref<1x128xf32, #tpu.memory_space<vmem>>, vector<1x128xf32>
    %7 = vector.shape_cast %6 : vector<1x128xf32> to vector<128xf32>
    %8 = vector.shape_cast %7 : vector<128xf32> to vector<1x128xf32>
    %9 = vector.broadcast %8 : vector<1x128xf32> to vector<128x128xf32>
    %10 = arith.addf %5, %9 : vector<128x128xf32>
    %11 = arith.addf %10, %3 : vector<128x128xf32>
    %c0_9 = arith.constant 0 : index
    %c0_10 = arith.constant 0 : index
    %12 = vector.load %arg6[%c0_9, %c0_10] : memref<1x128xf32, #tpu.memory_space<vmem>>, vector<1x128xf32>
    %13 = vector.shape_cast %12 : vector<1x128xf32> to vector<128xf32>
    %14 = arith.mulf %11, %11 : vector<128x128xf32>
    %cst_11 = arith.constant dense<0.000000e+00> : vector<128xf32>
    %15 = vector.multi_reduction <add>, %14, %cst_11 [1] : vector<128x128xf32> to vector<128xf32>
    %16 = vector.shape_cast %15 : vector<128xf32> to vector<128x1xf32>
    %cst_12 = arith.constant 1.280000e+02 : f32
    %17 = vector.broadcast %cst_12 : f32 to vector<128x1xf32>
    %18 = arith.divf %16, %17 : vector<128x1xf32>
    %cst_13 = arith.constant 9.99999997E-7 : f32
    %19 = vector.broadcast %cst_13 : f32 to vector<128x1xf32>
    %20 = arith.addf %18, %19 : vector<128x1xf32>
    %21 = math.rsqrt %20 : vector<128x1xf32>
    %22 = vector.broadcast %21 : vector<128x1xf32> to vector<128x128xf32>
    %23 = arith.mulf %11, %22 : vector<128x128xf32>
    %24 = vector.shape_cast %13 : vector<128xf32> to vector<1x128xf32>
    %25 = vector.broadcast %24 : vector<1x128xf32> to vector<128x128xf32>
    %26 = arith.mulf %23, %25 : vector<128x128xf32>
    %27 = arith.truncf %26 : vector<128x128xf32> to vector<128x128xbf16>
    %c0_14 = arith.constant 0 : index
    %c0_15 = arith.constant 0 : index
    %28 = vector.load %arg7[%c0_14, %c0_15] : memref<128x512xbf16, #tpu.memory_space<vmem>>, vector<128x512xbf16>
    %cst_16 = arith.constant dense<0.000000e+00> : vector<128x512xf32>
    %29 = tpu.matmul %27, %28, %cst_16 {dimension_numbers = #tpu.dot_dimension_numbers<[1], [0], [0], [1], [0, 0, 1, 1], [], []>} : vector<128x128xbf16>, vector<128x512xbf16>, vector<128x512xf32> -> vector<128x512xf32>
    %c0_17 = arith.constant 0 : index
    %c0_18 = arith.constant 0 : index
    %30 = vector.load %arg8[%c0_17, %c0_18] : memref<1x512xf32, #tpu.memory_space<vmem>>, vector<1x512xf32>
    %31 = vector.shape_cast %30 : vector<1x512xf32> to vector<512xf32>
    %32 = vector.shape_cast %31 : vector<512xf32> to vector<1x512xf32>
    %33 = vector.broadcast %32 : vector<1x512xf32> to vector<128x512xf32>
    %34 = arith.addf %29, %33 : vector<128x512xf32>
    %35 = arith.mulf %34, %34 : vector<128x512xf32>
    %36 = arith.mulf %34, %35 : vector<128x512xf32>
    %cst_19 = arith.constant 4.471500e-02 : f32
    %37 = vector.broadcast %cst_19 : f32 to vector<128x512xf32>
    %38 = arith.mulf %37, %36 : vector<128x512xf32>
    %39 = arith.addf %34, %38 : vector<128x512xf32>
    %cst_20 = arith.constant 0.797884583 : f32
    %40 = vector.broadcast %cst_20 : f32 to vector<128x512xf32>
    %41 = arith.mulf %40, %39 : vector<128x512xf32>
    %42 = math.tanh %41 : vector<128x512xf32>
    %cst_21 = arith.constant 1.000000e+00 : f32
    %43 = vector.broadcast %cst_21 : f32 to vector<128x512xf32>
    %44 = arith.addf %43, %42 : vector<128x512xf32>
    %cst_22 = arith.constant 5.000000e-01 : f32
    %45 = vector.broadcast %cst_22 : f32 to vector<128x512xf32>
    %46 = arith.mulf %45, %44 : vector<128x512xf32>
    %47 = arith.mulf %34, %46 : vector<128x512xf32>
    %48 = arith.truncf %47 : vector<128x512xf32> to vector<128x512xbf16>
    %c0_23 = arith.constant 0 : index
    %c0_24 = arith.constant 0 : index
    %49 = vector.load %arg9[%c0_23, %c0_24] : memref<512x128xbf16, #tpu.memory_space<vmem>>, vector<512x128xbf16>
    %cst_25 = arith.constant dense<0.000000e+00> : vector<128x128xf32>
    %50 = tpu.matmul %48, %49, %cst_25 {dimension_numbers = #tpu.dot_dimension_numbers<[1], [0], [0], [1], [0, 0, 1, 1], [], []>} : vector<128x512xbf16>, vector<512x128xbf16>, vector<128x128xf32> -> vector<128x128xf32>
    %c0_26 = arith.constant 0 : index
    %c0_27 = arith.constant 0 : index
    %51 = vector.load %arg10[%c0_26, %c0_27] : memref<1x128xf32, #tpu.memory_space<vmem>>, vector<1x128xf32>
    %52 = vector.shape_cast %51 : vector<1x128xf32> to vector<128xf32>
    %53 = vector.shape_cast %52 : vector<128xf32> to vector<1x128xf32>
    %54 = vector.broadcast %53 : vector<1x128xf32> to vector<128x128xf32>
    %55 = arith.addf %50, %54 : vector<128x128xf32>
    %56 = arith.addf %55, %11 : vector<128x128xf32>
    %c0_28 = arith.constant 0 : index
    %c0_29 = arith.constant 0 : index
    %c0_30 = arith.constant 0 : index
    %57 = vector.load %arg11[%c0_28, %c0_29, %c0_30] : memref<1x128x128xf32, #tpu.memory_space<vmem>>, vector<1x128x128xf32>
    %58 = vector.shape_cast %57 : vector<1x128x128xf32> to vector<128x128xf32>
    %59 = vector.shape_cast %56 : vector<128x128xf32> to vector<1x128x128xf32>
    tpu.vector_store %arg11[%c0_28, %c0_29, %c0_30], %59 {strides = array<i32>} : memref<1x128x128xf32, #tpu.memory_space<vmem>>, vector<1x128x128xf32>,
    return
  }
  func.func @transform_0(%arg0: i32, %arg1: i32) -> (i32, i32, i32) {
    %c0_i32 = arith.constant 0 : i32
    %c0_i32_0 = arith.constant 0 : i32
    return %arg0, %arg1, %c0_i32 : i32, i32, i32
  }
  func.func @transform_1(%arg0: i32, %arg1: i32) -> (i32, i32, i32) {
    %c0_i32 = arith.constant 0 : i32
    %c0_i32_0 = arith.constant 0 : i32
    return %arg0, %arg1, %c0_i32 : i32, i32, i32
  }
  func.func @transform_2(%arg0: i32, %arg1: i32) -> (i32, i32) {
    %c0_i32 = arith.constant 0 : i32
    %c0_i32_0 = arith.constant 0 : i32
    %c0_i32_1 = arith.constant 0 : i32
    return %c0_i32, %c0_i32_0 : i32, i32
  }
  func.func @transform_3(%arg0: i32, %arg1: i32) -> (i32, i32) {
    %c0_i32 = arith.constant 0 : i32
    %c0_i32_0 = arith.constant 0 : i32
    %c0_i32_1 = arith.constant 0 : i32
    return %c0_i32, %c0_i32_0 : i32, i32
  }
  func.func @transform_4(%arg0: i32, %arg1: i32) -> (i32, i32) {
    %c0_i32 = arith.constant 0 : i32
    %c0_i32_0 = arith.constant 0 : i32
    %c0_i32_1 = arith.constant 0 : i32
    return %c0_i32, %c0_i32_0 : i32, i32
  }
  func.func @transform_5(%arg0: i32, %arg1: i32) -> (i32, i32) {
    %c0_i32 = arith.constant 0 : i32
    %c0_i32_0 = arith.constant 0 : i32
    %c0_i32_1 = arith.constant 0 : i32
    return %c0_i32, %c0_i32_0 : i32, i32
  }
  func.func @transform_6(%arg0: i32, %arg1: i32) -> (i32, i32) {
    %c0_i32 = arith.constant 0 : i32
    %c0_i32_0 = arith.constant 0 : i32
    %c0_i32_1 = arith.constant 0 : i32
    return %c0_i32, %c0_i32_0 : i32, i32
  }
  func.func @transform_7(%arg0: i32, %arg1: i32) -> (i32, i32) {
    %c0_i32 = arith.constant 0 : i32
    %c0_i32_0 = arith.constant 0 : i32
    %c0_i32_1 = arith.constant 0 : i32
    return %c0_i32, %c0_i32_0 : i32, i32
  }
  func.func @transform_8(%arg0: i32, %arg1: i32) -> (i32, i32) {
    %c0_i32 = arith.constant 0 : i32
    %c0_i32_0 = arith.constant 0 : i32
    %c0_i32_1 = arith.constant 0 : i32
    return %c0_i32, %c0_i32_0 : i32, i32
  }
  func.func @transform_9(%arg0: i32, %arg1: i32) -> (i32, i32, i32) {
    %c0_i32 = arith.constant 0 : i32
    %c0_i32_0 = arith.constant 0 : i32
    return %arg0, %arg1, %c0_i32 : i32, i32, i32
  }
}

</mosaic_0001>

<llo_original>
// kernel: transformer_forward.3
$region0: #{transformer_forward.3}
  #allocation0 [shape = 'u32[]', space=smem, size = 0x4, offset = 0x4, fixed_abs, tag = 'smem constant byte address 0x4 - core index']
  #allocation1 [shape = 'u32[144,128]{1,0:T(1,128)}', space=vmem, size = 0x12000, scoped, tag = 'internal scratch']
  %s0 = inlined_call_operand.hbm [shape: f32[2,128,128], index: 0, kind: input, shape index: {}]
  %s1 = inlined_call_operand.vmem [shape: f32[1,128], index: 1, kind: input, shape index: {}]
  %s2 = inlined_call_operand.vmem [shape: f32[1,256], index: 2, kind: input, shape index: {}]
  %s3 = inlined_call_operand.hbm [shape: bf16[128,384], index: 3, kind: input, shape index: {}]
  %s4 = inlined_call_operand.hbm [shape: bf16[128,384], index: 4, kind: input, shape index: {}]
  %s5 = inlined_call_operand.vmem [shape: f32[1,384], index: 5, kind: input, shape index: {}]
  %s6 = inlined_call_operand.vmem [shape: bf16[2,128,128], index: 6, kind: output, shape index: {0}]
  %s7 = inlined_call_operand.vmem [shape: bf16[2,128,128], index: 7, kind: output, shape index: {1}]
  %s8 = inlined_call_operand.vmem [shape: bf16[2,128,128], index: 8, kind: output, shape index: {2}]
  %9 = xla_tuple %s6, %s7, %s8
  %s10 = sld [smem:[#allocation0]]
  $region85: #{transformer_forward.3} parent=0
    _
  %s12 = ssub.s32 1, %s10
  %s13 = scalar_select 0, %s12, %s10
  $region1: #{transformer_forward.3} parent=0
    #allocation2 [shape = 'u8[131072]{0}', space=vmem, size = 0x20000, scoped, tag = 'input window, operand 0']
    #allocation3 [shape = 's32[2]{0}', space=sflag, size = 0x8, scoped, tag = 'scoped memory for transformer_forward.3']
    #allocation4 [shape = 'u8[98304]{0}', space=vmem, size = 0x18000, scoped, tag = 'input window, operand 3, single buffered']
    #allocation5 [shape = 's32[1]{0}', space=sflag, size = 0x4, scoped, tag = 'scoped memory for transformer_forward.3']
    #allocation6 [shape = 'u8[98304]{0}', space=vmem, size = 0x18000, scoped, tag = 'input window, operand 4, single buffered']
    %14 = vsyncpa [#allocation3], 0
    %s15 = scalar_lea.sflag [#allocation3], 1
    %16 = vsyncpa %s15, 0
    %17 = vsyncpa [#allocation5], 0
    loop: start=0, step=1, limit=4
    $region2: #{transformer_forward.3} parent=1 // loop_pre_header
      _
    $region3: #{transformer_forward.3} parent=1 // loop_header
      %s19 = sphi 0, %s23
      %p20 = scmp.ge.s32.totalorder %s19, 4
      %s26 = sphi 0, %s38
      %s27 = sphi 0, %s34
      %s28 = sphi 0, %s26
      %s29 = sphi 0, %s27
      %s30 = sphi 0, %s28
      %s31 = sphi 0, %s29
      %s43 = sphi 0, %s45
      %s46 = sphi 0, %s43
      %s47 = sphi 0, %s46
      %s63 = sphi 0, %s47
      %s67 = sphi 0, %s67
      %s69 = sphi 0, %s67
      %s70 = sphi 0, %s69
      %s84 = sphi 0, %s70
      %s88 = sphi 0, %s88
      %s90 = sphi 0, %s88
      %s91 = sphi 0, %s90
      %s105 = sphi 0, %s91
      %s109 = sphi 0, %s109
      %s111 = sphi 0, %s109
      %s112 = sphi 0, %s111
      %s126 = sphi 0, %s112
      %s130 = sphi 0, %s130
      %s132 = sphi 0, %s130
      %s133 = sphi 0, %s132
      %s147 = sphi 0, %s133
      %s151 = sphi 0, %s151
      %s153 = sphi 0, %s151
      %s154 = sphi 0, %s153
      %s168 = sphi 0, %s154
      %s176 = sphi 0, %s178
      %s179 = sphi 0, %s176
      %s180 = sphi 0, %s179
      %s196 = sphi 0, %s180
      %s204 = sphi 0, %s206
      %s207 = sphi 0, %s204
      %s208 = sphi 0, %s207
      %s224 = sphi 0, %s208
      %s232 = sphi 0, %s234
      %s235 = sphi 0, %s232
      %s236 = sphi 0, %s235
      %s252 = sphi 0, %s236
    $region4: #{transformer_forward.3} parent=1 // loop_header_branch
      %22 = sbr.rel (%p20) target = $region8
    $region5: #{transformer_forward.3} parent=1 // loop_body
      %s24 = ssub.s32 %s19, 1
      %s25 = ssub.s32 %s19, 2
      %s32 = sadd.s32 1, %s27
      %p33 = scmp.ge.s32.totalorder %s32, 1
      %s34 = scalar_select %p33, 0, %s32
      %s35 = sadd.s32 1, %s26
      %s36 = scalar_select %p33, %s35, %s26
      %p37 = scmp.ge.s32.totalorder %s36, 2
      %s38 = scalar_select %p37, 0, %s36
      %s39 = ssub.s32 %s26, %s38
      %s40 = ssub.s32 %s27, %s34
      %s41 = sor.u32 %s39, %s40
      %p42 = scmp.eq.s32.totalorder %s41, 0
      %s44 = sadd.s32 %s43, 1
      %s45 = scalar_select %p42, %s43, %s44
      %p48 = pneg %p42
      %p49 = scmp.eq.s32.totalorder %s19, 1
      %p50 = por %p48, %p49
      %p51 = scmp.ne.s32.totalorder %s43, %s46
      %p52 = scmp.eq.s32.totalorder %s19, 0
      %p53 = por %p51, %p52
      %p54 = scmp.ne.s32.totalorder %s43, %s46
      %p55 = scmp.eq.s32.totalorder %s24, 1
      %p56 = por %p54, %p55
      %p57 = scmp.ne.s32.totalorder %s46, %s47
      %p58 = scmp.eq.s32.totalorder %s24, 0
      %p59 = por %p57, %p58
      %p60 = scmp.ne.s32.totalorder %s46, %s47
      %p61 = scmp.eq.s32.totalorder %s25, 1
      %p62 = por %p60, %p61
      %p64 = scmp.ne.s32.totalorder %s47, %s63
      %p65 = scmp.eq.s32.totalorder %s25, 0
      %p66 = por %p64, %p65
      %s68 = sadd.s32 %s67, 1
      %p71 = scmp.eq.s32.totalorder %s19, 1
      %p72 = scmp.ne.s32.totalorder %s67, %s69
      %p73 = scmp.eq.s32.totalorder %s19, 0
      %p74 = por %p72, %p73
      %p75 = scmp.ne.s32.totalorder %s67, %s69
      %p76 = scmp.eq.s32.totalorder %s24, 1
      %p77 = por %p75, %p76
      %p78 = scmp.ne.s32.totalorder %s69, %s70
      %p79 = scmp.eq.s32.totalorder %s24, 0
      %p80 = por %p78, %p79
      %p81 = scmp.ne.s32.totalorder %s69, %s70
      %p82 = scmp.eq.s32.totalorder %s25, 1
      %p83 = por %p81, %p82
      %p85 = scmp.ne.s32.totalorder %s70, %s84
      %p86 = scmp.eq.s32.totalorder %s25, 0
      %p87 = por %p85, %p86
      %s89 = sadd.s32 %s88, 1
      %p92 = scmp.eq.s32.totalorder %s19, 1
      %p93 = scmp.ne.s32.totalorder %s88, %s90
      %p94 = scmp.eq.s32.totalorder %s19, 0
      %p95 = por %p93, %p94
      %p96 = scmp.ne.s32.totalorder %s88, %s90
      %p97 = scmp.eq.s32.totalorder %s24, 1
      %p98 = por %p96, %p97
      %p99 = scmp.ne.s32.totalorder %s90, %s91
      %p100 = scmp.eq.s32.totalorder %s24, 0
      %p101 = por %p99, %p100
      %p102 = scmp.ne.s32.totalorder %s90, %s91
      %p103 = scmp.eq.s32.totalorder %s25, 1
      %p104 = por %p102, %p103
      %p106 = scmp.ne.s32.totalorder %s91, %s105
      %p107 = scmp.eq.s32.totalorder %s25, 0
      %p108 = por %p106, %p107
      %s110 = sadd.s32 %s109, 1
      %p113 = scmp.eq.s32.totalorder %s19, 1
      %p114 = scmp.ne.s32.totalorder %s109, %s111
      %p115 = scmp.eq.s32.totalorder %s19, 0
      %p116 = por %p114, %p115
      %p117 = scmp.ne.s32.totalorder %s109, %s111
      %p118 = scmp.eq.s32.totalorder %s24, 1
      %p119 = por %p117, %p118
      %p120 = scmp.ne.s32.totalorder %s111, %s112
      %p121 = scmp.eq.s32.totalorder %s24, 0
      %p122 = por %p120, %p121
      %p123 = scmp.ne.s32.totalorder %s111, %s112
      %p124 = scmp.eq.s32.totalorder %s25, 1
      %p125 = por %p123, %p124
      %p127 = scmp.ne.s32.totalorder %s112, %s126
      %p128 = scmp.eq.s32.totalorder %s25, 0
      %p129 = por %p127, %p128
      %s131 = sadd.s32 %s130, 1
      %p134 = scmp.eq.s32.totalorder %s19, 1
      %p135 = scmp.ne.s32.totalorder %s130, %s132
      %p136 = scmp.eq.s32.totalorder %s19, 0
      %p137 = por %p135, %p136
      %p138 = scmp.ne.s32.totalorder %s130, %s132
      %p139 = scmp.eq.s32.totalorder %s24, 1
      %p140 = por %p138, %p139
      %p141 = scmp.ne.s32.totalorder %s132, %s133
      %p142 = scmp.eq.s32.totalorder %s24, 0
      %p143 = por %p141, %p142
      %p144 = scmp.ne.s32.totalorder %s132, %s133
      %p145 = scmp.eq.s32.totalorder %s25, 1
      %p146 = por %p144, %p145
      %p148 = scmp.ne.s32.totalorder %s133, %s147
      %p149 = scmp.eq.s32.totalorder %s25, 0
      %p150 = por %p148, %p149
      %s152 = sadd.s32 %s151, 1
      %p155 = scmp.eq.s32.totalorder %s19, 1
      %p156 = scmp.ne.s32.totalorder %s151, %s153
      %p157 = scmp.eq.s32.totalorder %s19, 0
      %p158 = por %p156, %p157
      %p159 = scmp.ne.s32.totalorder %s151, %s153
      %p160 = scmp.eq.s32.totalorder %s24, 1
      %p161 = por %p159, %p160
      %p162 = scmp.ne.s32.totalorder %s153, %s154
      %p163 = scmp.eq.s32.totalorder %s24, 0
      %p164 = por %p162, %p163
      %p165 = scmp.ne.s32.totalorder %s153, %s154
      %p166 = scmp.eq.s32.totalorder %s25, 1
      %p167 = por %p165, %p166
      %p169 = scmp.ne.s32.totalorder %s154, %s168
      %p170 = scmp.eq.s32.totalorder %s25, 0
      %p171 = por %p169, %p170
      %s172 = ssub.s32 %s26, %s38
      %s173 = ssub.s32 %s27, %s34
      %s174 = sor.u32 %s172, %s173
      %p175 = scmp.eq.s32.totalorder %s174, 0
      %s177 = sadd.s32 %s176, 1
      %s178 = scalar_select %p175, %s176, %s177
      %p181 = pneg %p175
      %p182 = scmp.eq.s32.totalorder %s19, 1
      %p183 = por %p181, %p182
      %p184 = scmp.ne.s32.totalorder %s176, %s179
      %p185 = scmp.eq.s32.totalorder %s19, 0
      %p186 = por %p184, %p185
      %p187 = scmp.ne.s32.totalorder %s176, %s179
      %p188 = scmp.eq.s32.totalorder %s24, 1
      %p189 = por %p187, %p188
      %p190 = scmp.ne.s32.totalorder %s179, %s180
      %p191 = scmp.eq.s32.totalorder %s24, 0
      %p192 = por %p190, %p191
      %p193 = scmp.ne.s32.totalorder %s179, %s180
      %p194 = scmp.eq.s32.totalorder %s25, 1
      %p195 = por %p193, %p194
      %p197 = scmp.ne.s32.totalorder %s180, %s196
      %p198 = scmp.eq.s32.totalorder %s25, 0
      %p199 = por %p197, %p198
      %s200 = ssub.s32 %s26, %s38
      %s201 = ssub.s32 %s27, %s34
      %s202 = sor.u32 %s200, %s201
      %p203 = scmp.eq.s32.totalorder %s202, 0
      %s205 = sadd.s32 %s204, 1
      %s206 = scalar_select %p203, %s204, %s205
      %p209 = pneg %p203
      %p210 = scmp.eq.s32.totalorder %s19, 1
      %p211 = por %p209, %p210
      %p212 = scmp.ne.s32.totalorder %s204, %s207
      %p213 = scmp.eq.s32.totalorder %s19, 0
      %p214 = por %p212, %p213
      %p215 = scmp.ne.s32.totalorder %s204, %s207
      %p216 = scmp.eq.s32.totalorder %s24, 1
      %p217 = por %p215, %p216
      %p218 = scmp.ne.s32.totalorder %s207, %s208
      %p219 = scmp.eq.s32.totalorder %s24, 0
      %p220 = por %p218, %p219
      %p221 = scmp.ne.s32.totalorder %s207, %s208
      %p222 = scmp.eq.s32.totalorder %s25, 1
      %p223 = por %p221, %p222
      %p225 = scmp.ne.s32.totalorder %s208, %s224
      %p226 = scmp.eq.s32.totalorder %s25, 0
      %p227 = por %p225, %p226
      %s228 = ssub.s32 %s26, %s38
      %s229 = ssub.s32 %s27, %s34
      %s230 = sor.u32 %s228, %s229
      %p231 = scmp.eq.s32.totalorder %s230, 0
      %s233 = sadd.s32 %s232, 1
      %s234 = scalar_select %p231, %s232, %s233
      %p237 = pneg %p231
      %p238 = scmp.eq.s32.totalorder %s19, 1
      %p239 = por %p237, %p238
      %p240 = scmp.ne.s32.totalorder %s232, %s235
      %p241 = scmp.eq.s32.totalorder %s19, 0
      %p242 = por %p240, %p241
      %p243 = scmp.ne.s32.totalorder %s232, %s235
      %p244 = scmp.eq.s32.totalorder %s24, 1
      %p245 = por %p243, %p244
      %p246 = scmp.ne.s32.totalorder %s235, %s236
      %p247 = scmp.eq.s32.totalorder %s24, 0
      %p248 = por %p246, %p247
      %p249 = scmp.ne.s32.totalorder %s235, %s236
      %p250 = scmp.eq.s32.totalorder %s25, 1
      %p251 = por %p249, %p250
      %p253 = scmp.ne.s32.totalorder %s236, %s252
      %p254 = scmp.eq.s32.totalorder %s25, 0
      %p255 = por %p253, %p254
      %p256 = scmp.le.s32.totalorder 1, %s19
      %p257 = scmp.lt.s32.totalorder %s19, 3
      %p258 = pnand %p256, %p257
      %p259 = pneg %p258
      // Predicated region
      $region9: #{transformer_forward.3} parent=5 // pred_check
        _
      $region10: #{transformer_forward.3} parent=5 // pred_check_branch
        %261 = sbr.rel (%p258) target = $region12
      $region11: #{transformer_forward.3} parent=5 // pred_region
        %s262 = ssub.s32 %s19, 1
        // Predicated region
        $region13: #{transformer_forward.3} parent=11 // pred_check
          %p263 = pneg %p80
        $region14: #{transformer_forward.3} parent=11 // pred_check_branch
          %265 = sbr.rel (%p263) target = $region16
        $region15: #{transformer_forward.3} parent=11 // pred_region
          _
        $region16: #{transformer_forward.3} parent=11 // pred_fallthru
          _
        // Predicated region
        $region17: #{transformer_forward.3} parent=11 // pred_check
          %p266 = pneg %p101
        $region18: #{transformer_forward.3} parent=11 // pred_check_branch
          %268 = sbr.rel (%p266) target = $region20
        $region19: #{transformer_forward.3} parent=11 // pred_region
          _
        $region20: #{transformer_forward.3} parent=11 // pred_fallthru
          _
        // Predicated region
        $region21: #{transformer_forward.3} parent=11 // pred_check
          %p269 = pneg %p122
        $region22: #{transformer_forward.3} parent=11 // pred_check_branch
          %271 = sbr.rel (%p269) target = $region24
        $region23: #{transformer_forward.3} parent=11 // pred_region
          %s273 = ssub.s32 3072, 3072
          %274 = vsyncadd [#allocation5], %s273
          %s275 = sshll.u32 [#allocation4], 4
          %s276 = int_to_ptr.vmem [resolvable:$true] %s275
          %281 = dma.hbm_to_vmem [thread:$0]  %s3, 3072, %s276, [#allocation5], 192, 192, 12
        $region24: #{transformer_forward.3} parent=11 // pred_fallthru
          _
        // Predicated region
        $region25: #{transformer_forward.3} parent=11 // pred_check
          %p282 = pneg %p143
        $region26: #{transformer_forward.3} parent=11 // pred_check_branch
          %284 = sbr.rel (%p282) target = $region28
        $region27: #{transformer_forward.3} parent=11 // pred_region
          %s286 = ssub.s32 3072, 3072
          %287 = vsyncadd [#allocation5], %s286
          %s288 = sshll.u32 [#allocation6], 4
          %s289 = int_to_ptr.vmem [resolvable:$true] %s288
          %294 = dma.hbm_to_vmem [thread:$0]  %s4, 3072, %s289, [#allocation5], 192, 192, 12
        $region28: #{transformer_forward.3} parent=11 // pred_fallthru
          _
        // Predicated region
        $region29: #{transformer_forward.3} parent=11 // pred_check
          %p295 = pneg %p164
        $region30: #{transformer_forward.3} parent=11 // pred_check_branch
          %297 = sbr.rel (%p295) target = $region32
        $region31: #{transformer_forward.3} parent=11 // pred_region
          _
        $region32: #{transformer_forward.3} parent=11 // pred_fallthru
          _
      $region12: #{transformer_forward.3} parent=5 // pred_fallthru
        _
      %p298 = scmp.lt.s32.totalorder %s19, 2
      // Predicated region
      $region33: #{transformer_forward.3} parent=5 // pred_check
        %p299 = pneg %p298
      $region34: #{transformer_forward.3} parent=5 // pred_check_branch
        %301 = sbr.rel (%p299) target = $region36
      $region35: #{transformer_forward.3} parent=5 // pred_region
        // Predicated region
        $region37: #{transformer_forward.3} parent=35 // pred_check
          %p302 = pneg %p53
        $region38: #{transformer_forward.3} parent=35 // pred_check_branch
          %304 = sbr.rel (%p302) target = $region40
        $region39: #{transformer_forward.3} parent=35 // pred_region
          %s305 = sand.u32 %s43, 1
          %s306 = scalar_lea.sflag [#allocation3], %s305
          %s307 = sand.u32 %s43, 1
          %s308 = smul.addr %s307, 128
          %s309 = scalar_lea.vmem [#allocation2], %s308
          %s310 = smul.u32 16, %s27
          %s312 = ssub.s32 2048, 2048
          %313 = vsyncadd %s306, %s312
          %s314 = smul.addr %s26, 16
          %s315 = sadd.s32 %s310, %s314
          %s316 = smul.addr %s315, 128
          %s317 = scalar_lea.hbm %s0, %s316
          %s318 = sshll.u32 %s309, 4
          %s319 = int_to_ptr.vmem [resolvable:$true] %s318
          %324 = dma.hbm_to_vmem [thread:$0]  %s317, 2048, %s319, %s306, 128, 128, 8
        $region40: #{transformer_forward.3} parent=35 // pred_fallthru
          _
      $region36: #{transformer_forward.3} parent=5 // pred_fallthru
        _
      %p325 = scmp.le.s32.totalorder 1, %s19
      %p326 = scmp.lt.s32.totalorder %s19, 3
      %p327 = pnand %p325, %p326
      %p328 = pneg %p327
      // Predicated region
      $region41: #{transformer_forward.3} parent=5 // pred_check
        _
      $region42: #{transformer_forward.3} parent=5 // pred_check_branch
        %330 = sbr.rel (%p327) target = $region44
      $region43: #{transformer_forward.3} parent=5 // pred_region
        %s331 = ssub.s32 %s19, 1
        %s332 = sand.u32 %s46, 1
        %s333 = scalar_lea.sflag [#allocation3], %s332
        %s334 = sand.u32 %s46, 1
        %s335 = smul.addr %s334, 128
        %s336 = scalar_lea.vmem [#allocation2], %s335
        // Predicated region
        $region45: #{transformer_forward.3} parent=43 // pred_check
          %p337 = pneg %p59
        $region46: #{transformer_forward.3} parent=43 // pred_check_branch
          %339 = sbr.rel (%p337) target = $region48
        $region47: #{transformer_forward.3} parent=43 // pred_region
          %340 = dma.done %s333, 2048
        $region48: #{transformer_forward.3} parent=43 // pred_fallthru
          _
        // Predicated region
        $region49: #{transformer_forward.3} parent=43 // pred_check
          %p341 = pneg %p122
        $region50: #{transformer_forward.3} parent=43 // pred_check_branch
          %343 = sbr.rel (%p341) target = $region52
        $region51: #{transformer_forward.3} parent=43 // pred_region
          %344 = dma.done [#allocation5], 3072
        $region52: #{transformer_forward.3} parent=43 // pred_fallthru
          _
        // Predicated region
        $region53: #{transformer_forward.3} parent=43 // pred_check
          %p345 = pneg %p143
        $region54: #{transformer_forward.3} parent=43 // pred_check_branch
          %347 = sbr.rel (%p345) target = $region56
        $region55: #{transformer_forward.3} parent=43 // pred_region
          %348 = dma.done [#allocation5], 3072
        $region56: #{transformer_forward.3} parent=43 // pred_fallthru
          _
        %s349 = sand.u32 %s46, 1
        %s350 = scalar_lea.sflag [#allocation3], %s349
        %s351 = sand.u32 %s46, 1
        %s352 = smul.addr %s351, 128
        %s353 = scalar_lea.vmem [#allocation2], %s352
        %p354 = pneg %p59
        %p355 = pneg %p56
        %p356 = pneg %p80
        %p357 = pneg %p77
        %p358 = pneg %p101
        %p359 = pneg %p98
        %p360 = pneg %p122
        %p361 = pneg %p119
        %p362 = pneg %p143
        %p363 = pneg %p140
        %p364 = pneg %p164
        %p365 = pneg %p161
        %p366 = pneg %p192
        %p367 = pneg %p189
        %s368 = smul.u32 16, %s29
        %p369 = scmp.lt.s32.totalorder %s28, 1
        %s370 = scalar_select %p369, %s28, 1
        %p371 = scmp.lt.s32.totalorder %s368, 15
        %s372 = scalar_select %p371, %s368, 15
        %s373 = smul.addr %s370, 16
        %s374 = sadd.s32 %s372, %s373
        %s375 = smul.addr %s374, 4
        %s376 = scalar_lea.vmem %s6, %s375
        %p377 = pneg %p220
        %p378 = pneg %p217
        %s379 = smul.u32 16, %s29
        %p380 = scmp.lt.s32.totalorder %s28, 1
        %s381 = scalar_select %p380, %s28, 1
        %p382 = scmp.lt.s32.totalorder %s379, 15
        %s383 = scalar_select %p382, %s379, 15
        %s384 = smul.addr %s381, 16
        %s385 = sadd.s32 %s383, %s384
        %s386 = smul.addr %s385, 4
        %s387 = scalar_lea.vmem %s7, %s386
        %p388 = pneg %p248
        %p389 = pneg %p245
        %s390 = smul.u32 16, %s29
        %p391 = scmp.lt.s32.totalorder %s28, 1
        %s392 = scalar_select %p391, %s28, 1
        %p393 = scmp.lt.s32.totalorder %s390, 15
        %s394 = scalar_select %p393, %s390, 15
        %s395 = smul.addr %s392, 16
        %s396 = sadd.s32 %s394, %s395
        %s397 = smul.addr %s396, 4
        %s398 = scalar_lea.vmem %s8, %s397
        %s399 = smul.u32 16, %s29
        %s400 = smul.u32 16, %s29
        %p401 = scmp.lt.s32.totalorder %s28, 1
        %s402 = scalar_select %p401, %s28, 1
        %p403 = scmp.lt.s32.totalorder %s400, 15
        %s404 = scalar_select %p403, %s400, 15
        %s405 = smul.addr %s402, 16
        %s406 = sadd.s32 %s404, %s405
        %s407 = smul.addr %s406, 4
        %s408 = scalar_lea.vmem %s6, %s407
        %s409 = smul.u32 16, %s29
        %s410 = smul.u32 16, %s29
        %p411 = scmp.lt.s32.totalorder %s28, 1
        %s412 = scalar_select %p411, %s28, 1
        %p413 = scmp.lt.s32.totalorder %s410, 15
        %s414 = scalar_select %p413, %s410, 15
        %s415 = smul.addr %s412, 16
        %s416 = sadd.s32 %s414, %s415
        %s417 = smul.addr %s416, 4
        %s418 = scalar_lea.vmem %s7, %s417
        %s419 = smul.u32 16, %s29
        %s420 = smul.u32 16, %s29
        %p421 = scmp.lt.s32.totalorder %s28, 1
        %s422 = scalar_select %p421, %s28, 1
        %p423 = scmp.lt.s32.totalorder %s420, 15
        %s424 = scalar_select %p423, %s420, 15
        %s425 = smul.addr %s422, 16
        %s426 = sadd.s32 %s424, %s425
        %s427 = smul.addr %s426, 4
        %s428 = scalar_lea.vmem %s8, %s427
        %s429 = smul.u32 16, %s29
        %v431 = vld [vmem:[%s336] sm:$0xff]
        %v432 = vld [vmem:[%s336 + $0x8] sm:$0xff]
        %v433 = vld [vmem:[%s336 + $0x10] sm:$0xff]
        %v434 = vld [vmem:[%s336 + $0x18] sm:$0xff]
        %v435 = vld [vmem:[%s336 + $0x20] sm:$0xff]
        %v436 = vld [vmem:[%s336 + $0x28] sm:$0xff]
        %v437 = vld [vmem:[%s336 + $0x30] sm:$0xff]
        %v438 = vld [vmem:[%s336 + $0x38] sm:$0xff]
        %v439 = vld [vmem:[%s336 + $0x40] sm:$0xff]
        %v440 = vld [vmem:[%s336 + $0x48] sm:$0xff]
        %v441 = vld [vmem:[%s336 + $0x50] sm:$0xff]
        %v442 = vld [vmem:[%s336 + $0x58] sm:$0xff]
        %v443 = vld [vmem:[%s336 + $0x60] sm:$0xff]
        %v444 = vld [vmem:[%s336 + $0x68] sm:$0xff]
        %v445 = vld [vmem:[%s336 + $0x70] sm:$0xff]
        %v446 = vld [vmem:[%s336 + $0x78] sm:$0xff]
        %v447 = vld [vmem:[%s1] sm:$0x1]
        %v448 = vmul.f32 %v431, %v431
        %v449 = vmul.f32 %v432, %v432
        %v450 = vmul.f32 %v433, %v433
        %v451 = vmul.f32 %v434, %v434
        %v452 = vmul.f32 %v435, %v435
        %v453 = vmul.f32 %v436, %v436
        %v454 = vmul.f32 %v437, %v437
        %v455 = vmul.f32 %v438, %v438
        %v456 = vmul.f32 %v439, %v439
        %v457 = vmul.f32 %v440, %v440
        %v458 = vmul.f32 %v441, %v441
        %v459 = vmul.f32 %v442, %v442
        %v460 = vmul.f32 %v443, %v443
        %v461 = vmul.f32 %v444, %v444
        %v462 = vmul.f32 %v445, %v445
        %v463 = vmul.f32 %v446, %v446
        %464 = vadd.xlane.f32.xlu0 %v448
        %v465 = vpop.xlane.xlu0 %464
        %466 = vadd.xlane.f32.xlu0 %v449
        %v467 = vpop.xlane.xlu0 %466
        %468 = vadd.xlane.f32.xlu0 %v450
        %v469 = vpop.xlane.xlu0 %468
        %470 = vadd.xlane.f32.xlu0 %v451
        %v471 = vpop.xlane.xlu0 %470
        %472 = vadd.xlane.f32.xlu0 %v452
        %v473 = vpop.xlane.xlu0 %472
        %474 = vadd.xlane.f32.xlu0 %v453
        %v475 = vpop.xlane.xlu0 %474
        %476 = vadd.xlane.f32.xlu0 %v454
        %v477 = vpop.xlane.xlu0 %476
        %478 = vadd.xlane.f32.xlu0 %v455
        %v479 = vpop.xlane.xlu0 %478
        %480 = vadd.xlane.f32.xlu0 %v456
        %v481 = vpop.xlane.xlu0 %480
        %482 = vadd.xlane.f32.xlu0 %v457
        %v483 = vpop.xlane.xlu0 %482
        %484 = vadd.xlane.f32.xlu0 %v458
        %v485 = vpop.xlane.xlu0 %484
        %486 = vadd.xlane.f32.xlu0 %v459
        %v487 = vpop.xlane.xlu0 %486
        %488 = vadd.xlane.f32.xlu0 %v460
        %v489 = vpop.xlane.xlu0 %488
        %490 = vadd.xlane.f32.xlu0 %v461
        %v491 = vpop.xlane.xlu0 %490
        %492 = vadd.xlane.f32.xlu0 %v462
        %v493 = vpop.xlane.xlu0 %492
        %494 = vadd.xlane.f32.xlu0 %v463
        %v495 = vpop.xlane.xlu0 %494
        %v496 = vrcp.pop 128.0
        %v497 = vmul.f32 %v465, %v496
        %v498 = vmul.f32 %v467, %v496
        %v499 = vmul.f32 %v469, %v496
        %v500 = vmul.f32 %v471, %v496
        %v501 = vmul.f32 %v473, %v496
        %v502 = vmul.f32 %v475, %v496
        %v503 = vmul.f32 %v477, %v496
        %v504 = vmul.f32 %v479, %v496
        %v505 = vmul.f32 %v481, %v496
        %v506 = vmul.f32 %v483, %v496
        %v507 = vmul.f32 %v485, %v496
        %v508 = vmul.f32 %v487, %v496
        %v509 = vmul.f32 %v489, %v496
        %v510 = vmul.f32 %v491, %v496
        %v511 = vmul.f32 %v493, %v496
        %v512 = vmul.f32 %v495, %v496
        %v513 = vadd.f32 %v497, 1e-06
        %v514 = vadd.f32 %v498, 1e-06
        %v515 = vadd.f32 %v499, 1e-06
        %v516 = vadd.f32 %v500, 1e-06
        %v517 = vadd.f32 %v501, 1e-06
        %v518 = vadd.f32 %v502, 1e-06
        %v519 = vadd.f32 %v503, 1e-06
        %v520 = vadd.f32 %v504, 1e-06
        %v521 = vadd.f32 %v505, 1e-06
        %v522 = vadd.f32 %v506, 1e-06
        %v523 = vadd.f32 %v507, 1e-06
        %v524 = vadd.f32 %v508, 1e-06
        %v525 = vadd.f32 %v509, 1e-06
        %v526 = vadd.f32 %v510, 1e-06
        %v527 = vadd.f32 %v511, 1e-06
        %v528 = vadd.f32 %v512, 1e-06
        %v529 = vrsqrt.pop %v513
        %v530 = vrsqrt.pop %v514
        %v531 = vrsqrt.pop %v515
        %v532 = vrsqrt.pop %v516
        %v533 = vrsqrt.pop %v517
        %v534 = vrsqrt.pop %v518
        %v535 = vrsqrt.pop %v519
        %v536 = vrsqrt.pop %v520
        %v537 = vrsqrt.pop %v521
        %v538 = vrsqrt.pop %v522
        %v539 = vrsqrt.pop %v523
        %v540 = vrsqrt.pop %v524
        %v541 = vrsqrt.pop %v525
        %v542 = vrsqrt.pop %v526
        %v543 = vrsqrt.pop %v527
        %v544 = vrsqrt.pop %v528
        %v545 = vmul.f32 %v431, %v529
        %v546 = vmul.f32 %v432, %v530
        %v547 = vmul.f32 %v433, %v531
        %v548 = vmul.f32 %v434, %v532
        %v549 = vmul.f32 %v435, %v533
        %v550 = vmul.f32 %v436, %v534
        %v551 = vmul.f32 %v437, %v535
        %v552 = vmul.f32 %v438, %v536
        %v553 = vmul.f32 %v439, %v537
        %v554 = vmul.f32 %v440, %v538
        %v555 = vmul.f32 %v441, %v539
        %v556 = vmul.f32 %v442, %v540
        %v557 = vmul.f32 %v443, %v541
        %v558 = vmul.f32 %v444, %v542
        %v559 = vmul.f32 %v445, %v543
        %v560 = vmul.f32 %v446, %v544
        %v562 = vlaneseq
        %v563 = vshrl.u32 %v562, 7
        %v564 = vsub.s32 0, %v563
        %v565 = vrot.slane %v447, %v564
        %v567 = vmul.f32 %v545, %v565
        %v568 = vmul.f32 %v546, %v565
        %v569 = vmul.f32 %v547, %v565
        %v570 = vmul.f32 %v548, %v565
        %v571 = vmul.f32 %v549, %v565
        %v572 = vmul.f32 %v550, %v565
        %v573 = vmul.f32 %v551, %v565
        %v574 = vmul.f32 %v552, %v565
        %v575 = vmul.f32 %v553, %v565
        %v576 = vmul.f32 %v554, %v565
        %v577 = vmul.f32 %v555, %v565
        %v578 = vmul.f32 %v556, %v565
        %v579 = vmul.f32 %v557, %v565
        %v580 = vmul.f32 %v558, %v565
        %v581 = vmul.f32 %v559, %v565
        %v582 = vmul.f32 %v560, %v565
        %v583 = vpack.c.bf16 %v568, %v567
        %v584 = vpack.c.bf16 %v570, %v569
        %v585 = vpack.c.bf16 %v572, %v571
        %v586 = vpack.c.bf16 %v574, %v573
        %v587 = vpack.c.bf16 %v576, %v575
        %v588 = vpack.c.bf16 %v578, %v577
        %v589 = vpack.c.bf16 %v580, %v579
        %v590 = vpack.c.bf16 %v582, %v581
        %v591 = vld [vmem:[#allocation4] sm:$0xff]
        %v592 = vld [vmem:[#allocation4 + $0x8] sm:$0xf]
        %v593 = vld [vmem:[#allocation4 + $0xc] sm:$0xff]
        %v594 = vld [vmem:[#allocation4 + $0x14] sm:$0xf]
        %v595 = vld [vmem:[#allocation4 + $0x18] sm:$0xff]
        %v596 = vld [vmem:[#allocation4 + $0x20] sm:$0xf]
        %v597 = vld [vmem:[#allocation4 + $0x24] sm:$0xff]
        %v598 = vld [vmem:[#allocation4 + $0x2c] sm:$0xf]
        %v599 = vld [vmem:[#allocation4 + $0x30] sm:$0xff]
        %v600 = vld [vmem:[#allocation4 + $0x38] sm:$0xf]
        %v601 = vld [vmem:[#allocation4 + $0x3c] sm:$0xff]
        %v602 = vld [vmem:[#allocation4 + $0x44] sm:$0xf]
        %v603 = vld [vmem:[#allocation4 + $0x48] sm:$0xff]
        %v604 = vld [vmem:[#allocation4 + $0x50] sm:$0xf]
        %v605 = vld [vmem:[#allocation4 + $0x54] sm:$0xff]
        %v606 = vld [vmem:[#allocation4 + $0x5c] sm:$0xf]
        %v607 = vld [vmem:[#allocation4 + $0x60] sm:$0xff]
        %v608 = vld [vmem:[#allocation4 + $0x68] sm:$0xf]
        %v609 = vld [vmem:[#allocation4 + $0x6c] sm:$0xff]
        %v610 = vld [vmem:[#allocation4 + $0x74] sm:$0xf]
        %v611 = vld [vmem:[#allocation4 + $0x78] sm:$0xff]
        %v612 = vld [vmem:[#allocation4 + $0x80] sm:$0xf]
        %v613 = vld [vmem:[#allocation4 + $0x84] sm:$0xff]
        %v614 = vld [vmem:[#allocation4 + $0x8c] sm:$0xf]
        %v615 = vld [vmem:[#allocation4 + $0x90] sm:$0xff]
        %v616 = vld [vmem:[#allocation4 + $0x98] sm:$0xf]
        %v617 = vld [vmem:[#allocation4 + $0x9c] sm:$0xff]
        %v618 = vld [vmem:[#allocation4 + $0xa4] sm:$0xf]
        %v619 = vld [vmem:[#allocation4 + $0xa8] sm:$0xff]
        %v620 = vld [vmem:[#allocation4 + $0xb0] sm:$0xf]
        %v621 = vld [vmem:[#allocation4 + $0xb4] sm:$0xff]
        %v622 = vld [vmem:[#allocation4 + $0xbc] sm:$0xf]
        %v655 = vunpack.c.l.b16 %v591
        %v656 = vunpack.c.h.b16 %v591
        %v657 = vunpack.c.l.b16 %v592
        %v658 = vunpack.c.l.b16 %v593
        %v659 = vunpack.c.h.b16 %v593
        %v660 = vunpack.c.l.b16 %v594
        %v661 = vunpack.c.l.b16 %v595
        %v662 = vunpack.c.h.b16 %v595
        %v663 = vunpack.c.l.b16 %v596
        %v664 = vunpack.c.l.b16 %v597
        %v665 = vunpack.c.h.b16 %v597
        %v666 = vunpack.c.l.b16 %v598
        %v667 = vunpack.c.l.b16 %v599
        %v668 = vunpack.c.h.b16 %v599
        %v669 = vunpack.c.l.b16 %v600
        %v670 = vunpack.c.l.b16 %v601
        %v671 = vunpack.c.h.b16 %v601
        %v672 = vunpack.c.l.b16 %v602
        %v673 = vunpack.c.l.b16 %v603
        %v674 = vunpack.c.h.b16 %v603
        %v675 = vunpack.c.l.b16 %v604
        %v676 = vunpack.c.l.b16 %v605
        %v677 = vunpack.c.h.b16 %v605
        %v678 = vunpack.c.l.b16 %v606
        %v679 = vunpack.c.l.b16 %v607
        %v680 = vunpack.c.h.b16 %v607
        %v681 = vunpack.c.l.b16 %v608
        %v682 = vunpack.c.l.b16 %v609
        %v683 = vunpack.c.h.b16 %v609
        %v684 = vunpack.c.l.b16 %v610
        %v685 = vunpack.c.l.b16 %v611
        %v686 = vunpack.c.h.b16 %v611
        %v687 = vunpack.c.l.b16 %v612
        %v688 = vunpack.c.l.b16 %v613
        %v689 = vunpack.c.h.b16 %v613
        %v690 = vunpack.c.l.b16 %v614
        %v691 = vunpack.c.l.b16 %v615
        %v692 = vunpack.c.h.b16 %v615
        %v693 = vunpack.c.l.b16 %v616
        %v694 = vunpack.c.l.b16 %v617
        %v695 = vunpack.c.h.b16 %v617
        %v696 = vunpack.c.l.b16 %v618
        %v697 = vunpack.c.l.b16 %v619
        %v698 = vunpack.c.h.b16 %v619
        %v699 = vunpack.c.l.b16 %v620
        %v700 = vunpack.c.l.b16 %v621
        %v701 = vunpack.c.h.b16 %v621
        %v702 = vunpack.c.l.b16 %v622
        %v703 = vpack.c.b16 %v658, %v655
        %v704 = vpack.c.b16 %v659, %v656
        %v705 = vpack.c.b16 %v660, %v657
        %v706 = vpack.c.b16 %v664, %v661
        %v707 = vpack.c.b16 %v665, %v662
        %v708 = vpack.c.b16 %v666, %v663
        %v709 = vpack.c.b16 %v670, %v667
        %v710 = vpack.c.b16 %v671, %v668
        %v711 = vpack.c.b16 %v672, %v669
        %v712 = vpack.c.b16 %v676, %v673
        %v713 = vpack.c.b16 %v677, %v674
        %v714 = vpack.c.b16 %v678, %v675
        %v715 = vpack.c.b16 %v682, %v679
        %v716 = vpack.c.b16 %v683, %v680
        %v717 = vpack.c.b16 %v684, %v681
        %v718 = vpack.c.b16 %v688, %v685
        %v719 = vpack.c.b16 %v689, %v686
        %v720 = vpack.c.b16 %v690, %v687
        %v721 = vpack.c.b16 %v694, %v691
        %v722 = vpack.c.b16 %v695, %v692
        %v723 = vpack.c.b16 %v696, %v693
        %v724 = vpack.c.b16 %v700, %v697
        %v725 = vpack.c.b16 %v701, %v698
        %v726 = vpack.c.b16 %v702, %v699
        %751 = vmatprep.subr.bf16.mxu0 %v704
        %752 = vmatpush1.bf16.msra.mxu0 %v703
        %753 = vmatprep.subr.bf16.mxu0 %v707
        %754 = vmatpush1.bf16.msra.mxu0 %v706
        %755 = vmatprep.subr.bf16.mxu0 %v710
        %756 = vmatpush1.bf16.msra.mxu0 %v709
        %757 = vmatprep.subr.bf16.mxu0 %v713
        %758 = vmatpush1.bf16.msra.mxu0 %v712
        %759 = vmatprep.subr.bf16.mxu0 %v716
        %760 = vmatpush1.bf16.msra.mxu0 %v715
        %761 = vmatprep.subr.bf16.mxu0 %v719
        %762 = vmatpush1.bf16.msra.mxu0 %v718
        %763 = vmatprep.subr.bf16.mxu0 %v722
        %764 = vmatpush1.bf16.msra.mxu0 %v721
        %765 = vmatprep.subr.bf16.mxu0 %v725
        %766 = vmatpush1.bf16.msra.mxu0 %v724
        %767 = vmatprep.subr.bf16.mxu0 0
        %768 = vmatpush1.bf16.msra.mxu0 0
        %769 = vmatprep.subr.bf16.mxu0 0
        %770 = vmatpush1.bf16.msra.mxu0 0
        %771 = vmatprep.subr.bf16.mxu0 0
        %772 = vmatpush1.bf16.msra.mxu0 0
        %773 = vmatprep.subr.bf16.mxu0 0
        %774 = vmatpush1.bf16.msra.mxu0 0
        %775 = vmatprep.subr.bf16.mxu0 0
        %776 = vmatpush1.bf16.msra.mxu0 0
        %777 = vmatprep.subr.bf16.mxu0 0
        %778 = vmatpush1.bf16.msra.mxu0 0
        %779 = vmatprep.subr.bf16.mxu0 0
        %780 = vmatpush1.bf16.msra.mxu0 0
        %781 = vmatprep.subr.bf16.mxu0 0
        %782 = vmatpush1.bf16.msra.mxu0 0
        %783 = vmatprep.mubr.bf16.mxu0 0
        %784 = vmatmul.mubr.bf16.gmra.mrb[0].mxu0 %v583
        %v785 = vpop.f32.mrb[0].mxu0
        %v786 = vadd.f32 0.0, %v785
        %v787 = vpop.f32.mrb[0].mxu0
        %v788 = vadd.f32 0.0, %v787
        %v789 = vpop.f32.mrb[0].mxu0
        %v790 = vadd.f32 0.0, %v789
        %v791 = vpop.f32.mrb[0].mxu0
        %v792 = vadd.f32 0.0, %v791
        %793 = vmatprep.mubr.bf16.mxu0 0
        %794 = vmatmul.mubr.bf16.gmra.mrb[0].mxu0 %v584
        %v795 = vpop.f32.mrb[0].mxu0
        %v796 = vadd.f32 0.0, %v795
        %v797 = vpop.f32.mrb[0].mxu0
        %v798 = vadd.f32 0.0, %v797
        %v799 = vpop.f32.mrb[0].mxu0
        %v800 = vadd.f32 0.0, %v799
        %v801 = vpop.f32.mrb[0].mxu0
        %v802 = vadd.f32 0.0, %v801
        %803 = vmatprep.mubr.bf16.mxu0 0
        %804 = vmatmul.mubr.bf16.gmra.mrb[0].mxu0 %v585
        %v805 = vpop.f32.mrb[0].mxu0
        %v806 = vadd.f32 0.0, %v805
        %v807 = vpop.f32.mrb[0].mxu0
        %v808 = vadd.f32 0.0, %v807
        %v809 = vpop.f32.mrb[0].mxu0
        %v810 = vadd.f32 0.0, %v809
        %v811 = vpop.f32.mrb[0].mxu0
        %v812 = vadd.f32 0.0, %v811
        %813 = vmatprep.mubr.bf16.mxu0 0
        %814 = vmatmul.mubr.bf16.gmra.mrb[0].mxu0 %v586
        %v815 = vpop.f32.mrb[0].mxu0
        %v816 = vadd.f32 0.0, %v815
        %v817 = vpop.f32.mrb[0].mxu0
        %v818 = vadd.f32 0.0, %v817
        %v819 = vpop.f32.mrb[0].mxu0
        %v820 = vadd.f32 0.0, %v819
        %v821 = vpop.f32.mrb[0].mxu0
        %v822 = vadd.f32 0.0, %v821
        %823 = vmatprep.mubr.bf16.mxu0 0
        %824 = vmatmul.mubr.bf16.gmra.mrb[0].mxu0 %v587
        %v825 = vpop.f32.mrb[0].mxu0
        %v826 = vadd.f32 0.0, %v825
        %v827 = vpop.f32.mrb[0].mxu0
        %v828 = vadd.f32 0.0, %v827
        %v829 = vpop.f32.mrb[0].mxu0
        %v830 = vadd.f32 0.0, %v829
        %v831 = vpop.f32.mrb[0].mxu0
        %v832 = vadd.f32 0.0, %v831
        %833 = vmatprep.mubr.bf16.mxu0 0
        %834 = vmatmul.mubr.bf16.gmra.mrb[0].mxu0 %v588
        %v835 = vpop.f32.mrb[0].mxu0
        %v836 = vadd.f32 0.0, %v835
        %v837 = vpop.f32.mrb[0].mxu0
        %v838 = vadd.f32 0.0, %v837
        %v839 = vpop.f32.mrb[0].mxu0
        %v840 = vadd.f32 0.0, %v839
        %v841 = vpop.f32.mrb[0].mxu0
        %v842 = vadd.f32 0.0, %v841
        %843 = vmatprep.mubr.bf16.mxu0 0
        %844 = vmatmul.mubr.bf16.gmra.mrb[0].mxu0 %v589
        %v845 = vpop.f32.mrb[0].mxu0
        %v846 = vadd.f32 0.0, %v845
        %v847 = vpop.f32.mrb[0].mxu0
        %v848 = vadd.f32 0.0, %v847
        %v849 = vpop.f32.mrb[0].mxu0
        %v850 = vadd.f32 0.0, %v849
        %v851 = vpop.f32.mrb[0].mxu0
        %v852 = vadd.f32 0.0, %v851
        %853 = vmatprep.mubr.bf16.mxu0 0
        %854 = vmatmul.mubr.bf16.gmra.mrb[0].mxu0 %v590
        %v855 = vpop.f32.mrb[0].mxu0
        %v856 = vadd.f32 0.0, %v855
        %v857 = vpop.f32.mrb[0].mxu0
        %v858 = vadd.f32 0.0, %v857
        %v859 = vpop.f32.mrb[0].mxu0
        %v860 = vadd.f32 0.0, %v859
        %v861 = vpop.f32.mrb[0].mxu0
        %v862 = vadd.f32 0.0, %v861
        %863 = vdwg.mxu0
        %864 = vmatprep.subr.bf16.mxu0 0
        %865 = vmatpush1.bf16.msra.mxu0 %v705
        %866 = vmatprep.subr.bf16.mxu0 0
        %867 = vmatpush1.bf16.msra.mxu0 %v708
        %868 = vmatprep.subr.bf16.mxu0 0
        %869 = vmatpush1.bf16.msra.mxu0 %v711
        %870 = vmatprep.subr.bf16.mxu0 0
        %871 = vmatpush1.bf16.msra.mxu0 %v714
        %872 = vmatprep.subr.bf16.mxu0 0
        %873 = vmatpush1.bf16.msra.mxu0 %v717
        %874 = vmatprep.subr.bf16.mxu0 0
        %875 = vmatpush1.bf16.msra.mxu0 %v720
        %876 = vmatprep.subr.bf16.mxu0 0
        %877 = vmatpush1.bf16.msra.mxu0 %v723
        %878 = vmatprep.subr.bf16.mxu0 0
        %879 = vmatpush1.bf16.msra.mxu0 %v726
        %880 = vmatprep.subr.bf16.mxu0 0
        %881 = vmatpush1.bf16.msra.mxu0 0
        %882 = vmatprep.subr.bf16.mxu0 0
        %883 = vmatpush1.bf16.msra.mxu0 0
        %884 = vmatprep.subr.bf16.mxu0 0
        %885 = vmatpush1.bf16.msra.mxu0 0
        %886 = vmatprep.subr.bf16.mxu0 0
        %887 = vmatpush1.bf16.msra.mxu0 0
        %888 = vmatprep.subr.bf16.mxu0 0
        %889 = vmatpush1.bf16.msra.mxu0 0
        %890 = vmatprep.subr.bf16.mxu0 0
        %891 = vmatpush1.bf16.msra.mxu0 0
        %892 = vmatprep.subr.bf16.mxu0 0
        %893 = vmatpush1.bf16.msra.mxu0 0
        %894 = vmatprep.subr.bf16.mxu0 0
        %895 = vmatpush1.bf16.msra.mxu0 0
        %896 = vmatprep.mubr.bf16.mxu0 0
        %897 = vmatmul.mubr.bf16.gmra.mrb[0].mxu0 %v583
        %v898 = vpop.f32.mrb[0].mxu0
        %v899 = vadd.f32 0.0, %v898
        %v900 = vpop.f32.mrb[0].mxu0
        %v901 = vpop.f32.mrb[0].mxu0
        %v902 = vadd.f32 0.0, %v901
        %v903 = vpop.f32.mrb[0].mxu0
        %904 = vmatprep.mubr.bf16.mxu0 0
        %905 = vmatmul.mubr.bf16.gmra.mrb[0].mxu0 %v584
        %v906 = vpop.f32.mrb[0].mxu0
        %v907 = vadd.f32 0.0, %v906
        %v908 = vpop.f32.mrb[0].mxu0
        %v909 = vpop.f32.mrb[0].mxu0
        %v910 = vadd.f32 0.0, %v909
        %v911 = vpop.f32.mrb[0].mxu0
        %912 = vmatprep.mubr.bf16.mxu0 0
        %913 = vmatmul.mubr.bf16.gmra.mrb[0].mxu0 %v585
        %v914 = vpop.f32.mrb[0].mxu0
        %v915 = vadd.f32 0.0, %v914
        %v916 = vpop.f32.mrb[0].mxu0
        %v917 = vpop.f32.mrb[0].mxu0
        %v918 = vadd.f32 0.0, %v917
        %v919 = vpop.f32.mrb[0].mxu0
        %920 = vmatprep.mubr.bf16.mxu0 0
        %921 = vmatmul.mubr.bf16.gmra.mrb[0].mxu0 %v586
        %v922 = vpop.f32.mrb[0].mxu0
        %v923 = vadd.f32 0.0, %v922
        %v924 = vpop.f32.mrb[0].mxu0
        %v925 = vpop.f32.mrb[0].mxu0
        %v926 = vadd.f32 0.0, %v925
        %v927 = vpop.f32.mrb[0].mxu0
        %928 = vmatprep.mubr.bf16.mxu0 0
        %929 = vmatmul.mubr.bf16.gmra.mrb[0].mxu0 %v587
        %v930 = vpop.f32.mrb[0].mxu0
        %v931 = vadd.f32 0.0, %v930
        %v932 = vpop.f32.mrb[0].mxu0
        %v933 = vpop.f32.mrb[0].mxu0
        %v934 = vadd.f32 0.0, %v933
        %v935 = vpop.f32.mrb[0].mxu0
        %936 = vmatprep.mubr.bf16.mxu0 0
        %937 = vmatmul.mubr.bf16.gmra.mrb[0].mxu0 %v588
        %v938 = vpop.f32.mrb[0].mxu0
        %v939 = vadd.f32 0.0, %v938
        %v940 = vpop.f32.mrb[0].mxu0
        %v941 = vpop.f32.mrb[0].mxu0
        %v942 = vadd.f32 0.0, %v941
        %v943 = vpop.f32.mrb[0].mxu0
        %944 = vmatprep.mubr.bf16.mxu0 0
        %945 = vmatmul.mubr.bf16.gmra.mrb[0].mxu0 %v589
        %v946 = vpop.f32.mrb[0].mxu0
        %v947 = vadd.f32 0.0, %v946
        %v948 = vpop.f32.mrb[0].mxu0
        %v949 = vpop.f32.mrb[0].mxu0
        %v950 = vadd.f32 0.0, %v949
        %v951 = vpop.f32.mrb[0].mxu0
        %952 = vmatprep.mubr.bf16.mxu0 0
        %953 = vmatmul.mubr.bf16.gmra.mrb[0].mxu0 %v590
        %v954 = vpop.f32.mrb[0].mxu0
        %v955 = vadd.f32 0.0, %v954
        %v956 = vpop.f32.mrb[0].mxu0
        %v957 = vpop.f32.mrb[0].mxu0
        %v958 = vadd.f32 0.0, %v957
        %v959 = vpop.f32.mrb[0].mxu0
        %960 = vdwg.mxu0
        %v961 = vld [vmem:[%s2] sm:$0x3]
        %v962 = vmul.f32 %v786, %v786
        %v963 = vmul.f32 %v788, %v788
        %v964 = vmul.f32 %v790, %v790
        %v965 = vmul.f32 %v792, %v792
        %v966 = vmul.f32 %v796, %v796
        %v967 = vmul.f32 %v798, %v798
        %v968 = vmul.f32 %v800, %v800
        %v969 = vmul.f32 %v802, %v802
        %v970 = vmul.f32 %v806, %v806
        %v971 = vmul.f32 %v808, %v808
        %v972 = vmul.f32 %v810, %v810
        %v973 = vmul.f32 %v812, %v812
        %v974 = vmul.f32 %v816, %v816
        %v975 = vmul.f32 %v818, %v818
        %v976 = vmul.f32 %v820, %v820
        %v977 = vmul.f32 %v822, %v822
        %v978 = vmul.f32 %v826, %v826
        %v979 = vmul.f32 %v828, %v828
        %v980 = vmul.f32 %v830, %v830
        %v981 = vmul.f32 %v832, %v832
        %v982 = vmul.f32 %v836, %v836
        %v983 = vmul.f32 %v838, %v838
        %v984 = vmul.f32 %v840, %v840
        %v985 = vmul.f32 %v842, %v842
        %v986 = vmul.f32 %v846, %v846
        %v987 = vmul.f32 %v848, %v848
        %v988 = vmul.f32 %v850, %v850
        %v989 = vmul.f32 %v852, %v852
        %v990 = vmul.f32 %v856, %v856
        %v991 = vmul.f32 %v858, %v858
        %v992 = vmul.f32 %v860, %v860
        %v993 = vmul.f32 %v862, %v862
        %v994 = vadd.f32 %v962, %v963
        %995 = vadd.xlane.f32.xlu0 %v994
        %v996 = vpop.xlane.xlu0 %995
        %v997 = vadd.f32 %v964, %v965
        %998 = vadd.xlane.f32.xlu0 %v997
        %v999 = vpop.xlane.xlu0 %998
        %v1000 = vadd.f32 %v966, %v967
        %1001 = vadd.xlane.f32.xlu0 %v1000
        %v1002 = vpop.xlane.xlu0 %1001
        %v1003 = vadd.f32 %v968, %v969
        %1004 = vadd.xlane.f32.xlu0 %v1003
        %v1005 = vpop.xlane.xlu0 %1004
        %v1006 = vadd.f32 %v970, %v971
        %1007 = vadd.xlane.f32.xlu0 %v1006
        %v1008 = vpop.xlane.xlu0 %1007
        %v1009 = vadd.f32 %v972, %v973
        %1010 = vadd.xlane.f32.xlu0 %v1009
        %v1011 = vpop.xlane.xlu0 %1010
        %v1012 = vadd.f32 %v974, %v975
        %1013 = vadd.xlane.f32.xlu0 %v1012
        %v1014 = vpop.xlane.xlu0 %1013
        %v1015 = vadd.f32 %v976, %v977
        %1016 = vadd.xlane.f32.xlu0 %v1015
        %v1017 = vpop.xlane.xlu0 %1016
        %v1018 = vadd.f32 %v978, %v979
        %1019 = vadd.xlane.f32.xlu0 %v1018
        %v1020 = vpop.xlane.xlu0 %1019
        %v1021 = vadd.f32 %v980, %v981
        %1022 = vadd.xlane.f32.xlu0 %v1021
        %v1023 = vpop.xlane.xlu0 %1022
        %v1024 = vadd.f32 %v982, %v983
        %1025 = vadd.xlane.f32.xlu0 %v1024
        %v1026 = vpop.xlane.xlu0 %1025
        %v1027 = vadd.f32 %v984, %v985
        %1028 = vadd.xlane.f32.xlu0 %v1027
        %v1029 = vpop.xlane.xlu0 %1028
        %v1030 = vadd.f32 %v986, %v987
        %1031 = vadd.xlane.f32.xlu0 %v1030
        %v1032 = vpop.xlane.xlu0 %1031
        %v1033 = vadd.f32 %v988, %v989
        %1034 = vadd.xlane.f32.xlu0 %v1033
        %v1035 = vpop.xlane.xlu0 %1034
        %v1036 = vadd.f32 %v990, %v991
        %1037 = vadd.xlane.f32.xlu0 %v1036
        %v1038 = vpop.xlane.xlu0 %1037
        %v1039 = vadd.f32 %v992, %v993
        %1040 = vadd.xlane.f32.xlu0 %v1039
        %v1041 = vpop.xlane.xlu0 %1040
        %v1042 = vrcp.pop 256.0
        %v1043 = vmul.f32 %v996, %v1042
        %v1044 = vmul.f32 %v999, %v1042
        %v1045 = vmul.f32 %v1002, %v1042
        %v1046 = vmul.f32 %v1005, %v1042
        %v1047 = vmul.f32 %v1008, %v1042
        %v1048 = vmul.f32 %v1011, %v1042
        %v1049 = vmul.f32 %v1014, %v1042
        %v1050 = vmul.f32 %v1017, %v1042
        %v1051 = vmul.f32 %v1020, %v1042
        %v1052 = vmul.f32 %v1023, %v1042
        %v1053 = vmul.f32 %v1026, %v1042
        %v1054 = vmul.f32 %v1029, %v1042
        %v1055 = vmul.f32 %v1032, %v1042
        %v1056 = vmul.f32 %v1035, %v1042
        %v1057 = vmul.f32 %v1038, %v1042
        %v1058 = vmul.f32 %v1041, %v1042
        %v1059 = vadd.f32 %v1043, 1e-06
        %v1060 = vadd.f32 %v1044, 1e-06
        %v1061 = vadd.f32 %v1045, 1e-06
        %v1062 = vadd.f32 %v1046, 1e-06
        %v1063 = vadd.f32 %v1047, 1e-06
        %v1064 = vadd.f32 %v1048, 1e-06
        %v1065 = vadd.f32 %v1049, 1e-06
        %v1066 = vadd.f32 %v1050, 1e-06
        %v1067 = vadd.f32 %v1051, 1e-06
        %v1068 = vadd.f32 %v1052, 1e-06
        %v1069 = vadd.f32 %v1053, 1e-06
        %v1070 = vadd.f32 %v1054, 1e-06
        %v1071 = vadd.f32 %v1055, 1e-06
        %v1072 = vadd.f32 %v1056, 1e-06
        %v1073 = vadd.f32 %v1057, 1e-06
        %v1074 = vadd.f32 %v1058, 1e-06
        %v1075 = vrsqrt.pop %v1059
        %v1076 = vrsqrt.pop %v1060
        %v1077 = vrsqrt.pop %v1061
        %v1078 = vrsqrt.pop %v1062
        %v1079 = vrsqrt.pop %v1063
        %v1080 = vrsqrt.pop %v1064
        %v1081 = vrsqrt.pop %v1065
        %v1082 = vrsqrt.pop %v1066
        %v1083 = vrsqrt.pop %v1067
        %v1084 = vrsqrt.pop %v1068
        %v1085 = vrsqrt.pop %v1069
        %v1086 = vrsqrt.pop %v1070
        %v1087 = vrsqrt.pop %v1071
        %v1088 = vrsqrt.pop %v1072
        %v1089 = vrsqrt.pop %v1073
        %v1090 = vrsqrt.pop %v1074
        %v1091 = vmul.f32 %v786, %v1075
        %v1092 = vmul.f32 %v788, %v1075
        %v1093 = vmul.f32 %v790, %v1076
        %v1094 = vmul.f32 %v792, %v1076
        %v1095 = vmul.f32 %v796, %v1077
        %v1096 = vmul.f32 %v798, %v1077
        %v1097 = vmul.f32 %v800, %v1078
        %v1098 = vmul.f32 %v802, %v1078
        %v1099 = vmul.f32 %v806, %v1079
        %v1100 = vmul.f32 %v808, %v1079
        %v1101 = vmul.f32 %v810, %v1080
        %v1102 = vmul.f32 %v812, %v1080
        %v1103 = vmul.f32 %v816, %v1081
        %v1104 = vmul.f32 %v818, %v1081
        %v1105 = vmul.f32 %v820, %v1082
        %v1106 = vmul.f32 %v822, %v1082
        %v1107 = vmul.f32 %v826, %v1083
        %v1108 = vmul.f32 %v828, %v1083
        %v1109 = vmul.f32 %v830, %v1084
        %v1110 = vmul.f32 %v832, %v1084
        %v1111 = vmul.f32 %v836, %v1085
        %v1112 = vmul.f32 %v838, %v1085
        %v1113 = vmul.f32 %v840, %v1086
        %v1114 = vmul.f32 %v842, %v1086
        %v1115 = vmul.f32 %v846, %v1087
        %v1116 = vmul.f32 %v848, %v1087
        %v1117 = vmul.f32 %v850, %v1088
        %v1118 = vmul.f32 %v852, %v1088
        %v1119 = vmul.f32 %v856, %v1089
        %v1120 = vmul.f32 %v858, %v1089
        %v1121 = vmul.f32 %v860, %v1090
        %v1122 = vmul.f32 %v862, %v1090
        %v1124 = vlaneseq
        %v1125 = vshrl.u32 %v1124, 7
        %v1126 = vsub.s32 0, %v1125
        %v1127 = vrot.slane %v961, %v1126
        %v1128 = vlaneseq
        %v1129 = vshrl.u32 %v1128, 7
        %v1130 = vsub.s32 1, %v1129
        %v1131 = vrot.slane %v961, %v1130
        %v1134 = vmul.f32 %v1091, %v1127
        %v1135 = vmul.f32 %v1092, %v1131
        %v1136 = vmul.f32 %v1093, %v1127
        %v1137 = vmul.f32 %v1094, %v1131
        %v1138 = vmul.f32 %v1095, %v1127
        %v1139 = vmul.f32 %v1096, %v1131
        %v1140 = vmul.f32 %v1097, %v1127
        %v1141 = vmul.f32 %v1098, %v1131
        %v1142 = vmul.f32 %v1099, %v1127
        %v1143 = vmul.f32 %v1100, %v1131
        %v1144 = vmul.f32 %v1101, %v1127
        %v1145 = vmul.f32 %v1102, %v1131
        %v1146 = vmul.f32 %v1103, %v1127
        %v1147 = vmul.f32 %v1104, %v1131
        %v1148 = vmul.f32 %v1105, %v1127
        %v1149 = vmul.f32 %v1106, %v1131
        %v1150 = vmul.f32 %v1107, %v1127
        %v1151 = vmul.f32 %v1108, %v1131
        %v1152 = vmul.f32 %v1109, %v1127
        %v1153 = vmul.f32 %v1110, %v1131
        %v1154 = vmul.f32 %v1111, %v1127
        %v1155 = vmul.f32 %v1112, %v1131
        %v1156 = vmul.f32 %v1113, %v1127
        %v1157 = vmul.f32 %v1114, %v1131
        %v1158 = vmul.f32 %v1115, %v1127
        %v1159 = vmul.f32 %v1116, %v1131
        %v1160 = vmul.f32 %v1117, %v1127
        %v1161 = vmul.f32 %v1118, %v1131
        %v1162 = vmul.f32 %v1119, %v1127
        %v1163 = vmul.f32 %v1120, %v1131
        %v1164 = vmul.f32 %v1121, %v1127
        %v1165 = vmul.f32 %v1122, %v1131
        %v1166 = vld [vmem:[#allocation6] sm:$0xff]
        %v1167 = vld [vmem:[#allocation6 + $0x8] sm:$0xf]
        %v1168 = vld [vmem:[#allocation6 + $0xc] sm:$0xff]
        %v1169 = vld [vmem:[#allocation6 + $0x14] sm:$0xf]
        %v1170 = vld [vmem:[#allocation6 + $0x18] sm:$0xff]
        %v1171 = vld [vmem:[#allocation6 + $0x20] sm:$0xf]
        %v1172 = vld [vmem:[#allocation6 + $0x24] sm:$0xff]
        %v1173 = vld [vmem:[#allocation6 + $0x2c] sm:$0xf]
        %v1174 = vld [vmem:[#allocation6 + $0x30] sm:$0xff]
        %v1175 = vld [vmem:[#allocation6 + $0x38] sm:$0xf]
        %v1176 = vld [vmem:[#allocation6 + $0x3c] sm:$0xff]
        %v1177 = vld [vmem:[#allocation6 + $0x44] sm:$0xf]
        %v1178 = vld [vmem:[#allocation6 + $0x48] sm:$0xff]
        %v1179 = vld [vmem:[#allocation6 + $0x50] sm:$0xf]
        %v1180 = vld [vmem:[#allocation6 + $0x54] sm:$0xff]
        %v1181 = vld [vmem:[#allocation6 + $0x5c] sm:$0xf]
        %v1182 = vld [vmem:[#allocation6 + $0x60] sm:$0xff]
        %v1183 = vld [vmem:[#allocation6 + $0x68] sm:$0xf]
        %v1184 = vld [vmem:[#allocation6 + $0x6c] sm:$0xff]
        %v1185 = vld [vmem:[#allocation6 + $0x74] sm:$0xf]
        %v1186 = vld [vmem:[#allocation6 + $0x78] sm:$0xff]
        %v1187 = vld [vmem:[#allocation6 + $0x80] sm:$0xf]
        %v1188 = vld [vmem:[#allocation6 + $0x84] sm:$0xff]
        %v1189 = vld [vmem:[#allocation6 + $0x8c] sm:$0xf]
        %v1190 = vld [vmem:[#allocation6 + $0x90] sm:$0xff]
        %v1191 = vld [vmem:[#allocation6 + $0x98] sm:$0xf]
        %v1192 = vld [vmem:[#allocation6 + $0x9c] sm:$0xff]
        %v1193 = vld [vmem:[#allocation6 + $0xa4] sm:$0xf]
        %v1194 = vld [vmem:[#allocation6 + $0xa8] sm:$0xff]
        %v1195 = vld [vmem:[#allocation6 + $0xb0] sm:$0xf]
        %v1196 = vld [vmem:[#allocation6 + $0xb4] sm:$0xff]
        %v1197 = vld [vmem:[#allocation6 + $0xbc] sm:$0xf]
        %v1198 = vld [vmem:[%s5] sm:$0x7]
        %v1199 = vpack.c.bf16 %v1136, %v1134
        %v1200 = vpack.c.bf16 %v1140, %v1138
        %v1201 = vpack.c.bf16 %v1144, %v1142
        %v1202 = vpack.c.bf16 %v1148, %v1146
        %v1203 = vpack.c.bf16 %v1152, %v1150
        %v1204 = vpack.c.bf16 %v1156, %v1154
        %v1205 = vpack.c.bf16 %v1160, %v1158
        %v1206 = vpack.c.bf16 %v1164, %v1162
        %v1208 = vlaneseq
        %v1209 = vshrl.u32 %v1208, 7
        %v1210 = vsub.s32 0, %v1209
        %v1211 = vrot.slane %v1198, %v1210
        %v1229 = vunpack.c.l.b16 %v1166
        %v1230 = vunpack.c.l.b16 %v1168
        %v1231 = vunpack.c.l.b16 %v1170
        %v1232 = vunpack.c.l.b16 %v1172
        %v1233 = vunpack.c.l.b16 %v1174
        %v1234 = vunpack.c.l.b16 %v1176
        %v1235 = vunpack.c.l.b16 %v1178
        %v1236 = vunpack.c.l.b16 %v1180
        %v1237 = vunpack.c.l.b16 %v1182
        %v1238 = vunpack.c.l.b16 %v1184
        %v1239 = vunpack.c.l.b16 %v1186
        %v1240 = vunpack.c.l.b16 %v1188
        %v1241 = vunpack.c.l.b16 %v1190
        %v1242 = vunpack.c.l.b16 %v1192
        %v1243 = vunpack.c.l.b16 %v1194
        %v1244 = vunpack.c.l.b16 %v1196
        %v1245 = vpack.c.b16 %v1230, %v1229
        %v1246 = vpack.c.b16 %v1232, %v1231
        %v1247 = vpack.c.b16 %v1234, %v1233
        %v1248 = vpack.c.b16 %v1236, %v1235
        %v1249 = vpack.c.b16 %v1238, %v1237
        %v1250 = vpack.c.b16 %v1240, %v1239
        %v1251 = vpack.c.b16 %v1242, %v1241
        %v1252 = vpack.c.b16 %v1244, %v1243
        %1261 = vmatprep.subr.bf16.mxu0 0
        %1262 = vmatpush1.bf16.msra.mxu0 %v1245
        %1263 = vmatprep.subr.bf16.mxu0 0
        %1264 = vmatpush1.bf16.msra.mxu0 %v1246
        %1265 = vmatprep.subr.bf16.mxu0 0
        %1266 = vmatpush1.bf16.msra.mxu0 %v1247
        %1267 = vmatprep.subr.bf16.mxu0 0
        %1268 = vmatpush1.bf16.msra.mxu0 %v1248
        %1269 = vmatprep.subr.bf16.mxu0 0
        %1270 = vmatpush1.bf16.msra.mxu0 %v1249
        %1271 = vmatprep.subr.bf16.mxu0 0
        %1272 = vmatpush1.bf16.msra.mxu0 %v1250
        %1273 = vmatprep.subr.bf16.mxu0 0
        %1274 = vmatpush1.bf16.msra.mxu0 %v1251
        %1275 = vmatprep.subr.bf16.mxu0 0
        %1276 = vmatpush1.bf16.msra.mxu0 %v1252
        %1277 = vmatprep.subr.bf16.mxu0 0
        %1278 = vmatpush1.bf16.msra.mxu0 0
        %1279 = vmatprep.subr.bf16.mxu0 0
        %1280 = vmatpush1.bf16.msra.mxu0 0
        %1281 = vmatprep.subr.bf16.mxu0 0
        %1282 = vmatpush1.bf16.msra.mxu0 0
        %1283 = vmatprep.subr.bf16.mxu0 0
        %1284 = vmatpush1.bf16.msra.mxu0 0
        %1285 = vmatprep.subr.bf16.mxu0 0
        %1286 = vmatpush1.bf16.msra.mxu0 0
        %1287 = vmatprep.subr.bf16.mxu0 0
        %1288 = vmatpush1.bf16.msra.mxu0 0
        %1289 = vmatprep.subr.bf16.mxu0 0
        %1290 = vmatpush1.bf16.msra.mxu0 0
        %1291 = vmatprep.subr.bf16.mxu0 0
        %1292 = vmatpush1.bf16.msra.mxu0 0
        %1293 = vmatprep.mubr.bf16.mxu0 0
        %1294 = vmatmul.mubr.bf16.gmra.mrb[0].mxu0 %v1199
        %v1295 = vpop.f32.mrb[0].mxu0
        %v1296 = vadd.f32 %v1211, %v1295
        %v1297 = vpop.f32.mrb[0].mxu0
        %v1298 = vpop.f32.mrb[0].mxu0
        %v1299 = vadd.f32 %v1211, %v1298
        %v1300 = vpop.f32.mrb[0].mxu0
        %1301 = vmatprep.mubr.bf16.mxu0 0
        %1302 = vmatmul.mubr.bf16.gmra.mrb[0].mxu0 %v1200
        %v1303 = vpop.f32.mrb[0].mxu0
        %v1304 = vadd.f32 %v1211, %v1303
        %v1305 = vpop.f32.mrb[0].mxu0
        %v1306 = vpop.f32.mrb[0].mxu0
        %v1307 = vadd.f32 %v1211, %v1306
        %v1308 = vpop.f32.mrb[0].mxu0
        %1309 = vmatprep.mubr.bf16.mxu0 0
        %1310 = vmatmul.mubr.bf16.gmra.mrb[0].mxu0 %v1201
        %v1311 = vpop.f32.mrb[0].mxu0
        %v1312 = vadd.f32 %v1211, %v1311
        %v1313 = vpop.f32.mrb[0].mxu0
        %v1314 = vpop.f32.mrb[0].mxu0
        %v1315 = vadd.f32 %v1211, %v1314
        %v1316 = vpop.f32.mrb[0].mxu0
        %1317 = vmatprep.mubr.bf16.mxu0 0
        %1318 = vmatmul.mubr.bf16.gmra.mrb[0].mxu0 %v1202
        %v1319 = vpop.f32.mrb[0].mxu0
        %v1320 = vadd.f32 %v1211, %v1319
        %v1321 = vpop.f32.mrb[0].mxu0
        %v1322 = vpop.f32.mrb[0].mxu0
        %v1323 = vadd.f32 %v1211, %v1322
        %v1324 = vpop.f32.mrb[0].mxu0
        %1325 = vmatprep.mubr.bf16.mxu0 0
        %1326 = vmatmul.mubr.bf16.gmra.mrb[0].mxu0 %v1203
        %v1327 = vpop.f32.mrb[0].mxu0
        %v1328 = vadd.f32 %v1211, %v1327
        %v1329 = vpop.f32.mrb[0].mxu0
        %v1330 = vpop.f32.mrb[0].mxu0
        %v1331 = vadd.f32 %v1211, %v1330
        %v1332 = vpop.f32.mrb[0].mxu0
        %1333 = vmatprep.mubr.bf16.mxu0 0
        %1334 = vmatmul.mubr.bf16.gmra.mrb[0].mxu0 %v1204
        %v1335 = vpop.f32.mrb[0].mxu0
        %v1336 = vadd.f32 %v1211, %v1335
        %v1337 = vpop.f32.mrb[0].mxu0
        %v1338 = vpop.f32.mrb[0].mxu0
        %v1339 = vadd.f32 %v1211, %v1338
        %v1340 = vpop.f32.mrb[0].mxu0
        %1341 = vmatprep.mubr.bf16.mxu0 0
        %1342 = vmatmul.mubr.bf16.gmra.mrb[0].mxu0 %v1205
        %v1343 = vpop.f32.mrb[0].mxu0
        %v1344 = vadd.f32 %v1211, %v1343
        %v1345 = vpop.f32.mrb[0].mxu0
        %v1346 = vpop.f32.mrb[0].mxu0
        %v1347 = vadd.f32 %v1211, %v1346
        %v1348 = vpop.f32.mrb[0].mxu0
        %1349 = vmatprep.mubr.bf16.mxu0 0
        %1350 = vmatmul.mubr.bf16.gmra.mrb[0].mxu0 %v1206
        %v1351 = vpop.f32.mrb[0].mxu0
        %v1352 = vadd.f32 %v1211, %v1351
        %v1353 = vpop.f32.mrb[0].mxu0
        %v1354 = vpop.f32.mrb[0].mxu0
        %v1355 = vadd.f32 %v1211, %v1354
        %v1356 = vpop.f32.mrb[0].mxu0
        %1357 = vdwg.mxu0
        %v1358 = vpack.c.bf16 %v1137, %v1135
        %v1359 = vpack.c.bf16 %v1141, %v1139
        %v1360 = vpack.c.bf16 %v1145, %v1143
        %v1361 = vpack.c.bf16 %v1149, %v1147
        %v1362 = vpack.c.bf16 %v1153, %v1151
        %v1363 = vpack.c.bf16 %v1157, %v1155
        %v1364 = vpack.c.bf16 %v1161, %v1159
        %v1365 = vpack.c.bf16 %v1165, %v1163
        %v1366 = vrot.slane %v1198, 1
        %v1367 = vlaneseq
        %v1368 = vshrl.u32 %v1367, 7
        %v1369 = vsub.s32 0, %v1368
        %v1370 = vrot.slane %v1366, %v1369
        %v1372 = vunpack.c.h.b16 %v1166
        %v1373 = vunpack.c.h.b16 %v1168
        %v1374 = vunpack.c.h.b16 %v1170
        %v1375 = vunpack.c.h.b16 %v1172
        %v1376 = vunpack.c.h.b16 %v1174
        %v1377 = vunpack.c.h.b16 %v1176
        %v1378 = vunpack.c.h.b16 %v1178
        %v1379 = vunpack.c.h.b16 %v1180
        %v1380 = vunpack.c.h.b16 %v1182
        %v1381 = vunpack.c.h.b16 %v1184
        %v1382 = vunpack.c.h.b16 %v1186
        %v1383 = vunpack.c.h.b16 %v1188
        %v1384 = vunpack.c.h.b16 %v1190
        %v1385 = vunpack.c.h.b16 %v1192
        %v1386 = vunpack.c.h.b16 %v1194
        %v1387 = vunpack.c.h.b16 %v1196
        %v1388 = vpack.c.b16 %v1373, %v1372
        %v1389 = vpack.c.b16 %v1375, %v1374
        %v1390 = vpack.c.b16 %v1377, %v1376
        %v1391 = vpack.c.b16 %v1379, %v1378
        %v1392 = vpack.c.b16 %v1381, %v1380
        %v1393 = vpack.c.b16 %v1383, %v1382
        %v1394 = vpack.c.b16 %v1385, %v1384
        %v1395 = vpack.c.b16 %v1387, %v1386
        %1404 = vmatprep.subr.bf16.mxu0 0
        %1405 = vmatpush1.bf16.msra.mxu0 %v1388
        %1406 = vmatprep.subr.bf16.mxu0 0
        %1407 = vmatpush1.bf16.msra.mxu0 %v1389
        %1408 = vmatprep.subr.bf16.mxu0 0
        %1409 = vmatpush1.bf16.msra.mxu0 %v1390
        %1410 = vmatprep.subr.bf16.mxu0 0
        %1411 = vmatpush1.bf16.msra.mxu0 %v1391
        %1412 = vmatprep.subr.bf16.mxu0 0
        %1413 = vmatpush1.bf16.msra.mxu0 %v1392
        %1414 = vmatprep.subr.bf16.mxu0 0
        %1415 = vmatpush1.bf16.msra.mxu0 %v1393
        %1416 = vmatprep.subr.bf16.mxu0 0
        %1417 = vmatpush1.bf16.msra.mxu0 %v1394
        %1418 = vmatprep.subr.bf16.mxu0 0
        %1419 = vmatpush1.bf16.msra.mxu0 %v1395
        %1420 = vmatprep.subr.bf16.mxu0 0
        %1421 = vmatpush1.bf16.msra.mxu0 0
        %1422 = vmatprep.subr.bf16.mxu0 0
        %1423 = vmatpush1.bf16.msra.mxu0 0
        %1424 = vmatprep.subr.bf16.mxu0 0
        %1425 = vmatpush1.bf16.msra.mxu0 0
        %1426 = vmatprep.subr.bf16.mxu0 0
        %1427 = vmatpush1.bf16.msra.mxu0 0
        %1428 = vmatprep.subr.bf16.mxu0 0
        %1429 = vmatpush1.bf16.msra.mxu0 0
        %1430 = vmatprep.subr.bf16.mxu0 0
        %1431 = vmatpush1.bf16.msra.mxu0 0
        %1432 = vmatprep.subr.bf16.mxu0 0
        %1433 = vmatpush1.bf16.msra.mxu0 0
        %1434 = vmatprep.subr.bf16.mxu0 0
        %1435 = vmatpush1.bf16.msra.mxu0 0
        %1436 = vmatprep.mubr.bf16.mxu0 0
        %1437 = vmatmul.mubr.bf16.gmra.mrb[0].mxu0 %v1358
        %v1438 = vpop.f32.mrb[0].mxu0
        %v1439 = vadd.f32 %v1370, %v1438
        %v1440 = vpop.f32.mrb[0].mxu0
        %v1441 = vpop.f32.mrb[0].mxu0
        %v1442 = vadd.f32 %v1370, %v1441
        %v1443 = vpop.f32.mrb[0].mxu0
        %1444 = vmatprep.mubr.bf16.mxu0 0
        %1445 = vmatmul.mubr.bf16.gmra.mrb[0].mxu0 %v1359
        %v1446 = vpop.f32.mrb[0].mxu0
        %v1447 = vadd.f32 %v1370, %v1446
        %v1448 = vpop.f32.mrb[0].mxu0
        %v1449 = vpop.f32.mrb[0].mxu0
        %v1450 = vadd.f32 %v1370, %v1449
        %v1451 = vpop.f32.mrb[0].mxu0
        %1452 = vmatprep.mubr.bf16.mxu0 0
        %1453 = vmatmul.mubr.bf16.gmra.mrb[0].mxu0 %v1360
        %v1454 = vpop.f32.mrb[0].mxu0
        %v1455 = vadd.f32 %v1370, %v1454
        %v1456 = vpop.f32.mrb[0].mxu0
        %v1457 = vpop.f32.mrb[0].mxu0
        %v1458 = vadd.f32 %v1370, %v1457
        %v1459 = vpop.f32.mrb[0].mxu0
        %1460 = vmatprep.mubr.bf16.mxu0 0
        %1461 = vmatmul.mubr.bf16.gmra.mrb[0].mxu0 %v1361
        %v1462 = vpop.f32.mrb[0].mxu0
        %v1463 = vadd.f32 %v1370, %v1462
        %v1464 = vpop.f32.mrb[0].mxu0
        %v1465 = vpop.f32.mrb[0].mxu0
        %v1466 = vadd.f32 %v1370, %v1465
        %v1467 = vpop.f32.mrb[0].mxu0
        %1468 = vmatprep.mubr.bf16.mxu0 0
        %1469 = vmatmul.mubr.bf16.gmra.mrb[0].mxu0 %v1362
        %v1470 = vpop.f32.mrb[0].mxu0
        %v1471 = vadd.f32 %v1370, %v1470
        %v1472 = vpop.f32.mrb[0].mxu0
        %v1473 = vpop.f32.mrb[0].mxu0
        %v1474 = vadd.f32 %v1370, %v1473
        %v1475 = vpop.f32.mrb[0].mxu0
        %1476 = vmatprep.mubr.bf16.mxu0 0
        %1477 = vmatmul.mubr.bf16.gmra.mrb[0].mxu0 %v1363
        %v1478 = vpop.f32.mrb[0].mxu0
        %v1479 = vadd.f32 %v1370, %v1478
        %v1480 = vpop.f32.mrb[0].mxu0
        %v1481 = vpop.f32.mrb[0].mxu0
        %v1482 = vadd.f32 %v1370, %v1481
        %v1483 = vpop.f32.mrb[0].mxu0
        %1484 = vmatprep.mubr.bf16.mxu0 0
        %1485 = vmatmul.mubr.bf16.gmra.mrb[0].mxu0 %v1364
        %v1486 = vpop.f32.mrb[0].mxu0
        %v1487 = vadd.f32 %v1370, %v1486
        %v1488 = vpop.f32.mrb[0].mxu0
        %v1489 = vpop.f32.mrb[0].mxu0
        %v1490 = vadd.f32 %v1370, %v1489
        %v1491 = vpop.f32.mrb[0].mxu0
        %1492 = vmatprep.mubr.bf16.mxu0 0
        %1493 = vmatmul.mubr.bf16.gmra.mrb[0].mxu0 %v1365
        %v1494 = vpop.f32.mrb[0].mxu0
        %v1495 = vadd.f32 %v1370, %v1494
        %v1496 = vpop.f32.mrb[0].mxu0
        %v1497 = vpop.f32.mrb[0].mxu0
        %v1498 = vadd.f32 %v1370, %v1497
        %v1499 = vpop.f32.mrb[0].mxu0
        %1500 = vdwg.mxu0
        %v1501 = vpack.c.bf16 %v902, %v899
        %v1502 = vpack.c.bf16 %v910, %v907
        %v1503 = vpack.c.bf16 %v918, %v915
        %v1504 = vpack.c.bf16 %v926, %v923
        %v1505 = vpack.c.bf16 %v934, %v931
        %v1506 = vpack.c.bf16 %v942, %v939
        %v1507 = vpack.c.bf16 %v950, %v947
        %v1508 = vpack.c.bf16 %v958, %v955
        %v1509 = vrot.slane %v1198, 2
        %v1510 = vlaneseq
        %v1511 = vshrl.u32 %v1510, 7
        %v1512 = vsub.s32 0, %v1511
        %v1513 = vrot.slane %v1509, %v1512
        %v1531 = vunpack.c.l.b16 %v1167
        %v1532 = vunpack.c.l.b16 %v1169
        %v1533 = vunpack.c.l.b16 %v1171
        %v1534 = vunpack.c.l.b16 %v1173
        %v1535 = vunpack.c.l.b16 %v1175
        %v1536 = vunpack.c.l.b16 %v1177
        %v1537 = vunpack.c.l.b16 %v1179
        %v1538 = vunpack.c.l.b16 %v1181
        %v1539 = vunpack.c.l.b16 %v1183
        %v1540 = vunpack.c.l.b16 %v1185
        %v1541 = vunpack.c.l.b16 %v1187
        %v1542 = vunpack.c.l.b16 %v1189
        %v1543 = vunpack.c.l.b16 %v1191
        %v1544 = vunpack.c.l.b16 %v1193
        %v1545 = vunpack.c.l.b16 %v1195
        %v1546 = vunpack.c.l.b16 %v1197
        %v1547 = vpack.c.b16 %v1532, %v1531
        %v1548 = vpack.c.b16 %v1534, %v1533
        %v1549 = vpack.c.b16 %v1536, %v1535
        %v1550 = vpack.c.b16 %v1538, %v1537
        %v1551 = vpack.c.b16 %v1540, %v1539
        %v1552 = vpack.c.b16 %v1542, %v1541
        %v1553 = vpack.c.b16 %v1544, %v1543
        %v1554 = vpack.c.b16 %v1546, %v1545
        %1563 = vmatprep.subr.bf16.mxu0 0
        %1564 = vmatpush1.bf16.msra.mxu0 %v1547
        %1565 = vmatprep.subr.bf16.mxu0 0
        %1566 = vmatpush1.bf16.msra.mxu0 %v1548
        %1567 = vmatprep.subr.bf16.mxu0 0
        %1568 = vmatpush1.bf16.msra.mxu0 %v1549
        %1569 = vmatprep.subr.bf16.mxu0 0
        %1570 = vmatpush1.bf16.msra.mxu0 %v1550
        %1571 = vmatprep.subr.bf16.mxu0 0
        %1572 = vmatpush1.bf16.msra.mxu0 %v1551
        %1573 = vmatprep.subr.bf16.mxu0 0
        %1574 = vmatpush1.bf16.msra.mxu0 %v1552
        %1575 = vmatprep.subr.bf16.mxu0 0
        %1576 = vmatpush1.bf16.msra.mxu0 %v1553
        %1577 = vmatprep.subr.bf16.mxu0 0
        %1578 = vmatpush1.bf16.msra.mxu0 %v1554
        %1579 = vmatprep.subr.bf16.mxu0 0
        %1580 = vmatpush1.bf16.msra.mxu0 0
        %1581 = vmatprep.subr.bf16.mxu0 0
        %1582 = vmatpush1.bf16.msra.mxu0 0
        %1583 = vmatprep.subr.bf16.mxu0 0
        %1584 = vmatpush1.bf16.msra.mxu0 0
        %1585 = vmatprep.subr.bf16.mxu0 0
        %1586 = vmatpush1.bf16.msra.mxu0 0
        %1587 = vmatprep.subr.bf16.mxu0 0
        %1588 = vmatpush1.bf16.msra.mxu0 0
        %1589 = vmatprep.subr.bf16.mxu0 0
        %1590 = vmatpush1.bf16.msra.mxu0 0
        %1591 = vmatprep.subr.bf16.mxu0 0
        %1592 = vmatpush1.bf16.msra.mxu0 0
        %1593 = vmatprep.subr.bf16.mxu0 0
        %1594 = vmatpush1.bf16.msra.mxu0 0
        %1595 = vmatprep.mubr.bf16.mxu0 0
        %1596 = vmatmul.mubr.bf16.gmra.mrb[0].mxu0 %v1501
        %v1597 = vpop.f32.mrb[0].mxu0
        %v1598 = vadd.f32 %v1513, %v1597
        %v1599 = vpop.f32.mrb[0].mxu0
        %v1600 = vpop.f32.mrb[0].mxu0
        %v1601 = vadd.f32 %v1513, %v1600
        %v1602 = vpop.f32.mrb[0].mxu0
        %1603 = vmatprep.mubr.bf16.mxu0 0
        %1604 = vmatmul.mubr.bf16.gmra.mrb[0].mxu0 %v1502
        %v1605 = vpop.f32.mrb[0].mxu0
        %v1606 = vadd.f32 %v1513, %v1605
        %v1607 = vpop.f32.mrb[0].mxu0
        %v1608 = vpop.f32.mrb[0].mxu0
        %v1609 = vadd.f32 %v1513, %v1608
        %v1610 = vpop.f32.mrb[0].mxu0
        %1611 = vmatprep.mubr.bf16.mxu0 0
        %1612 = vmatmul.mubr.bf16.gmra.mrb[0].mxu0 %v1503
        %v1613 = vpop.f32.mrb[0].mxu0
        %v1614 = vadd.f32 %v1513, %v1613
        %v1615 = vpop.f32.mrb[0].mxu0
        %v1616 = vpop.f32.mrb[0].mxu0
        %v1617 = vadd.f32 %v1513, %v1616
        %v1618 = vpop.f32.mrb[0].mxu0
        %1619 = vmatprep.mubr.bf16.mxu0 0
        %1620 = vmatmul.mubr.bf16.gmra.mrb[0].mxu0 %v1504
        %v1621 = vpop.f32.mrb[0].mxu0
        %v1622 = vadd.f32 %v1513, %v1621
        %v1623 = vpop.f32.mrb[0].mxu0
        %v1624 = vpop.f32.mrb[0].mxu0
        %v1625 = vadd.f32 %v1513, %v1624
        %v1626 = vpop.f32.mrb[0].mxu0
        %1627 = vmatprep.mubr.bf16.mxu0 0
        %1628 = vmatmul.mubr.bf16.gmra.mrb[0].mxu0 %v1505
        %v1629 = vpop.f32.mrb[0].mxu0
        %v1630 = vadd.f32 %v1513, %v1629
        %v1631 = vpop.f32.mrb[0].mxu0
        %v1632 = vpop.f32.mrb[0].mxu0
        %v1633 = vadd.f32 %v1513, %v1632
        %v1634 = vpop.f32.mrb[0].mxu0
        %1635 = vmatprep.mubr.bf16.mxu0 0
        %1636 = vmatmul.mubr.bf16.gmra.mrb[0].mxu0 %v1506
        %v1637 = vpop.f32.mrb[0].mxu0
        %v1638 = vadd.f32 %v1513, %v1637
        %v1639 = vpop.f32.mrb[0].mxu0
        %v1640 = vpop.f32.mrb[0].mxu0
        %v1641 = vadd.f32 %v1513, %v1640
        %v1642 = vpop.f32.mrb[0].mxu0
        %1643 = vmatprep.mubr.bf16.mxu0 0
        %1644 = vmatmul.mubr.bf16.gmra.mrb[0].mxu0 %v1507
        %v1645 = vpop.f32.mrb[0].mxu0
        %v1646 = vadd.f32 %v1513, %v1645
        %v1647 = vpop.f32.mrb[0].mxu0
        %v1648 = vpop.f32.mrb[0].mxu0
        %v1649 = vadd.f32 %v1513, %v1648
        %v1650 = vpop.f32.mrb[0].mxu0
        %1651 = vmatprep.mubr.bf16.mxu0 0
        %1652 = vmatmul.mubr.bf16.gmra.mrb[0].mxu0 %v1508
        %v1653 = vpop.f32.mrb[0].mxu0
        %v1654 = vadd.f32 %v1513, %v1653
        %v1655 = vpop.f32.mrb[0].mxu0
        %v1656 = vpop.f32.mrb[0].mxu0
        %v1657 = vadd.f32 %v1513, %v1656
        %v1658 = vpop.f32.mrb[0].mxu0
        %1659 = vdwg.mxu0
        %v1660 = vmul.f32 %v1296, 0.125
        %v1661 = vmul.f32 %v1299, 0.125
        %v1662 = vmul.f32 %v1304, 0.125
        %v1663 = vmul.f32 %v1307, 0.125
        %v1664 = vmul.f32 %v1312, 0.125
        %v1665 = vmul.f32 %v1315, 0.125
        %v1666 = vmul.f32 %v1320, 0.125
        %v1667 = vmul.f32 %v1323, 0.125
        %v1668 = vmul.f32 %v1328, 0.125
        %v1669 = vmul.f32 %v1331, 0.125
        %v1670 = vmul.f32 %v1336, 0.125
        %v1671 = vmul.f32 %v1339, 0.125
        %v1672 = vmul.f32 %v1344, 0.125
        %v1673 = vmul.f32 %v1347, 0.125
        %v1674 = vmul.f32 %v1352, 0.125
        %v1675 = vmul.f32 %v1355, 0.125
        %v1676 = vpack.c.bf16 %v1661, %v1660
        %v1677 = vpack.c.bf16 %v1663, %v1662
        %v1678 = vpack.c.bf16 %v1665, %v1664
        %v1679 = vpack.c.bf16 %v1667, %v1666
        %v1680 = vpack.c.bf16 %v1669, %v1668
        %v1681 = vpack.c.bf16 %v1671, %v1670
        %v1682 = vpack.c.bf16 %v1673, %v1672
        %v1683 = vpack.c.bf16 %v1675, %v1674
        %v1692 = vunpack.c.l.b16 %v1676
        %v1693 = vunpack.c.h.b16 %v1676
        %v1694 = vunpack.c.l.b16 %v1677
        %v1695 = vunpack.c.h.b16 %v1677
        %v1696 = vunpack.c.l.b16 %v1678
        %v1697 = vunpack.c.h.b16 %v1678
        %v1698 = vunpack.c.l.b16 %v1679
        %v1699 = vunpack.c.h.b16 %v1679
        %v1700 = vunpack.c.l.b16 %v1680
        %v1701 = vunpack.c.h.b16 %v1680
        %v1702 = vunpack.c.l.b16 %v1681
        %v1703 = vunpack.c.h.b16 %v1681
        %v1704 = vunpack.c.l.b16 %v1682
        %v1705 = vunpack.c.h.b16 %v1682
        %v1706 = vunpack.c.l.b16 %v1683
        %v1707 = vunpack.c.h.b16 %v1683
        %v1708 = vpack.c.b16 %v1692, %v1692
        %v1709 = vpack.c.b16 %v1693, %v1693
        %v1710 = vpack.c.b16 %v1694, %v1694
        %v1711 = vpack.c.b16 %v1695, %v1695
        %v1712 = vpack.c.b16 %v1696, %v1696
        %v1713 = vpack.c.b16 %v1697, %v1697
        %v1714 = vpack.c.b16 %v1698, %v1698
        %v1715 = vpack.c.b16 %v1699, %v1699
        %v1716 = vpack.c.b16 %v1700, %v1700
        %v1717 = vpack.c.b16 %v1701, %v1701
        %v1718 = vpack.c.b16 %v1702, %v1702
        %v1719 = vpack.c.b16 %v1703, %v1703
        %v1720 = vpack.c.b16 %v1704, %v1704
        %v1721 = vpack.c.b16 %v1705, %v1705
        %v1722 = vpack.c.b16 %v1706, %v1706
        %v1723 = vpack.c.b16 %v1707, %v1707
        %1740 = vst [vmem:[%s408] sm:$0xf] %v1708
        %1741 = vst [vmem:[%s408 + $0x4] sm:$0xf] %v1709
        %1742 = vst [vmem:[%s408 + $0x8] sm:$0xf] %v1710
        %1743 = vst [vmem:[%s408 + $0xc] sm:$0xf] %v1711
        %1744 = vst [vmem:[%s408 + $0x10] sm:$0xf] %v1712
        %1745 = vst [vmem:[%s408 + $0x14] sm:$0xf] %v1713
        %1746 = vst [vmem:[%s408 + $0x18] sm:$0xf] %v1714
        %1747 = vst [vmem:[%s408 + $0x1c] sm:$0xf] %v1715
        %1748 = vst [vmem:[%s408 + $0x20] sm:$0xf] %v1716
        %1749 = vst [vmem:[%s408 + $0x24] sm:$0xf] %v1717
        %1750 = vst [vmem:[%s408 + $0x28] sm:$0xf] %v1718
        %1751 = vst [vmem:[%s408 + $0x2c] sm:$0xf] %v1719
        %1752 = vst [vmem:[%s408 + $0x30] sm:$0xf] %v1720
        %1753 = vst [vmem:[%s408 + $0x34] sm:$0xf] %v1721
        %1754 = vst [vmem:[%s408 + $0x38] sm:$0xf] %v1722
        %1755 = vst [vmem:[%s408 + $0x3c] sm:$0xf] %v1723
        %v1756 = vpack.c.bf16 %v1442, %v1439
        %v1757 = vpack.c.bf16 %v1450, %v1447
        %v1758 = vpack.c.bf16 %v1458, %v1455
        %v1759 = vpack.c.bf16 %v1466, %v1463
        %v1760 = vpack.c.bf16 %v1474, %v1471
        %v1761 = vpack.c.bf16 %v1482, %v1479
        %v1762 = vpack.c.bf16 %v1490, %v1487
        %v1763 = vpack.c.bf16 %v1498, %v1495
        %v1772 = vunpack.c.l.b16 %v1756
        %v1773 = vunpack.c.h.b16 %v1756
        %v1774 = vunpack.c.l.b16 %v1757
        %v1775 = vunpack.c.h.b16 %v1757
        %v1776 = vunpack.c.l.b16 %v1758
        %v1777 = vunpack.c.h.b16 %v1758
        %v1778 = vunpack.c.l.b16 %v1759
        %v1779 = vunpack.c.h.b16 %v1759
        %v1780 = vunpack.c.l.b16 %v1760
        %v1781 = vunpack.c.h.b16 %v1760
        %v1782 = vunpack.c.l.b16 %v1761
        %v1783 = vunpack.c.h.b16 %v1761
        %v1784 = vunpack.c.l.b16 %v1762
        %v1785 = vunpack.c.h.b16 %v1762
        %v1786 = vunpack.c.l.b16 %v1763
        %v1787 = vunpack.c.h.b16 %v1763
        %v1788 = vpack.c.b16 %v1772, %v1772
        %v1789 = vpack.c.b16 %v1773, %v1773
        %v1790 = vpack.c.b16 %v1774, %v1774
        %v1791 = vpack.c.b16 %v1775, %v1775
        %v1792 = vpack.c.b16 %v1776, %v1776
        %v1793 = vpack.c.b16 %v1777, %v1777
        %v1794 = vpack.c.b16 %v1778, %v1778
        %v1795 = vpack.c.b16 %v1779, %v1779
        %v1796 = vpack.c.b16 %v1780, %v1780
        %v1797 = vpack.c.b16 %v1781, %v1781
        %v1798 = vpack.c.b16 %v1782, %v1782
        %v1799 = vpack.c.b16 %v1783, %v1783
        %v1800 = vpack.c.b16 %v1784, %v1784
        %v1801 = vpack.c.b16 %v1785, %v1785
        %v1802 = vpack.c.b16 %v1786, %v1786
        %v1803 = vpack.c.b16 %v1787, %v1787
        %1820 = vst [vmem:[%s418] sm:$0xf] %v1788
        %1821 = vst [vmem:[%s418 + $0x4] sm:$0xf] %v1789
        %1822 = vst [vmem:[%s418 + $0x8] sm:$0xf] %v1790
        %1823 = vst [vmem:[%s418 + $0xc] sm:$0xf] %v1791
        %1824 = vst [vmem:[%s418 + $0x10] sm:$0xf] %v1792
        %1825 = vst [vmem:[%s418 + $0x14] sm:$0xf] %v1793
        %1826 = vst [vmem:[%s418 + $0x18] sm:$0xf] %v1794
        %1827 = vst [vmem:[%s418 + $0x1c] sm:$0xf] %v1795
        %1828 = vst [vmem:[%s418 + $0x20] sm:$0xf] %v1796
        %1829 = vst [vmem:[%s418 + $0x24] sm:$0xf] %v1797
        %1830 = vst [vmem:[%s418 + $0x28] sm:$0xf] %v1798
        %1831 = vst [vmem:[%s418 + $0x2c] sm:$0xf] %v1799
        %1832 = vst [vmem:[%s418 + $0x30] sm:$0xf] %v1800
        %1833 = vst [vmem:[%s418 + $0x34] sm:$0xf] %v1801
        %1834 = vst [vmem:[%s418 + $0x38] sm:$0xf] %v1802
        %1835 = vst [vmem:[%s418 + $0x3c] sm:$0xf] %v1803
        %v1836 = vpack.c.bf16 %v1601, %v1598
        %v1837 = vpack.c.bf16 %v1609, %v1606
        %v1838 = vpack.c.bf16 %v1617, %v1614
        %v1839 = vpack.c.bf16 %v1625, %v1622
        %v1840 = vpack.c.bf16 %v1633, %v1630
        %v1841 = vpack.c.bf16 %v1641, %v1638
        %v1842 = vpack.c.bf16 %v1649, %v1646
        %v1843 = vpack.c.bf16 %v1657, %v1654
        %v1852 = vunpack.c.l.b16 %v1836
        %v1853 = vunpack.c.h.b16 %v1836
        %v1854 = vunpack.c.l.b16 %v1837
        %v1855 = vunpack.c.h.b16 %v1837
        %v1856 = vunpack.c.l.b16 %v1838
        %v1857 = vunpack.c.h.b16 %v1838
        %v1858 = vunpack.c.l.b16 %v1839
        %v1859 = vunpack.c.h.b16 %v1839
        %v1860 = vunpack.c.l.b16 %v1840
        %v1861 = vunpack.c.h.b16 %v1840
        %v1862 = vunpack.c.l.b16 %v1841
        %v1863 = vunpack.c.h.b16 %v1841
        %v1864 = vunpack.c.l.b16 %v1842
        %v1865 = vunpack.c.h.b16 %v1842
        %v1866 = vunpack.c.l.b16 %v1843
        %v1867 = vunpack.c.h.b16 %v1843
        %v1868 = vpack.c.b16 %v1852, %v1852
        %v1869 = vpack.c.b16 %v1853, %v1853
        %v1870 = vpack.c.b16 %v1854, %v1854
        %v1871 = vpack.c.b16 %v1855, %v1855
        %v1872 = vpack.c.b16 %v1856, %v1856
        %v1873 = vpack.c.b16 %v1857, %v1857
        %v1874 = vpack.c.b16 %v1858, %v1858
        %v1875 = vpack.c.b16 %v1859, %v1859
        %v1876 = vpack.c.b16 %v1860, %v1860
        %v1877 = vpack.c.b16 %v1861, %v1861
        %v1878 = vpack.c.b16 %v1862, %v1862
        %v1879 = vpack.c.b16 %v1863, %v1863
        %v1880 = vpack.c.b16 %v1864, %v1864
        %v1881 = vpack.c.b16 %v1865, %v1865
        %v1882 = vpack.c.b16 %v1866, %v1866
        %v1883 = vpack.c.b16 %v1867, %v1867
        %1900 = vst [vmem:[%s428] sm:$0xf] %v1868
        %1901 = vst [vmem:[%s428 + $0x4] sm:$0xf] %v1869
        %1902 = vst [vmem:[%s428 + $0x8] sm:$0xf] %v1870
        %1903 = vst [vmem:[%s428 + $0xc] sm:$0xf] %v1871
        %1904 = vst [vmem:[%s428 + $0x10] sm:$0xf] %v1872
        %1905 = vst [vmem:[%s428 + $0x14] sm:$0xf] %v1873
        %1906 = vst [vmem:[%s428 + $0x18] sm:$0xf] %v1874
        %1907 = vst [vmem:[%s428 + $0x1c] sm:$0xf] %v1875
        %1908 = vst [vmem:[%s428 + $0x20] sm:$0xf] %v1876
        %1909 = vst [vmem:[%s428 + $0x24] sm:$0xf] %v1877
        %1910 = vst [vmem:[%s428 + $0x28] sm:$0xf] %v1878
        %1911 = vst [vmem:[%s428 + $0x2c] sm:$0xf] %v1879
        %1912 = vst [vmem:[%s428 + $0x30] sm:$0xf] %v1880
        %1913 = vst [vmem:[%s428 + $0x34] sm:$0xf] %v1881
        %1914 = vst [vmem:[%s428 + $0x38] sm:$0xf] %v1882
        %1915 = vst [vmem:[%s428 + $0x3c] sm:$0xf] %v1883
        %s1916 = smul.u32 16, %s29
        %p1917 = scmp.lt.s32.totalorder %s28, 1
        %s1918 = scalar_select %p1917, %s28, 1
        %p1919 = scmp.lt.s32.totalorder %s1916, 15
        %s1920 = scalar_select %p1919, %s1916, 15
        %s1921 = smul.addr %s1918, 16
        %s1922 = sadd.s32 %s1920, %s1921
        %s1923 = smul.addr %s1922, 4
        %s1924 = scalar_lea.vmem %s6, %s1923
        %s1925 = smul.u32 16, %s29
        %p1926 = scmp.lt.s32.totalorder %s28, 1
        %s1927 = scalar_select %p1926, %s28, 1
        %p1928 = scmp.lt.s32.totalorder %s1925, 15
        %s1929 = scalar_select %p1928, %s1925, 15
        %s1930 = smul.addr %s1927, 16
        %s1931 = sadd.s32 %s1929, %s1930
        %s1932 = smul.addr %s1931, 4
        %s1933 = scalar_lea.vmem %s7, %s1932
        %s1934 = smul.u32 16, %s29
        %p1935 = scmp.lt.s32.totalorder %s28, 1
        %s1936 = scalar_select %p1935, %s28, 1
        %p1937 = scmp.lt.s32.totalorder %s1934, 15
        %s1938 = scalar_select %p1937, %s1934, 15
        %s1939 = smul.addr %s1936, 16
        %s1940 = sadd.s32 %s1938, %s1939
        %s1941 = smul.addr %s1940, 4
        %s1942 = scalar_lea.vmem %s8, %s1941
        // Predicated region
        $region57: #{transformer_forward.3} parent=43 // pred_check
          %p1943 = pneg %p189
        $region58: #{transformer_forward.3} parent=43 // pred_check_branch
          %1945 = sbr.rel (%p1943) target = $region60
        $region59: #{transformer_forward.3} parent=43 // pred_region
          %s1946 = smul.u32 16, %s29
        $region60: #{transformer_forward.3} parent=43 // pred_fallthru
          _
        // Predicated region
        $region61: #{transformer_forward.3} parent=43 // pred_check
          %p1947 = pneg %p217
        $region62: #{transformer_forward.3} parent=43 // pred_check_branch
          %1949 = sbr.rel (%p1947) target = $region64
        $region63: #{transformer_forward.3} parent=43 // pred_region
          %s1950 = smul.u32 16, %s29
        $region64: #{transformer_forward.3} parent=43 // pred_fallthru
          _
        // Predicated region
        $region65: #{transformer_forward.3} parent=43 // pred_check
          %p1951 = pneg %p245
        $region66: #{transformer_forward.3} parent=43 // pred_check_branch
          %1953 = sbr.rel (%p1951) target = $region68
        $region67: #{transformer_forward.3} parent=43 // pred_region
          %s1954 = smul.u32 16, %s29
        $region68: #{transformer_forward.3} parent=43 // pred_fallthru
          _
      $region44: #{transformer_forward.3} parent=5 // pred_fallthru
        _
      %p1955 = scmp.le.s32.totalorder 2, %s19
      // Predicated region
      $region69: #{transformer_forward.3} parent=5 // pred_check
        %p1956 = pneg %p1955
      $region70: #{transformer_forward.3} parent=5 // pred_check_branch
        %1958 = sbr.rel (%p1956) target = $region72
      $region71: #{transformer_forward.3} parent=5 // pred_region
        %s1959 = ssub.s32 %s19, 2
        // Predicated region
        $region73: #{transformer_forward.3} parent=71 // pred_check
          %p1960 = pneg %p195
        $region74: #{transformer_forward.3} parent=71 // pred_check_branch
          %1962 = sbr.rel (%p1960) target = $region76
        $region75: #{transformer_forward.3} parent=71 // pred_region
          %s1963 = smul.u32 16, %s31
          %p1964 = scmp.lt.s32.totalorder %s30, 1
          %s1965 = scalar_select %p1964, %s30, 1
          %p1966 = scmp.lt.s32.totalorder %s1963, 15
          %s1967 = scalar_select %p1966, %s1963, 15
          %s1968 = smul.addr %s1965, 16
          %s1969 = sadd.s32 %s1967, %s1968
          %s1970 = smul.addr %s1969, 4
          %s1971 = scalar_lea.vmem %s6, %s1970
        $region76: #{transformer_forward.3} parent=71 // pred_fallthru
          _
        // Predicated region
        $region77: #{transformer_forward.3} parent=71 // pred_check
          %p1972 = pneg %p223
        $region78: #{transformer_forward.3} parent=71 // pred_check_branch
          %1974 = sbr.rel (%p1972) target = $region80
        $region79: #{transformer_forward.3} parent=71 // pred_region
          %s1975 = smul.u32 16, %s31
          %p1976 = scmp.lt.s32.totalorder %s30, 1
          %s1977 = scalar_select %p1976, %s30, 1
          %p1978 = scmp.lt.s32.totalorder %s1975, 15
          %s1979 = scalar_select %p1978, %s1975, 15
          %s1980 = smul.addr %s1977, 16
          %s1981 = sadd.s32 %s1979, %s1980
          %s1982 = smul.addr %s1981, 4
          %s1983 = scalar_lea.vmem %s7, %s1982
        $region80: #{transformer_forward.3} parent=71 // pred_fallthru
          _
        // Predicated region
        $region81: #{transformer_forward.3} parent=71 // pred_check
          %p1984 = pneg %p251
        $region82: #{transformer_forward.3} parent=71 // pred_check_branch
          %1986 = sbr.rel (%p1984) target = $region84
        $region83: #{transformer_forward.3} parent=71 // pred_region
          %s1987 = smul.u32 16, %s31
          %p1988 = scmp.lt.s32.totalorder %s30, 1
          %s1989 = scalar_select %p1988, %s30, 1
          %p1990 = scmp.lt.s32.totalorder %s1987, 15
          %s1991 = scalar_select %p1990, %s1987, 15
          %s1992 = smul.addr %s1989, 16
          %s1993 = sadd.s32 %s1991, %s1992
          %s1994 = smul.addr %s1993, 4
          %s1995 = scalar_lea.vmem %s8, %s1994
        $region84: #{transformer_forward.3} parent=71 // pred_fallthru
          _
      $region72: #{transformer_forward.3} parent=5 // pred_fallthru
        _
    $region6: #{transformer_forward.3} parent=1 // loop_footer
      %s23 = sadd.s32 1, %s19
    $region7: #{transformer_forward.3} parent=1 // loop_footer_branch
      %18 = sbr.rel target = $region3
    $region8: #{transformer_forward.3} parent=1 // loop_exit
      _
    %1996 = vsyncpa [#allocation3], 1
    %s1997 = scalar_lea.sflag [#allocation3], 1
    %1998 = vsyncpa %s1997, 1
    %1999 = vsyncpa [#allocation5], 1

// kernel: transformer_forward.5
$region0: #{transformer_forward.5}
  #allocation0 [shape = 'u32[]', space=smem, size = 0x4, offset = 0x4, fixed_abs, tag = 'smem constant byte address 0x4 - core index']
  #allocation1 [shape = 'u32[144,128]{1,0:T(1,128)}', space=vmem, size = 0x12000, scoped, tag = 'internal scratch']
  %s0 = inlined_call_operand.vmem [shape: bf16[2,128,128], index: 0, kind: input, shape index: {}]
  %s1 = inlined_call_operand.vmem [shape: f32[2,128,128], index: 1, kind: input, shape index: {}]
  %s2 = inlined_call_operand.vmem [shape: bf16[128,128], index: 2, kind: input, shape index: {}]
  %s3 = inlined_call_operand.vmem [shape: f32[1,128], index: 3, kind: input, shape index: {}]
  %s4 = inlined_call_operand.vmem [shape: f32[1,128], index: 4, kind: input, shape index: {}]
  %s5 = inlined_call_operand.vmem [shape: bf16[128,512], index: 5, kind: input, shape index: {}]
  %s6 = inlined_call_operand.vmem [shape: f32[1,512], index: 6, kind: input, shape index: {}]
  %s7 = inlined_call_operand.vmem [shape: bf16[512,128], index: 7, kind: input, shape index: {}]
  %s8 = inlined_call_operand.vmem [shape: f32[1,128], index: 8, kind: input, shape index: {}]
  %s9 = inlined_call_operand.hbm [shape: f32[2,128,128], index: 9, kind: output, shape index: {}]
  %s10 = sld [smem:[#allocation0]]
  $region69: #{transformer_forward.5} parent=0
    _
  %s12 = ssub.s32 1, %s10
  %s13 = scalar_select 0, %s12, %s10
  $region1: #{transformer_forward.5} parent=0
    #allocation2 [shape = 'u8[131072]{0}', space=vmem, size = 0x20000, scoped, tag = 'output window, operand 0']
    #allocation3 [shape = 's32[2]{0}', space=sflag, size = 0x8, scoped, tag = 'scoped memory for transformer_forward.5']
    %14 = vsyncpa [#allocation3], 0
    %s15 = scalar_lea.sflag [#allocation3], 1
    %16 = vsyncpa %s15, 0
    loop: start=0, step=1, limit=4
    $region2: #{transformer_forward.5} parent=1 // loop_pre_header
      _
    $region3: #{transformer_forward.5} parent=1 // loop_header
      %s18 = sphi 0, %s22
      %p19 = scmp.ge.s32.totalorder %s18, 4
      %s25 = sphi 0, %s37
      %s26 = sphi 0, %s33
      %s27 = sphi 0, %s25
      %s28 = sphi 0, %s26
      %s29 = sphi 0, %s27
      %s30 = sphi 0, %s28
      %s42 = sphi 0, %s44
      %s45 = sphi 0, %s42
      %s46 = sphi 0, %s45
      %s62 = sphi 0, %s46
      %s70 = sphi 0, %s72
      %s73 = sphi 0, %s70
      %s74 = sphi 0, %s73
      %s90 = sphi 0, %s74
      %s94 = sphi 0, %s94
      %s96 = sphi 0, %s94
      %s97 = sphi 0, %s96
      %s111 = sphi 0, %s97
      %s115 = sphi 0, %s115
      %s117 = sphi 0, %s115
      %s118 = sphi 0, %s117
      %s132 = sphi 0, %s118
      %s136 = sphi 0, %s136
      %s138 = sphi 0, %s136
      %s139 = sphi 0, %s138
      %s153 = sphi 0, %s139
      %s157 = sphi 0, %s157
      %s159 = sphi 0, %s157
      %s160 = sphi 0, %s159
      %s174 = sphi 0, %s160
      %s178 = sphi 0, %s178
      %s180 = sphi 0, %s178
      %s181 = sphi 0, %s180
      %s195 = sphi 0, %s181
      %s199 = sphi 0, %s199
      %s201 = sphi 0, %s199
      %s202 = sphi 0, %s201
      %s216 = sphi 0, %s202
      %s220 = sphi 0, %s220
      %s222 = sphi 0, %s220
      %s223 = sphi 0, %s222
      %s237 = sphi 0, %s223
      %s245 = sphi 0, %s247
      %s248 = sphi 0, %s245
      %s249 = sphi 0, %s248
      %s265 = sphi 0, %s249
    $region4: #{transformer_forward.5} parent=1 // loop_header_branch
      %21 = sbr.rel (%p19) target = $region8
    $region5: #{transformer_forward.5} parent=1 // loop_body
      %s23 = ssub.s32 %s18, 1
      %s24 = ssub.s32 %s18, 2
      %s31 = sadd.s32 1, %s26
      %p32 = scmp.ge.s32.totalorder %s31, 1
      %s33 = scalar_select %p32, 0, %s31
      %s34 = sadd.s32 1, %s25
      %s35 = scalar_select %p32, %s34, %s25
      %p36 = scmp.ge.s32.totalorder %s35, 2
      %s37 = scalar_select %p36, 0, %s35
      %s38 = ssub.s32 %s25, %s37
      %s39 = ssub.s32 %s26, %s33
      %s40 = sor.u32 %s38, %s39
      %p41 = scmp.eq.s32.totalorder %s40, 0
      %s43 = sadd.s32 %s42, 1
      %s44 = scalar_select %p41, %s42, %s43
      %p47 = pneg %p41
      %p48 = scmp.eq.s32.totalorder %s18, 1
      %p49 = por %p47, %p48
      %p50 = scmp.ne.s32.totalorder %s42, %s45
      %p51 = scmp.eq.s32.totalorder %s18, 0
      %p52 = por %p50, %p51
      %p53 = scmp.ne.s32.totalorder %s42, %s45
      %p54 = scmp.eq.s32.totalorder %s23, 1
      %p55 = por %p53, %p54
      %p56 = scmp.ne.s32.totalorder %s45, %s46
      %p57 = scmp.eq.s32.totalorder %s23, 0
      %p58 = por %p56, %p57
      %p59 = scmp.ne.s32.totalorder %s45, %s46
      %p60 = scmp.eq.s32.totalorder %s24, 1
      %p61 = por %p59, %p60
      %p63 = scmp.ne.s32.totalorder %s46, %s62
      %p64 = scmp.eq.s32.totalorder %s24, 0
      %p65 = por %p63, %p64
      %s66 = ssub.s32 %s25, %s37
      %s67 = ssub.s32 %s26, %s33
      %s68 = sor.u32 %s66, %s67
      %p69 = scmp.eq.s32.totalorder %s68, 0
      %s71 = sadd.s32 %s70, 1
      %s72 = scalar_select %p69, %s70, %s71
      %p75 = pneg %p69
      %p76 = scmp.eq.s32.totalorder %s18, 1
      %p77 = por %p75, %p76
      %p78 = scmp.ne.s32.totalorder %s70, %s73
      %p79 = scmp.eq.s32.totalorder %s18, 0
      %p80 = por %p78, %p79
      %p81 = scmp.ne.s32.totalorder %s70, %s73
      %p82 = scmp.eq.s32.totalorder %s23, 1
      %p83 = por %p81, %p82
      %p84 = scmp.ne.s32.totalorder %s73, %s74
      %p85 = scmp.eq.s32.totalorder %s23, 0
      %p86 = por %p84, %p85
      %p87 = scmp.ne.s32.totalorder %s73, %s74
      %p88 = scmp.eq.s32.totalorder %s24, 1
      %p89 = por %p87, %p88
      %p91 = scmp.ne.s32.totalorder %s74, %s90
      %p92 = scmp.eq.s32.totalorder %s24, 0
      %p93 = por %p91, %p92
      %s95 = sadd.s32 %s94, 1
      %p98 = scmp.eq.s32.totalorder %s18, 1
      %p99 = scmp.ne.s32.totalorder %s94, %s96
      %p100 = scmp.eq.s32.totalorder %s18, 0
      %p101 = por %p99, %p100
      %p102 = scmp.ne.s32.totalorder %s94, %s96
      %p103 = scmp.eq.s32.totalorder %s23, 1
      %p104 = por %p102, %p103
      %p105 = scmp.ne.s32.totalorder %s96, %s97
      %p106 = scmp.eq.s32.totalorder %s23, 0
      %p107 = por %p105, %p106
      %p108 = scmp.ne.s32.totalorder %s96, %s97
      %p109 = scmp.eq.s32.totalorder %s24, 1
      %p110 = por %p108, %p109
      %p112 = scmp.ne.s32.totalorder %s97, %s111
      %p113 = scmp.eq.s32.totalorder %s24, 0
      %p114 = por %p112, %p113
      %s116 = sadd.s32 %s115, 1
      %p119 = scmp.eq.s32.totalorder %s18, 1
      %p120 = scmp.ne.s32.totalorder %s115, %s117
      %p121 = scmp.eq.s32.totalorder %s18, 0
      %p122 = por %p120, %p121
      %p123 = scmp.ne.s32.totalorder %s115, %s117
      %p124 = scmp.eq.s32.totalorder %s23, 1
      %p125 = por %p123, %p124
      %p126 = scmp.ne.s32.totalorder %s117, %s118
      %p127 = scmp.eq.s32.totalorder %s23, 0
      %p128 = por %p126, %p127
      %p129 = scmp.ne.s32.totalorder %s117, %s118
      %p130 = scmp.eq.s32.totalorder %s24, 1
      %p131 = por %p129, %p130
      %p133 = scmp.ne.s32.totalorder %s118, %s132
      %p134 = scmp.eq.s32.totalorder %s24, 0
      %p135 = por %p133, %p134
      %s137 = sadd.s32 %s136, 1
      %p140 = scmp.eq.s32.totalorder %s18, 1
      %p141 = scmp.ne.s32.totalorder %s136, %s138
      %p142 = scmp.eq.s32.totalorder %s18, 0
      %p143 = por %p141, %p142
      %p144 = scmp.ne.s32.totalorder %s136, %s138
      %p145 = scmp.eq.s32.totalorder %s23, 1
      %p146 = por %p144, %p145
      %p147 = scmp.ne.s32.totalorder %s138, %s139
      %p148 = scmp.eq.s32.totalorder %s23, 0
      %p149 = por %p147, %p148
      %p150 = scmp.ne.s32.totalorder %s138, %s139
      %p151 = scmp.eq.s32.totalorder %s24, 1
      %p152 = por %p150, %p151
      %p154 = scmp.ne.s32.totalorder %s139, %s153
      %p155 = scmp.eq.s32.totalorder %s24, 0
      %p156 = por %p154, %p155
      %s158 = sadd.s32 %s157, 1
      %p161 = scmp.eq.s32.totalorder %s18, 1
      %p162 = scmp.ne.s32.totalorder %s157, %s159
      %p163 = scmp.eq.s32.totalorder %s18, 0
      %p164 = por %p162, %p163
      %p165 = scmp.ne.s32.totalorder %s157, %s159
      %p166 = scmp.eq.s32.totalorder %s23, 1
      %p167 = por %p165, %p166
      %p168 = scmp.ne.s32.totalorder %s159, %s160
      %p169 = scmp.eq.s32.totalorder %s23, 0
      %p170 = por %p168, %p169
      %p171 = scmp.ne.s32.totalorder %s159, %s160
      %p172 = scmp.eq.s32.totalorder %s24, 1
      %p173 = por %p171, %p172
      %p175 = scmp.ne.s32.totalorder %s160, %s174
      %p176 = scmp.eq.s32.totalorder %s24, 0
      %p177 = por %p175, %p176
      %s179 = sadd.s32 %s178, 1
      %p182 = scmp.eq.s32.totalorder %s18, 1
      %p183 = scmp.ne.s32.totalorder %s178, %s180
      %p184 = scmp.eq.s32.totalorder %s18, 0
      %p185 = por %p183, %p184
      %p186 = scmp.ne.s32.totalorder %s178, %s180
      %p187 = scmp.eq.s32.totalorder %s23, 1
      %p188 = por %p186, %p187
      %p189 = scmp.ne.s32.totalorder %s180, %s181
      %p190 = scmp.eq.s32.totalorder %s23, 0
      %p191 = por %p189, %p190
      %p192 = scmp.ne.s32.totalorder %s180, %s181
      %p193 = scmp.eq.s32.totalorder %s24, 1
      %p194 = por %p192, %p193
      %p196 = scmp.ne.s32.totalorder %s181, %s195
      %p197 = scmp.eq.s32.totalorder %s24, 0
      %p198 = por %p196, %p197
      %s200 = sadd.s32 %s199, 1
      %p203 = scmp.eq.s32.totalorder %s18, 1
      %p204 = scmp.ne.s32.totalorder %s199, %s201
      %p205 = scmp.eq.s32.totalorder %s18, 0
      %p206 = por %p204, %p205
      %p207 = scmp.ne.s32.totalorder %s199, %s201
      %p208 = scmp.eq.s32.totalorder %s23, 1
      %p209 = por %p207, %p208
      %p210 = scmp.ne.s32.totalorder %s201, %s202
      %p211 = scmp.eq.s32.totalorder %s23, 0
      %p212 = por %p210, %p211
      %p213 = scmp.ne.s32.totalorder %s201, %s202
      %p214 = scmp.eq.s32.totalorder %s24, 1
      %p215 = por %p213, %p214
      %p217 = scmp.ne.s32.totalorder %s202, %s216
      %p218 = scmp.eq.s32.totalorder %s24, 0
      %p219 = por %p217, %p218
      %s221 = sadd.s32 %s220, 1
      %p224 = scmp.eq.s32.totalorder %s18, 1
      %p225 = scmp.ne.s32.totalorder %s220, %s222
      %p226 = scmp.eq.s32.totalorder %s18, 0
      %p227 = por %p225, %p226
      %p228 = scmp.ne.s32.totalorder %s220, %s222
      %p229 = scmp.eq.s32.totalorder %s23, 1
      %p230 = por %p228, %p229
      %p231 = scmp.ne.s32.totalorder %s222, %s223
      %p232 = scmp.eq.s32.totalorder %s23, 0
      %p233 = por %p231, %p232
      %p234 = scmp.ne.s32.totalorder %s222, %s223
      %p235 = scmp.eq.s32.totalorder %s24, 1
      %p236 = por %p234, %p235
      %p238 = scmp.ne.s32.totalorder %s223, %s237
      %p239 = scmp.eq.s32.totalorder %s24, 0
      %p240 = por %p238, %p239
      %s241 = ssub.s32 %s25, %s37
      %s242 = ssub.s32 %s26, %s33
      %s243 = sor.u32 %s241, %s242
      %p244 = scmp.eq.s32.totalorder %s243, 0
      %s246 = sadd.s32 %s245, 1
      %s247 = scalar_select %p244, %s245, %s246
      %p250 = pneg %p244
      %p251 = scmp.eq.s32.totalorder %s18, 1
      %p252 = por %p250, %p251
      %p253 = scmp.ne.s32.totalorder %s245, %s248
      %p254 = scmp.eq.s32.totalorder %s18, 0
      %p255 = por %p253, %p254
      %p256 = scmp.ne.s32.totalorder %s245, %s248
      %p257 = scmp.eq.s32.totalorder %s23, 1
      %p258 = por %p256, %p257
      %p259 = scmp.ne.s32.totalorder %s248, %s249
      %p260 = scmp.eq.s32.totalorder %s23, 0
      %p261 = por %p259, %p260
      %p262 = scmp.ne.s32.totalorder %s248, %s249
      %p263 = scmp.eq.s32.totalorder %s24, 1
      %p264 = por %p262, %p263
      %p266 = scmp.ne.s32.totalorder %s249, %s265
      %p267 = scmp.eq.s32.totalorder %s24, 0
      %p268 = por %p266, %p267
      %p269 = scmp.le.s32.totalorder 1, %s18
      %p270 = scmp.lt.s32.totalorder %s18, 3
      %p271 = pnand %p269, %p270
      %p272 = pneg %p271
      // Predicated region
      $region9: #{transformer_forward.5} parent=5 // pred_check
        _
      $region10: #{transformer_forward.5} parent=5 // pred_check_branch
        %274 = sbr.rel (%p271) target = $region12
      $region11: #{transformer_forward.5} parent=5 // pred_region
        %s275 = ssub.s32 %s18, 1
        // Predicated region
        $region13: #{transformer_forward.5} parent=11 // pred_check
          %p276 = pneg %p107
        $region14: #{transformer_forward.5} parent=11 // pred_check_branch
          %278 = sbr.rel (%p276) target = $region16
        $region15: #{transformer_forward.5} parent=11 // pred_region
          _
        $region16: #{transformer_forward.5} parent=11 // pred_fallthru
          _
        // Predicated region
        $region17: #{transformer_forward.5} parent=11 // pred_check
          %p279 = pneg %p128
        $region18: #{transformer_forward.5} parent=11 // pred_check_branch
          %281 = sbr.rel (%p279) target = $region20
        $region19: #{transformer_forward.5} parent=11 // pred_region
          _
        $region20: #{transformer_forward.5} parent=11 // pred_fallthru
          _
        // Predicated region
        $region21: #{transformer_forward.5} parent=11 // pred_check
          %p282 = pneg %p149
        $region22: #{transformer_forward.5} parent=11 // pred_check_branch
          %284 = sbr.rel (%p282) target = $region24
        $region23: #{transformer_forward.5} parent=11 // pred_region
          _
        $region24: #{transformer_forward.5} parent=11 // pred_fallthru
          _
        // Predicated region
        $region25: #{transformer_forward.5} parent=11 // pred_check
          %p285 = pneg %p170
        $region26: #{transformer_forward.5} parent=11 // pred_check_branch
          %287 = sbr.rel (%p285) target = $region28
        $region27: #{transformer_forward.5} parent=11 // pred_region
          _
        $region28: #{transformer_forward.5} parent=11 // pred_fallthru
          _
        // Predicated region
        $region29: #{transformer_forward.5} parent=11 // pred_check
          %p288 = pneg %p191
        $region30: #{transformer_forward.5} parent=11 // pred_check_branch
          %290 = sbr.rel (%p288) target = $region32
        $region31: #{transformer_forward.5} parent=11 // pred_region
          _
        $region32: #{transformer_forward.5} parent=11 // pred_fallthru
          _
        // Predicated region
        $region33: #{transformer_forward.5} parent=11 // pred_check
          %p291 = pneg %p212
        $region34: #{transformer_forward.5} parent=11 // pred_check_branch
          %293 = sbr.rel (%p291) target = $region36
        $region35: #{transformer_forward.5} parent=11 // pred_region
          _
        $region36: #{transformer_forward.5} parent=11 // pred_fallthru
          _
        // Predicated region
        $region37: #{transformer_forward.5} parent=11 // pred_check
          %p294 = pneg %p233
        $region38: #{transformer_forward.5} parent=11 // pred_check_branch
          %296 = sbr.rel (%p294) target = $region40
        $region39: #{transformer_forward.5} parent=11 // pred_region
          _
        $region40: #{transformer_forward.5} parent=11 // pred_fallthru
          _
      $region12: #{transformer_forward.5} parent=5 // pred_fallthru
        _
      %p297 = scmp.lt.s32.totalorder %s18, 2
      // Predicated region
      $region41: #{transformer_forward.5} parent=5 // pred_check
        %p298 = pneg %p297
      $region42: #{transformer_forward.5} parent=5 // pred_check_branch
        %300 = sbr.rel (%p298) target = $region44
      $region43: #{transformer_forward.5} parent=5 // pred_region
        // Predicated region
        $region45: #{transformer_forward.5} parent=43 // pred_check
          %p301 = pneg %p52
        $region46: #{transformer_forward.5} parent=43 // pred_check_branch
          %303 = sbr.rel (%p301) target = $region48
        $region47: #{transformer_forward.5} parent=43 // pred_region
          %s304 = smul.u32 16, %s26
          %p305 = scmp.lt.s32.totalorder %s25, 1
          %s306 = scalar_select %p305, %s25, 1
          %p307 = scmp.lt.s32.totalorder %s304, 15
          %s308 = scalar_select %p307, %s304, 15
          %s309 = smul.addr %s306, 16
          %s310 = sadd.s32 %s308, %s309
          %s311 = smul.addr %s310, 4
          %s312 = scalar_lea.vmem %s0, %s311
          %s313 = smul.u32 16, %s26
        $region48: #{transformer_forward.5} parent=43 // pred_fallthru
          _
        // Predicated region
        $region49: #{transformer_forward.5} parent=43 // pred_check
          %p314 = pneg %p80
        $region50: #{transformer_forward.5} parent=43 // pred_check_branch
          %316 = sbr.rel (%p314) target = $region52
        $region51: #{transformer_forward.5} parent=43 // pred_region
          %s317 = smul.u32 16, %s26
          %p318 = scmp.lt.s32.totalorder %s25, 1
          %s319 = scalar_select %p318, %s25, 1
          %p320 = scmp.lt.s32.totalorder %s317, 15
          %s321 = scalar_select %p320, %s317, 15
          %s322 = smul.addr %s319, 16
          %s323 = sadd.s32 %s321, %s322
          %s324 = smul.addr %s323, 8
          %s325 = scalar_lea.vmem %s1, %s324
          %s326 = smul.u32 16, %s26
        $region52: #{transformer_forward.5} parent=43 // pred_fallthru
          _
      $region44: #{transformer_forward.5} parent=5 // pred_fallthru
        _
      %p327 = scmp.le.s32.totalorder 1, %s18
      %p328 = scmp.lt.s32.totalorder %s18, 3
      %p329 = pnand %p327, %p328
      %p330 = pneg %p329
      // Predicated region
      $region53: #{transformer_forward.5} parent=5 // pred_check
        _
      $region54: #{transformer_forward.5} parent=5 // pred_check_branch
        %332 = sbr.rel (%p329) target = $region56
      $region55: #{transformer_forward.5} parent=5 // pred_region
        %s333 = ssub.s32 %s18, 1
        %s334 = smul.u32 16, %s28
        %p335 = scmp.lt.s32.totalorder %s27, 1
        %s336 = scalar_select %p335, %s27, 1
        %p337 = scmp.lt.s32.totalorder %s334, 15
        %s338 = scalar_select %p337, %s334, 15
        %s339 = smul.addr %s336, 16
        %s340 = sadd.s32 %s338, %s339
        %s341 = smul.addr %s340, 4
        %s342 = scalar_lea.vmem %s0, %s341
        %p343 = pneg %p58
        %p344 = pneg %p55
        %s345 = smul.u32 16, %s28
        %p346 = scmp.lt.s32.totalorder %s27, 1
        %s347 = scalar_select %p346, %s27, 1
        %p348 = scmp.lt.s32.totalorder %s345, 15
        %s349 = scalar_select %p348, %s345, 15
        %s350 = smul.addr %s347, 16
        %s351 = sadd.s32 %s349, %s350
        %s352 = smul.addr %s351, 8
        %s353 = scalar_lea.vmem %s1, %s352
        %p354 = pneg %p86
        %p355 = pneg %p83
        %p356 = pneg %p107
        %p357 = pneg %p104
        %p358 = pneg %p128
        %p359 = pneg %p125
        %p360 = pneg %p149
        %p361 = pneg %p146
        %p362 = pneg %p170
        %p363 = pneg %p167
        %p364 = pneg %p191
        %p365 = pneg %p188
        %p366 = pneg %p212
        %p367 = pneg %p209
        %p368 = pneg %p233
        %p369 = pneg %p230
        %p370 = pneg %p261
        %p371 = pneg %p258
        %s372 = sand.u32 %s248, 1
        %s373 = scalar_lea.sflag [#allocation3], %s372
        %s374 = sand.u32 %s248, 1
        %s375 = smul.addr %s374, 128
        %s376 = scalar_lea.vmem [#allocation2], %s375
        %s377 = smul.u32 16, %s28
        %p378 = scmp.lt.s32.totalorder %s27, 1
        %s379 = scalar_select %p378, %s27, 1
        %p380 = scmp.lt.s32.totalorder %s377, 15
        %s381 = scalar_select %p380, %s377, 15
        %s382 = smul.addr %s379, 16
        %s383 = sadd.s32 %s381, %s382
        %s384 = smul.addr %s383, 4
        %s385 = scalar_lea.vmem %s0, %s384
        %s386 = smul.u32 16, %s28
        %s387 = smul.u32 16, %s28
        %p388 = scmp.lt.s32.totalorder %s27, 1
        %s389 = scalar_select %p388, %s27, 1
        %p390 = scmp.lt.s32.totalorder %s387, 15
        %s391 = scalar_select %p390, %s387, 15
        %s392 = smul.addr %s389, 16
        %s393 = sadd.s32 %s391, %s392
        %s394 = smul.addr %s393, 8
        %s395 = scalar_lea.vmem %s1, %s394
        %s396 = smul.u32 16, %s28
        %s397 = smul.u32 16, %s28
        %v399 = vld [vmem:[%s385] sm:$0xf]
        %v400 = vld [vmem:[%s385 + $0x4] sm:$0xf]
        %v401 = vld [vmem:[%s385 + $0x8] sm:$0xf]
        %v402 = vld [vmem:[%s385 + $0xc] sm:$0xf]
        %v403 = vld [vmem:[%s385 + $0x10] sm:$0xf]
        %v404 = vld [vmem:[%s385 + $0x14] sm:$0xf]
        %v405 = vld [vmem:[%s385 + $0x18] sm:$0xf]
        %v406 = vld [vmem:[%s385 + $0x1c] sm:$0xf]
        %v407 = vld [vmem:[%s385 + $0x20] sm:$0xf]
        %v408 = vld [vmem:[%s385 + $0x24] sm:$0xf]
        %v409 = vld [vmem:[%s385 + $0x28] sm:$0xf]
        %v410 = vld [vmem:[%s385 + $0x2c] sm:$0xf]
        %v411 = vld [vmem:[%s385 + $0x30] sm:$0xf]
        %v412 = vld [vmem:[%s385 + $0x34] sm:$0xf]
        %v413 = vld [vmem:[%s385 + $0x38] sm:$0xf]
        %v414 = vld [vmem:[%s385 + $0x3c] sm:$0xf]
        %v415 = vld [vmem:[%s395] sm:$0xff]
        %v416 = vld [vmem:[%s395 + $0x8] sm:$0xff]
        %v417 = vld [vmem:[%s395 + $0x10] sm:$0xff]
        %v418 = vld [vmem:[%s395 + $0x18] sm:$0xff]
        %v419 = vld [vmem:[%s395 + $0x20] sm:$0xff]
        %v420 = vld [vmem:[%s395 + $0x28] sm:$0xff]
        %v421 = vld [vmem:[%s395 + $0x30] sm:$0xff]
        %v422 = vld [vmem:[%s395 + $0x38] sm:$0xff]
        %v423 = vld [vmem:[%s395 + $0x40] sm:$0xff]
        %v424 = vld [vmem:[%s395 + $0x48] sm:$0xff]
        %v425 = vld [vmem:[%s395 + $0x50] sm:$0xff]
        %v426 = vld [vmem:[%s395 + $0x58] sm:$0xff]
        %v427 = vld [vmem:[%s395 + $0x60] sm:$0xff]
        %v428 = vld [vmem:[%s395 + $0x68] sm:$0xff]
        %v429 = vld [vmem:[%s395 + $0x70] sm:$0xff]
        %v430 = vld [vmem:[%s395 + $0x78] sm:$0xff]
        %v431 = vld [vmem:[%s2] sm:$0xf]
        %v432 = vld [vmem:[%s2 + $0x4] sm:$0xf]
        %v433 = vld [vmem:[%s2 + $0x8] sm:$0xf]
        %v434 = vld [vmem:[%s2 + $0xc] sm:$0xf]
        %v435 = vld [vmem:[%s2 + $0x10] sm:$0xf]
        %v436 = vld [vmem:[%s2 + $0x14] sm:$0xf]
        %v437 = vld [vmem:[%s2 + $0x18] sm:$0xf]
        %v438 = vld [vmem:[%s2 + $0x1c] sm:$0xf]
        %v439 = vld [vmem:[%s2 + $0x20] sm:$0xf]
        %v440 = vld [vmem:[%s2 + $0x24] sm:$0xf]
        %v441 = vld [vmem:[%s2 + $0x28] sm:$0xf]
        %v442 = vld [vmem:[%s2 + $0x2c] sm:$0xf]
        %v443 = vld [vmem:[%s2 + $0x30] sm:$0xf]
        %v444 = vld [vmem:[%s2 + $0x34] sm:$0xf]
        %v445 = vld [vmem:[%s2 + $0x38] sm:$0xf]
        %v446 = vld [vmem:[%s2 + $0x3c] sm:$0xf]
        %v447 = vld [vmem:[%s3] sm:$0x1]
        %v449 = vlaneseq
        %v450 = vshrl.u32 %v449, 7
        %v451 = vsub.s32 0, %v450
        %v452 = vrot.slane %v447, %v451
        %v470 = vunpack.c.l.b16 %v399
        %v471 = vunpack.c.l.b16 %v400
        %v472 = vunpack.c.l.b16 %v401
        %v473 = vunpack.c.l.b16 %v402
        %v474 = vunpack.c.l.b16 %v403
        %v475 = vunpack.c.l.b16 %v404
        %v476 = vunpack.c.l.b16 %v405
        %v477 = vunpack.c.l.b16 %v406
        %v478 = vunpack.c.l.b16 %v407
        %v479 = vunpack.c.l.b16 %v408
        %v480 = vunpack.c.l.b16 %v409
        %v481 = vunpack.c.l.b16 %v410
        %v482 = vunpack.c.l.b16 %v411
        %v483 = vunpack.c.l.b16 %v412
        %v484 = vunpack.c.l.b16 %v413
        %v485 = vunpack.c.l.b16 %v414
        %v486 = vpack.c.b16 %v471, %v470
        %v487 = vpack.c.b16 %v473, %v472
        %v488 = vpack.c.b16 %v475, %v474
        %v489 = vpack.c.b16 %v477, %v476
        %v490 = vpack.c.b16 %v479, %v478
        %v491 = vpack.c.b16 %v481, %v480
        %v492 = vpack.c.b16 %v483, %v482
        %v493 = vpack.c.b16 %v485, %v484
        %v518 = vunpack.c.l.b16 %v431
        %v519 = vunpack.c.l.b16 %v432
        %v520 = vunpack.c.l.b16 %v433
        %v521 = vunpack.c.l.b16 %v434
        %v522 = vunpack.c.l.b16 %v435
        %v523 = vunpack.c.l.b16 %v436
        %v524 = vunpack.c.l.b16 %v437
        %v525 = vunpack.c.l.b16 %v438
        %v526 = vunpack.c.l.b16 %v439
        %v527 = vunpack.c.l.b16 %v440
        %v528 = vunpack.c.l.b16 %v441
        %v529 = vunpack.c.l.b16 %v442
        %v530 = vunpack.c.l.b16 %v443
        %v531 = vunpack.c.l.b16 %v444
        %v532 = vunpack.c.l.b16 %v445
        %v533 = vunpack.c.l.b16 %v446
        %v534 = vpack.c.b16 %v519, %v518
        %v535 = vpack.c.b16 %v521, %v520
        %v536 = vpack.c.b16 %v523, %v522
        %v537 = vpack.c.b16 %v525, %v524
        %v538 = vpack.c.b16 %v527, %v526
        %v539 = vpack.c.b16 %v529, %v528
        %v540 = vpack.c.b16 %v531, %v530
        %v541 = vpack.c.b16 %v533, %v532
        %550 = vmatprep.subr.bf16.mxu0 0
        %551 = vmatpush1.bf16.msra.mxu0 %v534
        %552 = vmatprep.subr.bf16.mxu0 0
        %553 = vmatpush1.bf16.msra.mxu0 %v535
        %554 = vmatprep.subr.bf16.mxu0 0
        %555 = vmatpush1.bf16.msra.mxu0 %v536
        %556 = vmatprep.subr.bf16.mxu0 0
        %557 = vmatpush1.bf16.msra.mxu0 %v537
        %558 = vmatprep.subr.bf16.mxu0 0
        %559 = vmatpush1.bf16.msra.mxu0 %v538
        %560 = vmatprep.subr.bf16.mxu0 0
        %561 = vmatpush1.bf16.msra.mxu0 %v539
        %562 = vmatprep.subr.bf16.mxu0 0
        %563 = vmatpush1.bf16.msra.mxu0 %v540
        %564 = vmatprep.subr.bf16.mxu0 0
        %565 = vmatpush1.bf16.msra.mxu0 %v541
        %566 = vmatprep.subr.bf16.mxu0 0
        %567 = vmatpush1.bf16.msra.mxu0 0
        %568 = vmatprep.subr.bf16.mxu0 0
        %569 = vmatpush1.bf16.msra.mxu0 0
        %570 = vmatprep.subr.bf16.mxu0 0
        %571 = vmatpush1.bf16.msra.mxu0 0
        %572 = vmatprep.subr.bf16.mxu0 0
        %573 = vmatpush1.bf16.msra.mxu0 0
        %574 = vmatprep.subr.bf16.mxu0 0
        %575 = vmatpush1.bf16.msra.mxu0 0
        %576 = vmatprep.subr.bf16.mxu0 0
        %577 = vmatpush1.bf16.msra.mxu0 0
        %578 = vmatprep.subr.bf16.mxu0 0
        %579 = vmatpush1.bf16.msra.mxu0 0
        %580 = vmatprep.subr.bf16.mxu0 0
        %581 = vmatpush1.bf16.msra.mxu0 0
        %582 = vmatprep.mubr.bf16.mxu0 0
        %583 = vmatmul.mubr.bf16.gmra.mrb[0].mxu0 %v486
        %v584 = vpop.f32.mrb[0].mxu0
        %v585 = vadd.f32 %v452, %v584
        %v586 = vpop.f32.mrb[0].mxu0
        %v587 = vpop.f32.mrb[0].mxu0
        %v588 = vadd.f32 %v452, %v587
        %v589 = vpop.f32.mrb[0].mxu0
        %590 = vmatprep.mubr.bf16.mxu0 0
        %591 = vmatmul.mubr.bf16.gmra.mrb[0].mxu0 %v487
        %v592 = vpop.f32.mrb[0].mxu0
        %v593 = vadd.f32 %v452, %v592
        %v594 = vpop.f32.mrb[0].mxu0
        %v595 = vpop.f32.mrb[0].mxu0
        %v596 = vadd.f32 %v452, %v595
        %v597 = vpop.f32.mrb[0].mxu0
        %598 = vmatprep.mubr.bf16.mxu0 0
        %599 = vmatmul.mubr.bf16.gmra.mrb[0].mxu0 %v488
        %v600 = vpop.f32.mrb[0].mxu0
        %v601 = vadd.f32 %v452, %v600
        %v602 = vpop.f32.mrb[0].mxu0
        %v603 = vpop.f32.mrb[0].mxu0
        %v604 = vadd.f32 %v452, %v603
        %v605 = vpop.f32.mrb[0].mxu0
        %606 = vmatprep.mubr.bf16.mxu0 0
        %607 = vmatmul.mubr.bf16.gmra.mrb[0].mxu0 %v489
        %v608 = vpop.f32.mrb[0].mxu0
        %v609 = vadd.f32 %v452, %v608
        %v610 = vpop.f32.mrb[0].mxu0
        %v611 = vpop.f32.mrb[0].mxu0
        %v612 = vadd.f32 %v452, %v611
        %v613 = vpop.f32.mrb[0].mxu0
        %614 = vmatprep.mubr.bf16.mxu0 0
        %615 = vmatmul.mubr.bf16.gmra.mrb[0].mxu0 %v490
        %v616 = vpop.f32.mrb[0].mxu0
        %v617 = vadd.f32 %v452, %v616
        %v618 = vpop.f32.mrb[0].mxu0
        %v619 = vpop.f32.mrb[0].mxu0
        %v620 = vadd.f32 %v452, %v619
        %v621 = vpop.f32.mrb[0].mxu0
        %622 = vmatprep.mubr.bf16.mxu0 0
        %623 = vmatmul.mubr.bf16.gmra.mrb[0].mxu0 %v491
        %v624 = vpop.f32.mrb[0].mxu0
        %v625 = vadd.f32 %v452, %v624
        %v626 = vpop.f32.mrb[0].mxu0
        %v627 = vpop.f32.mrb[0].mxu0
        %v628 = vadd.f32 %v452, %v627
        %v629 = vpop.f32.mrb[0].mxu0
        %630 = vmatprep.mubr.bf16.mxu0 0
        %631 = vmatmul.mubr.bf16.gmra.mrb[0].mxu0 %v492
        %v632 = vpop.f32.mrb[0].mxu0
        %v633 = vadd.f32 %v452, %v632
        %v634 = vpop.f32.mrb[0].mxu0
        %v635 = vpop.f32.mrb[0].mxu0
        %v636 = vadd.f32 %v452, %v635
        %v637 = vpop.f32.mrb[0].mxu0
        %638 = vmatprep.mubr.bf16.mxu0 0
        %639 = vmatmul.mubr.bf16.gmra.mrb[0].mxu0 %v493
        %v640 = vpop.f32.mrb[0].mxu0
        %v641 = vadd.f32 %v452, %v640
        %v642 = vpop.f32.mrb[0].mxu0
        %v643 = vpop.f32.mrb[0].mxu0
        %v644 = vadd.f32 %v452, %v643
        %v645 = vpop.f32.mrb[0].mxu0
        %646 = vdwg.mxu0
        %v647 = vadd.f32 %v585, %v415
        %v648 = vadd.f32 %v588, %v416
        %v649 = vadd.f32 %v593, %v417
        %v650 = vadd.f32 %v596, %v418
        %v651 = vadd.f32 %v601, %v419
        %v652 = vadd.f32 %v604, %v420
        %v653 = vadd.f32 %v609, %v421
        %v654 = vadd.f32 %v612, %v422
        %v655 = vadd.f32 %v617, %v423
        %v656 = vadd.f32 %v620, %v424
        %v657 = vadd.f32 %v625, %v425
        %v658 = vadd.f32 %v628, %v426
        %v659 = vadd.f32 %v633, %v427
        %v660 = vadd.f32 %v636, %v428
        %v661 = vadd.f32 %v641, %v429
        %v662 = vadd.f32 %v644, %v430
        %v663 = vld [vmem:[%s4] sm:$0x1]
        %v664 = vmul.f32 %v647, %v647
        %v665 = vmul.f32 %v648, %v648
        %v666 = vmul.f32 %v649, %v649
        %v667 = vmul.f32 %v650, %v650
        %v668 = vmul.f32 %v651, %v651
        %v669 = vmul.f32 %v652, %v652
        %v670 = vmul.f32 %v653, %v653
        %v671 = vmul.f32 %v654, %v654
        %v672 = vmul.f32 %v655, %v655
        %v673 = vmul.f32 %v656, %v656
        %v674 = vmul.f32 %v657, %v657
        %v675 = vmul.f32 %v658, %v658
        %v676 = vmul.f32 %v659, %v659
        %v677 = vmul.f32 %v660, %v660
        %v678 = vmul.f32 %v661, %v661
        %v679 = vmul.f32 %v662, %v662
        %680 = vadd.xlane.f32.xlu0 %v664
        %v681 = vpop.xlane.xlu0 %680
        %682 = vadd.xlane.f32.xlu0 %v665
        %v683 = vpop.xlane.xlu0 %682
        %684 = vadd.xlane.f32.xlu0 %v666
        %v685 = vpop.xlane.xlu0 %684
        %686 = vadd.xlane.f32.xlu0 %v667
        %v687 = vpop.xlane.xlu0 %686
        %688 = vadd.xlane.f32.xlu0 %v668
        %v689 = vpop.xlane.xlu0 %688
        %690 = vadd.xlane.f32.xlu0 %v669
        %v691 = vpop.xlane.xlu0 %690
        %692 = vadd.xlane.f32.xlu0 %v670
        %v693 = vpop.xlane.xlu0 %692
        %694 = vadd.xlane.f32.xlu0 %v671
        %v695 = vpop.xlane.xlu0 %694
        %696 = vadd.xlane.f32.xlu0 %v672
        %v697 = vpop.xlane.xlu0 %696
        %698 = vadd.xlane.f32.xlu0 %v673
        %v699 = vpop.xlane.xlu0 %698
        %700 = vadd.xlane.f32.xlu0 %v674
        %v701 = vpop.xlane.xlu0 %700
        %702 = vadd.xlane.f32.xlu0 %v675
        %v703 = vpop.xlane.xlu0 %702
        %704 = vadd.xlane.f32.xlu0 %v676
        %v705 = vpop.xlane.xlu0 %704
        %706 = vadd.xlane.f32.xlu0 %v677
        %v707 = vpop.xlane.xlu0 %706
        %708 = vadd.xlane.f32.xlu0 %v678
        %v709 = vpop.xlane.xlu0 %708
        %710 = vadd.xlane.f32.xlu0 %v679
        %v711 = vpop.xlane.xlu0 %710
        %v712 = vrcp.pop 128.0
        %v713 = vmul.f32 %v681, %v712
        %v714 = vmul.f32 %v683, %v712
        %v715 = vmul.f32 %v685, %v712
        %v716 = vmul.f32 %v687, %v712
        %v717 = vmul.f32 %v689, %v712
        %v718 = vmul.f32 %v691, %v712
        %v719 = vmul.f32 %v693, %v712
        %v720 = vmul.f32 %v695, %v712
        %v721 = vmul.f32 %v697, %v712
        %v722 = vmul.f32 %v699, %v712
        %v723 = vmul.f32 %v701, %v712
        %v724 = vmul.f32 %v703, %v712
        %v725 = vmul.f32 %v705, %v712
        %v726 = vmul.f32 %v707, %v712
        %v727 = vmul.f32 %v709, %v712
        %v728 = vmul.f32 %v711, %v712
        %v729 = vadd.f32 %v713, 1e-06
        %v730 = vadd.f32 %v714, 1e-06
        %v731 = vadd.f32 %v715, 1e-06
        %v732 = vadd.f32 %v716, 1e-06
        %v733 = vadd.f32 %v717, 1e-06
        %v734 = vadd.f32 %v718, 1e-06
        %v735 = vadd.f32 %v719, 1e-06
        %v736 = vadd.f32 %v720, 1e-06
        %v737 = vadd.f32 %v721, 1e-06
        %v738 = vadd.f32 %v722, 1e-06
        %v739 = vadd.f32 %v723, 1e-06
        %v740 = vadd.f32 %v724, 1e-06
        %v741 = vadd.f32 %v725, 1e-06
        %v742 = vadd.f32 %v726, 1e-06
        %v743 = vadd.f32 %v727, 1e-06
        %v744 = vadd.f32 %v728, 1e-06
        %v745 = vrsqrt.pop %v729
        %v746 = vrsqrt.pop %v730
        %v747 = vrsqrt.pop %v731
        %v748 = vrsqrt.pop %v732
        %v749 = vrsqrt.pop %v733
        %v750 = vrsqrt.pop %v734
        %v751 = vrsqrt.pop %v735
        %v752 = vrsqrt.pop %v736
        %v753 = vrsqrt.pop %v737
        %v754 = vrsqrt.pop %v738
        %v755 = vrsqrt.pop %v739
        %v756 = vrsqrt.pop %v740
        %v757 = vrsqrt.pop %v741
        %v758 = vrsqrt.pop %v742
        %v759 = vrsqrt.pop %v743
        %v760 = vrsqrt.pop %v744
        %v761 = vmul.f32 %v647, %v745
        %v762 = vmul.f32 %v648, %v746
        %v763 = vmul.f32 %v649, %v747
        %v764 = vmul.f32 %v650, %v748
        %v765 = vmul.f32 %v651, %v749
        %v766 = vmul.f32 %v652, %v750
        %v767 = vmul.f32 %v653, %v751
        %v768 = vmul.f32 %v654, %v752
        %v769 = vmul.f32 %v655, %v753
        %v770 = vmul.f32 %v656, %v754
        %v771 = vmul.f32 %v657, %v755
        %v772 = vmul.f32 %v658, %v756
        %v773 = vmul.f32 %v659, %v757
        %v774 = vmul.f32 %v660, %v758
        %v775 = vmul.f32 %v661, %v759
        %v776 = vmul.f32 %v662, %v760
        %v778 = vlaneseq
        %v779 = vshrl.u32 %v778, 7
        %v780 = vsub.s32 0, %v779
        %v781 = vrot.slane %v663, %v780
        %v783 = vmul.f32 %v761, %v781
        %v784 = vmul.f32 %v762, %v781
        %v785 = vmul.f32 %v763, %v781
        %v786 = vmul.f32 %v764, %v781
        %v787 = vmul.f32 %v765, %v781
        %v788 = vmul.f32 %v766, %v781
        %v789 = vmul.f32 %v767, %v781
        %v790 = vmul.f32 %v768, %v781
        %v791 = vmul.f32 %v769, %v781
        %v792 = vmul.f32 %v770, %v781
        %v793 = vmul.f32 %v771, %v781
        %v794 = vmul.f32 %v772, %v781
        %v795 = vmul.f32 %v773, %v781
        %v796 = vmul.f32 %v774, %v781
        %v797 = vmul.f32 %v775, %v781
        %v798 = vmul.f32 %v776, %v781
        %v799 = vpack.c.bf16 %v784, %v783
        %v800 = vpack.c.bf16 %v786, %v785
        %v801 = vpack.c.bf16 %v788, %v787
        %v802 = vpack.c.bf16 %v790, %v789
        %v803 = vpack.c.bf16 %v792, %v791
        %v804 = vpack.c.bf16 %v794, %v793
        %v805 = vpack.c.bf16 %v796, %v795
        %v806 = vpack.c.bf16 %v798, %v797
        %v807 = vld [vmem:[%s5] sm:$0xff]
        %v808 = vld [vmem:[%s5 + $0x8] sm:$0xff]
        %v809 = vld [vmem:[%s5 + $0x10] sm:$0xff]
        %v810 = vld [vmem:[%s5 + $0x18] sm:$0xff]
        %v811 = vld [vmem:[%s5 + $0x20] sm:$0xff]
        %v812 = vld [vmem:[%s5 + $0x28] sm:$0xff]
        %v813 = vld [vmem:[%s5 + $0x30] sm:$0xff]
        %v814 = vld [vmem:[%s5 + $0x38] sm:$0xff]
        %v815 = vld [vmem:[%s5 + $0x40] sm:$0xff]
        %v816 = vld [vmem:[%s5 + $0x48] sm:$0xff]
        %v817 = vld [vmem:[%s5 + $0x50] sm:$0xff]
        %v818 = vld [vmem:[%s5 + $0x58] sm:$0xff]
        %v819 = vld [vmem:[%s5 + $0x60] sm:$0xff]
        %v820 = vld [vmem:[%s5 + $0x68] sm:$0xff]
        %v821 = vld [vmem:[%s5 + $0x70] sm:$0xff]
        %v822 = vld [vmem:[%s5 + $0x78] sm:$0xff]
        %v823 = vld [vmem:[%s5 + $0x80] sm:$0xff]
        %v824 = vld [vmem:[%s5 + $0x88] sm:$0xff]
        %v825 = vld [vmem:[%s5 + $0x90] sm:$0xff]
        %v826 = vld [vmem:[%s5 + $0x98] sm:$0xff]
        %v827 = vld [vmem:[%s5 + $0xa0] sm:$0xff]
        %v828 = vld [vmem:[%s5 + $0xa8] sm:$0xff]
        %v829 = vld [vmem:[%s5 + $0xb0] sm:$0xff]
        %v830 = vld [vmem:[%s5 + $0xb8] sm:$0xff]
        %v831 = vld [vmem:[%s5 + $0xc0] sm:$0xff]
        %v832 = vld [vmem:[%s5 + $0xc8] sm:$0xff]
        %v833 = vld [vmem:[%s5 + $0xd0] sm:$0xff]
        %v834 = vld [vmem:[%s5 + $0xd8] sm:$0xff]
        %v835 = vld [vmem:[%s5 + $0xe0] sm:$0xff]
        %v836 = vld [vmem:[%s5 + $0xe8] sm:$0xff]
        %v837 = vld [vmem:[%s5 + $0xf0] sm:$0xff]
        %v838 = vld [vmem:[%s5 + $0xf8] sm:$0xff]
        %v839 = vld [vmem:[%s6] sm:$0xf]
        %v841 = vlaneseq
        %v842 = vshrl.u32 %v841, 7
        %v843 = vsub.s32 0, %v842
        %v844 = vrot.slane %v839, %v843
        %v845 = vlaneseq
        %v846 = vshrl.u32 %v845, 7
        %v847 = vsub.s32 1, %v846
        %v848 = vrot.slane %v839, %v847
        %v849 = vlaneseq
        %v850 = vshrl.u32 %v849, 7
        %v851 = vsub.s32 2, %v850
        %v852 = vrot.slane %v839, %v851
        %v853 = vlaneseq
        %v854 = vshrl.u32 %v853, 7
        %v855 = vsub.s32 3, %v854
        %v856 = vrot.slane %v839, %v855
        %v893 = vunpack.c.l.b16 %v807
        %v894 = vunpack.c.h.b16 %v807
        %v895 = vunpack.c.l.b16 %v808
        %v896 = vunpack.c.h.b16 %v808
        %v897 = vunpack.c.l.b16 %v809
        %v898 = vunpack.c.h.b16 %v809
        %v899 = vunpack.c.l.b16 %v810
        %v900 = vunpack.c.h.b16 %v810
        %v901 = vunpack.c.l.b16 %v811
        %v902 = vunpack.c.h.b16 %v811
        %v903 = vunpack.c.l.b16 %v812
        %v904 = vunpack.c.h.b16 %v812
        %v905 = vunpack.c.l.b16 %v813
        %v906 = vunpack.c.h.b16 %v813
        %v907 = vunpack.c.l.b16 %v814
        %v908 = vunpack.c.h.b16 %v814
        %v909 = vunpack.c.l.b16 %v815
        %v910 = vunpack.c.h.b16 %v815
        %v911 = vunpack.c.l.b16 %v816
        %v912 = vunpack.c.h.b16 %v816
        %v913 = vunpack.c.l.b16 %v817
        %v914 = vunpack.c.h.b16 %v817
        %v915 = vunpack.c.l.b16 %v818
        %v916 = vunpack.c.h.b16 %v818
        %v917 = vunpack.c.l.b16 %v819
        %v918 = vunpack.c.h.b16 %v819
        %v919 = vunpack.c.l.b16 %v820
        %v920 = vunpack.c.h.b16 %v820
        %v921 = vunpack.c.l.b16 %v821
        %v922 = vunpack.c.h.b16 %v821
        %v923 = vunpack.c.l.b16 %v822
        %v924 = vunpack.c.h.b16 %v822
        %v925 = vunpack.c.l.b16 %v823
        %v926 = vunpack.c.h.b16 %v823
        %v927 = vunpack.c.l.b16 %v824
        %v928 = vunpack.c.h.b16 %v824
        %v929 = vunpack.c.l.b16 %v825
        %v930 = vunpack.c.h.b16 %v825
        %v931 = vunpack.c.l.b16 %v826
        %v932 = vunpack.c.h.b16 %v826
        %v933 = vunpack.c.l.b16 %v827
        %v934 = vunpack.c.h.b16 %v827
        %v935 = vunpack.c.l.b16 %v828
        %v936 = vunpack.c.h.b16 %v828
        %v937 = vunpack.c.l.b16 %v829
        %v938 = vunpack.c.h.b16 %v829
        %v939 = vunpack.c.l.b16 %v830
        %v940 = vunpack.c.h.b16 %v830
        %v941 = vunpack.c.l.b16 %v831
        %v942 = vunpack.c.h.b16 %v831
        %v943 = vunpack.c.l.b16 %v832
        %v944 = vunpack.c.h.b16 %v832
        %v945 = vunpack.c.l.b16 %v833
        %v946 = vunpack.c.h.b16 %v833
        %v947 = vunpack.c.l.b16 %v834
        %v948 = vunpack.c.h.b16 %v834
        %v949 = vunpack.c.l.b16 %v835
        %v950 = vunpack.c.h.b16 %v835
        %v951 = vunpack.c.l.b16 %v836
        %v952 = vunpack.c.h.b16 %v836
        %v953 = vunpack.c.l.b16 %v837
        %v954 = vunpack.c.h.b16 %v837
        %v955 = vunpack.c.l.b16 %v838
        %v956 = vunpack.c.h.b16 %v838
        %v957 = vpack.c.b16 %v897, %v893
        %v958 = vpack.c.b16 %v898, %v894
        %v959 = vpack.c.b16 %v899, %v895
        %v960 = vpack.c.b16 %v900, %v896
        %v961 = vpack.c.b16 %v905, %v901
        %v962 = vpack.c.b16 %v906, %v902
        %v963 = vpack.c.b16 %v907, %v903
        %v964 = vpack.c.b16 %v908, %v904
        %v965 = vpack.c.b16 %v913, %v909
        %v966 = vpack.c.b16 %v914, %v910
        %v967 = vpack.c.b16 %v915, %v911
        %v968 = vpack.c.b16 %v916, %v912
        %v969 = vpack.c.b16 %v921, %v917
        %v970 = vpack.c.b16 %v922, %v918
        %v971 = vpack.c.b16 %v923, %v919
        %v972 = vpack.c.b16 %v924, %v920
        %v973 = vpack.c.b16 %v929, %v925
        %v974 = vpack.c.b16 %v930, %v926
        %v975 = vpack.c.b16 %v931, %v927
        %v976 = vpack.c.b16 %v932, %v928
        %v977 = vpack.c.b16 %v937, %v933
        %v978 = vpack.c.b16 %v938, %v934
        %v979 = vpack.c.b16 %v939, %v935
        %v980 = vpack.c.b16 %v940, %v936
        %v981 = vpack.c.b16 %v945, %v941
        %v982 = vpack.c.b16 %v946, %v942
        %v983 = vpack.c.b16 %v947, %v943
        %v984 = vpack.c.b16 %v948, %v944
        %v985 = vpack.c.b16 %v953, %v949
        %v986 = vpack.c.b16 %v954, %v950
        %v987 = vpack.c.b16 %v955, %v951
        %v988 = vpack.c.b16 %v956, %v952
        %1021 = vmatprep.subr.bf16.mxu0 %v958
        %1022 = vmatpush1.bf16.msra.mxu0 %v957
        %1023 = vmatprep.subr.bf16.mxu0 %v962
        %1024 = vmatpush1.bf16.msra.mxu0 %v961
        %1025 = vmatprep.subr.bf16.mxu0 %v966
        %1026 = vmatpush1.bf16.msra.mxu0 %v965
        %1027 = vmatprep.subr.bf16.mxu0 %v970
        %1028 = vmatpush1.bf16.msra.mxu0 %v969
        %1029 = vmatprep.subr.bf16.mxu0 %v974
        %1030 = vmatpush1.bf16.msra.mxu0 %v973
        %1031 = vmatprep.subr.bf16.mxu0 %v978
        %1032 = vmatpush1.bf16.msra.mxu0 %v977
        %1033 = vmatprep.subr.bf16.mxu0 %v982
        %1034 = vmatpush1.bf16.msra.mxu0 %v981
        %1035 = vmatprep.subr.bf16.mxu0 %v986
        %1036 = vmatpush1.bf16.msra.mxu0 %v985
        %1037 = vmatprep.subr.bf16.mxu0 0
        %1038 = vmatpush1.bf16.msra.mxu0 0
        %1039 = vmatprep.subr.bf16.mxu0 0
        %1040 = vmatpush1.bf16.msra.mxu0 0
        %1041 = vmatprep.subr.bf16.mxu0 0
        %1042 = vmatpush1.bf16.msra.mxu0 0
        %1043 = vmatprep.subr.bf16.mxu0 0
        %1044 = vmatpush1.bf16.msra.mxu0 0
        %1045 = vmatprep.subr.bf16.mxu0 0
        %1046 = vmatpush1.bf16.msra.mxu0 0
        %1047 = vmatprep.subr.bf16.mxu0 0
        %1048 = vmatpush1.bf16.msra.mxu0 0
        %1049 = vmatprep.subr.bf16.mxu0 0
        %1050 = vmatpush1.bf16.msra.mxu0 0
        %1051 = vmatprep.subr.bf16.mxu0 0
        %1052 = vmatpush1.bf16.msra.mxu0 0
        %1053 = vmatprep.mubr.bf16.mxu0 0
        %1054 = vmatmul.mubr.bf16.gmra.mrb[0].mxu0 %v799
        %v1055 = vpop.f32.mrb[0].mxu0
        %v1056 = vadd.f32 %v844, %v1055
        %v1057 = vpop.f32.mrb[0].mxu0
        %v1058 = vadd.f32 %v848, %v1057
        %v1059 = vpop.f32.mrb[0].mxu0
        %v1060 = vadd.f32 %v844, %v1059
        %v1061 = vpop.f32.mrb[0].mxu0
        %v1062 = vadd.f32 %v848, %v1061
        %1063 = vmatprep.mubr.bf16.mxu0 0
        %1064 = vmatmul.mubr.bf16.gmra.mrb[0].mxu0 %v800
        %v1065 = vpop.f32.mrb[0].mxu0
        %v1066 = vadd.f32 %v844, %v1065
        %v1067 = vpop.f32.mrb[0].mxu0
        %v1068 = vadd.f32 %v848, %v1067
        %v1069 = vpop.f32.mrb[0].mxu0
        %v1070 = vadd.f32 %v844, %v1069
        %v1071 = vpop.f32.mrb[0].mxu0
        %v1072 = vadd.f32 %v848, %v1071
        %1073 = vmatprep.mubr.bf16.mxu0 0
        %1074 = vmatmul.mubr.bf16.gmra.mrb[0].mxu0 %v801
        %v1075 = vpop.f32.mrb[0].mxu0
        %v1076 = vadd.f32 %v844, %v1075
        %v1077 = vpop.f32.mrb[0].mxu0
        %v1078 = vadd.f32 %v848, %v1077
        %v1079 = vpop.f32.mrb[0].mxu0
        %v1080 = vadd.f32 %v844, %v1079
        %v1081 = vpop.f32.mrb[0].mxu0
        %v1082 = vadd.f32 %v848, %v1081
        %1083 = vmatprep.mubr.bf16.mxu0 0
        %1084 = vmatmul.mubr.bf16.gmra.mrb[0].mxu0 %v802
        %v1085 = vpop.f32.mrb[0].mxu0
        %v1086 = vadd.f32 %v844, %v1085
        %v1087 = vpop.f32.mrb[0].mxu0
        %v1088 = vadd.f32 %v848, %v1087
        %v1089 = vpop.f32.mrb[0].mxu0
        %v1090 = vadd.f32 %v844, %v1089
        %v1091 = vpop.f32.mrb[0].mxu0
        %v1092 = vadd.f32 %v848, %v1091
        %1093 = vmatprep.mubr.bf16.mxu0 0
        %1094 = vmatmul.mubr.bf16.gmra.mrb[0].mxu0 %v803
        %v1095 = vpop.f32.mrb[0].mxu0
        %v1096 = vadd.f32 %v844, %v1095
        %v1097 = vpop.f32.mrb[0].mxu0
        %v1098 = vadd.f32 %v848, %v1097
        %v1099 = vpop.f32.mrb[0].mxu0
        %v1100 = vadd.f32 %v844, %v1099
        %v1101 = vpop.f32.mrb[0].mxu0
        %v1102 = vadd.f32 %v848, %v1101
        %1103 = vmatprep.mubr.bf16.mxu0 0
        %1104 = vmatmul.mubr.bf16.gmra.mrb[0].mxu0 %v804
        %v1105 = vpop.f32.mrb[0].mxu0
        %v1106 = vadd.f32 %v844, %v1105
        %v1107 = vpop.f32.mrb[0].mxu0
        %v1108 = vadd.f32 %v848, %v1107
        %v1109 = vpop.f32.mrb[0].mxu0
        %v1110 = vadd.f32 %v844, %v1109
        %v1111 = vpop.f32.mrb[0].mxu0
        %v1112 = vadd.f32 %v848, %v1111
        %1113 = vmatprep.mubr.bf16.mxu0 0
        %1114 = vmatmul.mubr.bf16.gmra.mrb[0].mxu0 %v805
        %v1115 = vpop.f32.mrb[0].mxu0
        %v1116 = vadd.f32 %v844, %v1115
        %v1117 = vpop.f32.mrb[0].mxu0
        %v1118 = vadd.f32 %v848, %v1117
        %v1119 = vpop.f32.mrb[0].mxu0
        %v1120 = vadd.f32 %v844, %v1119
        %v1121 = vpop.f32.mrb[0].mxu0
        %v1122 = vadd.f32 %v848, %v1121
        %1123 = vmatprep.mubr.bf16.mxu0 0
        %1124 = vmatmul.mubr.bf16.gmra.mrb[0].mxu0 %v806
        %v1125 = vpop.f32.mrb[0].mxu0
        %v1126 = vadd.f32 %v844, %v1125
        %v1127 = vpop.f32.mrb[0].mxu0
        %v1128 = vadd.f32 %v848, %v1127
        %v1129 = vpop.f32.mrb[0].mxu0
        %v1130 = vadd.f32 %v844, %v1129
        %v1131 = vpop.f32.mrb[0].mxu0
        %v1132 = vadd.f32 %v848, %v1131
        %1133 = vdwg.mxu0
        %1134 = vmatprep.subr.bf16.mxu0 %v960
        %1135 = vmatpush1.bf16.msra.mxu0 %v959
        %1136 = vmatprep.subr.bf16.mxu0 %v964
        %1137 = vmatpush1.bf16.msra.mxu0 %v963
        %1138 = vmatprep.subr.bf16.mxu0 %v968
        %1139 = vmatpush1.bf16.msra.mxu0 %v967
        %1140 = vmatprep.subr.bf16.mxu0 %v972
        %1141 = vmatpush1.bf16.msra.mxu0 %v971
        %1142 = vmatprep.subr.bf16.mxu0 %v976
        %1143 = vmatpush1.bf16.msra.mxu0 %v975
        %1144 = vmatprep.subr.bf16.mxu0 %v980
        %1145 = vmatpush1.bf16.msra.mxu0 %v979
        %1146 = vmatprep.subr.bf16.mxu0 %v984
        %1147 = vmatpush1.bf16.msra.mxu0 %v983
        %1148 = vmatprep.subr.bf16.mxu0 %v988
        %1149 = vmatpush1.bf16.msra.mxu0 %v987
        %1150 = vmatprep.subr.bf16.mxu0 0
        %1151 = vmatpush1.bf16.msra.mxu0 0
        %1152 = vmatprep.subr.bf16.mxu0 0
        %1153 = vmatpush1.bf16.msra.mxu0 0
        %1154 = vmatprep.subr.bf16.mxu0 0
        %1155 = vmatpush1.bf16.msra.mxu0 0
        %1156 = vmatprep.subr.bf16.mxu0 0
        %1157 = vmatpush1.bf16.msra.mxu0 0
        %1158 = vmatprep.subr.bf16.mxu0 0
        %1159 = vmatpush1.bf16.msra.mxu0 0
        %1160 = vmatprep.subr.bf16.mxu0 0
        %1161 = vmatpush1.bf16.msra.mxu0 0
        %1162 = vmatprep.subr.bf16.mxu0 0
        %1163 = vmatpush1.bf16.msra.mxu0 0
        %1164 = vmatprep.subr.bf16.mxu0 0
        %1165 = vmatpush1.bf16.msra.mxu0 0
        %1166 = vmatprep.mubr.bf16.mxu0 0
        %1167 = vmatmul.mubr.bf16.gmra.mrb[0].mxu0 %v799
        %v1168 = vpop.f32.mrb[0].mxu0
        %v1169 = vadd.f32 %v852, %v1168
        %v1170 = vpop.f32.mrb[0].mxu0
        %v1171 = vadd.f32 %v856, %v1170
        %v1172 = vpop.f32.mrb[0].mxu0
        %v1173 = vadd.f32 %v852, %v1172
        %v1174 = vpop.f32.mrb[0].mxu0
        %v1175 = vadd.f32 %v856, %v1174
        %1176 = vmatprep.mubr.bf16.mxu0 0
        %1177 = vmatmul.mubr.bf16.gmra.mrb[0].mxu0 %v800
        %v1178 = vpop.f32.mrb[0].mxu0
        %v1179 = vadd.f32 %v852, %v1178
        %v1180 = vpop.f32.mrb[0].mxu0
        %v1181 = vadd.f32 %v856, %v1180
        %v1182 = vpop.f32.mrb[0].mxu0
        %v1183 = vadd.f32 %v852, %v1182
        %v1184 = vpop.f32.mrb[0].mxu0
        %v1185 = vadd.f32 %v856, %v1184
        %1186 = vmatprep.mubr.bf16.mxu0 0
        %1187 = vmatmul.mubr.bf16.gmra.mrb[0].mxu0 %v801
        %v1188 = vpop.f32.mrb[0].mxu0
        %v1189 = vadd.f32 %v852, %v1188
        %v1190 = vpop.f32.mrb[0].mxu0
        %v1191 = vadd.f32 %v856, %v1190
        %v1192 = vpop.f32.mrb[0].mxu0
        %v1193 = vadd.f32 %v852, %v1192
        %v1194 = vpop.f32.mrb[0].mxu0
        %v1195 = vadd.f32 %v856, %v1194
        %1196 = vmatprep.mubr.bf16.mxu0 0
        %1197 = vmatmul.mubr.bf16.gmra.mrb[0].mxu0 %v802
        %v1198 = vpop.f32.mrb[0].mxu0
        %v1199 = vadd.f32 %v852, %v1198
        %v1200 = vpop.f32.mrb[0].mxu0
        %v1201 = vadd.f32 %v856, %v1200
        %v1202 = vpop.f32.mrb[0].mxu0
        %v1203 = vadd.f32 %v852, %v1202
        %v1204 = vpop.f32.mrb[0].mxu0
        %v1205 = vadd.f32 %v856, %v1204
        %1206 = vmatprep.mubr.bf16.mxu0 0
        %1207 = vmatmul.mubr.bf16.gmra.mrb[0].mxu0 %v803
        %v1208 = vpop.f32.mrb[0].mxu0
        %v1209 = vadd.f32 %v852, %v1208
        %v1210 = vpop.f32.mrb[0].mxu0
        %v1211 = vadd.f32 %v856, %v1210
        %v1212 = vpop.f32.mrb[0].mxu0
        %v1213 = vadd.f32 %v852, %v1212
        %v1214 = vpop.f32.mrb[0].mxu0
        %v1215 = vadd.f32 %v856, %v1214
        %1216 = vmatprep.mubr.bf16.mxu0 0
        %1217 = vmatmul.mubr.bf16.gmra.mrb[0].mxu0 %v804
        %v1218 = vpop.f32.mrb[0].mxu0
        %v1219 = vadd.f32 %v852, %v1218
        %v1220 = vpop.f32.mrb[0].mxu0
        %v1221 = vadd.f32 %v856, %v1220
        %v1222 = vpop.f32.mrb[0].mxu0
        %v1223 = vadd.f32 %v852, %v1222
        %v1224 = vpop.f32.mrb[0].mxu0
        %v1225 = vadd.f32 %v856, %v1224
        %1226 = vmatprep.mubr.bf16.mxu0 0
        %1227 = vmatmul.mubr.bf16.gmra.mrb[0].mxu0 %v805
        %v1228 = vpop.f32.mrb[0].mxu0
        %v1229 = vadd.f32 %v852, %v1228
        %v1230 = vpop.f32.mrb[0].mxu0
        %v1231 = vadd.f32 %v856, %v1230
        %v1232 = vpop.f32.mrb[0].mxu0
        %v1233 = vadd.f32 %v852, %v1232
        %v1234 = vpop.f32.mrb[0].mxu0
        %v1235 = vadd.f32 %v856, %v1234
        %1236 = vmatprep.mubr.bf16.mxu0 0
        %1237 = vmatmul.mubr.bf16.gmra.mrb[0].mxu0 %v806
        %v1238 = vpop.f32.mrb[0].mxu0
        %v1239 = vadd.f32 %v852, %v1238
        %v1240 = vpop.f32.mrb[0].mxu0
        %v1241 = vadd.f32 %v856, %v1240
        %v1242 = vpop.f32.mrb[0].mxu0
        %v1243 = vadd.f32 %v852, %v1242
        %v1244 = vpop.f32.mrb[0].mxu0
        %v1245 = vadd.f32 %v856, %v1244
        %1246 = vdwg.mxu0
        %v1247 = vmul.f32 %v1056, %v1056
        %v1248 = vmul.f32 %v1058, %v1058
        %v1249 = vmul.f32 %v1169, %v1169
        %v1250 = vmul.f32 %v1171, %v1171
        %v1251 = vmul.f32 %v1060, %v1060
        %v1252 = vmul.f32 %v1062, %v1062
        %v1253 = vmul.f32 %v1173, %v1173
        %v1254 = vmul.f32 %v1175, %v1175
        %v1255 = vmul.f32 %v1066, %v1066
        %v1256 = vmul.f32 %v1068, %v1068
        %v1257 = vmul.f32 %v1179, %v1179
        %v1258 = vmul.f32 %v1181, %v1181
        %v1259 = vmul.f32 %v1070, %v1070
        %v1260 = vmul.f32 %v1072, %v1072
        %v1261 = vmul.f32 %v1183, %v1183
        %v1262 = vmul.f32 %v1185, %v1185
        %v1263 = vmul.f32 %v1076, %v1076
        %v1264 = vmul.f32 %v1078, %v1078
        %v1265 = vmul.f32 %v1189, %v1189
        %v1266 = vmul.f32 %v1191, %v1191
        %v1267 = vmul.f32 %v1080, %v1080
        %v1268 = vmul.f32 %v1082, %v1082
        %v1269 = vmul.f32 %v1193, %v1193
        %v1270 = vmul.f32 %v1195, %v1195
        %v1271 = vmul.f32 %v1086, %v1086
        %v1272 = vmul.f32 %v1088, %v1088
        %v1273 = vmul.f32 %v1199, %v1199
        %v1274 = vmul.f32 %v1201, %v1201
        %v1275 = vmul.f32 %v1090, %v1090
        %v1276 = vmul.f32 %v1092, %v1092
        %v1277 = vmul.f32 %v1203, %v1203
        %v1278 = vmul.f32 %v1205, %v1205
        %v1279 = vmul.f32 %v1096, %v1096
        %v1280 = vmul.f32 %v1098, %v1098
        %v1281 = vmul.f32 %v1209, %v1209
        %v1282 = vmul.f32 %v1211, %v1211
        %v1283 = vmul.f32 %v1100, %v1100
        %v1284 = vmul.f32 %v1102, %v1102
        %v1285 = vmul.f32 %v1213, %v1213
        %v1286 = vmul.f32 %v1215, %v1215
        %v1287 = vmul.f32 %v1106, %v1106
        %v1288 = vmul.f32 %v1108, %v1108
        %v1289 = vmul.f32 %v1219, %v1219
        %v1290 = vmul.f32 %v1221, %v1221
        %v1291 = vmul.f32 %v1110, %v1110
        %v1292 = vmul.f32 %v1112, %v1112
        %v1293 = vmul.f32 %v1223, %v1223
        %v1294 = vmul.f32 %v1225, %v1225
        %v1295 = vmul.f32 %v1116, %v1116
        %v1296 = vmul.f32 %v1118, %v1118
        %v1297 = vmul.f32 %v1229, %v1229
        %v1298 = vmul.f32 %v1231, %v1231
        %v1299 = vmul.f32 %v1120, %v1120
        %v1300 = vmul.f32 %v1122, %v1122
        %v1301 = vmul.f32 %v1233, %v1233
        %v1302 = vmul.f32 %v1235, %v1235
        %v1303 = vmul.f32 %v1126, %v1126
        %v1304 = vmul.f32 %v1128, %v1128
        %v1305 = vmul.f32 %v1239, %v1239
        %v1306 = vmul.f32 %v1241, %v1241
        %v1307 = vmul.f32 %v1130, %v1130
        %v1308 = vmul.f32 %v1132, %v1132
        %v1309 = vmul.f32 %v1243, %v1243
        %v1310 = vmul.f32 %v1245, %v1245
        %v1311 = vmul.f32 %v1056, %v1247
        %v1312 = vmul.f32 %v1058, %v1248
        %v1313 = vmul.f32 %v1169, %v1249
        %v1314 = vmul.f32 %v1171, %v1250
        %v1315 = vmul.f32 %v1060, %v1251
        %v1316 = vmul.f32 %v1062, %v1252
        %v1317 = vmul.f32 %v1173, %v1253
        %v1318 = vmul.f32 %v1175, %v1254
        %v1319 = vmul.f32 %v1066, %v1255
        %v1320 = vmul.f32 %v1068, %v1256
        %v1321 = vmul.f32 %v1179, %v1257
        %v1322 = vmul.f32 %v1181, %v1258
        %v1323 = vmul.f32 %v1070, %v1259
        %v1324 = vmul.f32 %v1072, %v1260
        %v1325 = vmul.f32 %v1183, %v1261
        %v1326 = vmul.f32 %v1185, %v1262
        %v1327 = vmul.f32 %v1076, %v1263
        %v1328 = vmul.f32 %v1078, %v1264
        %v1329 = vmul.f32 %v1189, %v1265
        %v1330 = vmul.f32 %v1191, %v1266
        %v1331 = vmul.f32 %v1080, %v1267
        %v1332 = vmul.f32 %v1082, %v1268
        %v1333 = vmul.f32 %v1193, %v1269
        %v1334 = vmul.f32 %v1195, %v1270
        %v1335 = vmul.f32 %v1086, %v1271
        %v1336 = vmul.f32 %v1088, %v1272
        %v1337 = vmul.f32 %v1199, %v1273
        %v1338 = vmul.f32 %v1201, %v1274
        %v1339 = vmul.f32 %v1090, %v1275
        %v1340 = vmul.f32 %v1092, %v1276
        %v1341 = vmul.f32 %v1203, %v1277
        %v1342 = vmul.f32 %v1205, %v1278
        %v1343 = vmul.f32 %v1096, %v1279
        %v1344 = vmul.f32 %v1098, %v1280
        %v1345 = vmul.f32 %v1209, %v1281
        %v1346 = vmul.f32 %v1211, %v1282
        %v1347 = vmul.f32 %v1100, %v1283
        %v1348 = vmul.f32 %v1102, %v1284
        %v1349 = vmul.f32 %v1213, %v1285
        %v1350 = vmul.f32 %v1215, %v1286
        %v1351 = vmul.f32 %v1106, %v1287
        %v1352 = vmul.f32 %v1108, %v1288
        %v1353 = vmul.f32 %v1219, %v1289
        %v1354 = vmul.f32 %v1221, %v1290
        %v1355 = vmul.f32 %v1110, %v1291
        %v1356 = vmul.f32 %v1112, %v1292
        %v1357 = vmul.f32 %v1223, %v1293
        %v1358 = vmul.f32 %v1225, %v1294
        %v1359 = vmul.f32 %v1116, %v1295
        %v1360 = vmul.f32 %v1118, %v1296
        %v1361 = vmul.f32 %v1229, %v1297
        %v1362 = vmul.f32 %v1231, %v1298
        %v1363 = vmul.f32 %v1120, %v1299
        %v1364 = vmul.f32 %v1122, %v1300
        %v1365 = vmul.f32 %v1233, %v1301
        %v1366 = vmul.f32 %v1235, %v1302
        %v1367 = vmul.f32 %v1126, %v1303
        %v1368 = vmul.f32 %v1128, %v1304
        %v1369 = vmul.f32 %v1239, %v1305
        %v1370 = vmul.f32 %v1241, %v1306
        %v1371 = vmul.f32 %v1130, %v1307
        %v1372 = vmul.f32 %v1132, %v1308
        %v1373 = vmul.f32 %v1243, %v1309
        %v1374 = vmul.f32 %v1245, %v1310
        %v1375 = vmul.f32 %v1311, 0.044715
        %v1376 = vmul.f32 %v1312, 0.044715
        %v1377 = vmul.f32 %v1313, 0.044715
        %v1378 = vmul.f32 %v1314, 0.044715
        %v1379 = vmul.f32 %v1315, 0.044715
        %v1380 = vmul.f32 %v1316, 0.044715
        %v1381 = vmul.f32 %v1317, 0.044715
        %v1382 = vmul.f32 %v1318, 0.044715
        %v1383 = vmul.f32 %v1319, 0.044715
        %v1384 = vmul.f32 %v1320, 0.044715
        %v1385 = vmul.f32 %v1321, 0.044715
        %v1386 = vmul.f32 %v1322, 0.044715
        %v1387 = vmul.f32 %v1323, 0.044715
        %v1388 = vmul.f32 %v1324, 0.044715
        %v1389 = vmul.f32 %v1325, 0.044715
        %v1390 = vmul.f32 %v1326, 0.044715
        %v1391 = vmul.f32 %v1327, 0.044715
        %v1392 = vmul.f32 %v1328, 0.044715
        %v1393 = vmul.f32 %v1329, 0.044715
        %v1394 = vmul.f32 %v1330, 0.044715
        %v1395 = vmul.f32 %v1331, 0.044715
        %v1396 = vmul.f32 %v1332, 0.044715
        %v1397 = vmul.f32 %v1333, 0.044715
        %v1398 = vmul.f32 %v1334, 0.044715
        %v1399 = vmul.f32 %v1335, 0.044715
        %v1400 = vmul.f32 %v1336, 0.044715
        %v1401 = vmul.f32 %v1337, 0.044715
        %v1402 = vmul.f32 %v1338, 0.044715
        %v1403 = vmul.f32 %v1339, 0.044715
        %v1404 = vmul.f32 %v1340, 0.044715
        %v1405 = vmul.f32 %v1341, 0.044715
        %v1406 = vmul.f32 %v1342, 0.044715
        %v1407 = vmul.f32 %v1343, 0.044715
        %v1408 = vmul.f32 %v1344, 0.044715
        %v1409 = vmul.f32 %v1345, 0.044715
        %v1410 = vmul.f32 %v1346, 0.044715
        %v1411 = vmul.f32 %v1347, 0.044715
        %v1412 = vmul.f32 %v1348, 0.044715
        %v1413 = vmul.f32 %v1349, 0.044715
        %v1414 = vmul.f32 %v1350, 0.044715
        %v1415 = vmul.f32 %v1351, 0.044715
        %v1416 = vmul.f32 %v1352, 0.044715
        %v1417 = vmul.f32 %v1353, 0.044715
        %v1418 = vmul.f32 %v1354, 0.044715
        %v1419 = vmul.f32 %v1355, 0.044715
        %v1420 = vmul.f32 %v1356, 0.044715
        %v1421 = vmul.f32 %v1357, 0.044715
        %v1422 = vmul.f32 %v1358, 0.044715
        %v1423 = vmul.f32 %v1359, 0.044715
        %v1424 = vmul.f32 %v1360, 0.044715
        %v1425 = vmul.f32 %v1361, 0.044715
        %v1426 = vmul.f32 %v1362, 0.044715
        %v1427 = vmul.f32 %v1363, 0.044715
        %v1428 = vmul.f32 %v1364, 0.044715
        %v1429 = vmul.f32 %v1365, 0.044715
        %v1430 = vmul.f32 %v1366, 0.044715
        %v1431 = vmul.f32 %v1367, 0.044715
        %v1432 = vmul.f32 %v1368, 0.044715
        %v1433 = vmul.f32 %v1369, 0.044715
        %v1434 = vmul.f32 %v1370, 0.044715
        %v1435 = vmul.f32 %v1371, 0.044715
        %v1436 = vmul.f32 %v1372, 0.044715
        %v1437 = vmul.f32 %v1373, 0.044715
        %v1438 = vmul.f32 %v1374, 0.044715
        %v1439 = vadd.f32 %v1056, %v1375
        %v1440 = vadd.f32 %v1058, %v1376
        %v1441 = vadd.f32 %v1169, %v1377
        %v1442 = vadd.f32 %v1171, %v1378
        %v1443 = vadd.f32 %v1060, %v1379
        %v1444 = vadd.f32 %v1062, %v1380
        %v1445 = vadd.f32 %v1173, %v1381
        %v1446 = vadd.f32 %v1175, %v1382
        %v1447 = vadd.f32 %v1066, %v1383
        %v1448 = vadd.f32 %v1068, %v1384
        %v1449 = vadd.f32 %v1179, %v1385
        %v1450 = vadd.f32 %v1181, %v1386
        %v1451 = vadd.f32 %v1070, %v1387
        %v1452 = vadd.f32 %v1072, %v1388
        %v1453 = vadd.f32 %v1183, %v1389
        %v1454 = vadd.f32 %v1185, %v1390
        %v1455 = vadd.f32 %v1076, %v1391
        %v1456 = vadd.f32 %v1078, %v1392
        %v1457 = vadd.f32 %v1189, %v1393
        %v1458 = vadd.f32 %v1191, %v1394
        %v1459 = vadd.f32 %v1080, %v1395
        %v1460 = vadd.f32 %v1082, %v1396
        %v1461 = vadd.f32 %v1193, %v1397
        %v1462 = vadd.f32 %v1195, %v1398
        %v1463 = vadd.f32 %v1086, %v1399
        %v1464 = vadd.f32 %v1088, %v1400
        %v1465 = vadd.f32 %v1199, %v1401
        %v1466 = vadd.f32 %v1201, %v1402
        %v1467 = vadd.f32 %v1090, %v1403
        %v1468 = vadd.f32 %v1092, %v1404
        %v1469 = vadd.f32 %v1203, %v1405
        %v1470 = vadd.f32 %v1205, %v1406
        %v1471 = vadd.f32 %v1096, %v1407
        %v1472 = vadd.f32 %v1098, %v1408
        %v1473 = vadd.f32 %v1209, %v1409
        %v1474 = vadd.f32 %v1211, %v1410
        %v1475 = vadd.f32 %v1100, %v1411
        %v1476 = vadd.f32 %v1102, %v1412
        %v1477 = vadd.f32 %v1213, %v1413
        %v1478 = vadd.f32 %v1215, %v1414
        %v1479 = vadd.f32 %v1106, %v1415
        %v1480 = vadd.f32 %v1108, %v1416
        %v1481 = vadd.f32 %v1219, %v1417
        %v1482 = vadd.f32 %v1221, %v1418
        %v1483 = vadd.f32 %v1110, %v1419
        %v1484 = vadd.f32 %v1112, %v1420
        %v1485 = vadd.f32 %v1223, %v1421
        %v1486 = vadd.f32 %v1225, %v1422
        %v1487 = vadd.f32 %v1116, %v1423
        %v1488 = vadd.f32 %v1118, %v1424
        %v1489 = vadd.f32 %v1229, %v1425
        %v1490 = vadd.f32 %v1231, %v1426
        %v1491 = vadd.f32 %v1120, %v1427
        %v1492 = vadd.f32 %v1122, %v1428
        %v1493 = vadd.f32 %v1233, %v1429
        %v1494 = vadd.f32 %v1235, %v1430
        %v1495 = vadd.f32 %v1126, %v1431
        %v1496 = vadd.f32 %v1128, %v1432
        %v1497 = vadd.f32 %v1239, %v1433
        %v1498 = vadd.f32 %v1241, %v1434
        %v1499 = vadd.f32 %v1130, %v1435
        %v1500 = vadd.f32 %v1132, %v1436
        %v1501 = vadd.f32 %v1243, %v1437
        %v1502 = vadd.f32 %v1245, %v1438
        %v1503 = vmul.f32 %v1439, 0.7978846
        %v1504 = vmul.f32 %v1440, 0.7978846
        %v1505 = vmul.f32 %v1441, 0.7978846
        %v1506 = vmul.f32 %v1442, 0.7978846
        %v1507 = vmul.f32 %v1443, 0.7978846
        %v1508 = vmul.f32 %v1444, 0.7978846
        %v1509 = vmul.f32 %v1445, 0.7978846
        %v1510 = vmul.f32 %v1446, 0.7978846
        %v1511 = vmul.f32 %v1447, 0.7978846
        %v1512 = vmul.f32 %v1448, 0.7978846
        %v1513 = vmul.f32 %v1449, 0.7978846
        %v1514 = vmul.f32 %v1450, 0.7978846
        %v1515 = vmul.f32 %v1451, 0.7978846
        %v1516 = vmul.f32 %v1452, 0.7978846
        %v1517 = vmul.f32 %v1453, 0.7978846
        %v1518 = vmul.f32 %v1454, 0.7978846
        %v1519 = vmul.f32 %v1455, 0.7978846
        %v1520 = vmul.f32 %v1456, 0.7978846
        %v1521 = vmul.f32 %v1457, 0.7978846
        %v1522 = vmul.f32 %v1458, 0.7978846
        %v1523 = vmul.f32 %v1459, 0.7978846
        %v1524 = vmul.f32 %v1460, 0.7978846
        %v1525 = vmul.f32 %v1461, 0.7978846
        %v1526 = vmul.f32 %v1462, 0.7978846
        %v1527 = vmul.f32 %v1463, 0.7978846
        %v1528 = vmul.f32 %v1464, 0.7978846
        %v1529 = vmul.f32 %v1465, 0.7978846
        %v1530 = vmul.f32 %v1466, 0.7978846
        %v1531 = vmul.f32 %v1467, 0.7978846
        %v1532 = vmul.f32 %v1468, 0.7978846
        %v1533 = vmul.f32 %v1469, 0.7978846
        %v1534 = vmul.f32 %v1470, 0.7978846
        %v1535 = vmul.f32 %v1471, 0.7978846
        %v1536 = vmul.f32 %v1472, 0.7978846
        %v1537 = vmul.f32 %v1473, 0.7978846
        %v1538 = vmul.f32 %v1474, 0.7978846
        %v1539 = vmul.f32 %v1475, 0.7978846
        %v1540 = vmul.f32 %v1476, 0.7978846
        %v1541 = vmul.f32 %v1477, 0.7978846
        %v1542 = vmul.f32 %v1478, 0.7978846
        %v1543 = vmul.f32 %v1479, 0.7978846
        %v1544 = vmul.f32 %v1480, 0.7978846
        %v1545 = vmul.f32 %v1481, 0.7978846
        %v1546 = vmul.f32 %v1482, 0.7978846
        %v1547 = vmul.f32 %v1483, 0.7978846
        %v1548 = vmul.f32 %v1484, 0.7978846
        %v1549 = vmul.f32 %v1485, 0.7978846
        %v1550 = vmul.f32 %v1486, 0.7978846
        %v1551 = vmul.f32 %v1487, 0.7978846
        %v1552 = vmul.f32 %v1488, 0.7978846
        %v1553 = vmul.f32 %v1489, 0.7978846
        %v1554 = vmul.f32 %v1490, 0.7978846
        %v1555 = vmul.f32 %v1491, 0.7978846
        %v1556 = vmul.f32 %v1492, 0.7978846
        %v1557 = vmul.f32 %v1493, 0.7978846
        %v1558 = vmul.f32 %v1494, 0.7978846
        %v1559 = vmul.f32 %v1495, 0.7978846
        %v1560 = vmul.f32 %v1496, 0.7978846
        %v1561 = vmul.f32 %v1497, 0.7978846
        %v1562 = vmul.f32 %v1498, 0.7978846
        %v1563 = vmul.f32 %v1499, 0.7978846
        %v1564 = vmul.f32 %v1500, 0.7978846
        %v1565 = vmul.f32 %v1501, 0.7978846
        %v1566 = vmul.f32 %v1502, 0.7978846
        %v1567 = vtanh.pop %v1503
        %v1568 = vtanh.pop %v1504
        %v1569 = vtanh.pop %v1505
        %v1570 = vtanh.pop %v1506
        %v1571 = vtanh.pop %v1507
        %v1572 = vtanh.pop %v1508
        %v1573 = vtanh.pop %v1509
        %v1574 = vtanh.pop %v1510
        %v1575 = vtanh.pop %v1511
        %v1576 = vtanh.pop %v1512
        %v1577 = vtanh.pop %v1513
        %v1578 = vtanh.pop %v1514
        %v1579 = vtanh.pop %v1515
        %v1580 = vtanh.pop %v1516
        %v1581 = vtanh.pop %v1517
        %v1582 = vtanh.pop %v1518
        %v1583 = vtanh.pop %v1519
        %v1584 = vtanh.pop %v1520
        %v1585 = vtanh.pop %v1521
        %v1586 = vtanh.pop %v1522
        %v1587 = vtanh.pop %v1523
        %v1588 = vtanh.pop %v1524
        %v1589 = vtanh.pop %v1525
        %v1590 = vtanh.pop %v1526
        %v1591 = vtanh.pop %v1527
        %v1592 = vtanh.pop %v1528
        %v1593 = vtanh.pop %v1529
        %v1594 = vtanh.pop %v1530
        %v1595 = vtanh.pop %v1531
        %v1596 = vtanh.pop %v1532
        %v1597 = vtanh.pop %v1533
        %v1598 = vtanh.pop %v1534
        %v1599 = vtanh.pop %v1535
        %v1600 = vtanh.pop %v1536
        %v1601 = vtanh.pop %v1537
        %v1602 = vtanh.pop %v1538
        %v1603 = vtanh.pop %v1539
        %v1604 = vtanh.pop %v1540
        %v1605 = vtanh.pop %v1541
        %v1606 = vtanh.pop %v1542
        %v1607 = vtanh.pop %v1543
        %v1608 = vtanh.pop %v1544
        %v1609 = vtanh.pop %v1545
        %v1610 = vtanh.pop %v1546
        %v1611 = vtanh.pop %v1547
        %v1612 = vtanh.pop %v1548
        %v1613 = vtanh.pop %v1549
        %v1614 = vtanh.pop %v1550
        %v1615 = vtanh.pop %v1551
        %v1616 = vtanh.pop %v1552
        %v1617 = vtanh.pop %v1553
        %v1618 = vtanh.pop %v1554
        %v1619 = vtanh.pop %v1555
        %v1620 = vtanh.pop %v1556
        %v1621 = vtanh.pop %v1557
        %v1622 = vtanh.pop %v1558
        %v1623 = vtanh.pop %v1559
        %v1624 = vtanh.pop %v1560
        %v1625 = vtanh.pop %v1561
        %v1626 = vtanh.pop %v1562
        %v1627 = vtanh.pop %v1563
        %v1628 = vtanh.pop %v1564
        %v1629 = vtanh.pop %v1565
        %v1630 = vtanh.pop %v1566
        %v1631 = vadd.f32 %v1567, 1.0
        %v1632 = vadd.f32 %v1568, 1.0
        %v1633 = vadd.f32 %v1569, 1.0
        %v1634 = vadd.f32 %v1570, 1.0
        %v1635 = vadd.f32 %v1571, 1.0
        %v1636 = vadd.f32 %v1572, 1.0
        %v1637 = vadd.f32 %v1573, 1.0
        %v1638 = vadd.f32 %v1574, 1.0
        %v1639 = vadd.f32 %v1575, 1.0
        %v1640 = vadd.f32 %v1576, 1.0
        %v1641 = vadd.f32 %v1577, 1.0
        %v1642 = vadd.f32 %v1578, 1.0
        %v1643 = vadd.f32 %v1579, 1.0
        %v1644 = vadd.f32 %v1580, 1.0
        %v1645 = vadd.f32 %v1581, 1.0
        %v1646 = vadd.f32 %v1582, 1.0
        %v1647 = vadd.f32 %v1583, 1.0
        %v1648 = vadd.f32 %v1584, 1.0
        %v1649 = vadd.f32 %v1585, 1.0
        %v1650 = vadd.f32 %v1586, 1.0
        %v1651 = vadd.f32 %v1587, 1.0
        %v1652 = vadd.f32 %v1588, 1.0
        %v1653 = vadd.f32 %v1589, 1.0
        %v1654 = vadd.f32 %v1590, 1.0
        %v1655 = vadd.f32 %v1591, 1.0
        %v1656 = vadd.f32 %v1592, 1.0
        %v1657 = vadd.f32 %v1593, 1.0
        %v1658 = vadd.f32 %v1594, 1.0
        %v1659 = vadd.f32 %v1595, 1.0
        %v1660 = vadd.f32 %v1596, 1.0
        %v1661 = vadd.f32 %v1597, 1.0
        %v1662 = vadd.f32 %v1598, 1.0
        %v1663 = vadd.f32 %v1599, 1.0
        %v1664 = vadd.f32 %v1600, 1.0
        %v1665 = vadd.f32 %v1601, 1.0
        %v1666 = vadd.f32 %v1602, 1.0
        %v1667 = vadd.f32 %v1603, 1.0
        %v1668 = vadd.f32 %v1604, 1.0
        %v1669 = vadd.f32 %v1605, 1.0
        %v1670 = vadd.f32 %v1606, 1.0
        %v1671 = vadd.f32 %v1607, 1.0
        %v1672 = vadd.f32 %v1608, 1.0
        %v1673 = vadd.f32 %v1609, 1.0
        %v1674 = vadd.f32 %v1610, 1.0
        %v1675 = vadd.f32 %v1611, 1.0
        %v1676 = vadd.f32 %v1612, 1.0
        %v1677 = vadd.f32 %v1613, 1.0
        %v1678 = vadd.f32 %v1614, 1.0
        %v1679 = vadd.f32 %v1615, 1.0
        %v1680 = vadd.f32 %v1616, 1.0
        %v1681 = vadd.f32 %v1617, 1.0
        %v1682 = vadd.f32 %v1618, 1.0
        %v1683 = vadd.f32 %v1619, 1.0
        %v1684 = vadd.f32 %v1620, 1.0
        %v1685 = vadd.f32 %v1621, 1.0
        %v1686 = vadd.f32 %v1622, 1.0
        %v1687 = vadd.f32 %v1623, 1.0
        %v1688 = vadd.f32 %v1624, 1.0
        %v1689 = vadd.f32 %v1625, 1.0
        %v1690 = vadd.f32 %v1626, 1.0
        %v1691 = vadd.f32 %v1627, 1.0
        %v1692 = vadd.f32 %v1628, 1.0
        %v1693 = vadd.f32 %v1629, 1.0
        %v1694 = vadd.f32 %v1630, 1.0
        %v1695 = vmul.f32 %v1631, 0.5
        %v1696 = vmul.f32 %v1632, 0.5
        %v1697 = vmul.f32 %v1633, 0.5
        %v1698 = vmul.f32 %v1634, 0.5
        %v1699 = vmul.f32 %v1635, 0.5
        %v1700 = vmul.f32 %v1636, 0.5
        %v1701 = vmul.f32 %v1637, 0.5
        %v1702 = vmul.f32 %v1638, 0.5
        %v1703 = vmul.f32 %v1639, 0.5
        %v1704 = vmul.f32 %v1640, 0.5
        %v1705 = vmul.f32 %v1641, 0.5
        %v1706 = vmul.f32 %v1642, 0.5
        %v1707 = vmul.f32 %v1643, 0.5
        %v1708 = vmul.f32 %v1644, 0.5
        %v1709 = vmul.f32 %v1645, 0.5
        %v1710 = vmul.f32 %v1646, 0.5
        %v1711 = vmul.f32 %v1647, 0.5
        %v1712 = vmul.f32 %v1648, 0.5
        %v1713 = vmul.f32 %v1649, 0.5
        %v1714 = vmul.f32 %v1650, 0.5
        %v1715 = vmul.f32 %v1651, 0.5
        %v1716 = vmul.f32 %v1652, 0.5
        %v1717 = vmul.f32 %v1653, 0.5
        %v1718 = vmul.f32 %v1654, 0.5
        %v1719 = vmul.f32 %v1655, 0.5
        %v1720 = vmul.f32 %v1656, 0.5
        %v1721 = vmul.f32 %v1657, 0.5
        %v1722 = vmul.f32 %v1658, 0.5
        %v1723 = vmul.f32 %v1659, 0.5
        %v1724 = vmul.f32 %v1660, 0.5
        %v1725 = vmul.f32 %v1661, 0.5
        %v1726 = vmul.f32 %v1662, 0.5
        %v1727 = vmul.f32 %v1663, 0.5
        %v1728 = vmul.f32 %v1664, 0.5
        %v1729 = vmul.f32 %v1665, 0.5
        %v1730 = vmul.f32 %v1666, 0.5
        %v1731 = vmul.f32 %v1667, 0.5
        %v1732 = vmul.f32 %v1668, 0.5
        %v1733 = vmul.f32 %v1669, 0.5
        %v1734 = vmul.f32 %v1670, 0.5
        %v1735 = vmul.f32 %v1671, 0.5
        %v1736 = vmul.f32 %v1672, 0.5
        %v1737 = vmul.f32 %v1673, 0.5
        %v1738 = vmul.f32 %v1674, 0.5
        %v1739 = vmul.f32 %v1675, 0.5
        %v1740 = vmul.f32 %v1676, 0.5
        %v1741 = vmul.f32 %v1677, 0.5
        %v1742 = vmul.f32 %v1678, 0.5
        %v1743 = vmul.f32 %v1679, 0.5
        %v1744 = vmul.f32 %v1680, 0.5
        %v1745 = vmul.f32 %v1681, 0.5
        %v1746 = vmul.f32 %v1682, 0.5
        %v1747 = vmul.f32 %v1683, 0.5
        %v1748 = vmul.f32 %v1684, 0.5
        %v1749 = vmul.f32 %v1685, 0.5
        %v1750 = vmul.f32 %v1686, 0.5
        %v1751 = vmul.f32 %v1687, 0.5
        %v1752 = vmul.f32 %v1688, 0.5
        %v1753 = vmul.f32 %v1689, 0.5
        %v1754 = vmul.f32 %v1690, 0.5
        %v1755 = vmul.f32 %v1691, 0.5
        %v1756 = vmul.f32 %v1692, 0.5
        %v1757 = vmul.f32 %v1693, 0.5
        %v1758 = vmul.f32 %v1694, 0.5
        %v1759 = vmul.f32 %v1056, %v1695
        %v1760 = vmul.f32 %v1058, %v1696
        %v1761 = vmul.f32 %v1169, %v1697
        %v1762 = vmul.f32 %v1171, %v1698
        %v1763 = vmul.f32 %v1060, %v1699
        %v1764 = vmul.f32 %v1062, %v1700
        %v1765 = vmul.f32 %v1173, %v1701
        %v1766 = vmul.f32 %v1175, %v1702
        %v1767 = vmul.f32 %v1066, %v1703
        %v1768 = vmul.f32 %v1068, %v1704
        %v1769 = vmul.f32 %v1179, %v1705
        %v1770 = vmul.f32 %v1181, %v1706
        %v1771 = vmul.f32 %v1070, %v1707
        %v1772 = vmul.f32 %v1072, %v1708
        %v1773 = vmul.f32 %v1183, %v1709
        %v1774 = vmul.f32 %v1185, %v1710
        %v1775 = vmul.f32 %v1076, %v1711
        %v1776 = vmul.f32 %v1078, %v1712
        %v1777 = vmul.f32 %v1189, %v1713
        %v1778 = vmul.f32 %v1191, %v1714
        %v1779 = vmul.f32 %v1080, %v1715
        %v1780 = vmul.f32 %v1082, %v1716
        %v1781 = vmul.f32 %v1193, %v1717
        %v1782 = vmul.f32 %v1195, %v1718
        %v1783 = vmul.f32 %v1086, %v1719
        %v1784 = vmul.f32 %v1088, %v1720
        %v1785 = vmul.f32 %v1199, %v1721
        %v1786 = vmul.f32 %v1201, %v1722
        %v1787 = vmul.f32 %v1090, %v1723
        %v1788 = vmul.f32 %v1092, %v1724
        %v1789 = vmul.f32 %v1203, %v1725
        %v1790 = vmul.f32 %v1205, %v1726
        %v1791 = vmul.f32 %v1096, %v1727
        %v1792 = vmul.f32 %v1098, %v1728
        %v1793 = vmul.f32 %v1209, %v1729
        %v1794 = vmul.f32 %v1211, %v1730
        %v1795 = vmul.f32 %v1100, %v1731
        %v1796 = vmul.f32 %v1102, %v1732
        %v1797 = vmul.f32 %v1213, %v1733
        %v1798 = vmul.f32 %v1215, %v1734
        %v1799 = vmul.f32 %v1106, %v1735
        %v1800 = vmul.f32 %v1108, %v1736
        %v1801 = vmul.f32 %v1219, %v1737
        %v1802 = vmul.f32 %v1221, %v1738
        %v1803 = vmul.f32 %v1110, %v1739
        %v1804 = vmul.f32 %v1112, %v1740
        %v1805 = vmul.f32 %v1223, %v1741
        %v1806 = vmul.f32 %v1225, %v1742
        %v1807 = vmul.f32 %v1116, %v1743
        %v1808 = vmul.f32 %v1118, %v1744
        %v1809 = vmul.f32 %v1229, %v1745
        %v1810 = vmul.f32 %v1231, %v1746
        %v1811 = vmul.f32 %v1120, %v1747
        %v1812 = vmul.f32 %v1122, %v1748
        %v1813 = vmul.f32 %v1233, %v1749
        %v1814 = vmul.f32 %v1235, %v1750
        %v1815 = vmul.f32 %v1126, %v1751
        %v1816 = vmul.f32 %v1128, %v1752
        %v1817 = vmul.f32 %v1239, %v1753
        %v1818 = vmul.f32 %v1241, %v1754
        %v1819 = vmul.f32 %v1130, %v1755
        %v1820 = vmul.f32 %v1132, %v1756
        %v1821 = vmul.f32 %v1243, %v1757
        %v1822 = vmul.f32 %v1245, %v1758
        %v1823 = vpack.c.bf16 %v1763, %v1759
        %v1824 = vpack.c.bf16 %v1764, %v1760
        %v1825 = vpack.c.bf16 %v1765, %v1761
        %v1826 = vpack.c.bf16 %v1766, %v1762
        %v1827 = vpack.c.bf16 %v1771, %v1767
        %v1828 = vpack.c.bf16 %v1772, %v1768
        %v1829 = vpack.c.bf16 %v1773, %v1769
        %v1830 = vpack.c.bf16 %v1774, %v1770
        %v1831 = vpack.c.bf16 %v1779, %v1775
        %v1832 = vpack.c.bf16 %v1780, %v1776
        %v1833 = vpack.c.bf16 %v1781, %v1777
        %v1834 = vpack.c.bf16 %v1782, %v1778
        %v1835 = vpack.c.bf16 %v1787, %v1783
        %v1836 = vpack.c.bf16 %v1788, %v1784
        %v1837 = vpack.c.bf16 %v1789, %v1785
        %v1838 = vpack.c.bf16 %v1790, %v1786
        %v1839 = vpack.c.bf16 %v1795, %v1791
        %v1840 = vpack.c.bf16 %v1796, %v1792
        %v1841 = vpack.c.bf16 %v1797, %v1793
        %v1842 = vpack.c.bf16 %v1798, %v1794
        %v1843 = vpack.c.bf16 %v1803, %v1799
        %v1844 = vpack.c.bf16 %v1804, %v1800
        %v1845 = vpack.c.bf16 %v1805, %v1801
        %v1846 = vpack.c.bf16 %v1806, %v1802
        %v1847 = vpack.c.bf16 %v1811, %v1807
        %v1848 = vpack.c.bf16 %v1812, %v1808
        %v1849 = vpack.c.bf16 %v1813, %v1809
        %v1850 = vpack.c.bf16 %v1814, %v1810
        %v1851 = vpack.c.bf16 %v1819, %v1815
        %v1852 = vpack.c.bf16 %v1820, %v1816
        %v1853 = vpack.c.bf16 %v1821, %v1817
        %v1854 = vpack.c.bf16 %v1822, %v1818
        %v1855 = vld [vmem:[%s7] sm:$0xf]
        %v1856 = vld [vmem:[%s7 + $0x4] sm:$0xf]
        %v1857 = vld [vmem:[%s7 + $0x8] sm:$0xf]
        %v1858 = vld [vmem:[%s7 + $0xc] sm:$0xf]
        %v1859 = vld [vmem:[%s7 + $0x10] sm:$0xf]
        %v1860 = vld [vmem:[%s7 + $0x14] sm:$0xf]
        %v1861 = vld [vmem:[%s7 + $0x18] sm:$0xf]
        %v1862 = vld [vmem:[%s7 + $0x1c] sm:$0xf]
        %v1863 = vld [vmem:[%s7 + $0x20] sm:$0xf]
        %v1864 = vld [vmem:[%s7 + $0x24] sm:$0xf]
        %v1865 = vld [vmem:[%s7 + $0x28] sm:$0xf]
        %v1866 = vld [vmem:[%s7 + $0x2c] sm:$0xf]
        %v1867 = vld [vmem:[%s7 + $0x30] sm:$0xf]
        %v1868 = vld [vmem:[%s7 + $0x34] sm:$0xf]
        %v1869 = vld [vmem:[%s7 + $0x38] sm:$0xf]
        %v1870 = vld [vmem:[%s7 + $0x3c] sm:$0xf]
        %v1871 = vld [vmem:[%s7 + $0x40] sm:$0xf]
        %v1872 = vld [vmem:[%s7 + $0x44] sm:$0xf]
        %v1873 = vld [vmem:[%s7 + $0x48] sm:$0xf]
        %v1874 = vld [vmem:[%s7 + $0x4c] sm:$0xf]
        %v1875 = vld [vmem:[%s7 + $0x50] sm:$0xf]
        %v1876 = vld [vmem:[%s7 + $0x54] sm:$0xf]
        %v1877 = vld [vmem:[%s7 + $0x58] sm:$0xf]
        %v1878 = vld [vmem:[%s7 + $0x5c] sm:$0xf]
        %v1879 = vld [vmem:[%s7 + $0x60] sm:$0xf]
        %v1880 = vld [vmem:[%s7 + $0x64] sm:$0xf]
        %v1881 = vld [vmem:[%s7 + $0x68] sm:$0xf]
        %v1882 = vld [vmem:[%s7 + $0x6c] sm:$0xf]
        %v1883 = vld [vmem:[%s7 + $0x70] sm:$0xf]
        %v1884 = vld [vmem:[%s7 + $0x74] sm:$0xf]
        %v1885 = vld [vmem:[%s7 + $0x78] sm:$0xf]
        %v1886 = vld [vmem:[%s7 + $0x7c] sm:$0xf]
        %v1887 = vld [vmem:[%s7 + $0x80] sm:$0xf]
        %v1888 = vld [vmem:[%s7 + $0x84] sm:$0xf]
        %v1889 = vld [vmem:[%s7 + $0x88] sm:$0xf]
        %v1890 = vld [vmem:[%s7 + $0x8c] sm:$0xf]
        %v1891 = vld [vmem:[%s7 + $0x90] sm:$0xf]
        %v1892 = vld [vmem:[%s7 + $0x94] sm:$0xf]
        %v1893 = vld [vmem:[%s7 + $0x98] sm:$0xf]
        %v1894 = vld [vmem:[%s7 + $0x9c] sm:$0xf]
        %v1895 = vld [vmem:[%s7 + $0xa0] sm:$0xf]
        %v1896 = vld [vmem:[%s7 + $0xa4] sm:$0xf]
        %v1897 = vld [vmem:[%s7 + $0xa8] sm:$0xf]
        %v1898 = vld [vmem:[%s7 + $0xac] sm:$0xf]
        %v1899 = vld [vmem:[%s7 + $0xb0] sm:$0xf]
        %v1900 = vld [vmem:[%s7 + $0xb4] sm:$0xf]
        %v1901 = vld [vmem:[%s7 + $0xb8] sm:$0xf]
        %v1902 = vld [vmem:[%s7 + $0xbc] sm:$0xf]
        %v1903 = vld [vmem:[%s7 + $0xc0] sm:$0xf]
        %v1904 = vld [vmem:[%s7 + $0xc4] sm:$0xf]
        %v1905 = vld [vmem:[%s7 + $0xc8] sm:$0xf]
        %v1906 = vld [vmem:[%s7 + $0xcc] sm:$0xf]
        %v1907 = vld [vmem:[%s7 + $0xd0] sm:$0xf]
        %v1908 = vld [vmem:[%s7 + $0xd4] sm:$0xf]
        %v1909 = vld [vmem:[%s7 + $0xd8] sm:$0xf]
        %v1910 = vld [vmem:[%s7 + $0xdc] sm:$0xf]
        %v1911 = vld [vmem:[%s7 + $0xe0] sm:$0xf]
        %v1912 = vld [vmem:[%s7 + $0xe4] sm:$0xf]
        %v1913 = vld [vmem:[%s7 + $0xe8] sm:$0xf]
        %v1914 = vld [vmem:[%s7 + $0xec] sm:$0xf]
        %v1915 = vld [vmem:[%s7 + $0xf0] sm:$0xf]
        %v1916 = vld [vmem:[%s7 + $0xf4] sm:$0xf]
        %v1917 = vld [vmem:[%s7 + $0xf8] sm:$0xf]
        %v1918 = vld [vmem:[%s7 + $0xfc] sm:$0xf]
        %v1919 = vld [vmem:[%s8] sm:$0x1]
        %v1921 = vlaneseq
        %v1922 = vshrl.u32 %v1921, 7
        %v1923 = vsub.s32 0, %v1922
        %v1924 = vrot.slane %v1919, %v1923
        %v1990 = vunpack.c.l.b16 %v1855
        %v1991 = vunpack.c.l.b16 %v1856
        %v1992 = vunpack.c.l.b16 %v1857
        %v1993 = vunpack.c.l.b16 %v1858
        %v1994 = vunpack.c.l.b16 %v1859
        %v1995 = vunpack.c.l.b16 %v1860
        %v1996 = vunpack.c.l.b16 %v1861
        %v1997 = vunpack.c.l.b16 %v1862
        %v1998 = vunpack.c.l.b16 %v1863
        %v1999 = vunpack.c.l.b16 %v1864
        %v2000 = vunpack.c.l.b16 %v1865
        %v2001 = vunpack.c.l.b16 %v1866
        %v2002 = vunpack.c.l.b16 %v1867
        %v2003 = vunpack.c.l.b16 %v1868
        %v2004 = vunpack.c.l.b16 %v1869
        %v2005 = vunpack.c.l.b16 %v1870
        %v2006 = vunpack.c.l.b16 %v1871
        %v2007 = vunpack.c.l.b16 %v1872
        %v2008 = vunpack.c.l.b16 %v1873
        %v2009 = vunpack.c.l.b16 %v1874
        %v2010 = vunpack.c.l.b16 %v1875
        %v2011 = vunpack.c.l.b16 %v1876
        %v2012 = vunpack.c.l.b16 %v1877
        %v2013 = vunpack.c.l.b16 %v1878
        %v2014 = vunpack.c.l.b16 %v1879
        %v2015 = vunpack.c.l.b16 %v1880
        %v2016 = vunpack.c.l.b16 %v1881
        %v2017 = vunpack.c.l.b16 %v1882
        %v2018 = vunpack.c.l.b16 %v1883
        %v2019 = vunpack.c.l.b16 %v1884
        %v2020 = vunpack.c.l.b16 %v1885
        %v2021 = vunpack.c.l.b16 %v1886
        %v2022 = vunpack.c.l.b16 %v1887
        %v2023 = vunpack.c.l.b16 %v1888
        %v2024 = vunpack.c.l.b16 %v1889
        %v2025 = vunpack.c.l.b16 %v1890
        %v2026 = vunpack.c.l.b16 %v1891
        %v2027 = vunpack.c.l.b16 %v1892
        %v2028 = vunpack.c.l.b16 %v1893
        %v2029 = vunpack.c.l.b16 %v1894
        %v2030 = vunpack.c.l.b16 %v1895
        %v2031 = vunpack.c.l.b16 %v1896
        %v2032 = vunpack.c.l.b16 %v1897
        %v2033 = vunpack.c.l.b16 %v1898
        %v2034 = vunpack.c.l.b16 %v1899
        %v2035 = vunpack.c.l.b16 %v1900
        %v2036 = vunpack.c.l.b16 %v1901
        %v2037 = vunpack.c.l.b16 %v1902
        %v2038 = vunpack.c.l.b16 %v1903
        %v2039 = vunpack.c.l.b16 %v1904
        %v2040 = vunpack.c.l.b16 %v1905
        %v2041 = vunpack.c.l.b16 %v1906
        %v2042 = vunpack.c.l.b16 %v1907
        %v2043 = vunpack.c.l.b16 %v1908
        %v2044 = vunpack.c.l.b16 %v1909
        %v2045 = vunpack.c.l.b16 %v1910
        %v2046 = vunpack.c.l.b16 %v1911
        %v2047 = vunpack.c.l.b16 %v1912
        %v2048 = vunpack.c.l.b16 %v1913
        %v2049 = vunpack.c.l.b16 %v1914
        %v2050 = vunpack.c.l.b16 %v1915
        %v2051 = vunpack.c.l.b16 %v1916
        %v2052 = vunpack.c.l.b16 %v1917
        %v2053 = vunpack.c.l.b16 %v1918
        %v2054 = vpack.c.b16 %v1991, %v1990
        %v2055 = vpack.c.b16 %v1993, %v1992
        %v2056 = vpack.c.b16 %v1995, %v1994
        %v2057 = vpack.c.b16 %v1997, %v1996
        %v2058 = vpack.c.b16 %v1999, %v1998
        %v2059 = vpack.c.b16 %v2001, %v2000
        %v2060 = vpack.c.b16 %v2003, %v2002
        %v2061 = vpack.c.b16 %v2005, %v2004
        %v2062 = vpack.c.b16 %v2007, %v2006
        %v2063 = vpack.c.b16 %v2009, %v2008
        %v2064 = vpack.c.b16 %v2011, %v2010
        %v2065 = vpack.c.b16 %v2013, %v2012
        %v2066 = vpack.c.b16 %v2015, %v2014
        %v2067 = vpack.c.b16 %v2017, %v2016
        %v2068 = vpack.c.b16 %v2019, %v2018
        %v2069 = vpack.c.b16 %v2021, %v2020
        %v2070 = vpack.c.b16 %v2023, %v2022
        %v2071 = vpack.c.b16 %v2025, %v2024
        %v2072 = vpack.c.b16 %v2027, %v2026
        %v2073 = vpack.c.b16 %v2029, %v2028
        %v2074 = vpack.c.b16 %v2031, %v2030
        %v2075 = vpack.c.b16 %v2033, %v2032
        %v2076 = vpack.c.b16 %v2035, %v2034
        %v2077 = vpack.c.b16 %v2037, %v2036
        %v2078 = vpack.c.b16 %v2039, %v2038
        %v2079 = vpack.c.b16 %v2041, %v2040
        %v2080 = vpack.c.b16 %v2043, %v2042
        %v2081 = vpack.c.b16 %v2045, %v2044
        %v2082 = vpack.c.b16 %v2047, %v2046
        %v2083 = vpack.c.b16 %v2049, %v2048
        %v2084 = vpack.c.b16 %v2051, %v2050
        %v2085 = vpack.c.b16 %v2053, %v2052
        %2118 = vmatprep.subr.bf16.mxu0 0
        %2119 = vmatpush1.bf16.msra.mxu0 %v2054
        %2120 = vmatprep.subr.bf16.mxu0 0
        %2121 = vmatpush1.bf16.msra.mxu0 %v2055
        %2122 = vmatprep.subr.bf16.mxu0 0
        %2123 = vmatpush1.bf16.msra.mxu0 %v2056
        %2124 = vmatprep.subr.bf16.mxu0 0
        %2125 = vmatpush1.bf16.msra.mxu0 %v2057
        %2126 = vmatprep.subr.bf16.mxu0 0
        %2127 = vmatpush1.bf16.msra.mxu0 %v2058
        %2128 = vmatprep.subr.bf16.mxu0 0
        %2129 = vmatpush1.bf16.msra.mxu0 %v2059
        %2130 = vmatprep.subr.bf16.mxu0 0
        %2131 = vmatpush1.bf16.msra.mxu0 %v2060
        %2132 = vmatprep.subr.bf16.mxu0 0
        %2133 = vmatpush1.bf16.msra.mxu0 %v2061
        %2134 = vmatprep.subr.bf16.mxu0 0
        %2135 = vmatpush1.bf16.msra.mxu0 %v2062
        %2136 = vmatprep.subr.bf16.mxu0 0
        %2137 = vmatpush1.bf16.msra.mxu0 %v2063
        %2138 = vmatprep.subr.bf16.mxu0 0
        %2139 = vmatpush1.bf16.msra.mxu0 %v2064
        %2140 = vmatprep.subr.bf16.mxu0 0
        %2141 = vmatpush1.bf16.msra.mxu0 %v2065
        %2142 = vmatprep.subr.bf16.mxu0 0
        %2143 = vmatpush1.bf16.msra.mxu0 %v2066
        %2144 = vmatprep.subr.bf16.mxu0 0
        %2145 = vmatpush1.bf16.msra.mxu0 %v2067
        %2146 = vmatprep.subr.bf16.mxu0 0
        %2147 = vmatpush1.bf16.msra.mxu0 %v2068
        %2148 = vmatprep.subr.bf16.mxu0 0
        %2149 = vmatpush1.bf16.msra.mxu0 %v2069
        %2150 = vmatprep.mubr.bf16.mxu0 %v1824
        %2151 = vmatmul.mubr.bf16.gmra.mrb[0].mxu0 %v1823
        %v2152 = vpop.f32.mrb[0].mxu0
        %v2153 = vadd.f32 %v1924, %v2152
        %v2154 = vpop.f32.mrb[0].mxu0
        %v2155 = vpop.f32.mrb[0].mxu0
        %v2156 = vadd.f32 %v1924, %v2155
        %v2157 = vpop.f32.mrb[0].mxu0
        %2158 = vmatprep.mubr.bf16.mxu0 %v1828
        %2159 = vmatmul.mubr.bf16.gmra.mrb[0].mxu0 %v1827
        %v2160 = vpop.f32.mrb[0].mxu0
        %v2161 = vadd.f32 %v1924, %v2160
        %v2162 = vpop.f32.mrb[0].mxu0
        %v2163 = vpop.f32.mrb[0].mxu0
        %v2164 = vadd.f32 %v1924, %v2163
        %v2165 = vpop.f32.mrb[0].mxu0
        %2166 = vmatprep.mubr.bf16.mxu0 %v1832
        %2167 = vmatmul.mubr.bf16.gmra.mrb[0].mxu0 %v1831
        %v2168 = vpop.f32.mrb[0].mxu0
        %v2169 = vadd.f32 %v1924, %v2168
        %v2170 = vpop.f32.mrb[0].mxu0
        %v2171 = vpop.f32.mrb[0].mxu0
        %v2172 = vadd.f32 %v1924, %v2171
        %v2173 = vpop.f32.mrb[0].mxu0
        %2174 = vmatprep.mubr.bf16.mxu0 %v1836
        %2175 = vmatmul.mubr.bf16.gmra.mrb[0].mxu0 %v1835
        %v2176 = vpop.f32.mrb[0].mxu0
        %v2177 = vadd.f32 %v1924, %v2176
        %v2178 = vpop.f32.mrb[0].mxu0
        %v2179 = vpop.f32.mrb[0].mxu0
        %v2180 = vadd.f32 %v1924, %v2179
        %v2181 = vpop.f32.mrb[0].mxu0
        %2182 = vmatprep.mubr.bf16.mxu0 %v1840
        %2183 = vmatmul.mubr.bf16.gmra.mrb[0].mxu0 %v1839
        %v2184 = vpop.f32.mrb[0].mxu0
        %v2185 = vadd.f32 %v1924, %v2184
        %v2186 = vpop.f32.mrb[0].mxu0
        %v2187 = vpop.f32.mrb[0].mxu0
        %v2188 = vadd.f32 %v1924, %v2187
        %v2189 = vpop.f32.mrb[0].mxu0
        %2190 = vmatprep.mubr.bf16.mxu0 %v1844
        %2191 = vmatmul.mubr.bf16.gmra.mrb[0].mxu0 %v1843
        %v2192 = vpop.f32.mrb[0].mxu0
        %v2193 = vadd.f32 %v1924, %v2192
        %v2194 = vpop.f32.mrb[0].mxu0
        %v2195 = vpop.f32.mrb[0].mxu0
        %v2196 = vadd.f32 %v1924, %v2195
        %v2197 = vpop.f32.mrb[0].mxu0
        %2198 = vmatprep.mubr.bf16.mxu0 %v1848
        %2199 = vmatmul.mubr.bf16.gmra.mrb[0].mxu0 %v1847
        %v2200 = vpop.f32.mrb[0].mxu0
        %v2201 = vadd.f32 %v1924, %v2200
        %v2202 = vpop.f32.mrb[0].mxu0
        %v2203 = vpop.f32.mrb[0].mxu0
        %v2204 = vadd.f32 %v1924, %v2203
        %v2205 = vpop.f32.mrb[0].mxu0
        %2206 = vmatprep.mubr.bf16.mxu0 %v1852
        %2207 = vmatmul.mubr.bf16.gmra.mrb[0].mxu0 %v1851
        %v2208 = vpop.f32.mrb[0].mxu0
        %v2209 = vadd.f32 %v1924, %v2208
        %v2210 = vpop.f32.mrb[0].mxu0
        %v2211 = vpop.f32.mrb[0].mxu0
        %v2212 = vadd.f32 %v1924, %v2211
        %v2213 = vpop.f32.mrb[0].mxu0
        %2214 = vdwg.mxu0
        %2215 = vmatprep.subr.bf16.mxu0 0
        %2216 = vmatpush1.bf16.msra.mxu0 %v2070
        %2217 = vmatprep.subr.bf16.mxu0 0
        %2218 = vmatpush1.bf16.msra.mxu0 %v2071
        %2219 = vmatprep.subr.bf16.mxu0 0
        %2220 = vmatpush1.bf16.msra.mxu0 %v2072
        %2221 = vmatprep.subr.bf16.mxu0 0
        %2222 = vmatpush1.bf16.msra.mxu0 %v2073
        %2223 = vmatprep.subr.bf16.mxu0 0
        %2224 = vmatpush1.bf16.msra.mxu0 %v2074
        %2225 = vmatprep.subr.bf16.mxu0 0
        %2226 = vmatpush1.bf16.msra.mxu0 %v2075
        %2227 = vmatprep.subr.bf16.mxu0 0
        %2228 = vmatpush1.bf16.msra.mxu0 %v2076
        %2229 = vmatprep.subr.bf16.mxu0 0
        %2230 = vmatpush1.bf16.msra.mxu0 %v2077
        %2231 = vmatprep.subr.bf16.mxu0 0
        %2232 = vmatpush1.bf16.msra.mxu0 %v2078
        %2233 = vmatprep.subr.bf16.mxu0 0
        %2234 = vmatpush1.bf16.msra.mxu0 %v2079
        %2235 = vmatprep.subr.bf16.mxu0 0
        %2236 = vmatpush1.bf16.msra.mxu0 %v2080
        %2237 = vmatprep.subr.bf16.mxu0 0
        %2238 = vmatpush1.bf16.msra.mxu0 %v2081
        %2239 = vmatprep.subr.bf16.mxu0 0
        %2240 = vmatpush1.bf16.msra.mxu0 %v2082
        %2241 = vmatprep.subr.bf16.mxu0 0
        %2242 = vmatpush1.bf16.msra.mxu0 %v2083
        %2243 = vmatprep.subr.bf16.mxu0 0
        %2244 = vmatpush1.bf16.msra.mxu0 %v2084
        %2245 = vmatprep.subr.bf16.mxu0 0
        %2246 = vmatpush1.bf16.msra.mxu0 %v2085
        %2247 = vmatprep.mubr.bf16.mxu0 %v1826
        %2248 = vmatmul.mubr.bf16.gmra.mrb[0].mxu0 %v1825
        %v2249 = vpop.f32.mrb[0].mxu0
        %v2250 = vadd.f32 %v2153, %v2249
        %v2251 = vpop.f32.mrb[0].mxu0
        %v2252 = vpop.f32.mrb[0].mxu0
        %v2253 = vadd.f32 %v2156, %v2252
        %v2254 = vpop.f32.mrb[0].mxu0
        %2255 = vmatprep.mubr.bf16.mxu0 %v1830
        %2256 = vmatmul.mubr.bf16.gmra.mrb[0].mxu0 %v1829
        %v2257 = vpop.f32.mrb[0].mxu0
        %v2258 = vadd.f32 %v2161, %v2257
        %v2259 = vpop.f32.mrb[0].mxu0
        %v2260 = vpop.f32.mrb[0].mxu0
        %v2261 = vadd.f32 %v2164, %v2260
        %v2262 = vpop.f32.mrb[0].mxu0
        %2263 = vmatprep.mubr.bf16.mxu0 %v1834
        %2264 = vmatmul.mubr.bf16.gmra.mrb[0].mxu0 %v1833
        %v2265 = vpop.f32.mrb[0].mxu0
        %v2266 = vadd.f32 %v2169, %v2265
        %v2267 = vpop.f32.mrb[0].mxu0
        %v2268 = vpop.f32.mrb[0].mxu0
        %v2269 = vadd.f32 %v2172, %v2268
        %v2270 = vpop.f32.mrb[0].mxu0
        %2271 = vmatprep.mubr.bf16.mxu0 %v1838
        %2272 = vmatmul.mubr.bf16.gmra.mrb[0].mxu0 %v1837
        %v2273 = vpop.f32.mrb[0].mxu0
        %v2274 = vadd.f32 %v2177, %v2273
        %v2275 = vpop.f32.mrb[0].mxu0
        %v2276 = vpop.f32.mrb[0].mxu0
        %v2277 = vadd.f32 %v2180, %v2276
        %v2278 = vpop.f32.mrb[0].mxu0
        %2279 = vmatprep.mubr.bf16.mxu0 %v1842
        %2280 = vmatmul.mubr.bf16.gmra.mrb[0].mxu0 %v1841
        %v2281 = vpop.f32.mrb[0].mxu0
        %v2282 = vadd.f32 %v2185, %v2281
        %v2283 = vpop.f32.mrb[0].mxu0
        %v2284 = vpop.f32.mrb[0].mxu0
        %v2285 = vadd.f32 %v2188, %v2284
        %v2286 = vpop.f32.mrb[0].mxu0
        %2287 = vmatprep.mubr.bf16.mxu0 %v1846
        %2288 = vmatmul.mubr.bf16.gmra.mrb[0].mxu0 %v1845
        %v2289 = vpop.f32.mrb[0].mxu0
        %v2290 = vadd.f32 %v2193, %v2289
        %v2291 = vpop.f32.mrb[0].mxu0
        %v2292 = vpop.f32.mrb[0].mxu0
        %v2293 = vadd.f32 %v2196, %v2292
        %v2294 = vpop.f32.mrb[0].mxu0
        %2295 = vmatprep.mubr.bf16.mxu0 %v1850
        %2296 = vmatmul.mubr.bf16.gmra.mrb[0].mxu0 %v1849
        %v2297 = vpop.f32.mrb[0].mxu0
        %v2298 = vadd.f32 %v2201, %v2297
        %v2299 = vpop.f32.mrb[0].mxu0
        %v2300 = vpop.f32.mrb[0].mxu0
        %v2301 = vadd.f32 %v2204, %v2300
        %v2302 = vpop.f32.mrb[0].mxu0
        %2303 = vmatprep.mubr.bf16.mxu0 %v1854
        %2304 = vmatmul.mubr.bf16.gmra.mrb[0].mxu0 %v1853
        %v2305 = vpop.f32.mrb[0].mxu0
        %v2306 = vadd.f32 %v2209, %v2305
        %v2307 = vpop.f32.mrb[0].mxu0
        %v2308 = vpop.f32.mrb[0].mxu0
        %v2309 = vadd.f32 %v2212, %v2308
        %v2310 = vpop.f32.mrb[0].mxu0
        %2311 = vdwg.mxu0
        %v2312 = vadd.f32 %v2250, %v647
        %v2313 = vadd.f32 %v2253, %v648
        %v2314 = vadd.f32 %v2258, %v649
        %v2315 = vadd.f32 %v2261, %v650
        %v2316 = vadd.f32 %v2266, %v651
        %v2317 = vadd.f32 %v2269, %v652
        %v2318 = vadd.f32 %v2274, %v653
        %v2319 = vadd.f32 %v2277, %v654
        %v2320 = vadd.f32 %v2282, %v655
        %v2321 = vadd.f32 %v2285, %v656
        %v2322 = vadd.f32 %v2290, %v657
        %v2323 = vadd.f32 %v2293, %v658
        %v2324 = vadd.f32 %v2298, %v659
        %v2325 = vadd.f32 %v2301, %v660
        %v2326 = vadd.f32 %v2306, %v661
        %v2327 = vadd.f32 %v2309, %v662
        %2328 = vst [vmem:[%s376] sm:$0xff] %v2312
        %2329 = vst [vmem:[%s376 + $0x8] sm:$0xff] %v2313
        %2330 = vst [vmem:[%s376 + $0x10] sm:$0xff] %v2314
        %2331 = vst [vmem:[%s376 + $0x18] sm:$0xff] %v2315
        %2332 = vst [vmem:[%s376 + $0x20] sm:$0xff] %v2316
        %2333 = vst [vmem:[%s376 + $0x28] sm:$0xff] %v2317
        %2334 = vst [vmem:[%s376 + $0x30] sm:$0xff] %v2318
        %2335 = vst [vmem:[%s376 + $0x38] sm:$0xff] %v2319
        %2336 = vst [vmem:[%s376 + $0x40] sm:$0xff] %v2320
        %2337 = vst [vmem:[%s376 + $0x48] sm:$0xff] %v2321
        %2338 = vst [vmem:[%s376 + $0x50] sm:$0xff] %v2322
        %2339 = vst [vmem:[%s376 + $0x58] sm:$0xff] %v2323
        %2340 = vst [vmem:[%s376 + $0x60] sm:$0xff] %v2324
        %2341 = vst [vmem:[%s376 + $0x68] sm:$0xff] %v2325
        %2342 = vst [vmem:[%s376 + $0x70] sm:$0xff] %v2326
        %2343 = vst [vmem:[%s376 + $0x78] sm:$0xff] %v2327
        %s2344 = sand.u32 %s248, 1
        %s2345 = scalar_lea.sflag [#allocation3], %s2344
        %s2346 = sand.u32 %s248, 1
        %s2347 = smul.addr %s2346, 128
        %s2348 = scalar_lea.vmem [#allocation2], %s2347
        // Predicated region
        $region57: #{transformer_forward.5} parent=55 // pred_check
          %p2349 = pneg %p258
        $region58: #{transformer_forward.5} parent=55 // pred_check_branch
          %2351 = sbr.rel (%p2349) target = $region60
        $region59: #{transformer_forward.5} parent=55 // pred_region
          %s2352 = smul.u32 16, %s28
          %s2354 = ssub.s32 2048, 2048
          %2355 = vsyncadd %s2345, %s2354
          %s2356 = smul.addr %s27, 16
          %s2357 = sadd.s32 %s2352, %s2356
          %s2358 = smul.addr %s2357, 128
          %s2359 = scalar_lea.hbm %s9, %s2358
          %s2360 = sshll.u32 %s2348, 4
          %s2361 = int_to_ptr.vmem [resolvable:$true] %s2360
          %2366 = dma.vmem_to_hbm [thread:$0]  %s2361, 2048, %s2359, %s2345, 128, 128, 8
        $region60: #{transformer_forward.5} parent=55 // pred_fallthru
          _
      $region56: #{transformer_forward.5} parent=5 // pred_fallthru
        _
      %p2367 = scmp.le.s32.totalorder 2, %s18
      // Predicated region
      $region61: #{transformer_forward.5} parent=5 // pred_check
        %p2368 = pneg %p2367
      $region62: #{transformer_forward.5} parent=5 // pred_check_branch
        %2370 = sbr.rel (%p2368) target = $region64
      $region63: #{transformer_forward.5} parent=5 // pred_region
        %s2371 = ssub.s32 %s18, 2
        // Predicated region
        $region65: #{transformer_forward.5} parent=63 // pred_check
          %p2372 = pneg %p264
        $region66: #{transformer_forward.5} parent=63 // pred_check_branch
          %2374 = sbr.rel (%p2372) target = $region68
        $region67: #{transformer_forward.5} parent=63 // pred_region
          %s2375 = sand.u32 %s249, 1
          %s2376 = scalar_lea.sflag [#allocation3], %s2375
          %s2377 = sand.u32 %s249, 1
          %s2378 = smul.addr %s2377, 128
          %s2379 = scalar_lea.vmem [#allocation2], %s2378
          %2380 = dma.done %s2376, 2048
        $region68: #{transformer_forward.5} parent=63 // pred_fallthru
          _
      $region64: #{transformer_forward.5} parent=5 // pred_fallthru
        _
    $region6: #{transformer_forward.5} parent=1 // loop_footer
      %s22 = sadd.s32 1, %s18
    $region7: #{transformer_forward.5} parent=1 // loop_footer_branch
      %17 = sbr.rel target = $region3
    $region8: #{transformer_forward.5} parent=1 // loop_exit
      _
    %2381 = vsyncpa [#allocation3], 1
    %s2382 = scalar_lea.sflag [#allocation3], 1
    %2383 = vsyncpa %s2382, 1

// kernel: transformer_forward.4
$region0: #{transformer_forward.4}
  #allocation0 [shape = 'u32[]', space=smem, size = 0x4, offset = 0x4, fixed_abs, tag = 'smem constant byte address 0x4 - core index']
  #allocation1 [shape = 'u32[144,128]{1,0:T(1,128)}', space=vmem, size = 0x12000, scoped, tag = 'internal scratch']
  #allocation2 [shape = 'f32[2,128,1]{2,1,0:T(8,128)}', space=vmem, size = 0x20000, scoped, tag = 'scratch operand']
  #allocation3 [shape = 'f32[2,128,1]{2,1,0:T(8,128)}', space=vmem, size = 0x20000, scoped, tag = 'scratch operand']
  #allocation4 [shape = 'f32[2,128,64]{2,1,0:T(8,128)}', space=vmem, size = 0x20000, scoped, tag = 'scratch operand']
  %s0 = inlined_call_operand.vmem [shape: bf16[2,2,128,64], index: 0, kind: input, shape index: {}]
  %s1 = inlined_call_operand.vmem [shape: bf16[2,2,128,64], index: 1, kind: input, shape index: {}]
  %s2 = inlined_call_operand.vmem [shape: bf16[2,2,128,64], index: 2, kind: input, shape index: {}]
  %s3 = inlined_call_operand.vmem [shape: bf16[2,2,128,64], index: 3, kind: output, shape index: {}]
  %s4 = sld [smem:[#allocation0]]
  $region53: #{transformer_forward.4} parent=0
    _
  %s6 = ssub.s32 1, %s4
  %s7 = scalar_select 0, %s6, %s4
  loop: start=0, step=1, limit=4
  $region2: #{transformer_forward.4} parent=0 // loop_pre_header
    _
  $region3: #{transformer_forward.4} parent=0 // loop_header
    %s9 = sphi 0, %s13
    %p10 = scmp.ge.s32.totalorder %s9, 4
    %s16 = sphi 0, %s35
    %s17 = sphi 0, %s31
    %s18 = sphi 0, %s27
    %s19 = sphi 0, %s16
    %s20 = sphi 0, %s17
    %s21 = sphi 0, %s18
    %s22 = sphi 0, %s19
    %s23 = sphi 0, %s20
    %s24 = sphi 0, %s21
    %s40 = sphi 0, %s42
    %s43 = sphi 0, %s40
    %s44 = sphi 0, %s43
    %s60 = sphi 0, %s44
    %s68 = sphi 0, %s70
    %s71 = sphi 0, %s68
    %s72 = sphi 0, %s71
    %s88 = sphi 0, %s72
    %s96 = sphi 0, %s98
    %s99 = sphi 0, %s96
    %s100 = sphi 0, %s99
    %s116 = sphi 0, %s100
    %s124 = sphi 0, %s126
    %s127 = sphi 0, %s124
    %s128 = sphi 0, %s127
    %s144 = sphi 0, %s128
  $region4: #{transformer_forward.4} parent=0 // loop_header_branch
    %12 = sbr.rel (%p10) target = $region8
  $region5: #{transformer_forward.4} parent=0 // loop_body
    %s14 = ssub.s32 %s9, 1
    %s15 = ssub.s32 %s9, 2
    %s25 = sadd.s32 1, %s18
    %p26 = scmp.ge.s32.totalorder %s25, 1
    %s27 = scalar_select %p26, 0, %s25
    %s28 = sadd.s32 1, %s17
    %s29 = scalar_select %p26, %s28, %s17
    %p30 = scmp.ge.s32.totalorder %s29, 1
    %s31 = scalar_select %p30, 0, %s29
    %s32 = sadd.s32 1, %s16
    %s33 = scalar_select %p30, %s32, %s16
    %p34 = scmp.ge.s32.totalorder %s33, 2
    %s35 = scalar_select %p34, 0, %s33
    %s36 = ssub.s32 %s16, %s35
    %s37 = ssub.s32 %s17, %s31
    %s38 = sor.u32 %s36, %s37
    %p39 = scmp.eq.s32.totalorder %s38, 0
    %s41 = sadd.s32 %s40, 1
    %s42 = scalar_select %p39, %s40, %s41
    %p45 = pneg %p39
    %p46 = scmp.eq.s32.totalorder %s9, 1
    %p47 = por %p45, %p46
    %p48 = scmp.ne.s32.totalorder %s40, %s43
    %p49 = scmp.eq.s32.totalorder %s9, 0
    %p50 = por %p48, %p49
    %p51 = scmp.ne.s32.totalorder %s40, %s43
    %p52 = scmp.eq.s32.totalorder %s14, 1
    %p53 = por %p51, %p52
    %p54 = scmp.ne.s32.totalorder %s43, %s44
    %p55 = scmp.eq.s32.totalorder %s14, 0
    %p56 = por %p54, %p55
    %p57 = scmp.ne.s32.totalorder %s43, %s44
    %p58 = scmp.eq.s32.totalorder %s15, 1
    %p59 = por %p57, %p58
    %p61 = scmp.ne.s32.totalorder %s44, %s60
    %p62 = scmp.eq.s32.totalorder %s15, 0
    %p63 = por %p61, %p62
    %s64 = ssub.s32 %s16, %s35
    %s65 = ssub.s32 %s18, %s27
    %s66 = sor.u32 %s64, %s65
    %p67 = scmp.eq.s32.totalorder %s66, 0
    %s69 = sadd.s32 %s68, 1
    %s70 = scalar_select %p67, %s68, %s69
    %p73 = pneg %p67
    %p74 = scmp.eq.s32.totalorder %s9, 1
    %p75 = por %p73, %p74
    %p76 = scmp.ne.s32.totalorder %s68, %s71
    %p77 = scmp.eq.s32.totalorder %s9, 0
    %p78 = por %p76, %p77
    %p79 = scmp.ne.s32.totalorder %s68, %s71
    %p80 = scmp.eq.s32.totalorder %s14, 1
    %p81 = por %p79, %p80
    %p82 = scmp.ne.s32.totalorder %s71, %s72
    %p83 = scmp.eq.s32.totalorder %s14, 0
    %p84 = por %p82, %p83
    %p85 = scmp.ne.s32.totalorder %s71, %s72
    %p86 = scmp.eq.s32.totalorder %s15, 1
    %p87 = por %p85, %p86
    %p89 = scmp.ne.s32.totalorder %s72, %s88
    %p90 = scmp.eq.s32.totalorder %s15, 0
    %p91 = por %p89, %p90
    %s92 = ssub.s32 %s16, %s35
    %s93 = ssub.s32 %s18, %s27
    %s94 = sor.u32 %s92, %s93
    %p95 = scmp.eq.s32.totalorder %s94, 0
    %s97 = sadd.s32 %s96, 1
    %s98 = scalar_select %p95, %s96, %s97
    %p101 = pneg %p95
    %p102 = scmp.eq.s32.totalorder %s9, 1
    %p103 = por %p101, %p102
    %p104 = scmp.ne.s32.totalorder %s96, %s99
    %p105 = scmp.eq.s32.totalorder %s9, 0
    %p106 = por %p104, %p105
    %p107 = scmp.ne.s32.totalorder %s96, %s99
    %p108 = scmp.eq.s32.totalorder %s14, 1
    %p109 = por %p107, %p108
    %p110 = scmp.ne.s32.totalorder %s99, %s100
    %p111 = scmp.eq.s32.totalorder %s14, 0
    %p112 = por %p110, %p111
    %p113 = scmp.ne.s32.totalorder %s99, %s100
    %p114 = scmp.eq.s32.totalorder %s15, 1
    %p115 = por %p113, %p114
    %p117 = scmp.ne.s32.totalorder %s100, %s116
    %p118 = scmp.eq.s32.totalorder %s15, 0
    %p119 = por %p117, %p118
    %s120 = ssub.s32 %s16, %s35
    %s121 = ssub.s32 %s17, %s31
    %s122 = sor.u32 %s120, %s121
    %p123 = scmp.eq.s32.totalorder %s122, 0
    %s125 = sadd.s32 %s124, 1
    %s126 = scalar_select %p123, %s124, %s125
    %p129 = pneg %p123
    %p130 = scmp.eq.s32.totalorder %s9, 1
    %p131 = por %p129, %p130
    %p132 = scmp.ne.s32.totalorder %s124, %s127
    %p133 = scmp.eq.s32.totalorder %s9, 0
    %p134 = por %p132, %p133
    %p135 = scmp.ne.s32.totalorder %s124, %s127
    %p136 = scmp.eq.s32.totalorder %s14, 1
    %p137 = por %p135, %p136
    %p138 = scmp.ne.s32.totalorder %s127, %s128
    %p139 = scmp.eq.s32.totalorder %s14, 0
    %p140 = por %p138, %p139
    %p141 = scmp.ne.s32.totalorder %s127, %s128
    %p142 = scmp.eq.s32.totalorder %s15, 1
    %p143 = por %p141, %p142
    %p145 = scmp.ne.s32.totalorder %s128, %s144
    %p146 = scmp.eq.s32.totalorder %s15, 0
    %p147 = por %p145, %p146
    %p148 = scmp.le.s32.totalorder 1, %s9
    %p149 = scmp.lt.s32.totalorder %s9, 3
    %p150 = pnand %p148, %p149
    %p151 = pneg %p150
    // Predicated region
    $region9: #{transformer_forward.4} parent=5 // pred_check
      _
    $region10: #{transformer_forward.4} parent=5 // pred_check_branch
      %153 = sbr.rel (%p150) target = $region12
    $region11: #{transformer_forward.4} parent=5 // pred_region
      %s154 = ssub.s32 %s9, 1
    $region12: #{transformer_forward.4} parent=5 // pred_fallthru
      _
    %p155 = scmp.lt.s32.totalorder %s9, 2
    // Predicated region
    $region13: #{transformer_forward.4} parent=5 // pred_check
      %p156 = pneg %p155
    $region14: #{transformer_forward.4} parent=5 // pred_check_branch
      %158 = sbr.rel (%p156) target = $region16
    $region15: #{transformer_forward.4} parent=5 // pred_region
      // Predicated region
      $region17: #{transformer_forward.4} parent=15 // pred_check
        %p159 = pneg %p50
      $region18: #{transformer_forward.4} parent=15 // pred_check_branch
        %161 = sbr.rel (%p159) target = $region20
      $region19: #{transformer_forward.4} parent=15 // pred_region
        %s162 = smul.u32 16, %s17
        %p163 = scmp.lt.s32.totalorder %s16, 1
        %s164 = scalar_select %p163, %s16, 1
        %p165 = scmp.lt.s32.totalorder %s162, 15
        %s166 = scalar_select %p165, %s162, 15
        %s167 = smul.addr %s164, 32
        %s168 = sadd.s32 %s166, %s167
        %s169 = smul.addr %s168, 4
        %s170 = scalar_lea.vmem %s0, %s169
        %s171 = smul.u32 16, %s17
      $region20: #{transformer_forward.4} parent=15 // pred_fallthru
        _
      // Predicated region
      $region21: #{transformer_forward.4} parent=15 // pred_check
        %p172 = pneg %p78
      $region22: #{transformer_forward.4} parent=15 // pred_check_branch
        %174 = sbr.rel (%p172) target = $region24
      $region23: #{transformer_forward.4} parent=15 // pred_region
        %s175 = smul.u32 16, %s18
        %p176 = scmp.lt.s32.totalorder %s16, 1
        %s177 = scalar_select %p176, %s16, 1
        %p178 = scmp.lt.s32.totalorder %s175, 15
        %s179 = scalar_select %p178, %s175, 15
        %s180 = smul.addr %s177, 32
        %s181 = sadd.s32 %s179, %s180
        %s182 = smul.addr %s181, 4
        %s183 = scalar_lea.vmem %s1, %s182
        %s184 = smul.u32 16, %s18
      $region24: #{transformer_forward.4} parent=15 // pred_fallthru
        _
      // Predicated region
      $region25: #{transformer_forward.4} parent=15 // pred_check
        %p185 = pneg %p106
      $region26: #{transformer_forward.4} parent=15 // pred_check_branch
        %187 = sbr.rel (%p185) target = $region28
      $region27: #{transformer_forward.4} parent=15 // pred_region
        %s188 = smul.u32 16, %s18
        %p189 = scmp.lt.s32.totalorder %s16, 1
        %s190 = scalar_select %p189, %s16, 1
        %p191 = scmp.lt.s32.totalorder %s188, 15
        %s192 = scalar_select %p191, %s188, 15
        %s193 = smul.addr %s190, 32
        %s194 = sadd.s32 %s192, %s193
        %s195 = smul.addr %s194, 4
        %s196 = scalar_lea.vmem %s2, %s195
        %s197 = smul.u32 16, %s18
      $region28: #{transformer_forward.4} parent=15 // pred_fallthru
        _
    $region16: #{transformer_forward.4} parent=5 // pred_fallthru
      _
    %p198 = scmp.le.s32.totalorder 1, %s9
    %p199 = scmp.lt.s32.totalorder %s9, 3
    %p200 = pnand %p198, %p199
    %p201 = pneg %p200
    // Predicated region
    $region29: #{transformer_forward.4} parent=5 // pred_check
      _
    $region30: #{transformer_forward.4} parent=5 // pred_check_branch
      %203 = sbr.rel (%p200) target = $region32
    $region31: #{transformer_forward.4} parent=5 // pred_region
      %s204 = ssub.s32 %s9, 1
      %s205 = smul.u32 16, %s20
      %p206 = scmp.lt.s32.totalorder %s19, 1
      %s207 = scalar_select %p206, %s19, 1
      %p208 = scmp.lt.s32.totalorder %s205, 15
      %s209 = scalar_select %p208, %s205, 15
      %s210 = smul.addr %s207, 32
      %s211 = sadd.s32 %s209, %s210
      %s212 = smul.addr %s211, 4
      %s213 = scalar_lea.vmem %s0, %s212
      %p214 = pneg %p56
      %p215 = pneg %p53
      %s216 = smul.u32 16, %s21
      %p217 = scmp.lt.s32.totalorder %s19, 1
      %s218 = scalar_select %p217, %s19, 1
      %p219 = scmp.lt.s32.totalorder %s216, 15
      %s220 = scalar_select %p219, %s216, 15
      %s221 = smul.addr %s218, 32
      %s222 = sadd.s32 %s220, %s221
      %s223 = smul.addr %s222, 4
      %s224 = scalar_lea.vmem %s1, %s223
      %p225 = pneg %p84
      %p226 = pneg %p81
      %s227 = smul.u32 16, %s21
      %p228 = scmp.lt.s32.totalorder %s19, 1
      %s229 = scalar_select %p228, %s19, 1
      %p230 = scmp.lt.s32.totalorder %s227, 15
      %s231 = scalar_select %p230, %s227, 15
      %s232 = smul.addr %s229, 32
      %s233 = sadd.s32 %s231, %s232
      %s234 = smul.addr %s233, 4
      %s235 = scalar_lea.vmem %s2, %s234
      %p236 = pneg %p112
      %p237 = pneg %p109
      %p238 = pneg %p140
      %p239 = pneg %p137
      %s240 = smul.u32 16, %s20
      %p241 = scmp.lt.s32.totalorder %s19, 1
      %s242 = scalar_select %p241, %s19, 1
      %p243 = scmp.lt.s32.totalorder %s240, 15
      %s244 = scalar_select %p243, %s240, 15
      %s245 = smul.addr %s242, 32
      %s246 = sadd.s32 %s244, %s245
      %s247 = smul.addr %s246, 4
      %s248 = scalar_lea.vmem %s3, %s247
      %s249 = smul.u32 16, %s20
      %p250 = scmp.lt.s32.totalorder %s19, 1
      %s251 = scalar_select %p250, %s19, 1
      %p252 = scmp.lt.s32.totalorder %s249, 15
      %s253 = scalar_select %p252, %s249, 15
      %s254 = smul.addr %s251, 32
      %s255 = sadd.s32 %s253, %s254
      %s256 = smul.addr %s255, 4
      %s257 = scalar_lea.vmem %s0, %s256
      %s258 = smul.u32 16, %s20
      %s259 = smul.u32 16, %s21
      %p260 = scmp.lt.s32.totalorder %s19, 1
      %s261 = scalar_select %p260, %s19, 1
      %p262 = scmp.lt.s32.totalorder %s259, 15
      %s263 = scalar_select %p262, %s259, 15
      %s264 = smul.addr %s261, 32
      %s265 = sadd.s32 %s263, %s264
      %s266 = smul.addr %s265, 4
      %s267 = scalar_lea.vmem %s1, %s266
      %s268 = smul.u32 16, %s21
      %s269 = smul.u32 16, %s21
      %p270 = scmp.lt.s32.totalorder %s19, 1
      %s271 = scalar_select %p270, %s19, 1
      %p272 = scmp.lt.s32.totalorder %s269, 15
      %s273 = scalar_select %p272, %s269, 15
      %s274 = smul.addr %s271, 32
      %s275 = sadd.s32 %s273, %s274
      %s276 = smul.addr %s275, 4
      %s277 = scalar_lea.vmem %s2, %s276
      %s278 = smul.u32 16, %s21
      %s279 = smul.u32 16, %s20
      %p280 = scmp.lt.s32.totalorder %s19, 1
      %s281 = scalar_select %p280, %s19, 1
      %p282 = scmp.lt.s32.totalorder %s279, 15
      %s283 = scalar_select %p282, %s279, 15
      %s284 = smul.addr %s281, 32
      %s285 = sadd.s32 %s283, %s284
      %s286 = smul.addr %s285, 4
      %s287 = scalar_lea.vmem %s3, %s286
      %s288 = smul.u32 16, %s20
      %p290 = scmp.eq.s32.totalorder %s21, 0
      // Predicated region
      $region33: #{transformer_forward.4} parent=31 // pred_check
        %p291 = pneg %p290
      $region34: #{transformer_forward.4} parent=31 // pred_check_branch
        %293 = sbr.rel (%p291) target = $region36
      $region35: #{transformer_forward.4} parent=31 // pred_region
        %vm294 = vcmask 7168
        %295 = vst.msk [vmem:[#allocation2] sm:$0xff] %vm294, -inf
        %296 = vst.msk [vmem:[#allocation2 + $0x8] sm:$0xff] %vm294, -inf
        %297 = vst.msk [vmem:[#allocation2 + $0x10] sm:$0xff] %vm294, -inf
        %298 = vst.msk [vmem:[#allocation2 + $0x18] sm:$0xff] %vm294, -inf
        %299 = vst.msk [vmem:[#allocation2 + $0x20] sm:$0xff] %vm294, -inf
        %300 = vst.msk [vmem:[#allocation2 + $0x28] sm:$0xff] %vm294, -inf
        %301 = vst.msk [vmem:[#allocation2 + $0x30] sm:$0xff] %vm294, -inf
        %302 = vst.msk [vmem:[#allocation2 + $0x38] sm:$0xff] %vm294, -inf
        %303 = vst.msk [vmem:[#allocation2 + $0x40] sm:$0xff] %vm294, -inf
        %304 = vst.msk [vmem:[#allocation2 + $0x48] sm:$0xff] %vm294, -inf
        %305 = vst.msk [vmem:[#allocation2 + $0x50] sm:$0xff] %vm294, -inf
        %306 = vst.msk [vmem:[#allocation2 + $0x58] sm:$0xff] %vm294, -inf
        %307 = vst.msk [vmem:[#allocation2 + $0x60] sm:$0xff] %vm294, -inf
        %308 = vst.msk [vmem:[#allocation2 + $0x68] sm:$0xff] %vm294, -inf
        %309 = vst.msk [vmem:[#allocation2 + $0x70] sm:$0xff] %vm294, -inf
        %310 = vst.msk [vmem:[#allocation2 + $0x78] sm:$0xff] %vm294, -inf
        %311 = vst.msk [vmem:[#allocation2 + $0x80] sm:$0xff] %vm294, -inf
        %312 = vst.msk [vmem:[#allocation2 + $0x88] sm:$0xff] %vm294, -inf
        %313 = vst.msk [vmem:[#allocation2 + $0x90] sm:$0xff] %vm294, -inf
        %314 = vst.msk [vmem:[#allocation2 + $0x98] sm:$0xff] %vm294, -inf
        %315 = vst.msk [vmem:[#allocation2 + $0xa0] sm:$0xff] %vm294, -inf
        %316 = vst.msk [vmem:[#allocation2 + $0xa8] sm:$0xff] %vm294, -inf
        %317 = vst.msk [vmem:[#allocation2 + $0xb0] sm:$0xff] %vm294, -inf
        %318 = vst.msk [vmem:[#allocation2 + $0xb8] sm:$0xff] %vm294, -inf
        %319 = vst.msk [vmem:[#allocation2 + $0xc0] sm:$0xff] %vm294, -inf
        %320 = vst.msk [vmem:[#allocation2 + $0xc8] sm:$0xff] %vm294, -inf
        %321 = vst.msk [vmem:[#allocation2 + $0xd0] sm:$0xff] %vm294, -inf
        %322 = vst.msk [vmem:[#allocation2 + $0xd8] sm:$0xff] %vm294, -inf
        %323 = vst.msk [vmem:[#allocation2 + $0xe0] sm:$0xff] %vm294, -inf
        %324 = vst.msk [vmem:[#allocation2 + $0xe8] sm:$0xff] %vm294, -inf
        %325 = vst.msk [vmem:[#allocation2 + $0xf0] sm:$0xff] %vm294, -inf
        %326 = vst.msk [vmem:[#allocation2 + $0xf8] sm:$0xff] %vm294, -inf
        %327 = vst.msk [vmem:[#allocation3] sm:$0xff] %vm294, 0.0
        %328 = vst.msk [vmem:[#allocation3 + $0x8] sm:$0xff] %vm294, 0.0
        %329 = vst.msk [vmem:[#allocation3 + $0x10] sm:$0xff] %vm294, 0.0
        %330 = vst.msk [vmem:[#allocation3 + $0x18] sm:$0xff] %vm294, 0.0
        %331 = vst.msk [vmem:[#allocation3 + $0x20] sm:$0xff] %vm294, 0.0
        %332 = vst.msk [vmem:[#allocation3 + $0x28] sm:$0xff] %vm294, 0.0
        %333 = vst.msk [vmem:[#allocation3 + $0x30] sm:$0xff] %vm294, 0.0
        %334 = vst.msk [vmem:[#allocation3 + $0x38] sm:$0xff] %vm294, 0.0
        %335 = vst.msk [vmem:[#allocation3 + $0x40] sm:$0xff] %vm294, 0.0
        %336 = vst.msk [vmem:[#allocation3 + $0x48] sm:$0xff] %vm294, 0.0
        %337 = vst.msk [vmem:[#allocation3 + $0x50] sm:$0xff] %vm294, 0.0
        %338 = vst.msk [vmem:[#allocation3 + $0x58] sm:$0xff] %vm294, 0.0
        %339 = vst.msk [vmem:[#allocation3 + $0x60] sm:$0xff] %vm294, 0.0
        %340 = vst.msk [vmem:[#allocation3 + $0x68] sm:$0xff] %vm294, 0.0
        %341 = vst.msk [vmem:[#allocation3 + $0x70] sm:$0xff] %vm294, 0.0
        %342 = vst.msk [vmem:[#allocation3 + $0x78] sm:$0xff] %vm294, 0.0
        %343 = vst.msk [vmem:[#allocation3 + $0x80] sm:$0xff] %vm294, 0.0
        %344 = vst.msk [vmem:[#allocation3 + $0x88] sm:$0xff] %vm294, 0.0
        %345 = vst.msk [vmem:[#allocation3 + $0x90] sm:$0xff] %vm294, 0.0
        %346 = vst.msk [vmem:[#allocation3 + $0x98] sm:$0xff] %vm294, 0.0
        %347 = vst.msk [vmem:[#allocation3 + $0xa0] sm:$0xff] %vm294, 0.0
        %348 = vst.msk [vmem:[#allocation3 + $0xa8] sm:$0xff] %vm294, 0.0
        %349 = vst.msk [vmem:[#allocation3 + $0xb0] sm:$0xff] %vm294, 0.0
        %350 = vst.msk [vmem:[#allocation3 + $0xb8] sm:$0xff] %vm294, 0.0
        %351 = vst.msk [vmem:[#allocation3 + $0xc0] sm:$0xff] %vm294, 0.0
        %352 = vst.msk [vmem:[#allocation3 + $0xc8] sm:$0xff] %vm294, 0.0
        %353 = vst.msk [vmem:[#allocation3 + $0xd0] sm:$0xff] %vm294, 0.0
        %354 = vst.msk [vmem:[#allocation3 + $0xd8] sm:$0xff] %vm294, 0.0
        %355 = vst.msk [vmem:[#allocation3 + $0xe0] sm:$0xff] %vm294, 0.0
        %356 = vst.msk [vmem:[#allocation3 + $0xe8] sm:$0xff] %vm294, 0.0
        %357 = vst.msk [vmem:[#allocation3 + $0xf0] sm:$0xff] %vm294, 0.0
        %358 = vst.msk [vmem:[#allocation3 + $0xf8] sm:$0xff] %vm294, 0.0
        %vm359 = vcmask 523264
        %360 = vst.msk [vmem:[#allocation4] sm:$0xff] %vm359, 0.0
        %361 = vst.msk [vmem:[#allocation4 + $0x8] sm:$0xff] %vm359, 0.0
        %362 = vst.msk [vmem:[#allocation4 + $0x10] sm:$0xff] %vm359, 0.0
        %363 = vst.msk [vmem:[#allocation4 + $0x18] sm:$0xff] %vm359, 0.0
        %364 = vst.msk [vmem:[#allocation4 + $0x20] sm:$0xff] %vm359, 0.0
        %365 = vst.msk [vmem:[#allocation4 + $0x28] sm:$0xff] %vm359, 0.0
        %366 = vst.msk [vmem:[#allocation4 + $0x30] sm:$0xff] %vm359, 0.0
        %367 = vst.msk [vmem:[#allocation4 + $0x38] sm:$0xff] %vm359, 0.0
        %368 = vst.msk [vmem:[#allocation4 + $0x40] sm:$0xff] %vm359, 0.0
        %369 = vst.msk [vmem:[#allocation4 + $0x48] sm:$0xff] %vm359, 0.0
        %370 = vst.msk [vmem:[#allocation4 + $0x50] sm:$0xff] %vm359, 0.0
        %371 = vst.msk [vmem:[#allocation4 + $0x58] sm:$0xff] %vm359, 0.0
        %372 = vst.msk [vmem:[#allocation4 + $0x60] sm:$0xff] %vm359, 0.0
        %373 = vst.msk [vmem:[#allocation4 + $0x68] sm:$0xff] %vm359, 0.0
        %374 = vst.msk [vmem:[#allocation4 + $0x70] sm:$0xff] %vm359, 0.0
        %375 = vst.msk [vmem:[#allocation4 + $0x78] sm:$0xff] %vm359, 0.0
        %376 = vst.msk [vmem:[#allocation4 + $0x80] sm:$0xff] %vm359, 0.0
        %377 = vst.msk [vmem:[#allocation4 + $0x88] sm:$0xff] %vm359, 0.0
        %378 = vst.msk [vmem:[#allocation4 + $0x90] sm:$0xff] %vm359, 0.0
        %379 = vst.msk [vmem:[#allocation4 + $0x98] sm:$0xff] %vm359, 0.0
        %380 = vst.msk [vmem:[#allocation4 + $0xa0] sm:$0xff] %vm359, 0.0
        %381 = vst.msk [vmem:[#allocation4 + $0xa8] sm:$0xff] %vm359, 0.0
        %382 = vst.msk [vmem:[#allocation4 + $0xb0] sm:$0xff] %vm359, 0.0
        %383 = vst.msk [vmem:[#allocation4 + $0xb8] sm:$0xff] %vm359, 0.0
        %384 = vst.msk [vmem:[#allocation4 + $0xc0] sm:$0xff] %vm359, 0.0
        %385 = vst.msk [vmem:[#allocation4 + $0xc8] sm:$0xff] %vm359, 0.0
        %386 = vst.msk [vmem:[#allocation4 + $0xd0] sm:$0xff] %vm359, 0.0
        %387 = vst.msk [vmem:[#allocation4 + $0xd8] sm:$0xff] %vm359, 0.0
        %388 = vst.msk [vmem:[#allocation4 + $0xe0] sm:$0xff] %vm359, 0.0
        %389 = vst.msk [vmem:[#allocation4 + $0xe8] sm:$0xff] %vm359, 0.0
        %390 = vst.msk [vmem:[#allocation4 + $0xf0] sm:$0xff] %vm359, 0.0
        %391 = vst.msk [vmem:[#allocation4 + $0xf8] sm:$0xff] %vm359, 0.0
      $region36: #{transformer_forward.4} parent=31 // pred_fallthru
        _
      %v392 = vld [vmem:[%s257] sm:$0xf]
      %v393 = vld [vmem:[%s257 + $0x4] sm:$0xf]
      %v394 = vld [vmem:[%s257 + $0x8] sm:$0xf]
      %v395 = vld [vmem:[%s257 + $0xc] sm:$0xf]
      %v396 = vld [vmem:[%s257 + $0x10] sm:$0xf]
      %v397 = vld [vmem:[%s257 + $0x14] sm:$0xf]
      %v398 = vld [vmem:[%s257 + $0x18] sm:$0xf]
      %v399 = vld [vmem:[%s257 + $0x1c] sm:$0xf]
      %v400 = vld [vmem:[%s257 + $0x20] sm:$0xf]
      %v401 = vld [vmem:[%s257 + $0x24] sm:$0xf]
      %v402 = vld [vmem:[%s257 + $0x28] sm:$0xf]
      %v403 = vld [vmem:[%s257 + $0x2c] sm:$0xf]
      %v404 = vld [vmem:[%s257 + $0x30] sm:$0xf]
      %v405 = vld [vmem:[%s257 + $0x34] sm:$0xf]
      %v406 = vld [vmem:[%s257 + $0x38] sm:$0xf]
      %v407 = vld [vmem:[%s257 + $0x3c] sm:$0xf]
      %v408 = vld [vmem:[%s257 + $0x40] sm:$0xf]
      %v409 = vld [vmem:[%s257 + $0x44] sm:$0xf]
      %v410 = vld [vmem:[%s257 + $0x48] sm:$0xf]
      %v411 = vld [vmem:[%s257 + $0x4c] sm:$0xf]
      %v412 = vld [vmem:[%s257 + $0x50] sm:$0xf]
      %v413 = vld [vmem:[%s257 + $0x54] sm:$0xf]
      %v414 = vld [vmem:[%s257 + $0x58] sm:$0xf]
      %v415 = vld [vmem:[%s257 + $0x5c] sm:$0xf]
      %v416 = vld [vmem:[%s257 + $0x60] sm:$0xf]
      %v417 = vld [vmem:[%s257 + $0x64] sm:$0xf]
      %v418 = vld [vmem:[%s257 + $0x68] sm:$0xf]
      %v419 = vld [vmem:[%s257 + $0x6c] sm:$0xf]
      %v420 = vld [vmem:[%s257 + $0x70] sm:$0xf]
      %v421 = vld [vmem:[%s257 + $0x74] sm:$0xf]
      %v422 = vld [vmem:[%s257 + $0x78] sm:$0xf]
      %v423 = vld [vmem:[%s257 + $0x7c] sm:$0xf]
      %v424 = vld [vmem:[%s267] sm:$0xf]
      %v425 = vld [vmem:[%s267 + $0x4] sm:$0xf]
      %v426 = vld [vmem:[%s267 + $0x8] sm:$0xf]
      %v427 = vld [vmem:[%s267 + $0xc] sm:$0xf]
      %v428 = vld [vmem:[%s267 + $0x10] sm:$0xf]
      %v429 = vld [vmem:[%s267 + $0x14] sm:$0xf]
      %v430 = vld [vmem:[%s267 + $0x18] sm:$0xf]
      %v431 = vld [vmem:[%s267 + $0x1c] sm:$0xf]
      %v432 = vld [vmem:[%s267 + $0x20] sm:$0xf]
      %v433 = vld [vmem:[%s267 + $0x24] sm:$0xf]
      %v434 = vld [vmem:[%s267 + $0x28] sm:$0xf]
      %v435 = vld [vmem:[%s267 + $0x2c] sm:$0xf]
      %v436 = vld [vmem:[%s267 + $0x30] sm:$0xf]
      %v437 = vld [vmem:[%s267 + $0x34] sm:$0xf]
      %v438 = vld [vmem:[%s267 + $0x38] sm:$0xf]
      %v439 = vld [vmem:[%s267 + $0x3c] sm:$0xf]
      %v440 = vld [vmem:[%s267 + $0x40] sm:$0xf]
      %v441 = vld [vmem:[%s267 + $0x44] sm:$0xf]
      %v442 = vld [vmem:[%s267 + $0x48] sm:$0xf]
      %v443 = vld [vmem:[%s267 + $0x4c] sm:$0xf]
      %v444 = vld [vmem:[%s267 + $0x50] sm:$0xf]
      %v445 = vld [vmem:[%s267 + $0x54] sm:$0xf]
      %v446 = vld [vmem:[%s267 + $0x58] sm:$0xf]
      %v447 = vld [vmem:[%s267 + $0x5c] sm:$0xf]
      %v448 = vld [vmem:[%s267 + $0x60] sm:$0xf]
      %v449 = vld [vmem:[%s267 + $0x64] sm:$0xf]
      %v450 = vld [vmem:[%s267 + $0x68] sm:$0xf]
      %v451 = vld [vmem:[%s267 + $0x6c] sm:$0xf]
      %v452 = vld [vmem:[%s267 + $0x70] sm:$0xf]
      %v453 = vld [vmem:[%s267 + $0x74] sm:$0xf]
      %v454 = vld [vmem:[%s267 + $0x78] sm:$0xf]
      %v455 = vld [vmem:[%s267 + $0x7c] sm:$0xf]
      %v472 = vunpack.c.l.b16 %v392
      %v473 = vunpack.c.l.b16 %v393
      %v474 = vunpack.c.l.b16 %v394
      %v475 = vunpack.c.l.b16 %v395
      %v476 = vunpack.c.l.b16 %v396
      %v477 = vunpack.c.l.b16 %v397
      %v478 = vunpack.c.l.b16 %v398
      %v479 = vunpack.c.l.b16 %v399
      %v480 = vunpack.c.l.b16 %v400
      %v481 = vunpack.c.l.b16 %v401
      %v482 = vunpack.c.l.b16 %v402
      %v483 = vunpack.c.l.b16 %v403
      %v484 = vunpack.c.l.b16 %v404
      %v485 = vunpack.c.l.b16 %v405
      %v486 = vunpack.c.l.b16 %v406
      %v487 = vunpack.c.l.b16 %v407
      %v488 = vpack.c.b16 %v473, %v472
      %v489 = vpack.c.b16 %v475, %v474
      %v490 = vpack.c.b16 %v477, %v476
      %v491 = vpack.c.b16 %v479, %v478
      %v492 = vpack.c.b16 %v481, %v480
      %v493 = vpack.c.b16 %v483, %v482
      %v494 = vpack.c.b16 %v485, %v484
      %v495 = vpack.c.b16 %v487, %v486
      %v512 = vunpack.c.l.b16 %v424
      %v513 = vunpack.c.l.b16 %v425
      %v514 = vunpack.c.l.b16 %v426
      %v515 = vunpack.c.l.b16 %v427
      %v516 = vunpack.c.l.b16 %v428
      %v517 = vunpack.c.l.b16 %v429
      %v518 = vunpack.c.l.b16 %v430
      %v519 = vunpack.c.l.b16 %v431
      %v520 = vunpack.c.l.b16 %v432
      %v521 = vunpack.c.l.b16 %v433
      %v522 = vunpack.c.l.b16 %v434
      %v523 = vunpack.c.l.b16 %v435
      %v524 = vunpack.c.l.b16 %v436
      %v525 = vunpack.c.l.b16 %v437
      %v526 = vunpack.c.l.b16 %v438
      %v527 = vunpack.c.l.b16 %v439
      %v528 = vpack.c.b16 %v513, %v512
      %v529 = vpack.c.b16 %v515, %v514
      %v530 = vpack.c.b16 %v517, %v516
      %v531 = vpack.c.b16 %v519, %v518
      %v532 = vpack.c.b16 %v521, %v520
      %v533 = vpack.c.b16 %v523, %v522
      %v534 = vpack.c.b16 %v525, %v524
      %v535 = vpack.c.b16 %v527, %v526
      %vm536 = vcmask 523264
      %v538 = vsel %vm536, %v488, 0
      %v541 = vsel %vm536, %v489, 0
      %v544 = vsel %vm536, %v490, 0
      %v547 = vsel %vm536, %v491, 0
      %v550 = vsel %vm536, %v492, 0
      %v553 = vsel %vm536, %v493, 0
      %v556 = vsel %vm536, %v494, 0
      %v559 = vsel %vm536, %v495, 0
      %v562 = vsel %vm536, %v528, 0
      %v565 = vsel %vm536, %v529, 0
      %v568 = vsel %vm536, %v530, 0
      %v571 = vsel %vm536, %v531, 0
      %v574 = vsel %vm536, %v532, 0
      %v577 = vsel %vm536, %v533, 0
      %v580 = vsel %vm536, %v534, 0
      %v583 = vsel %vm536, %v535, 0
      %585 = vmatprep.subr.bf16.mxu0 0
      %586 = vmatpush1.bf16.xpose.msra.mxu0 %v562
      %587 = vmatprep.subr.bf16.mxu0 0
      %588 = vmatpush1.bf16.xpose.msra.mxu0 %v565
      %589 = vmatprep.subr.bf16.mxu0 0
      %590 = vmatpush1.bf16.xpose.msra.mxu0 %v568
      %591 = vmatprep.subr.bf16.mxu0 0
      %592 = vmatpush1.bf16.xpose.msra.mxu0 %v571
      %593 = vmatprep.subr.bf16.mxu0 0
      %594 = vmatpush1.bf16.xpose.msra.mxu0 %v574
      %595 = vmatprep.subr.bf16.mxu0 0
      %596 = vmatpush1.bf16.xpose.msra.mxu0 %v577
      %597 = vmatprep.subr.bf16.mxu0 0
      %598 = vmatpush1.bf16.xpose.msra.mxu0 %v580
      %599 = vmatprep.subr.bf16.mxu0 0
      %600 = vmatpush1.bf16.xpose.msra.mxu0 %v583
      %601 = vmatprep.subr.bf16.mxu0 0
      %602 = vmatpush1.bf16.xpose.msra.mxu0 0
      %603 = vmatprep.subr.bf16.mxu0 0
      %604 = vmatpush1.bf16.xpose.msra.mxu0 0
      %605 = vmatprep.subr.bf16.mxu0 0
      %606 = vmatpush1.bf16.xpose.msra.mxu0 0
      %607 = vmatprep.subr.bf16.mxu0 0
      %608 = vmatpush1.bf16.xpose.msra.mxu0 0
      %609 = vmatprep.subr.bf16.mxu0 0
      %610 = vmatpush1.bf16.xpose.msra.mxu0 0
      %611 = vmatprep.subr.bf16.mxu0 0
      %612 = vmatpush1.bf16.xpose.msra.mxu0 0
      %613 = vmatprep.subr.bf16.mxu0 0
      %614 = vmatpush1.bf16.xpose.msra.mxu0 0
      %615 = vmatprep.subr.bf16.mxu0 0
      %616 = vmatpush1.bf16.xpose.msra.mxu0 0
      %617 = vmatprep.mubr.bf16.mxu0 0
      %618 = vmatmul.mubr.bf16.gmra.mrb[0].mxu0 %v538
      %v619 = vpop.f32.mrb[0].mxu0
      %v620 = vadd.f32 0.0, %v619
      %v621 = vpop.f32.mrb[0].mxu0
      %v622 = vpop.f32.mrb[0].mxu0
      %v623 = vadd.f32 0.0, %v622
      %v624 = vpop.f32.mrb[0].mxu0
      %625 = vmatprep.mubr.bf16.mxu0 0
      %626 = vmatmul.mubr.bf16.gmra.mrb[0].mxu0 %v541
      %v627 = vpop.f32.mrb[0].mxu0
      %v628 = vadd.f32 0.0, %v627
      %v629 = vpop.f32.mrb[0].mxu0
      %v630 = vpop.f32.mrb[0].mxu0
      %v631 = vadd.f32 0.0, %v630
      %v632 = vpop.f32.mrb[0].mxu0
      %633 = vmatprep.mubr.bf16.mxu0 0
      %634 = vmatmul.mubr.bf16.gmra.mrb[0].mxu0 %v544
      %v635 = vpop.f32.mrb[0].mxu0
      %v636 = vadd.f32 0.0, %v635
      %v637 = vpop.f32.mrb[0].mxu0
      %v638 = vpop.f32.mrb[0].mxu0
      %v639 = vadd.f32 0.0, %v638
      %v640 = vpop.f32.mrb[0].mxu0
      %641 = vmatprep.mubr.bf16.mxu0 0
      %642 = vmatmul.mubr.bf16.gmra.mrb[0].mxu0 %v547
      %v643 = vpop.f32.mrb[0].mxu0
      %v644 = vadd.f32 0.0, %v643
      %v645 = vpop.f32.mrb[0].mxu0
      %v646 = vpop.f32.mrb[0].mxu0
      %v647 = vadd.f32 0.0, %v646
      %v648 = vpop.f32.mrb[0].mxu0
      %649 = vmatprep.mubr.bf16.mxu0 0
      %650 = vmatmul.mubr.bf16.gmra.mrb[0].mxu0 %v550
      %v651 = vpop.f32.mrb[0].mxu0
      %v652 = vadd.f32 0.0, %v651
      %v653 = vpop.f32.mrb[0].mxu0
      %v654 = vpop.f32.mrb[0].mxu0
      %v655 = vadd.f32 0.0, %v654
      %v656 = vpop.f32.mrb[0].mxu0
      %657 = vmatprep.mubr.bf16.mxu0 0
      %658 = vmatmul.mubr.bf16.gmra.mrb[0].mxu0 %v553
      %v659 = vpop.f32.mrb[0].mxu0
      %v660 = vadd.f32 0.0, %v659
      %v661 = vpop.f32.mrb[0].mxu0
      %v662 = vpop.f32.mrb[0].mxu0
      %v663 = vadd.f32 0.0, %v662
      %v664 = vpop.f32.mrb[0].mxu0
      %665 = vmatprep.mubr.bf16.mxu0 0
      %666 = vmatmul.mubr.bf16.gmra.mrb[0].mxu0 %v556
      %v667 = vpop.f32.mrb[0].mxu0
      %v668 = vadd.f32 0.0, %v667
      %v669 = vpop.f32.mrb[0].mxu0
      %v670 = vpop.f32.mrb[0].mxu0
      %v671 = vadd.f32 0.0, %v670
      %v672 = vpop.f32.mrb[0].mxu0
      %673 = vmatprep.mubr.bf16.mxu0 0
      %674 = vmatmul.mubr.bf16.gmra.mrb[0].mxu0 %v559
      %v675 = vpop.f32.mrb[0].mxu0
      %v676 = vadd.f32 0.0, %v675
      %v677 = vpop.f32.mrb[0].mxu0
      %v678 = vpop.f32.mrb[0].mxu0
      %v679 = vadd.f32 0.0, %v678
      %v680 = vpop.f32.mrb[0].mxu0
      %681 = vdwg.mxu0
      %v698 = vunpack.c.l.b16 %v408
      %v699 = vunpack.c.l.b16 %v409
      %v700 = vunpack.c.l.b16 %v410
      %v701 = vunpack.c.l.b16 %v411
      %v702 = vunpack.c.l.b16 %v412
      %v703 = vunpack.c.l.b16 %v413
      %v704 = vunpack.c.l.b16 %v414
      %v705 = vunpack.c.l.b16 %v415
      %v706 = vunpack.c.l.b16 %v416
      %v707 = vunpack.c.l.b16 %v417
      %v708 = vunpack.c.l.b16 %v418
      %v709 = vunpack.c.l.b16 %v419
      %v710 = vunpack.c.l.b16 %v420
      %v711 = vunpack.c.l.b16 %v421
      %v712 = vunpack.c.l.b16 %v422
      %v713 = vunpack.c.l.b16 %v423
      %v714 = vpack.c.b16 %v699, %v698
      %v715 = vpack.c.b16 %v701, %v700
      %v716 = vpack.c.b16 %v703, %v702
      %v717 = vpack.c.b16 %v705, %v704
      %v718 = vpack.c.b16 %v707, %v706
      %v719 = vpack.c.b16 %v709, %v708
      %v720 = vpack.c.b16 %v711, %v710
      %v721 = vpack.c.b16 %v713, %v712
      %v738 = vunpack.c.l.b16 %v440
      %v739 = vunpack.c.l.b16 %v441
      %v740 = vunpack.c.l.b16 %v442
      %v741 = vunpack.c.l.b16 %v443
      %v742 = vunpack.c.l.b16 %v444
      %v743 = vunpack.c.l.b16 %v445
      %v744 = vunpack.c.l.b16 %v446
      %v745 = vunpack.c.l.b16 %v447
      %v746 = vunpack.c.l.b16 %v448
      %v747 = vunpack.c.l.b16 %v449
      %v748 = vunpack.c.l.b16 %v450
      %v749 = vunpack.c.l.b16 %v451
      %v750 = vunpack.c.l.b16 %v452
      %v751 = vunpack.c.l.b16 %v453
      %v752 = vunpack.c.l.b16 %v454
      %v753 = vunpack.c.l.b16 %v455
      %v754 = vpack.c.b16 %v739, %v738
      %v755 = vpack.c.b16 %v741, %v740
      %v756 = vpack.c.b16 %v743, %v742
      %v757 = vpack.c.b16 %v745, %v744
      %v758 = vpack.c.b16 %v747, %v746
      %v759 = vpack.c.b16 %v749, %v748
      %v760 = vpack.c.b16 %v751, %v750
      %v761 = vpack.c.b16 %v753, %v752
      %v763 = vsel %vm536, %v714, 0
      %v766 = vsel %vm536, %v715, 0
      %v769 = vsel %vm536, %v716, 0
      %v772 = vsel %vm536, %v717, 0
      %v775 = vsel %vm536, %v718, 0
      %v778 = vsel %vm536, %v719, 0
      %v781 = vsel %vm536, %v720, 0
      %v784 = vsel %vm536, %v721, 0
      %v787 = vsel %vm536, %v754, 0
      %v790 = vsel %vm536, %v755, 0
      %v793 = vsel %vm536, %v756, 0
      %v796 = vsel %vm536, %v757, 0
      %v799 = vsel %vm536, %v758, 0
      %v802 = vsel %vm536, %v759, 0
      %v805 = vsel %vm536, %v760, 0
      %v808 = vsel %vm536, %v761, 0
      %810 = vmatprep.subr.bf16.mxu0 0
      %811 = vmatpush1.bf16.xpose.msra.mxu0 %v787
      %812 = vmatprep.subr.bf16.mxu0 0
      %813 = vmatpush1.bf16.xpose.msra.mxu0 %v790
      %814 = vmatprep.subr.bf16.mxu0 0
      %815 = vmatpush1.bf16.xpose.msra.mxu0 %v793
      %816 = vmatprep.subr.bf16.mxu0 0
      %817 = vmatpush1.bf16.xpose.msra.mxu0 %v796
      %818 = vmatprep.subr.bf16.mxu0 0
      %819 = vmatpush1.bf16.xpose.msra.mxu0 %v799
      %820 = vmatprep.subr.bf16.mxu0 0
      %821 = vmatpush1.bf16.xpose.msra.mxu0 %v802
      %822 = vmatprep.subr.bf16.mxu0 0
      %823 = vmatpush1.bf16.xpose.msra.mxu0 %v805
      %824 = vmatprep.subr.bf16.mxu0 0
      %825 = vmatpush1.bf16.xpose.msra.mxu0 %v808
      %826 = vmatprep.subr.bf16.mxu0 0
      %827 = vmatpush1.bf16.xpose.msra.mxu0 0
      %828 = vmatprep.subr.bf16.mxu0 0
      %829 = vmatpush1.bf16.xpose.msra.mxu0 0
      %830 = vmatprep.subr.bf16.mxu0 0
      %831 = vmatpush1.bf16.xpose.msra.mxu0 0
      %832 = vmatprep.subr.bf16.mxu0 0
      %833 = vmatpush1.bf16.xpose.msra.mxu0 0
      %834 = vmatprep.subr.bf16.mxu0 0
      %835 = vmatpush1.bf16.xpose.msra.mxu0 0
      %836 = vmatprep.subr.bf16.mxu0 0
      %837 = vmatpush1.bf16.xpose.msra.mxu0 0
      %838 = vmatprep.subr.bf16.mxu0 0
      %839 = vmatpush1.bf16.xpose.msra.mxu0 0
      %840 = vmatprep.subr.bf16.mxu0 0
      %841 = vmatpush1.bf16.xpose.msra.mxu0 0
      %842 = vmatprep.mubr.bf16.mxu0 0
      %843 = vmatmul.mubr.bf16.gmra.mrb[0].mxu0 %v763
      %v844 = vpop.f32.mrb[0].mxu0
      %v845 = vadd.f32 0.0, %v844
      %v846 = vpop.f32.mrb[0].mxu0
      %v847 = vpop.f32.mrb[0].mxu0
      %v848 = vadd.f32 0.0, %v847
      %v849 = vpop.f32.mrb[0].mxu0
      %850 = vmatprep.mubr.bf16.mxu0 0
      %851 = vmatmul.mubr.bf16.gmra.mrb[0].mxu0 %v766
      %v852 = vpop.f32.mrb[0].mxu0
      %v853 = vadd.f32 0.0, %v852
      %v854 = vpop.f32.mrb[0].mxu0
      %v855 = vpop.f32.mrb[0].mxu0
      %v856 = vadd.f32 0.0, %v855
      %v857 = vpop.f32.mrb[0].mxu0
      %858 = vmatprep.mubr.bf16.mxu0 0
      %859 = vmatmul.mubr.bf16.gmra.mrb[0].mxu0 %v769
      %v860 = vpop.f32.mrb[0].mxu0
      %v861 = vadd.f32 0.0, %v860
      %v862 = vpop.f32.mrb[0].mxu0
      %v863 = vpop.f32.mrb[0].mxu0
      %v864 = vadd.f32 0.0, %v863
      %v865 = vpop.f32.mrb[0].mxu0
      %866 = vmatprep.mubr.bf16.mxu0 0
      %867 = vmatmul.mubr.bf16.gmra.mrb[0].mxu0 %v772
      %v868 = vpop.f32.mrb[0].mxu0
      %v869 = vadd.f32 0.0, %v868
      %v870 = vpop.f32.mrb[0].mxu0
      %v871 = vpop.f32.mrb[0].mxu0
      %v872 = vadd.f32 0.0, %v871
      %v873 = vpop.f32.mrb[0].mxu0
      %874 = vmatprep.mubr.bf16.mxu0 0
      %875 = vmatmul.mubr.bf16.gmra.mrb[0].mxu0 %v775
      %v876 = vpop.f32.mrb[0].mxu0
      %v877 = vadd.f32 0.0, %v876
      %v878 = vpop.f32.mrb[0].mxu0
      %v879 = vpop.f32.mrb[0].mxu0
      %v880 = vadd.f32 0.0, %v879
      %v881 = vpop.f32.mrb[0].mxu0
      %882 = vmatprep.mubr.bf16.mxu0 0
      %883 = vmatmul.mubr.bf16.gmra.mrb[0].mxu0 %v778
      %v884 = vpop.f32.mrb[0].mxu0
      %v885 = vadd.f32 0.0, %v884
      %v886 = vpop.f32.mrb[0].mxu0
      %v887 = vpop.f32.mrb[0].mxu0
      %v888 = vadd.f32 0.0, %v887
      %v889 = vpop.f32.mrb[0].mxu0
      %890 = vmatprep.mubr.bf16.mxu0 0
      %891 = vmatmul.mubr.bf16.gmra.mrb[0].mxu0 %v781
      %v892 = vpop.f32.mrb[0].mxu0
      %v893 = vadd.f32 0.0, %v892
      %v894 = vpop.f32.mrb[0].mxu0
      %v895 = vpop.f32.mrb[0].mxu0
      %v896 = vadd.f32 0.0, %v895
      %v897 = vpop.f32.mrb[0].mxu0
      %898 = vmatprep.mubr.bf16.mxu0 0
      %899 = vmatmul.mubr.bf16.gmra.mrb[0].mxu0 %v784
      %v900 = vpop.f32.mrb[0].mxu0
      %v901 = vadd.f32 0.0, %v900
      %v902 = vpop.f32.mrb[0].mxu0
      %v903 = vpop.f32.mrb[0].mxu0
      %v904 = vadd.f32 0.0, %v903
      %v905 = vpop.f32.mrb[0].mxu0
      %906 = vdwg.mxu0
      %v907 = vld [vmem:[#allocation2] sm:$0xff]
      %v908 = vld [vmem:[#allocation2 + $0x8] sm:$0xff]
      %v909 = vld [vmem:[#allocation2 + $0x10] sm:$0xff]
      %v910 = vld [vmem:[#allocation2 + $0x18] sm:$0xff]
      %v911 = vld [vmem:[#allocation2 + $0x20] sm:$0xff]
      %v912 = vld [vmem:[#allocation2 + $0x28] sm:$0xff]
      %v913 = vld [vmem:[#allocation2 + $0x30] sm:$0xff]
      %v914 = vld [vmem:[#allocation2 + $0x38] sm:$0xff]
      %v915 = vld [vmem:[#allocation2 + $0x40] sm:$0xff]
      %v916 = vld [vmem:[#allocation2 + $0x48] sm:$0xff]
      %v917 = vld [vmem:[#allocation2 + $0x50] sm:$0xff]
      %v918 = vld [vmem:[#allocation2 + $0x58] sm:$0xff]
      %v919 = vld [vmem:[#allocation2 + $0x60] sm:$0xff]
      %v920 = vld [vmem:[#allocation2 + $0x68] sm:$0xff]
      %v921 = vld [vmem:[#allocation2 + $0x70] sm:$0xff]
      %v922 = vld [vmem:[#allocation2 + $0x78] sm:$0xff]
      %v923 = vld [vmem:[#allocation2 + $0x80] sm:$0xff]
      %v924 = vld [vmem:[#allocation2 + $0x88] sm:$0xff]
      %v925 = vld [vmem:[#allocation2 + $0x90] sm:$0xff]
      %v926 = vld [vmem:[#allocation2 + $0x98] sm:$0xff]
      %v927 = vld [vmem:[#allocation2 + $0xa0] sm:$0xff]
      %v928 = vld [vmem:[#allocation2 + $0xa8] sm:$0xff]
      %v929 = vld [vmem:[#allocation2 + $0xb0] sm:$0xff]
      %v930 = vld [vmem:[#allocation2 + $0xb8] sm:$0xff]
      %v931 = vld [vmem:[#allocation2 + $0xc0] sm:$0xff]
      %v932 = vld [vmem:[#allocation2 + $0xc8] sm:$0xff]
      %v933 = vld [vmem:[#allocation2 + $0xd0] sm:$0xff]
      %v934 = vld [vmem:[#allocation2 + $0xd8] sm:$0xff]
      %v935 = vld [vmem:[#allocation2 + $0xe0] sm:$0xff]
      %v936 = vld [vmem:[#allocation2 + $0xe8] sm:$0xff]
      %v937 = vld [vmem:[#allocation2 + $0xf0] sm:$0xff]
      %v938 = vld [vmem:[#allocation2 + $0xf8] sm:$0xff]
      %939 = vmax.xlane.f32.xlu0 %v620
      %v940 = vpop.xlane.xlu0 %939
      %941 = vmax.xlane.f32.xlu0 %v623
      %v942 = vpop.xlane.xlu0 %941
      %943 = vmax.xlane.f32.xlu0 %v628
      %v944 = vpop.xlane.xlu0 %943
      %945 = vmax.xlane.f32.xlu0 %v631
      %v946 = vpop.xlane.xlu0 %945
      %947 = vmax.xlane.f32.xlu0 %v636
      %v948 = vpop.xlane.xlu0 %947
      %949 = vmax.xlane.f32.xlu0 %v639
      %v950 = vpop.xlane.xlu0 %949
      %951 = vmax.xlane.f32.xlu0 %v644
      %v952 = vpop.xlane.xlu0 %951
      %953 = vmax.xlane.f32.xlu0 %v647
      %v954 = vpop.xlane.xlu0 %953
      %955 = vmax.xlane.f32.xlu0 %v652
      %v956 = vpop.xlane.xlu0 %955
      %957 = vmax.xlane.f32.xlu0 %v655
      %v958 = vpop.xlane.xlu0 %957
      %959 = vmax.xlane.f32.xlu0 %v660
      %v960 = vpop.xlane.xlu0 %959
      %961 = vmax.xlane.f32.xlu0 %v663
      %v962 = vpop.xlane.xlu0 %961
      %963 = vmax.xlane.f32.xlu0 %v668
      %v964 = vpop.xlane.xlu0 %963
      %965 = vmax.xlane.f32.xlu0 %v671
      %v966 = vpop.xlane.xlu0 %965
      %967 = vmax.xlane.f32.xlu0 %v676
      %v968 = vpop.xlane.xlu0 %967
      %969 = vmax.xlane.f32.xlu0 %v679
      %v970 = vpop.xlane.xlu0 %969
      %971 = vmax.xlane.f32.xlu0 %v845
      %v972 = vpop.xlane.xlu0 %971
      %973 = vmax.xlane.f32.xlu0 %v848
      %v974 = vpop.xlane.xlu0 %973
      %975 = vmax.xlane.f32.xlu0 %v853
      %v976 = vpop.xlane.xlu0 %975
      %977 = vmax.xlane.f32.xlu0 %v856
      %v978 = vpop.xlane.xlu0 %977
      %979 = vmax.xlane.f32.xlu0 %v861
      %v980 = vpop.xlane.xlu0 %979
      %981 = vmax.xlane.f32.xlu0 %v864
      %v982 = vpop.xlane.xlu0 %981
      %983 = vmax.xlane.f32.xlu0 %v869
      %v984 = vpop.xlane.xlu0 %983
      %985 = vmax.xlane.f32.xlu0 %v872
      %v986 = vpop.xlane.xlu0 %985
      %987 = vmax.xlane.f32.xlu0 %v877
      %v988 = vpop.xlane.xlu0 %987
      %989 = vmax.xlane.f32.xlu0 %v880
      %v990 = vpop.xlane.xlu0 %989
      %991 = vmax.xlane.f32.xlu0 %v885
      %v992 = vpop.xlane.xlu0 %991
      %993 = vmax.xlane.f32.xlu0 %v888
      %v994 = vpop.xlane.xlu0 %993
      %995 = vmax.xlane.f32.xlu0 %v893
      %v996 = vpop.xlane.xlu0 %995
      %997 = vmax.xlane.f32.xlu0 %v896
      %v998 = vpop.xlane.xlu0 %997
      %999 = vmax.xlane.f32.xlu0 %v901
      %v1000 = vpop.xlane.xlu0 %999
      %1001 = vmax.xlane.f32.xlu0 %v904
      %v1002 = vpop.xlane.xlu0 %1001
      %v1003 = vmax.f32 %v907, %v940
      %v1004 = vmax.f32 %v908, %v942
      %v1005 = vmax.f32 %v909, %v944
      %v1006 = vmax.f32 %v910, %v946
      %v1007 = vmax.f32 %v911, %v948
      %v1008 = vmax.f32 %v912, %v950
      %v1009 = vmax.f32 %v913, %v952
      %v1010 = vmax.f32 %v914, %v954
      %v1011 = vmax.f32 %v915, %v956
      %v1012 = vmax.f32 %v916, %v958
      %v1013 = vmax.f32 %v917, %v960
      %v1014 = vmax.f32 %v918, %v962
      %v1015 = vmax.f32 %v919, %v964
      %v1016 = vmax.f32 %v920, %v966
      %v1017 = vmax.f32 %v921, %v968
      %v1018 = vmax.f32 %v922, %v970
      %v1019 = vmax.f32 %v923, %v972
      %v1020 = vmax.f32 %v924, %v974
      %v1021 = vmax.f32 %v925, %v976
      %v1022 = vmax.f32 %v926, %v978
      %v1023 = vmax.f32 %v927, %v980
      %v1024 = vmax.f32 %v928, %v982
      %v1025 = vmax.f32 %v929, %v984
      %v1026 = vmax.f32 %v930, %v986
      %v1027 = vmax.f32 %v931, %v988
      %v1028 = vmax.f32 %v932, %v990
      %v1029 = vmax.f32 %v933, %v992
      %v1030 = vmax.f32 %v934, %v994
      %v1031 = vmax.f32 %v935, %v996
      %v1032 = vmax.f32 %v936, %v998
      %v1033 = vmax.f32 %v937, %v1000
      %v1034 = vmax.f32 %v938, %v1002
      %v1035 = vsub.f32 %v907, %v1003
      %v1036 = vsub.f32 %v908, %v1004
      %v1037 = vsub.f32 %v909, %v1005
      %v1038 = vsub.f32 %v910, %v1006
      %v1039 = vsub.f32 %v911, %v1007
      %v1040 = vsub.f32 %v912, %v1008
      %v1041 = vsub.f32 %v913, %v1009
      %v1042 = vsub.f32 %v914, %v1010
      %v1043 = vsub.f32 %v915, %v1011
      %v1044 = vsub.f32 %v916, %v1012
      %v1045 = vsub.f32 %v917, %v1013
      %v1046 = vsub.f32 %v918, %v1014
      %v1047 = vsub.f32 %v919, %v1015
      %v1048 = vsub.f32 %v920, %v1016
      %v1049 = vsub.f32 %v921, %v1017
      %v1050 = vsub.f32 %v922, %v1018
      %v1051 = vsub.f32 %v923, %v1019
      %v1052 = vsub.f32 %v924, %v1020
      %v1053 = vsub.f32 %v925, %v1021
      %v1054 = vsub.f32 %v926, %v1022
      %v1055 = vsub.f32 %v927, %v1023
      %v1056 = vsub.f32 %v928, %v1024
      %v1057 = vsub.f32 %v929, %v1025
      %v1058 = vsub.f32 %v930, %v1026
      %v1059 = vsub.f32 %v931, %v1027
      %v1060 = vsub.f32 %v932, %v1028
      %v1061 = vsub.f32 %v933, %v1029
      %v1062 = vsub.f32 %v934, %v1030
      %v1063 = vsub.f32 %v935, %v1031
      %v1064 = vsub.f32 %v936, %v1032
      %v1065 = vsub.f32 %v937, %v1033
      %v1066 = vsub.f32 %v938, %v1034
      %v1067 = vmul.f32 %v1035, 1.442695
      %v1068 = vpow.pop %v1067
      %v1069 = vmul.f32 %v1036, 1.442695
      %v1070 = vpow.pop %v1069
      %v1071 = vmul.f32 %v1037, 1.442695
      %v1072 = vpow.pop %v1071
      %v1073 = vmul.f32 %v1038, 1.442695
      %v1074 = vpow.pop %v1073
      %v1075 = vmul.f32 %v1039, 1.442695
      %v1076 = vpow.pop %v1075
      %v1077 = vmul.f32 %v1040, 1.442695
      %v1078 = vpow.pop %v1077
      %v1079 = vmul.f32 %v1041, 1.442695
      %v1080 = vpow.pop %v1079
      %v1081 = vmul.f32 %v1042, 1.442695
      %v1082 = vpow.pop %v1081
      %v1083 = vmul.f32 %v1043, 1.442695
      %v1084 = vpow.pop %v1083
      %v1085 = vmul.f32 %v1044, 1.442695
      %v1086 = vpow.pop %v1085
      %v1087 = vmul.f32 %v1045, 1.442695
      %v1088 = vpow.pop %v1087
      %v1089 = vmul.f32 %v1046, 1.442695
      %v1090 = vpow.pop %v1089
      %v1091 = vmul.f32 %v1047, 1.442695
      %v1092 = vpow.pop %v1091
      %v1093 = vmul.f32 %v1048, 1.442695
      %v1094 = vpow.pop %v1093
      %v1095 = vmul.f32 %v1049, 1.442695
      %v1096 = vpow.pop %v1095
      %v1097 = vmul.f32 %v1050, 1.442695
      %v1098 = vpow.pop %v1097
      %v1099 = vmul.f32 %v1051, 1.442695
      %v1100 = vpow.pop %v1099
      %v1101 = vmul.f32 %v1052, 1.442695
      %v1102 = vpow.pop %v1101
      %v1103 = vmul.f32 %v1053, 1.442695
      %v1104 = vpow.pop %v1103
      %v1105 = vmul.f32 %v1054, 1.442695
      %v1106 = vpow.pop %v1105
      %v1107 = vmul.f32 %v1055, 1.442695
      %v1108 = vpow.pop %v1107
      %v1109 = vmul.f32 %v1056, 1.442695
      %v1110 = vpow.pop %v1109
      %v1111 = vmul.f32 %v1057, 1.442695
      %v1112 = vpow.pop %v1111
      %v1113 = vmul.f32 %v1058, 1.442695
      %v1114 = vpow.pop %v1113
      %v1115 = vmul.f32 %v1059, 1.442695
      %v1116 = vpow.pop %v1115
      %v1117 = vmul.f32 %v1060, 1.442695
      %v1118 = vpow.pop %v1117
      %v1119 = vmul.f32 %v1061, 1.442695
      %v1120 = vpow.pop %v1119
      %v1121 = vmul.f32 %v1062, 1.442695
      %v1122 = vpow.pop %v1121
      %v1123 = vmul.f32 %v1063, 1.442695
      %v1124 = vpow.pop %v1123
      %v1125 = vmul.f32 %v1064, 1.442695
      %v1126 = vpow.pop %v1125
      %v1127 = vmul.f32 %v1065, 1.442695
      %v1128 = vpow.pop %v1127
      %v1129 = vmul.f32 %v1066, 1.442695
      %v1130 = vpow.pop %v1129
      %1132 = vset.pattern.permute.xlu0 0
      %1133 = vperm.xlu0 %1132, %v1003
      %v1134 = vpop.permute.xlu0 %1133
      %1137 = vset.pattern.permute.xlu0 0
      %1138 = vperm.xlu0 %1137, %v1004
      %v1139 = vpop.permute.xlu0 %1138
      %1142 = vset.pattern.permute.xlu0 0
      %1143 = vperm.xlu0 %1142, %v1005
      %v1144 = vpop.permute.xlu0 %1143
      %1147 = vset.pattern.permute.xlu0 0
      %1148 = vperm.xlu0 %1147, %v1006
      %v1149 = vpop.permute.xlu0 %1148
      %1152 = vset.pattern.permute.xlu0 0
      %1153 = vperm.xlu0 %1152, %v1007
      %v1154 = vpop.permute.xlu0 %1153
      %1157 = vset.pattern.permute.xlu0 0
      %1158 = vperm.xlu0 %1157, %v1008
      %v1159 = vpop.permute.xlu0 %1158
      %1162 = vset.pattern.permute.xlu0 0
      %1163 = vperm.xlu0 %1162, %v1009
      %v1164 = vpop.permute.xlu0 %1163
      %1167 = vset.pattern.permute.xlu0 0
      %1168 = vperm.xlu0 %1167, %v1010
      %v1169 = vpop.permute.xlu0 %1168
      %1172 = vset.pattern.permute.xlu0 0
      %1173 = vperm.xlu0 %1172, %v1011
      %v1174 = vpop.permute.xlu0 %1173
      %1177 = vset.pattern.permute.xlu0 0
      %1178 = vperm.xlu0 %1177, %v1012
      %v1179 = vpop.permute.xlu0 %1178
      %1182 = vset.pattern.permute.xlu0 0
      %1183 = vperm.xlu0 %1182, %v1013
      %v1184 = vpop.permute.xlu0 %1183
      %1187 = vset.pattern.permute.xlu0 0
      %1188 = vperm.xlu0 %1187, %v1014
      %v1189 = vpop.permute.xlu0 %1188
      %1192 = vset.pattern.permute.xlu0 0
      %1193 = vperm.xlu0 %1192, %v1015
      %v1194 = vpop.permute.xlu0 %1193
      %1197 = vset.pattern.permute.xlu0 0
      %1198 = vperm.xlu0 %1197, %v1016
      %v1199 = vpop.permute.xlu0 %1198
      %1202 = vset.pattern.permute.xlu0 0
      %1203 = vperm.xlu0 %1202, %v1017
      %v1204 = vpop.permute.xlu0 %1203
      %1207 = vset.pattern.permute.xlu0 0
      %1208 = vperm.xlu0 %1207, %v1018
      %v1209 = vpop.permute.xlu0 %1208
      %1212 = vset.pattern.permute.xlu0 0
      %1213 = vperm.xlu0 %1212, %v1019
      %v1214 = vpop.permute.xlu0 %1213
      %1217 = vset.pattern.permute.xlu0 0
      %1218 = vperm.xlu0 %1217, %v1020
      %v1219 = vpop.permute.xlu0 %1218
      %1222 = vset.pattern.permute.xlu0 0
      %1223 = vperm.xlu0 %1222, %v1021
      %v1224 = vpop.permute.xlu0 %1223
      %1227 = vset.pattern.permute.xlu0 0
      %1228 = vperm.xlu0 %1227, %v1022
      %v1229 = vpop.permute.xlu0 %1228
      %1232 = vset.pattern.permute.xlu0 0
      %1233 = vperm.xlu0 %1232, %v1023
      %v1234 = vpop.permute.xlu0 %1233
      %1237 = vset.pattern.permute.xlu0 0
      %1238 = vperm.xlu0 %1237, %v1024
      %v1239 = vpop.permute.xlu0 %1238
      %1242 = vset.pattern.permute.xlu0 0
      %1243 = vperm.xlu0 %1242, %v1025
      %v1244 = vpop.permute.xlu0 %1243
      %1247 = vset.pattern.permute.xlu0 0
      %1248 = vperm.xlu0 %1247, %v1026
      %v1249 = vpop.permute.xlu0 %1248
      %1252 = vset.pattern.permute.xlu0 0
      %1253 = vperm.xlu0 %1252, %v1027
      %v1254 = vpop.permute.xlu0 %1253
      %1257 = vset.pattern.permute.xlu0 0
      %1258 = vperm.xlu0 %1257, %v1028
      %v1259 = vpop.permute.xlu0 %1258
      %1262 = vset.pattern.permute.xlu0 0
      %1263 = vperm.xlu0 %1262, %v1029
      %v1264 = vpop.permute.xlu0 %1263
      %1267 = vset.pattern.permute.xlu0 0
      %1268 = vperm.xlu0 %1267, %v1030
      %v1269 = vpop.permute.xlu0 %1268
      %1272 = vset.pattern.permute.xlu0 0
      %1273 = vperm.xlu0 %1272, %v1031
      %v1274 = vpop.permute.xlu0 %1273
      %1277 = vset.pattern.permute.xlu0 0
      %1278 = vperm.xlu0 %1277, %v1032
      %v1279 = vpop.permute.xlu0 %1278
      %1282 = vset.pattern.permute.xlu0 0
      %1283 = vperm.xlu0 %1282, %v1033
      %v1284 = vpop.permute.xlu0 %1283
      %1287 = vset.pattern.permute.xlu0 0
      %1288 = vperm.xlu0 %1287, %v1034
      %v1289 = vpop.permute.xlu0 %1288
      %v1291 = vsub.f32 %v620, %v1134
      %v1292 = vsub.f32 %v623, %v1139
      %v1293 = vsub.f32 %v628, %v1144
      %v1294 = vsub.f32 %v631, %v1149
      %v1295 = vsub.f32 %v636, %v1154
      %v1296 = vsub.f32 %v639, %v1159
      %v1297 = vsub.f32 %v644, %v1164
      %v1298 = vsub.f32 %v647, %v1169
      %v1299 = vsub.f32 %v652, %v1174
      %v1300 = vsub.f32 %v655, %v1179
      %v1301 = vsub.f32 %v660, %v1184
      %v1302 = vsub.f32 %v663, %v1189
      %v1303 = vsub.f32 %v668, %v1194
      %v1304 = vsub.f32 %v671, %v1199
      %v1305 = vsub.f32 %v676, %v1204
      %v1306 = vsub.f32 %v679, %v1209
      %v1307 = vsub.f32 %v845, %v1214
      %v1308 = vsub.f32 %v848, %v1219
      %v1309 = vsub.f32 %v853, %v1224
      %v1310 = vsub.f32 %v856, %v1229
      %v1311 = vsub.f32 %v861, %v1234
      %v1312 = vsub.f32 %v864, %v1239
      %v1313 = vsub.f32 %v869, %v1244
      %v1314 = vsub.f32 %v872, %v1249
      %v1315 = vsub.f32 %v877, %v1254
      %v1316 = vsub.f32 %v880, %v1259
      %v1317 = vsub.f32 %v885, %v1264
      %v1318 = vsub.f32 %v888, %v1269
      %v1319 = vsub.f32 %v893, %v1274
      %v1320 = vsub.f32 %v896, %v1279
      %v1321 = vsub.f32 %v901, %v1284
      %v1322 = vsub.f32 %v904, %v1289
      %v1323 = vmul.f32 %v1291, 1.442695
      %v1324 = vpow.pop %v1323
      %v1325 = vmul.f32 %v1292, 1.442695
      %v1326 = vpow.pop %v1325
      %v1327 = vmul.f32 %v1293, 1.442695
      %v1328 = vpow.pop %v1327
      %v1329 = vmul.f32 %v1294, 1.442695
      %v1330 = vpow.pop %v1329
      %v1331 = vmul.f32 %v1295, 1.442695
      %v1332 = vpow.pop %v1331
      %v1333 = vmul.f32 %v1296, 1.442695
      %v1334 = vpow.pop %v1333
      %v1335 = vmul.f32 %v1297, 1.442695
      %v1336 = vpow.pop %v1335
      %v1337 = vmul.f32 %v1298, 1.442695
      %v1338 = vpow.pop %v1337
      %v1339 = vmul.f32 %v1299, 1.442695
      %v1340 = vpow.pop %v1339
      %v1341 = vmul.f32 %v1300, 1.442695
      %v1342 = vpow.pop %v1341
      %v1343 = vmul.f32 %v1301, 1.442695
      %v1344 = vpow.pop %v1343
      %v1345 = vmul.f32 %v1302, 1.442695
      %v1346 = vpow.pop %v1345
      %v1347 = vmul.f32 %v1303, 1.442695
      %v1348 = vpow.pop %v1347
      %v1349 = vmul.f32 %v1304, 1.442695
      %v1350 = vpow.pop %v1349
      %v1351 = vmul.f32 %v1305, 1.442695
      %v1352 = vpow.pop %v1351
      %v1353 = vmul.f32 %v1306, 1.442695
      %v1354 = vpow.pop %v1353
      %v1355 = vmul.f32 %v1307, 1.442695
      %v1356 = vpow.pop %v1355
      %v1357 = vmul.f32 %v1308, 1.442695
      %v1358 = vpow.pop %v1357
      %v1359 = vmul.f32 %v1309, 1.442695
      %v1360 = vpow.pop %v1359
      %v1361 = vmul.f32 %v1310, 1.442695
      %v1362 = vpow.pop %v1361
      %v1363 = vmul.f32 %v1311, 1.442695
      %v1364 = vpow.pop %v1363
      %v1365 = vmul.f32 %v1312, 1.442695
      %v1366 = vpow.pop %v1365
      %v1367 = vmul.f32 %v1313, 1.442695
      %v1368 = vpow.pop %v1367
      %v1369 = vmul.f32 %v1314, 1.442695
      %v1370 = vpow.pop %v1369
      %v1371 = vmul.f32 %v1315, 1.442695
      %v1372 = vpow.pop %v1371
      %v1373 = vmul.f32 %v1316, 1.442695
      %v1374 = vpow.pop %v1373
      %v1375 = vmul.f32 %v1317, 1.442695
      %v1376 = vpow.pop %v1375
      %v1377 = vmul.f32 %v1318, 1.442695
      %v1378 = vpow.pop %v1377
      %v1379 = vmul.f32 %v1319, 1.442695
      %v1380 = vpow.pop %v1379
      %v1381 = vmul.f32 %v1320, 1.442695
      %v1382 = vpow.pop %v1381
      %v1383 = vmul.f32 %v1321, 1.442695
      %v1384 = vpow.pop %v1383
      %v1385 = vmul.f32 %v1322, 1.442695
      %v1386 = vpow.pop %v1385
      %v1387 = vld [vmem:[#allocation3] sm:$0xff]
      %v1388 = vld [vmem:[#allocation3 + $0x8] sm:$0xff]
      %v1389 = vld [vmem:[#allocation3 + $0x10] sm:$0xff]
      %v1390 = vld [vmem:[#allocation3 + $0x18] sm:$0xff]
      %v1391 = vld [vmem:[#allocation3 + $0x20] sm:$0xff]
      %v1392 = vld [vmem:[#allocation3 + $0x28] sm:$0xff]
      %v1393 = vld [vmem:[#allocation3 + $0x30] sm:$0xff]
      %v1394 = vld [vmem:[#allocation3 + $0x38] sm:$0xff]
      %v1395 = vld [vmem:[#allocation3 + $0x40] sm:$0xff]
      %v1396 = vld [vmem:[#allocation3 + $0x48] sm:$0xff]
      %v1397 = vld [vmem:[#allocation3 + $0x50] sm:$0xff]
      %v1398 = vld [vmem:[#allocation3 + $0x58] sm:$0xff]
      %v1399 = vld [vmem:[#allocation3 + $0x60] sm:$0xff]
      %v1400 = vld [vmem:[#allocation3 + $0x68] sm:$0xff]
      %v1401 = vld [vmem:[#allocation3 + $0x70] sm:$0xff]
      %v1402 = vld [vmem:[#allocation3 + $0x78] sm:$0xff]
      %v1403 = vld [vmem:[#allocation3 + $0x80] sm:$0xff]
      %v1404 = vld [vmem:[#allocation3 + $0x88] sm:$0xff]
      %v1405 = vld [vmem:[#allocation3 + $0x90] sm:$0xff]
      %v1406 = vld [vmem:[#allocation3 + $0x98] sm:$0xff]
      %v1407 = vld [vmem:[#allocation3 + $0xa0] sm:$0xff]
      %v1408 = vld [vmem:[#allocation3 + $0xa8] sm:$0xff]
      %v1409 = vld [vmem:[#allocation3 + $0xb0] sm:$0xff]
      %v1410 = vld [vmem:[#allocation3 + $0xb8] sm:$0xff]
      %v1411 = vld [vmem:[#allocation3 + $0xc0] sm:$0xff]
      %v1412 = vld [vmem:[#allocation3 + $0xc8] sm:$0xff]
      %v1413 = vld [vmem:[#allocation3 + $0xd0] sm:$0xff]
      %v1414 = vld [vmem:[#allocation3 + $0xd8] sm:$0xff]
      %v1415 = vld [vmem:[#allocation3 + $0xe0] sm:$0xff]
      %v1416 = vld [vmem:[#allocation3 + $0xe8] sm:$0xff]
      %v1417 = vld [vmem:[#allocation3 + $0xf0] sm:$0xff]
      %v1418 = vld [vmem:[#allocation3 + $0xf8] sm:$0xff]
      %v1419 = vmul.f32 %v1068, %v1387
      %v1420 = vmul.f32 %v1070, %v1388
      %v1421 = vmul.f32 %v1072, %v1389
      %v1422 = vmul.f32 %v1074, %v1390
      %v1423 = vmul.f32 %v1076, %v1391
      %v1424 = vmul.f32 %v1078, %v1392
      %v1425 = vmul.f32 %v1080, %v1393
      %v1426 = vmul.f32 %v1082, %v1394
      %v1427 = vmul.f32 %v1084, %v1395
      %v1428 = vmul.f32 %v1086, %v1396
      %v1429 = vmul.f32 %v1088, %v1397
      %v1430 = vmul.f32 %v1090, %v1398
      %v1431 = vmul.f32 %v1092, %v1399
      %v1432 = vmul.f32 %v1094, %v1400
      %v1433 = vmul.f32 %v1096, %v1401
      %v1434 = vmul.f32 %v1098, %v1402
      %v1435 = vmul.f32 %v1100, %v1403
      %v1436 = vmul.f32 %v1102, %v1404
      %v1437 = vmul.f32 %v1104, %v1405
      %v1438 = vmul.f32 %v1106, %v1406
      %v1439 = vmul.f32 %v1108, %v1407
      %v1440 = vmul.f32 %v1110, %v1408
      %v1441 = vmul.f32 %v1112, %v1409
      %v1442 = vmul.f32 %v1114, %v1410
      %v1443 = vmul.f32 %v1116, %v1411
      %v1444 = vmul.f32 %v1118, %v1412
      %v1445 = vmul.f32 %v1120, %v1413
      %v1446 = vmul.f32 %v1122, %v1414
      %v1447 = vmul.f32 %v1124, %v1415
      %v1448 = vmul.f32 %v1126, %v1416
      %v1449 = vmul.f32 %v1128, %v1417
      %v1450 = vmul.f32 %v1130, %v1418
      %1451 = vadd.xlane.f32.xlu0 %v1324
      %v1452 = vpop.xlane.xlu0 %1451
      %1453 = vadd.xlane.f32.xlu0 %v1326
      %v1454 = vpop.xlane.xlu0 %1453
      %1455 = vadd.xlane.f32.xlu0 %v1328
      %v1456 = vpop.xlane.xlu0 %1455
      %1457 = vadd.xlane.f32.xlu0 %v1330
      %v1458 = vpop.xlane.xlu0 %1457
      %1459 = vadd.xlane.f32.xlu0 %v1332
      %v1460 = vpop.xlane.xlu0 %1459
      %1461 = vadd.xlane.f32.xlu0 %v1334
      %v1462 = vpop.xlane.xlu0 %1461
      %1463 = vadd.xlane.f32.xlu0 %v1336
      %v1464 = vpop.xlane.xlu0 %1463
      %1465 = vadd.xlane.f32.xlu0 %v1338
      %v1466 = vpop.xlane.xlu0 %1465
      %1467 = vadd.xlane.f32.xlu0 %v1340
      %v1468 = vpop.xlane.xlu0 %1467
      %1469 = vadd.xlane.f32.xlu0 %v1342
      %v1470 = vpop.xlane.xlu0 %1469
      %1471 = vadd.xlane.f32.xlu0 %v1344
      %v1472 = vpop.xlane.xlu0 %1471
      %1473 = vadd.xlane.f32.xlu0 %v1346
      %v1474 = vpop.xlane.xlu0 %1473
      %1475 = vadd.xlane.f32.xlu0 %v1348
      %v1476 = vpop.xlane.xlu0 %1475
      %1477 = vadd.xlane.f32.xlu0 %v1350
      %v1478 = vpop.xlane.xlu0 %1477
      %1479 = vadd.xlane.f32.xlu0 %v1352
      %v1480 = vpop.xlane.xlu0 %1479
      %1481 = vadd.xlane.f32.xlu0 %v1354
      %v1482 = vpop.xlane.xlu0 %1481
      %1483 = vadd.xlane.f32.xlu0 %v1356
      %v1484 = vpop.xlane.xlu0 %1483
      %1485 = vadd.xlane.f32.xlu0 %v1358
      %v1486 = vpop.xlane.xlu0 %1485
      %1487 = vadd.xlane.f32.xlu0 %v1360
      %v1488 = vpop.xlane.xlu0 %1487
      %1489 = vadd.xlane.f32.xlu0 %v1362
      %v1490 = vpop.xlane.xlu0 %1489
      %1491 = vadd.xlane.f32.xlu0 %v1364
      %v1492 = vpop.xlane.xlu0 %1491
      %1493 = vadd.xlane.f32.xlu0 %v1366
      %v1494 = vpop.xlane.xlu0 %1493
      %1495 = vadd.xlane.f32.xlu0 %v1368
      %v1496 = vpop.xlane.xlu0 %1495
      %1497 = vadd.xlane.f32.xlu0 %v1370
      %v1498 = vpop.xlane.xlu0 %1497
      %1499 = vadd.xlane.f32.xlu0 %v1372
      %v1500 = vpop.xlane.xlu0 %1499
      %1501 = vadd.xlane.f32.xlu0 %v1374
      %v1502 = vpop.xlane.xlu0 %1501
      %1503 = vadd.xlane.f32.xlu0 %v1376
      %v1504 = vpop.xlane.xlu0 %1503
      %1505 = vadd.xlane.f32.xlu0 %v1378
      %v1506 = vpop.xlane.xlu0 %1505
      %1507 = vadd.xlane.f32.xlu0 %v1380
      %v1508 = vpop.xlane.xlu0 %1507
      %1509 = vadd.xlane.f32.xlu0 %v1382
      %v1510 = vpop.xlane.xlu0 %1509
      %1511 = vadd.xlane.f32.xlu0 %v1384
      %v1512 = vpop.xlane.xlu0 %1511
      %1513 = vadd.xlane.f32.xlu0 %v1386
      %v1514 = vpop.xlane.xlu0 %1513
      %v1515 = vadd.f32 %v1419, %v1452
      %v1516 = vadd.f32 %v1420, %v1454
      %v1517 = vadd.f32 %v1421, %v1456
      %v1518 = vadd.f32 %v1422, %v1458
      %v1519 = vadd.f32 %v1423, %v1460
      %v1520 = vadd.f32 %v1424, %v1462
      %v1521 = vadd.f32 %v1425, %v1464
      %v1522 = vadd.f32 %v1426, %v1466
      %v1523 = vadd.f32 %v1427, %v1468
      %v1524 = vadd.f32 %v1428, %v1470
      %v1525 = vadd.f32 %v1429, %v1472
      %v1526 = vadd.f32 %v1430, %v1474
      %v1527 = vadd.f32 %v1431, %v1476
      %v1528 = vadd.f32 %v1432, %v1478
      %v1529 = vadd.f32 %v1433, %v1480
      %v1530 = vadd.f32 %v1434, %v1482
      %v1531 = vadd.f32 %v1435, %v1484
      %v1532 = vadd.f32 %v1436, %v1486
      %v1533 = vadd.f32 %v1437, %v1488
      %v1534 = vadd.f32 %v1438, %v1490
      %v1535 = vadd.f32 %v1439, %v1492
      %v1536 = vadd.f32 %v1440, %v1494
      %v1537 = vadd.f32 %v1441, %v1496
      %v1538 = vadd.f32 %v1442, %v1498
      %v1539 = vadd.f32 %v1443, %v1500
      %v1540 = vadd.f32 %v1444, %v1502
      %v1541 = vadd.f32 %v1445, %v1504
      %v1542 = vadd.f32 %v1446, %v1506
      %v1543 = vadd.f32 %v1447, %v1508
      %v1544 = vadd.f32 %v1448, %v1510
      %v1545 = vadd.f32 %v1449, %v1512
      %v1546 = vadd.f32 %v1450, %v1514
      %vm1547 = vcmask 7168
      %1548 = vst.msk [vmem:[#allocation3] sm:$0xff] %vm1547, %v1515
      %1549 = vst.msk [vmem:[#allocation3 + $0x8] sm:$0xff] %vm1547, %v1516
      %1550 = vst.msk [vmem:[#allocation3 + $0x10] sm:$0xff] %vm1547, %v1517
      %1551 = vst.msk [vmem:[#allocation3 + $0x18] sm:$0xff] %vm1547, %v1518
      %1552 = vst.msk [vmem:[#allocation3 + $0x20] sm:$0xff] %vm1547, %v1519
      %1553 = vst.msk [vmem:[#allocation3 + $0x28] sm:$0xff] %vm1547, %v1520
      %1554 = vst.msk [vmem:[#allocation3 + $0x30] sm:$0xff] %vm1547, %v1521
      %1555 = vst.msk [vmem:[#allocation3 + $0x38] sm:$0xff] %vm1547, %v1522
      %1556 = vst.msk [vmem:[#allocation3 + $0x40] sm:$0xff] %vm1547, %v1523
      %1557 = vst.msk [vmem:[#allocation3 + $0x48] sm:$0xff] %vm1547, %v1524
      %1558 = vst.msk [vmem:[#allocation3 + $0x50] sm:$0xff] %vm1547, %v1525
      %1559 = vst.msk [vmem:[#allocation3 + $0x58] sm:$0xff] %vm1547, %v1526
      %1560 = vst.msk [vmem:[#allocation3 + $0x60] sm:$0xff] %vm1547, %v1527
      %1561 = vst.msk [vmem:[#allocation3 + $0x68] sm:$0xff] %vm1547, %v1528
      %1562 = vst.msk [vmem:[#allocation3 + $0x70] sm:$0xff] %vm1547, %v1529
      %1563 = vst.msk [vmem:[#allocation3 + $0x78] sm:$0xff] %vm1547, %v1530
      %1564 = vst.msk [vmem:[#allocation3 + $0x80] sm:$0xff] %vm1547, %v1531
      %1565 = vst.msk [vmem:[#allocation3 + $0x88] sm:$0xff] %vm1547, %v1532
      %1566 = vst.msk [vmem:[#allocation3 + $0x90] sm:$0xff] %vm1547, %v1533
      %1567 = vst.msk [vmem:[#allocation3 + $0x98] sm:$0xff] %vm1547, %v1534
      %1568 = vst.msk [vmem:[#allocation3 + $0xa0] sm:$0xff] %vm1547, %v1535
      %1569 = vst.msk [vmem:[#allocation3 + $0xa8] sm:$0xff] %vm1547, %v1536
      %1570 = vst.msk [vmem:[#allocation3 + $0xb0] sm:$0xff] %vm1547, %v1537
      %1571 = vst.msk [vmem:[#allocation3 + $0xb8] sm:$0xff] %vm1547, %v1538
      %1572 = vst.msk [vmem:[#allocation3 + $0xc0] sm:$0xff] %vm1547, %v1539
      %1573 = vst.msk [vmem:[#allocation3 + $0xc8] sm:$0xff] %vm1547, %v1540
      %1574 = vst.msk [vmem:[#allocation3 + $0xd0] sm:$0xff] %vm1547, %v1541
      %1575 = vst.msk [vmem:[#allocation3 + $0xd8] sm:$0xff] %vm1547, %v1542
      %1576 = vst.msk [vmem:[#allocation3 + $0xe0] sm:$0xff] %vm1547, %v1543
      %1577 = vst.msk [vmem:[#allocation3 + $0xe8] sm:$0xff] %vm1547, %v1544
      %1578 = vst.msk [vmem:[#allocation3 + $0xf0] sm:$0xff] %vm1547, %v1545
      %1579 = vst.msk [vmem:[#allocation3 + $0xf8] sm:$0xff] %vm1547, %v1546
      %v1580 = vld [vmem:[#allocation4] sm:$0xff]
      %v1581 = vld [vmem:[#allocation4 + $0x8] sm:$0xff]
      %v1582 = vld [vmem:[#allocation4 + $0x10] sm:$0xff]
      %v1583 = vld [vmem:[#allocation4 + $0x18] sm:$0xff]
      %v1584 = vld [vmem:[#allocation4 + $0x20] sm:$0xff]
      %v1585 = vld [vmem:[#allocation4 + $0x28] sm:$0xff]
      %v1586 = vld [vmem:[#allocation4 + $0x30] sm:$0xff]
      %v1587 = vld [vmem:[#allocation4 + $0x38] sm:$0xff]
      %v1588 = vld [vmem:[#allocation4 + $0x40] sm:$0xff]
      %v1589 = vld [vmem:[#allocation4 + $0x48] sm:$0xff]
      %v1590 = vld [vmem:[#allocation4 + $0x50] sm:$0xff]
      %v1591 = vld [vmem:[#allocation4 + $0x58] sm:$0xff]
      %v1592 = vld [vmem:[#allocation4 + $0x60] sm:$0xff]
      %v1593 = vld [vmem:[#allocation4 + $0x68] sm:$0xff]
      %v1594 = vld [vmem:[#allocation4 + $0x70] sm:$0xff]
      %v1595 = vld [vmem:[#allocation4 + $0x78] sm:$0xff]
      %v1596 = vld [vmem:[#allocation4 + $0x80] sm:$0xff]
      %v1597 = vld [vmem:[#allocation4 + $0x88] sm:$0xff]
      %v1598 = vld [vmem:[#allocation4 + $0x90] sm:$0xff]
      %v1599 = vld [vmem:[#allocation4 + $0x98] sm:$0xff]
      %v1600 = vld [vmem:[#allocation4 + $0xa0] sm:$0xff]
      %v1601 = vld [vmem:[#allocation4 + $0xa8] sm:$0xff]
      %v1602 = vld [vmem:[#allocation4 + $0xb0] sm:$0xff]
      %v1603 = vld [vmem:[#allocation4 + $0xb8] sm:$0xff]
      %v1604 = vld [vmem:[#allocation4 + $0xc0] sm:$0xff]
      %v1605 = vld [vmem:[#allocation4 + $0xc8] sm:$0xff]
      %v1606 = vld [vmem:[#allocation4 + $0xd0] sm:$0xff]
      %v1607 = vld [vmem:[#allocation4 + $0xd8] sm:$0xff]
      %v1608 = vld [vmem:[#allocation4 + $0xe0] sm:$0xff]
      %v1609 = vld [vmem:[#allocation4 + $0xe8] sm:$0xff]
      %v1610 = vld [vmem:[#allocation4 + $0xf0] sm:$0xff]
      %v1611 = vld [vmem:[#allocation4 + $0xf8] sm:$0xff]
      %1613 = vset.pattern.permute.xlu0 0
      %1614 = vperm.xlu0 %1613, %v1068
      %v1615 = vpop.permute.xlu0 %1614
      %1618 = vset.pattern.permute.xlu0 0
      %1619 = vperm.xlu0 %1618, %v1070
      %v1620 = vpop.permute.xlu0 %1619
      %1623 = vset.pattern.permute.xlu0 0
      %1624 = vperm.xlu0 %1623, %v1072
      %v1625 = vpop.permute.xlu0 %1624
      %1628 = vset.pattern.permute.xlu0 0
      %1629 = vperm.xlu0 %1628, %v1074
      %v1630 = vpop.permute.xlu0 %1629
      %1633 = vset.pattern.permute.xlu0 0
      %1634 = vperm.xlu0 %1633, %v1076
      %v1635 = vpop.permute.xlu0 %1634
      %1638 = vset.pattern.permute.xlu0 0
      %1639 = vperm.xlu0 %1638, %v1078
      %v1640 = vpop.permute.xlu0 %1639
      %1643 = vset.pattern.permute.xlu0 0
      %1644 = vperm.xlu0 %1643, %v1080
      %v1645 = vpop.permute.xlu0 %1644
      %1648 = vset.pattern.permute.xlu0 0
      %1649 = vperm.xlu0 %1648, %v1082
      %v1650 = vpop.permute.xlu0 %1649
      %1653 = vset.pattern.permute.xlu0 0
      %1654 = vperm.xlu0 %1653, %v1084
      %v1655 = vpop.permute.xlu0 %1654
      %1658 = vset.pattern.permute.xlu0 0
      %1659 = vperm.xlu0 %1658, %v1086
      %v1660 = vpop.permute.xlu0 %1659
      %1663 = vset.pattern.permute.xlu0 0
      %1664 = vperm.xlu0 %1663, %v1088
      %v1665 = vpop.permute.xlu0 %1664
      %1668 = vset.pattern.permute.xlu0 0
      %1669 = vperm.xlu0 %1668, %v1090
      %v1670 = vpop.permute.xlu0 %1669
      %1673 = vset.pattern.permute.xlu0 0
      %1674 = vperm.xlu0 %1673, %v1092
      %v1675 = vpop.permute.xlu0 %1674
      %1678 = vset.pattern.permute.xlu0 0
      %1679 = vperm.xlu0 %1678, %v1094
      %v1680 = vpop.permute.xlu0 %1679
      %1683 = vset.pattern.permute.xlu0 0
      %1684 = vperm.xlu0 %1683, %v1096
      %v1685 = vpop.permute.xlu0 %1684
      %1688 = vset.pattern.permute.xlu0 0
      %1689 = vperm.xlu0 %1688, %v1098
      %v1690 = vpop.permute.xlu0 %1689
      %1693 = vset.pattern.permute.xlu0 0
      %1694 = vperm.xlu0 %1693, %v1100
      %v1695 = vpop.permute.xlu0 %1694
      %1698 = vset.pattern.permute.xlu0 0
      %1699 = vperm.xlu0 %1698, %v1102
      %v1700 = vpop.permute.xlu0 %1699
      %1703 = vset.pattern.permute.xlu0 0
      %1704 = vperm.xlu0 %1703, %v1104
      %v1705 = vpop.permute.xlu0 %1704
      %1708 = vset.pattern.permute.xlu0 0
      %1709 = vperm.xlu0 %1708, %v1106
      %v1710 = vpop.permute.xlu0 %1709
      %1713 = vset.pattern.permute.xlu0 0
      %1714 = vperm.xlu0 %1713, %v1108
      %v1715 = vpop.permute.xlu0 %1714
      %1718 = vset.pattern.permute.xlu0 0
      %1719 = vperm.xlu0 %1718, %v1110
      %v1720 = vpop.permute.xlu0 %1719
      %1723 = vset.pattern.permute.xlu0 0
      %1724 = vperm.xlu0 %1723, %v1112
      %v1725 = vpop.permute.xlu0 %1724
      %1728 = vset.pattern.permute.xlu0 0
      %1729 = vperm.xlu0 %1728, %v1114
      %v1730 = vpop.permute.xlu0 %1729
      %1733 = vset.pattern.permute.xlu0 0
      %1734 = vperm.xlu0 %1733, %v1116
      %v1735 = vpop.permute.xlu0 %1734
      %1738 = vset.pattern.permute.xlu0 0
      %1739 = vperm.xlu0 %1738, %v1118
      %v1740 = vpop.permute.xlu0 %1739
      %1743 = vset.pattern.permute.xlu0 0
      %1744 = vperm.xlu0 %1743, %v1120
      %v1745 = vpop.permute.xlu0 %1744
      %1748 = vset.pattern.permute.xlu0 0
      %1749 = vperm.xlu0 %1748, %v1122
      %v1750 = vpop.permute.xlu0 %1749
      %1753 = vset.pattern.permute.xlu0 0
      %1754 = vperm.xlu0 %1753, %v1124
      %v1755 = vpop.permute.xlu0 %1754
      %1758 = vset.pattern.permute.xlu0 0
      %1759 = vperm.xlu0 %1758, %v1126
      %v1760 = vpop.permute.xlu0 %1759
      %1763 = vset.pattern.permute.xlu0 0
      %1764 = vperm.xlu0 %1763, %v1128
      %v1765 = vpop.permute.xlu0 %1764
      %1768 = vset.pattern.permute.xlu0 0
      %1769 = vperm.xlu0 %1768, %v1130
      %v1770 = vpop.permute.xlu0 %1769
      %v1772 = vmul.f32 %v1615, %v1580
      %v1773 = vmul.f32 %v1620, %v1581
      %v1774 = vmul.f32 %v1625, %v1582
      %v1775 = vmul.f32 %v1630, %v1583
      %v1776 = vmul.f32 %v1635, %v1584
      %v1777 = vmul.f32 %v1640, %v1585
      %v1778 = vmul.f32 %v1645, %v1586
      %v1779 = vmul.f32 %v1650, %v1587
      %v1780 = vmul.f32 %v1655, %v1588
      %v1781 = vmul.f32 %v1660, %v1589
      %v1782 = vmul.f32 %v1665, %v1590
      %v1783 = vmul.f32 %v1670, %v1591
      %v1784 = vmul.f32 %v1675, %v1592
      %v1785 = vmul.f32 %v1680, %v1593
      %v1786 = vmul.f32 %v1685, %v1594
      %v1787 = vmul.f32 %v1690, %v1595
      %v1788 = vmul.f32 %v1695, %v1596
      %v1789 = vmul.f32 %v1700, %v1597
      %v1790 = vmul.f32 %v1705, %v1598
      %v1791 = vmul.f32 %v1710, %v1599
      %v1792 = vmul.f32 %v1715, %v1600
      %v1793 = vmul.f32 %v1720, %v1601
      %v1794 = vmul.f32 %v1725, %v1602
      %v1795 = vmul.f32 %v1730, %v1603
      %v1796 = vmul.f32 %v1735, %v1604
      %v1797 = vmul.f32 %v1740, %v1605
      %v1798 = vmul.f32 %v1745, %v1606
      %v1799 = vmul.f32 %v1750, %v1607
      %v1800 = vmul.f32 %v1755, %v1608
      %v1801 = vmul.f32 %v1760, %v1609
      %v1802 = vmul.f32 %v1765, %v1610
      %v1803 = vmul.f32 %v1770, %v1611
      %v1804 = vpack.c.bf16 %v1326, %v1324
      %v1805 = vpack.c.bf16 %v1330, %v1328
      %v1806 = vpack.c.bf16 %v1334, %v1332
      %v1807 = vpack.c.bf16 %v1338, %v1336
      %v1808 = vpack.c.bf16 %v1342, %v1340
      %v1809 = vpack.c.bf16 %v1346, %v1344
      %v1810 = vpack.c.bf16 %v1350, %v1348
      %v1811 = vpack.c.bf16 %v1354, %v1352
      %v1812 = vpack.c.bf16 %v1358, %v1356
      %v1813 = vpack.c.bf16 %v1362, %v1360
      %v1814 = vpack.c.bf16 %v1366, %v1364
      %v1815 = vpack.c.bf16 %v1370, %v1368
      %v1816 = vpack.c.bf16 %v1374, %v1372
      %v1817 = vpack.c.bf16 %v1378, %v1376
      %v1818 = vpack.c.bf16 %v1382, %v1380
      %v1819 = vpack.c.bf16 %v1386, %v1384
      %v1820 = vld [vmem:[%s277] sm:$0xf]
      %v1821 = vld [vmem:[%s277 + $0x4] sm:$0xf]
      %v1822 = vld [vmem:[%s277 + $0x8] sm:$0xf]
      %v1823 = vld [vmem:[%s277 + $0xc] sm:$0xf]
      %v1824 = vld [vmem:[%s277 + $0x10] sm:$0xf]
      %v1825 = vld [vmem:[%s277 + $0x14] sm:$0xf]
      %v1826 = vld [vmem:[%s277 + $0x18] sm:$0xf]
      %v1827 = vld [vmem:[%s277 + $0x1c] sm:$0xf]
      %v1828 = vld [vmem:[%s277 + $0x20] sm:$0xf]
      %v1829 = vld [vmem:[%s277 + $0x24] sm:$0xf]
      %v1830 = vld [vmem:[%s277 + $0x28] sm:$0xf]
      %v1831 = vld [vmem:[%s277 + $0x2c] sm:$0xf]
      %v1832 = vld [vmem:[%s277 + $0x30] sm:$0xf]
      %v1833 = vld [vmem:[%s277 + $0x34] sm:$0xf]
      %v1834 = vld [vmem:[%s277 + $0x38] sm:$0xf]
      %v1835 = vld [vmem:[%s277 + $0x3c] sm:$0xf]
      %v1836 = vld [vmem:[%s277 + $0x40] sm:$0xf]
      %v1837 = vld [vmem:[%s277 + $0x44] sm:$0xf]
      %v1838 = vld [vmem:[%s277 + $0x48] sm:$0xf]
      %v1839 = vld [vmem:[%s277 + $0x4c] sm:$0xf]
      %v1840 = vld [vmem:[%s277 + $0x50] sm:$0xf]
      %v1841 = vld [vmem:[%s277 + $0x54] sm:$0xf]
      %v1842 = vld [vmem:[%s277 + $0x58] sm:$0xf]
      %v1843 = vld [vmem:[%s277 + $0x5c] sm:$0xf]
      %v1844 = vld [vmem:[%s277 + $0x60] sm:$0xf]
      %v1845 = vld [vmem:[%s277 + $0x64] sm:$0xf]
      %v1846 = vld [vmem:[%s277 + $0x68] sm:$0xf]
      %v1847 = vld [vmem:[%s277 + $0x6c] sm:$0xf]
      %v1848 = vld [vmem:[%s277 + $0x70] sm:$0xf]
      %v1849 = vld [vmem:[%s277 + $0x74] sm:$0xf]
      %v1850 = vld [vmem:[%s277 + $0x78] sm:$0xf]
      %v1851 = vld [vmem:[%s277 + $0x7c] sm:$0xf]
      %v1868 = vunpack.c.l.b16 %v1820
      %v1869 = vunpack.c.l.b16 %v1821
      %v1870 = vunpack.c.l.b16 %v1822
      %v1871 = vunpack.c.l.b16 %v1823
      %v1872 = vunpack.c.l.b16 %v1824
      %v1873 = vunpack.c.l.b16 %v1825
      %v1874 = vunpack.c.l.b16 %v1826
      %v1875 = vunpack.c.l.b16 %v1827
      %v1876 = vunpack.c.l.b16 %v1828
      %v1877 = vunpack.c.l.b16 %v1829
      %v1878 = vunpack.c.l.b16 %v1830
      %v1879 = vunpack.c.l.b16 %v1831
      %v1880 = vunpack.c.l.b16 %v1832
      %v1881 = vunpack.c.l.b16 %v1833
      %v1882 = vunpack.c.l.b16 %v1834
      %v1883 = vunpack.c.l.b16 %v1835
      %v1884 = vpack.c.b16 %v1869, %v1868
      %v1885 = vpack.c.b16 %v1871, %v1870
      %v1886 = vpack.c.b16 %v1873, %v1872
      %v1887 = vpack.c.b16 %v1875, %v1874
      %v1888 = vpack.c.b16 %v1877, %v1876
      %v1889 = vpack.c.b16 %v1879, %v1878
      %v1890 = vpack.c.b16 %v1881, %v1880
      %v1891 = vpack.c.b16 %v1883, %v1882
      %1900 = vmatprep.subr.bf16.mxu0 0
      %1901 = vmatpush1.bf16.msra.mxu0 %v1884
      %1902 = vmatprep.subr.bf16.mxu0 0
      %1903 = vmatpush1.bf16.msra.mxu0 %v1885
      %1904 = vmatprep.subr.bf16.mxu0 0
      %1905 = vmatpush1.bf16.msra.mxu0 %v1886
      %1906 = vmatprep.subr.bf16.mxu0 0
      %1907 = vmatpush1.bf16.msra.mxu0 %v1887
      %1908 = vmatprep.subr.bf16.mxu0 0
      %1909 = vmatpush1.bf16.msra.mxu0 %v1888
      %1910 = vmatprep.subr.bf16.mxu0 0
      %1911 = vmatpush1.bf16.msra.mxu0 %v1889
      %1912 = vmatprep.subr.bf16.mxu0 0
      %1913 = vmatpush1.bf16.msra.mxu0 %v1890
      %1914 = vmatprep.subr.bf16.mxu0 0
      %1915 = vmatpush1.bf16.msra.mxu0 %v1891
      %1916 = vmatprep.subr.bf16.mxu0 0
      %1917 = vmatpush1.bf16.msra.mxu0 0
      %1918 = vmatprep.subr.bf16.mxu0 0
      %1919 = vmatpush1.bf16.msra.mxu0 0
      %1920 = vmatprep.subr.bf16.mxu0 0
      %1921 = vmatpush1.bf16.msra.mxu0 0
      %1922 = vmatprep.subr.bf16.mxu0 0
      %1923 = vmatpush1.bf16.msra.mxu0 0
      %1924 = vmatprep.subr.bf16.mxu0 0
      %1925 = vmatpush1.bf16.msra.mxu0 0
      %1926 = vmatprep.subr.bf16.mxu0 0
      %1927 = vmatpush1.bf16.msra.mxu0 0
      %1928 = vmatprep.subr.bf16.mxu0 0
      %1929 = vmatpush1.bf16.msra.mxu0 0
      %1930 = vmatprep.subr.bf16.mxu0 0
      %1931 = vmatpush1.bf16.msra.mxu0 0
      %1932 = vmatprep.mubr.bf16.mxu0 0
      %1933 = vmatmul.mubr.bf16.gmra.mrb[0].mxu0 %v1804
      %v1934 = vpop.f32.mrb[0].mxu0
      %v1935 = vadd.f32 0.0, %v1934
      %v1936 = vpop.f32.mrb[0].mxu0
      %v1937 = vpop.f32.mrb[0].mxu0
      %v1938 = vadd.f32 0.0, %v1937
      %v1939 = vpop.f32.mrb[0].mxu0
      %1940 = vmatprep.mubr.bf16.mxu0 0
      %1941 = vmatmul.mubr.bf16.gmra.mrb[0].mxu0 %v1805
      %v1942 = vpop.f32.mrb[0].mxu0
      %v1943 = vadd.f32 0.0, %v1942
      %v1944 = vpop.f32.mrb[0].mxu0
      %v1945 = vpop.f32.mrb[0].mxu0
      %v1946 = vadd.f32 0.0, %v1945
      %v1947 = vpop.f32.mrb[0].mxu0
      %1948 = vmatprep.mubr.bf16.mxu0 0
      %1949 = vmatmul.mubr.bf16.gmra.mrb[0].mxu0 %v1806
      %v1950 = vpop.f32.mrb[0].mxu0
      %v1951 = vadd.f32 0.0, %v1950
      %v1952 = vpop.f32.mrb[0].mxu0
      %v1953 = vpop.f32.mrb[0].mxu0
      %v1954 = vadd.f32 0.0, %v1953
      %v1955 = vpop.f32.mrb[0].mxu0
      %1956 = vmatprep.mubr.bf16.mxu0 0
      %1957 = vmatmul.mubr.bf16.gmra.mrb[0].mxu0 %v1807
      %v1958 = vpop.f32.mrb[0].mxu0
      %v1959 = vadd.f32 0.0, %v1958
      %v1960 = vpop.f32.mrb[0].mxu0
      %v1961 = vpop.f32.mrb[0].mxu0
      %v1962 = vadd.f32 0.0, %v1961
      %v1963 = vpop.f32.mrb[0].mxu0
      %1964 = vmatprep.mubr.bf16.mxu0 0
      %1965 = vmatmul.mubr.bf16.gmra.mrb[0].mxu0 %v1808
      %v1966 = vpop.f32.mrb[0].mxu0
      %v1967 = vadd.f32 0.0, %v1966
      %v1968 = vpop.f32.mrb[0].mxu0
      %v1969 = vpop.f32.mrb[0].mxu0
      %v1970 = vadd.f32 0.0, %v1969
      %v1971 = vpop.f32.mrb[0].mxu0
      %1972 = vmatprep.mubr.bf16.mxu0 0
      %1973 = vmatmul.mubr.bf16.gmra.mrb[0].mxu0 %v1809
      %v1974 = vpop.f32.mrb[0].mxu0
      %v1975 = vadd.f32 0.0, %v1974
      %v1976 = vpop.f32.mrb[0].mxu0
      %v1977 = vpop.f32.mrb[0].mxu0
      %v1978 = vadd.f32 0.0, %v1977
      %v1979 = vpop.f32.mrb[0].mxu0
      %1980 = vmatprep.mubr.bf16.mxu0 0
      %1981 = vmatmul.mubr.bf16.gmra.mrb[0].mxu0 %v1810
      %v1982 = vpop.f32.mrb[0].mxu0
      %v1983 = vadd.f32 0.0, %v1982
      %v1984 = vpop.f32.mrb[0].mxu0
      %v1985 = vpop.f32.mrb[0].mxu0
      %v1986 = vadd.f32 0.0, %v1985
      %v1987 = vpop.f32.mrb[0].mxu0
      %1988 = vmatprep.mubr.bf16.mxu0 0
      %1989 = vmatmul.mubr.bf16.gmra.mrb[0].mxu0 %v1811
      %v1990 = vpop.f32.mrb[0].mxu0
      %v1991 = vadd.f32 0.0, %v1990
      %v1992 = vpop.f32.mrb[0].mxu0
      %v1993 = vpop.f32.mrb[0].mxu0
      %v1994 = vadd.f32 0.0, %v1993
      %v1995 = vpop.f32.mrb[0].mxu0
      %1996 = vdwg.mxu0
      %v2013 = vunpack.c.l.b16 %v1836
      %v2014 = vunpack.c.l.b16 %v1837
      %v2015 = vunpack.c.l.b16 %v1838
      %v2016 = vunpack.c.l.b16 %v1839
      %v2017 = vunpack.c.l.b16 %v1840
      %v2018 = vunpack.c.l.b16 %v1841
      %v2019 = vunpack.c.l.b16 %v1842
      %v2020 = vunpack.c.l.b16 %v1843
      %v2021 = vunpack.c.l.b16 %v1844
      %v2022 = vunpack.c.l.b16 %v1845
      %v2023 = vunpack.c.l.b16 %v1846
      %v2024 = vunpack.c.l.b16 %v1847
      %v2025 = vunpack.c.l.b16 %v1848
      %v2026 = vunpack.c.l.b16 %v1849
      %v2027 = vunpack.c.l.b16 %v1850
      %v2028 = vunpack.c.l.b16 %v1851
      %v2029 = vpack.c.b16 %v2014, %v2013
      %v2030 = vpack.c.b16 %v2016, %v2015
      %v2031 = vpack.c.b16 %v2018, %v2017
      %v2032 = vpack.c.b16 %v2020, %v2019
      %v2033 = vpack.c.b16 %v2022, %v2021
      %v2034 = vpack.c.b16 %v2024, %v2023
      %v2035 = vpack.c.b16 %v2026, %v2025
      %v2036 = vpack.c.b16 %v2028, %v2027
      %2045 = vmatprep.subr.bf16.mxu0 0
      %2046 = vmatpush1.bf16.msra.mxu0 %v2029
      %2047 = vmatprep.subr.bf16.mxu0 0
      %2048 = vmatpush1.bf16.msra.mxu0 %v2030
      %2049 = vmatprep.subr.bf16.mxu0 0
      %2050 = vmatpush1.bf16.msra.mxu0 %v2031
      %2051 = vmatprep.subr.bf16.mxu0 0
      %2052 = vmatpush1.bf16.msra.mxu0 %v2032
      %2053 = vmatprep.subr.bf16.mxu0 0
      %2054 = vmatpush1.bf16.msra.mxu0 %v2033
      %2055 = vmatprep.subr.bf16.mxu0 0
      %2056 = vmatpush1.bf16.msra.mxu0 %v2034
      %2057 = vmatprep.subr.bf16.mxu0 0
      %2058 = vmatpush1.bf16.msra.mxu0 %v2035
      %2059 = vmatprep.subr.bf16.mxu0 0
      %2060 = vmatpush1.bf16.msra.mxu0 %v2036
      %2061 = vmatprep.subr.bf16.mxu0 0
      %2062 = vmatpush1.bf16.msra.mxu0 0
      %2063 = vmatprep.subr.bf16.mxu0 0
      %2064 = vmatpush1.bf16.msra.mxu0 0
      %2065 = vmatprep.subr.bf16.mxu0 0
      %2066 = vmatpush1.bf16.msra.mxu0 0
      %2067 = vmatprep.subr.bf16.mxu0 0
      %2068 = vmatpush1.bf16.msra.mxu0 0
      %2069 = vmatprep.subr.bf16.mxu0 0
      %2070 = vmatpush1.bf16.msra.mxu0 0
      %2071 = vmatprep.subr.bf16.mxu0 0
      %2072 = vmatpush1.bf16.msra.mxu0 0
      %2073 = vmatprep.subr.bf16.mxu0 0
      %2074 = vmatpush1.bf16.msra.mxu0 0
      %2075 = vmatprep.subr.bf16.mxu0 0
      %2076 = vmatpush1.bf16.msra.mxu0 0
      %2077 = vmatprep.mubr.bf16.mxu0 0
      %2078 = vmatmul.mubr.bf16.gmra.mrb[0].mxu0 %v1812
      %v2079 = vpop.f32.mrb[0].mxu0
      %v2080 = vadd.f32 0.0, %v2079
      %v2081 = vpop.f32.mrb[0].mxu0
      %v2082 = vpop.f32.mrb[0].mxu0
      %v2083 = vadd.f32 0.0, %v2082
      %v2084 = vpop.f32.mrb[0].mxu0
      %2085 = vmatprep.mubr.bf16.mxu0 0
      %2086 = vmatmul.mubr.bf16.gmra.mrb[0].mxu0 %v1813
      %v2087 = vpop.f32.mrb[0].mxu0
      %v2088 = vadd.f32 0.0, %v2087
      %v2089 = vpop.f32.mrb[0].mxu0
      %v2090 = vpop.f32.mrb[0].mxu0
      %v2091 = vadd.f32 0.0, %v2090
      %v2092 = vpop.f32.mrb[0].mxu0
      %2093 = vmatprep.mubr.bf16.mxu0 0
      %2094 = vmatmul.mubr.bf16.gmra.mrb[0].mxu0 %v1814
      %v2095 = vpop.f32.mrb[0].mxu0
      %v2096 = vadd.f32 0.0, %v2095
      %v2097 = vpop.f32.mrb[0].mxu0
      %v2098 = vpop.f32.mrb[0].mxu0
      %v2099 = vadd.f32 0.0, %v2098
      %v2100 = vpop.f32.mrb[0].mxu0
      %2101 = vmatprep.mubr.bf16.mxu0 0
      %2102 = vmatmul.mubr.bf16.gmra.mrb[0].mxu0 %v1815
      %v2103 = vpop.f32.mrb[0].mxu0
      %v2104 = vadd.f32 0.0, %v2103
      %v2105 = vpop.f32.mrb[0].mxu0
      %v2106 = vpop.f32.mrb[0].mxu0
      %v2107 = vadd.f32 0.0, %v2106
      %v2108 = vpop.f32.mrb[0].mxu0
      %2109 = vmatprep.mubr.bf16.mxu0 0
      %2110 = vmatmul.mubr.bf16.gmra.mrb[0].mxu0 %v1816
      %v2111 = vpop.f32.mrb[0].mxu0
      %v2112 = vadd.f32 0.0, %v2111
      %v2113 = vpop.f32.mrb[0].mxu0
      %v2114 = vpop.f32.mrb[0].mxu0
      %v2115 = vadd.f32 0.0, %v2114
      %v2116 = vpop.f32.mrb[0].mxu0
      %2117 = vmatprep.mubr.bf16.mxu0 0
      %2118 = vmatmul.mubr.bf16.gmra.mrb[0].mxu0 %v1817
      %v2119 = vpop.f32.mrb[0].mxu0
      %v2120 = vadd.f32 0.0, %v2119
      %v2121 = vpop.f32.mrb[0].mxu0
      %v2122 = vpop.f32.mrb[0].mxu0
      %v2123 = vadd.f32 0.0, %v2122
      %v2124 = vpop.f32.mrb[0].mxu0
      %2125 = vmatprep.mubr.bf16.mxu0 0
      %2126 = vmatmul.mubr.bf16.gmra.mrb[0].mxu0 %v1818
      %v2127 = vpop.f32.mrb[0].mxu0
      %v2128 = vadd.f32 0.0, %v2127
      %v2129 = vpop.f32.mrb[0].mxu0
      %v2130 = vpop.f32.mrb[0].mxu0
      %v2131 = vadd.f32 0.0, %v2130
      %v2132 = vpop.f32.mrb[0].mxu0
      %2133 = vmatprep.mubr.bf16.mxu0 0
      %2134 = vmatmul.mubr.bf16.gmra.mrb[0].mxu0 %v1819
      %v2135 = vpop.f32.mrb[0].mxu0
      %v2136 = vadd.f32 0.0, %v2135
      %v2137 = vpop.f32.mrb[0].mxu0
      %v2138 = vpop.f32.mrb[0].mxu0
      %v2139 = vadd.f32 0.0, %v2138
      %v2140 = vpop.f32.mrb[0].mxu0
      %2141 = vdwg.mxu0
      %v2142 = vadd.f32 %v1772, %v1935
      %v2143 = vadd.f32 %v1773, %v1938
      %v2144 = vadd.f32 %v1774, %v1943
      %v2145 = vadd.f32 %v1775, %v1946
      %v2146 = vadd.f32 %v1776, %v1951
      %v2147 = vadd.f32 %v1777, %v1954
      %v2148 = vadd.f32 %v1778, %v1959
      %v2149 = vadd.f32 %v1779, %v1962
      %v2150 = vadd.f32 %v1780, %v1967
      %v2151 = vadd.f32 %v1781, %v1970
      %v2152 = vadd.f32 %v1782, %v1975
      %v2153 = vadd.f32 %v1783, %v1978
      %v2154 = vadd.f32 %v1784, %v1983
      %v2155 = vadd.f32 %v1785, %v1986
      %v2156 = vadd.f32 %v1786, %v1991
      %v2157 = vadd.f32 %v1787, %v1994
      %v2158 = vadd.f32 %v1788, %v2080
      %v2159 = vadd.f32 %v1789, %v2083
      %v2160 = vadd.f32 %v1790, %v2088
      %v2161 = vadd.f32 %v1791, %v2091
      %v2162 = vadd.f32 %v1792, %v2096
      %v2163 = vadd.f32 %v1793, %v2099
      %v2164 = vadd.f32 %v1794, %v2104
      %v2165 = vadd.f32 %v1795, %v2107
      %v2166 = vadd.f32 %v1796, %v2112
      %v2167 = vadd.f32 %v1797, %v2115
      %v2168 = vadd.f32 %v1798, %v2120
      %v2169 = vadd.f32 %v1799, %v2123
      %v2170 = vadd.f32 %v1800, %v2128
      %v2171 = vadd.f32 %v1801, %v2131
      %v2172 = vadd.f32 %v1802, %v2136
      %v2173 = vadd.f32 %v1803, %v2139
      %2174 = vst.msk [vmem:[#allocation4] sm:$0xff] %vm536, %v2142
      %2175 = vst.msk [vmem:[#allocation4 + $0x8] sm:$0xff] %vm536, %v2143
      %2176 = vst.msk [vmem:[#allocation4 + $0x10] sm:$0xff] %vm536, %v2144
      %2177 = vst.msk [vmem:[#allocation4 + $0x18] sm:$0xff] %vm536, %v2145
      %2178 = vst.msk [vmem:[#allocation4 + $0x20] sm:$0xff] %vm536, %v2146
      %2179 = vst.msk [vmem:[#allocation4 + $0x28] sm:$0xff] %vm536, %v2147
      %2180 = vst.msk [vmem:[#allocation4 + $0x30] sm:$0xff] %vm536, %v2148
      %2181 = vst.msk [vmem:[#allocation4 + $0x38] sm:$0xff] %vm536, %v2149
      %2182 = vst.msk [vmem:[#allocation4 + $0x40] sm:$0xff] %vm536, %v2150
      %2183 = vst.msk [vmem:[#allocation4 + $0x48] sm:$0xff] %vm536, %v2151
      %2184 = vst.msk [vmem:[#allocation4 + $0x50] sm:$0xff] %vm536, %v2152
      %2185 = vst.msk [vmem:[#allocation4 + $0x58] sm:$0xff] %vm536, %v2153
      %2186 = vst.msk [vmem:[#allocation4 + $0x60] sm:$0xff] %vm536, %v2154
      %2187 = vst.msk [vmem:[#allocation4 + $0x68] sm:$0xff] %vm536, %v2155
      %2188 = vst.msk [vmem:[#allocation4 + $0x70] sm:$0xff] %vm536, %v2156
      %2189 = vst.msk [vmem:[#allocation4 + $0x78] sm:$0xff] %vm536, %v2157
      %2190 = vst.msk [vmem:[#allocation4 + $0x80] sm:$0xff] %vm536, %v2158
      %2191 = vst.msk [vmem:[#allocation4 + $0x88] sm:$0xff] %vm536, %v2159
      %2192 = vst.msk [vmem:[#allocation4 + $0x90] sm:$0xff] %vm536, %v2160
      %2193 = vst.msk [vmem:[#allocation4 + $0x98] sm:$0xff] %vm536, %v2161
      %2194 = vst.msk [vmem:[#allocation4 + $0xa0] sm:$0xff] %vm536, %v2162
      %2195 = vst.msk [vmem:[#allocation4 + $0xa8] sm:$0xff] %vm536, %v2163
      %2196 = vst.msk [vmem:[#allocation4 + $0xb0] sm:$0xff] %vm536, %v2164
      %2197 = vst.msk [vmem:[#allocation4 + $0xb8] sm:$0xff] %vm536, %v2165
      %2198 = vst.msk [vmem:[#allocation4 + $0xc0] sm:$0xff] %vm536, %v2166
      %2199 = vst.msk [vmem:[#allocation4 + $0xc8] sm:$0xff] %vm536, %v2167
      %2200 = vst.msk [vmem:[#allocation4 + $0xd0] sm:$0xff] %vm536, %v2168
      %2201 = vst.msk [vmem:[#allocation4 + $0xd8] sm:$0xff] %vm536, %v2169
      %2202 = vst.msk [vmem:[#allocation4 + $0xe0] sm:$0xff] %vm536, %v2170
      %2203 = vst.msk [vmem:[#allocation4 + $0xe8] sm:$0xff] %vm536, %v2171
      %2204 = vst.msk [vmem:[#allocation4 + $0xf0] sm:$0xff] %vm536, %v2172
      %2205 = vst.msk [vmem:[#allocation4 + $0xf8] sm:$0xff] %vm536, %v2173
      %2206 = vst.msk [vmem:[#allocation2] sm:$0xff] %vm1547, %v1003
      %2207 = vst.msk [vmem:[#allocation2 + $0x8] sm:$0xff] %vm1547, %v1004
      %2208 = vst.msk [vmem:[#allocation2 + $0x10] sm:$0xff] %vm1547, %v1005
      %2209 = vst.msk [vmem:[#allocation2 + $0x18] sm:$0xff] %vm1547, %v1006
      %2210 = vst.msk [vmem:[#allocation2 + $0x20] sm:$0xff] %vm1547, %v1007
      %2211 = vst.msk [vmem:[#allocation2 + $0x28] sm:$0xff] %vm1547, %v1008
      %2212 = vst.msk [vmem:[#allocation2 + $0x30] sm:$0xff] %vm1547, %v1009
      %2213 = vst.msk [vmem:[#allocation2 + $0x38] sm:$0xff] %vm1547, %v1010
      %2214 = vst.msk [vmem:[#allocation2 + $0x40] sm:$0xff] %vm1547, %v1011
      %2215 = vst.msk [vmem:[#allocation2 + $0x48] sm:$0xff] %vm1547, %v1012
      %2216 = vst.msk [vmem:[#allocation2 + $0x50] sm:$0xff] %vm1547, %v1013
      %2217 = vst.msk [vmem:[#allocation2 + $0x58] sm:$0xff] %vm1547, %v1014
      %2218 = vst.msk [vmem:[#allocation2 + $0x60] sm:$0xff] %vm1547, %v1015
      %2219 = vst.msk [vmem:[#allocation2 + $0x68] sm:$0xff] %vm1547, %v1016
      %2220 = vst.msk [vmem:[#allocation2 + $0x70] sm:$0xff] %vm1547, %v1017
      %2221 = vst.msk [vmem:[#allocation2 + $0x78] sm:$0xff] %vm1547, %v1018
      %2222 = vst.msk [vmem:[#allocation2 + $0x80] sm:$0xff] %vm1547, %v1019
      %2223 = vst.msk [vmem:[#allocation2 + $0x88] sm:$0xff] %vm1547, %v1020
      %2224 = vst.msk [vmem:[#allocation2 + $0x90] sm:$0xff] %vm1547, %v1021
      %2225 = vst.msk [vmem:[#allocation2 + $0x98] sm:$0xff] %vm1547, %v1022
      %2226 = vst.msk [vmem:[#allocation2 + $0xa0] sm:$0xff] %vm1547, %v1023
      %2227 = vst.msk [vmem:[#allocation2 + $0xa8] sm:$0xff] %vm1547, %v1024
      %2228 = vst.msk [vmem:[#allocation2 + $0xb0] sm:$0xff] %vm1547, %v1025
      %2229 = vst.msk [vmem:[#allocation2 + $0xb8] sm:$0xff] %vm1547, %v1026
      %2230 = vst.msk [vmem:[#allocation2 + $0xc0] sm:$0xff] %vm1547, %v1027
      %2231 = vst.msk [vmem:[#allocation2 + $0xc8] sm:$0xff] %vm1547, %v1028
      %2232 = vst.msk [vmem:[#allocation2 + $0xd0] sm:$0xff] %vm1547, %v1029
      %2233 = vst.msk [vmem:[#allocation2 + $0xd8] sm:$0xff] %vm1547, %v1030
      %2234 = vst.msk [vmem:[#allocation2 + $0xe0] sm:$0xff] %vm1547, %v1031
      %2235 = vst.msk [vmem:[#allocation2 + $0xe8] sm:$0xff] %vm1547, %v1032
      %2236 = vst.msk [vmem:[#allocation2 + $0xf0] sm:$0xff] %vm1547, %v1033
      %2237 = vst.msk [vmem:[#allocation2 + $0xf8] sm:$0xff] %vm1547, %v1034
      // Predicated region
      $region37: #{transformer_forward.4} parent=31 // pred_check
        %p2238 = pneg %p290
      $region38: #{transformer_forward.4} parent=31 // pred_check_branch
        %2240 = sbr.rel (%p2238) target = $region40
      $region39: #{transformer_forward.4} parent=31 // pred_region
        %v2241 = vld [vmem:[#allocation3] sm:$0xff]
        %v2242 = vld [vmem:[#allocation3 + $0x8] sm:$0xff]
        %v2243 = vld [vmem:[#allocation3 + $0x10] sm:$0xff]
        %v2244 = vld [vmem:[#allocation3 + $0x18] sm:$0xff]
        %v2245 = vld [vmem:[#allocation3 + $0x20] sm:$0xff]
        %v2246 = vld [vmem:[#allocation3 + $0x28] sm:$0xff]
        %v2247 = vld [vmem:[#allocation3 + $0x30] sm:$0xff]
        %v2248 = vld [vmem:[#allocation3 + $0x38] sm:$0xff]
        %v2249 = vld [vmem:[#allocation3 + $0x40] sm:$0xff]
        %v2250 = vld [vmem:[#allocation3 + $0x48] sm:$0xff]
        %v2251 = vld [vmem:[#allocation3 + $0x50] sm:$0xff]
        %v2252 = vld [vmem:[#allocation3 + $0x58] sm:$0xff]
        %v2253 = vld [vmem:[#allocation3 + $0x60] sm:$0xff]
        %v2254 = vld [vmem:[#allocation3 + $0x68] sm:$0xff]
        %v2255 = vld [vmem:[#allocation3 + $0x70] sm:$0xff]
        %v2256 = vld [vmem:[#allocation3 + $0x78] sm:$0xff]
        %v2257 = vld [vmem:[#allocation3 + $0x80] sm:$0xff]
        %v2258 = vld [vmem:[#allocation3 + $0x88] sm:$0xff]
        %v2259 = vld [vmem:[#allocation3 + $0x90] sm:$0xff]
        %v2260 = vld [vmem:[#allocation3 + $0x98] sm:$0xff]
        %v2261 = vld [vmem:[#allocation3 + $0xa0] sm:$0xff]
        %v2262 = vld [vmem:[#allocation3 + $0xa8] sm:$0xff]
        %v2263 = vld [vmem:[#allocation3 + $0xb0] sm:$0xff]
        %v2264 = vld [vmem:[#allocation3 + $0xb8] sm:$0xff]
        %v2265 = vld [vmem:[#allocation3 + $0xc0] sm:$0xff]
        %v2266 = vld [vmem:[#allocation3 + $0xc8] sm:$0xff]
        %v2267 = vld [vmem:[#allocation3 + $0xd0] sm:$0xff]
        %v2268 = vld [vmem:[#allocation3 + $0xd8] sm:$0xff]
        %v2269 = vld [vmem:[#allocation3 + $0xe0] sm:$0xff]
        %v2270 = vld [vmem:[#allocation3 + $0xe8] sm:$0xff]
        %v2271 = vld [vmem:[#allocation3 + $0xf0] sm:$0xff]
        %v2272 = vld [vmem:[#allocation3 + $0xf8] sm:$0xff]
        %v2273 = vrcp.pop %v2241
        %v2274 = vrcp.pop %v2242
        %v2275 = vrcp.pop %v2243
        %v2276 = vrcp.pop %v2244
        %v2277 = vrcp.pop %v2245
        %v2278 = vrcp.pop %v2246
        %v2279 = vrcp.pop %v2247
        %v2280 = vrcp.pop %v2248
        %v2281 = vrcp.pop %v2249
        %v2282 = vrcp.pop %v2250
        %v2283 = vrcp.pop %v2251
        %v2284 = vrcp.pop %v2252
        %v2285 = vrcp.pop %v2253
        %v2286 = vrcp.pop %v2254
        %v2287 = vrcp.pop %v2255
        %v2288 = vrcp.pop %v2256
        %v2289 = vrcp.pop %v2257
        %v2290 = vrcp.pop %v2258
        %v2291 = vrcp.pop %v2259
        %v2292 = vrcp.pop %v2260
        %v2293 = vrcp.pop %v2261
        %v2294 = vrcp.pop %v2262
        %v2295 = vrcp.pop %v2263
        %v2296 = vrcp.pop %v2264
        %v2297 = vrcp.pop %v2265
        %v2298 = vrcp.pop %v2266
        %v2299 = vrcp.pop %v2267
        %v2300 = vrcp.pop %v2268
        %v2301 = vrcp.pop %v2269
        %v2302 = vrcp.pop %v2270
        %v2303 = vrcp.pop %v2271
        %v2304 = vrcp.pop %v2272
        %v2305 = vld [vmem:[#allocation4] sm:$0xff]
        %v2306 = vld [vmem:[#allocation4 + $0x8] sm:$0xff]
        %v2307 = vld [vmem:[#allocation4 + $0x10] sm:$0xff]
        %v2308 = vld [vmem:[#allocation4 + $0x18] sm:$0xff]
        %v2309 = vld [vmem:[#allocation4 + $0x20] sm:$0xff]
        %v2310 = vld [vmem:[#allocation4 + $0x28] sm:$0xff]
        %v2311 = vld [vmem:[#allocation4 + $0x30] sm:$0xff]
        %v2312 = vld [vmem:[#allocation4 + $0x38] sm:$0xff]
        %v2313 = vld [vmem:[#allocation4 + $0x40] sm:$0xff]
        %v2314 = vld [vmem:[#allocation4 + $0x48] sm:$0xff]
        %v2315 = vld [vmem:[#allocation4 + $0x50] sm:$0xff]
        %v2316 = vld [vmem:[#allocation4 + $0x58] sm:$0xff]
        %v2317 = vld [vmem:[#allocation4 + $0x60] sm:$0xff]
        %v2318 = vld [vmem:[#allocation4 + $0x68] sm:$0xff]
        %v2319 = vld [vmem:[#allocation4 + $0x70] sm:$0xff]
        %v2320 = vld [vmem:[#allocation4 + $0x78] sm:$0xff]
        %v2321 = vld [vmem:[#allocation4 + $0x80] sm:$0xff]
        %v2322 = vld [vmem:[#allocation4 + $0x88] sm:$0xff]
        %v2323 = vld [vmem:[#allocation4 + $0x90] sm:$0xff]
        %v2324 = vld [vmem:[#allocation4 + $0x98] sm:$0xff]
        %v2325 = vld [vmem:[#allocation4 + $0xa0] sm:$0xff]
        %v2326 = vld [vmem:[#allocation4 + $0xa8] sm:$0xff]
        %v2327 = vld [vmem:[#allocation4 + $0xb0] sm:$0xff]
        %v2328 = vld [vmem:[#allocation4 + $0xb8] sm:$0xff]
        %v2329 = vld [vmem:[#allocation4 + $0xc0] sm:$0xff]
        %v2330 = vld [vmem:[#allocation4 + $0xc8] sm:$0xff]
        %v2331 = vld [vmem:[#allocation4 + $0xd0] sm:$0xff]
        %v2332 = vld [vmem:[#allocation4 + $0xd8] sm:$0xff]
        %v2333 = vld [vmem:[#allocation4 + $0xe0] sm:$0xff]
        %v2334 = vld [vmem:[#allocation4 + $0xe8] sm:$0xff]
        %v2335 = vld [vmem:[#allocation4 + $0xf0] sm:$0xff]
        %v2336 = vld [vmem:[#allocation4 + $0xf8] sm:$0xff]
        %2338 = vset.pattern.permute.xlu0 0
        %2339 = vperm.xlu0 %2338, %v2273
        %v2340 = vpop.permute.xlu0 %2339
        %2343 = vset.pattern.permute.xlu0 0
        %2344 = vperm.xlu0 %2343, %v2274
        %v2345 = vpop.permute.xlu0 %2344
        %2348 = vset.pattern.permute.xlu0 0
        %2349 = vperm.xlu0 %2348, %v2275
        %v2350 = vpop.permute.xlu0 %2349
        %2353 = vset.pattern.permute.xlu0 0
        %2354 = vperm.xlu0 %2353, %v2276
        %v2355 = vpop.permute.xlu0 %2354
        %2358 = vset.pattern.permute.xlu0 0
        %2359 = vperm.xlu0 %2358, %v2277
        %v2360 = vpop.permute.xlu0 %2359
        %2363 = vset.pattern.permute.xlu0 0
        %2364 = vperm.xlu0 %2363, %v2278
        %v2365 = vpop.permute.xlu0 %2364
        %2368 = vset.pattern.permute.xlu0 0
        %2369 = vperm.xlu0 %2368, %v2279
        %v2370 = vpop.permute.xlu0 %2369
        %2373 = vset.pattern.permute.xlu0 0
        %2374 = vperm.xlu0 %2373, %v2280
        %v2375 = vpop.permute.xlu0 %2374
        %2378 = vset.pattern.permute.xlu0 0
        %2379 = vperm.xlu0 %2378, %v2281
        %v2380 = vpop.permute.xlu0 %2379
        %2383 = vset.pattern.permute.xlu0 0
        %2384 = vperm.xlu0 %2383, %v2282
        %v2385 = vpop.permute.xlu0 %2384
        %2388 = vset.pattern.permute.xlu0 0
        %2389 = vperm.xlu0 %2388, %v2283
        %v2390 = vpop.permute.xlu0 %2389
        %2393 = vset.pattern.permute.xlu0 0
        %2394 = vperm.xlu0 %2393, %v2284
        %v2395 = vpop.permute.xlu0 %2394
        %2398 = vset.pattern.permute.xlu0 0
        %2399 = vperm.xlu0 %2398, %v2285
        %v2400 = vpop.permute.xlu0 %2399
        %2403 = vset.pattern.permute.xlu0 0
        %2404 = vperm.xlu0 %2403, %v2286
        %v2405 = vpop.permute.xlu0 %2404
        %2408 = vset.pattern.permute.xlu0 0
        %2409 = vperm.xlu0 %2408, %v2287
        %v2410 = vpop.permute.xlu0 %2409
        %2413 = vset.pattern.permute.xlu0 0
        %2414 = vperm.xlu0 %2413, %v2288
        %v2415 = vpop.permute.xlu0 %2414
        %2418 = vset.pattern.permute.xlu0 0
        %2419 = vperm.xlu0 %2418, %v2289
        %v2420 = vpop.permute.xlu0 %2419
        %2423 = vset.pattern.permute.xlu0 0
        %2424 = vperm.xlu0 %2423, %v2290
        %v2425 = vpop.permute.xlu0 %2424
        %2428 = vset.pattern.permute.xlu0 0
        %2429 = vperm.xlu0 %2428, %v2291
        %v2430 = vpop.permute.xlu0 %2429
        %2433 = vset.pattern.permute.xlu0 0
        %2434 = vperm.xlu0 %2433, %v2292
        %v2435 = vpop.permute.xlu0 %2434
        %2438 = vset.pattern.permute.xlu0 0
        %2439 = vperm.xlu0 %2438, %v2293
        %v2440 = vpop.permute.xlu0 %2439
        %2443 = vset.pattern.permute.xlu0 0
        %2444 = vperm.xlu0 %2443, %v2294
        %v2445 = vpop.permute.xlu0 %2444
        %2448 = vset.pattern.permute.xlu0 0
        %2449 = vperm.xlu0 %2448, %v2295
        %v2450 = vpop.permute.xlu0 %2449
        %2453 = vset.pattern.permute.xlu0 0
        %2454 = vperm.xlu0 %2453, %v2296
        %v2455 = vpop.permute.xlu0 %2454
        %2458 = vset.pattern.permute.xlu0 0
        %2459 = vperm.xlu0 %2458, %v2297
        %v2460 = vpop.permute.xlu0 %2459
        %2463 = vset.pattern.permute.xlu0 0
        %2464 = vperm.xlu0 %2463, %v2298
        %v2465 = vpop.permute.xlu0 %2464
        %2468 = vset.pattern.permute.xlu0 0
        %2469 = vperm.xlu0 %2468, %v2299
        %v2470 = vpop.permute.xlu0 %2469
        %2473 = vset.pattern.permute.xlu0 0
        %2474 = vperm.xlu0 %2473, %v2300
        %v2475 = vpop.permute.xlu0 %2474
        %2478 = vset.pattern.permute.xlu0 0
        %2479 = vperm.xlu0 %2478, %v2301
        %v2480 = vpop.permute.xlu0 %2479
        %2483 = vset.pattern.permute.xlu0 0
        %2484 = vperm.xlu0 %2483, %v2302
        %v2485 = vpop.permute.xlu0 %2484
        %2488 = vset.pattern.permute.xlu0 0
        %2489 = vperm.xlu0 %2488, %v2303
        %v2490 = vpop.permute.xlu0 %2489
        %2493 = vset.pattern.permute.xlu0 0
        %2494 = vperm.xlu0 %2493, %v2304
        %v2495 = vpop.permute.xlu0 %2494
        %v2497 = vmul.f32 %v2305, %v2340
        %v2498 = vmul.f32 %v2306, %v2345
        %v2499 = vmul.f32 %v2307, %v2350
        %v2500 = vmul.f32 %v2308, %v2355
        %v2501 = vmul.f32 %v2309, %v2360
        %v2502 = vmul.f32 %v2310, %v2365
        %v2503 = vmul.f32 %v2311, %v2370
        %v2504 = vmul.f32 %v2312, %v2375
        %v2505 = vmul.f32 %v2313, %v2380
        %v2506 = vmul.f32 %v2314, %v2385
        %v2507 = vmul.f32 %v2315, %v2390
        %v2508 = vmul.f32 %v2316, %v2395
        %v2509 = vmul.f32 %v2317, %v2400
        %v2510 = vmul.f32 %v2318, %v2405
        %v2511 = vmul.f32 %v2319, %v2410
        %v2512 = vmul.f32 %v2320, %v2415
        %v2513 = vmul.f32 %v2321, %v2420
        %v2514 = vmul.f32 %v2322, %v2425
        %v2515 = vmul.f32 %v2323, %v2430
        %v2516 = vmul.f32 %v2324, %v2435
        %v2517 = vmul.f32 %v2325, %v2440
        %v2518 = vmul.f32 %v2326, %v2445
        %v2519 = vmul.f32 %v2327, %v2450
        %v2520 = vmul.f32 %v2328, %v2455
        %v2521 = vmul.f32 %v2329, %v2460
        %v2522 = vmul.f32 %v2330, %v2465
        %v2523 = vmul.f32 %v2331, %v2470
        %v2524 = vmul.f32 %v2332, %v2475
        %v2525 = vmul.f32 %v2333, %v2480
        %v2526 = vmul.f32 %v2334, %v2485
        %v2527 = vmul.f32 %v2335, %v2490
        %v2528 = vmul.f32 %v2336, %v2495
        %v2529 = vpack.c.bf16 %v2498, %v2497
        %v2530 = vpack.c.bf16 %v2500, %v2499
        %v2531 = vpack.c.bf16 %v2502, %v2501
        %v2532 = vpack.c.bf16 %v2504, %v2503
        %v2533 = vpack.c.bf16 %v2506, %v2505
        %v2534 = vpack.c.bf16 %v2508, %v2507
        %v2535 = vpack.c.bf16 %v2510, %v2509
        %v2536 = vpack.c.bf16 %v2512, %v2511
        %v2537 = vpack.c.bf16 %v2514, %v2513
        %v2538 = vpack.c.bf16 %v2516, %v2515
        %v2539 = vpack.c.bf16 %v2518, %v2517
        %v2540 = vpack.c.bf16 %v2520, %v2519
        %v2541 = vpack.c.bf16 %v2522, %v2521
        %v2542 = vpack.c.bf16 %v2524, %v2523
        %v2543 = vpack.c.bf16 %v2526, %v2525
        %v2544 = vpack.c.bf16 %v2528, %v2527
        %v2561 = vunpack.c.l.b16 %v2529
        %v2562 = vunpack.c.h.b16 %v2529
        %v2563 = vunpack.c.l.b16 %v2530
        %v2564 = vunpack.c.h.b16 %v2530
        %v2565 = vunpack.c.l.b16 %v2531
        %v2566 = vunpack.c.h.b16 %v2531
        %v2567 = vunpack.c.l.b16 %v2532
        %v2568 = vunpack.c.h.b16 %v2532
        %v2569 = vunpack.c.l.b16 %v2533
        %v2570 = vunpack.c.h.b16 %v2533
        %v2571 = vunpack.c.l.b16 %v2534
        %v2572 = vunpack.c.h.b16 %v2534
        %v2573 = vunpack.c.l.b16 %v2535
        %v2574 = vunpack.c.h.b16 %v2535
        %v2575 = vunpack.c.l.b16 %v2536
        %v2576 = vunpack.c.h.b16 %v2536
        %v2577 = vunpack.c.l.b16 %v2537
        %v2578 = vunpack.c.h.b16 %v2537
        %v2579 = vunpack.c.l.b16 %v2538
        %v2580 = vunpack.c.h.b16 %v2538
        %v2581 = vunpack.c.l.b16 %v2539
        %v2582 = vunpack.c.h.b16 %v2539
        %v2583 = vunpack.c.l.b16 %v2540
        %v2584 = vunpack.c.h.b16 %v2540
        %v2585 = vunpack.c.l.b16 %v2541
        %v2586 = vunpack.c.h.b16 %v2541
        %v2587 = vunpack.c.l.b16 %v2542
        %v2588 = vunpack.c.h.b16 %v2542
        %v2589 = vunpack.c.l.b16 %v2543
        %v2590 = vunpack.c.h.b16 %v2543
        %v2591 = vunpack.c.l.b16 %v2544
        %v2592 = vunpack.c.h.b16 %v2544
        %v2593 = vpack.c.b16 %v2561, %v2561
        %v2594 = vpack.c.b16 %v2562, %v2562
        %v2595 = vpack.c.b16 %v2563, %v2563
        %v2596 = vpack.c.b16 %v2564, %v2564
        %v2597 = vpack.c.b16 %v2565, %v2565
        %v2598 = vpack.c.b16 %v2566, %v2566
        %v2599 = vpack.c.b16 %v2567, %v2567
        %v2600 = vpack.c.b16 %v2568, %v2568
        %v2601 = vpack.c.b16 %v2569, %v2569
        %v2602 = vpack.c.b16 %v2570, %v2570
        %v2603 = vpack.c.b16 %v2571, %v2571
        %v2604 = vpack.c.b16 %v2572, %v2572
        %v2605 = vpack.c.b16 %v2573, %v2573
        %v2606 = vpack.c.b16 %v2574, %v2574
        %v2607 = vpack.c.b16 %v2575, %v2575
        %v2608 = vpack.c.b16 %v2576, %v2576
        %v2609 = vpack.c.b16 %v2577, %v2577
        %v2610 = vpack.c.b16 %v2578, %v2578
        %v2611 = vpack.c.b16 %v2579, %v2579
        %v2612 = vpack.c.b16 %v2580, %v2580
        %v2613 = vpack.c.b16 %v2581, %v2581
        %v2614 = vpack.c.b16 %v2582, %v2582
        %v2615 = vpack.c.b16 %v2583, %v2583
        %v2616 = vpack.c.b16 %v2584, %v2584
        %v2617 = vpack.c.b16 %v2585, %v2585
        %v2618 = vpack.c.b16 %v2586, %v2586
        %v2619 = vpack.c.b16 %v2587, %v2587
        %v2620 = vpack.c.b16 %v2588, %v2588
        %v2621 = vpack.c.b16 %v2589, %v2589
        %v2622 = vpack.c.b16 %v2590, %v2590
        %v2623 = vpack.c.b16 %v2591, %v2591
        %v2624 = vpack.c.b16 %v2592, %v2592
        %vm2657 = vcmask 519168
        %2658 = vst.msk [vmem:[%s287] sm:$0xf] %vm2657, %v2593
        %2659 = vst.msk [vmem:[%s287 + $0x4] sm:$0xf] %vm2657, %v2594
        %2660 = vst.msk [vmem:[%s287 + $0x8] sm:$0xf] %vm2657, %v2595
        %2661 = vst.msk [vmem:[%s287 + $0xc] sm:$0xf] %vm2657, %v2596
        %2662 = vst.msk [vmem:[%s287 + $0x10] sm:$0xf] %vm2657, %v2597
        %2663 = vst.msk [vmem:[%s287 + $0x14] sm:$0xf] %vm2657, %v2598
        %2664 = vst.msk [vmem:[%s287 + $0x18] sm:$0xf] %vm2657, %v2599
        %2665 = vst.msk [vmem:[%s287 + $0x1c] sm:$0xf] %vm2657, %v2600
        %2666 = vst.msk [vmem:[%s287 + $0x20] sm:$0xf] %vm2657, %v2601
        %2667 = vst.msk [vmem:[%s287 + $0x24] sm:$0xf] %vm2657, %v2602
        %2668 = vst.msk [vmem:[%s287 + $0x28] sm:$0xf] %vm2657, %v2603
        %2669 = vst.msk [vmem:[%s287 + $0x2c] sm:$0xf] %vm2657, %v2604
        %2670 = vst.msk [vmem:[%s287 + $0x30] sm:$0xf] %vm2657, %v2605
        %2671 = vst.msk [vmem:[%s287 + $0x34] sm:$0xf] %vm2657, %v2606
        %2672 = vst.msk [vmem:[%s287 + $0x38] sm:$0xf] %vm2657, %v2607
        %2673 = vst.msk [vmem:[%s287 + $0x3c] sm:$0xf] %vm2657, %v2608
        %2674 = vst.msk [vmem:[%s287 + $0x40] sm:$0xf] %vm2657, %v2609
        %2675 = vst.msk [vmem:[%s287 + $0x44] sm:$0xf] %vm2657, %v2610
        %2676 = vst.msk [vmem:[%s287 + $0x48] sm:$0xf] %vm2657, %v2611
        %2677 = vst.msk [vmem:[%s287 + $0x4c] sm:$0xf] %vm2657, %v2612
        %2678 = vst.msk [vmem:[%s287 + $0x50] sm:$0xf] %vm2657, %v2613
        %2679 = vst.msk [vmem:[%s287 + $0x54] sm:$0xf] %vm2657, %v2614
        %2680 = vst.msk [vmem:[%s287 + $0x58] sm:$0xf] %vm2657, %v2615
        %2681 = vst.msk [vmem:[%s287 + $0x5c] sm:$0xf] %vm2657, %v2616
        %2682 = vst.msk [vmem:[%s287 + $0x60] sm:$0xf] %vm2657, %v2617
        %2683 = vst.msk [vmem:[%s287 + $0x64] sm:$0xf] %vm2657, %v2618
        %2684 = vst.msk [vmem:[%s287 + $0x68] sm:$0xf] %vm2657, %v2619
        %2685 = vst.msk [vmem:[%s287 + $0x6c] sm:$0xf] %vm2657, %v2620
        %2686 = vst.msk [vmem:[%s287 + $0x70] sm:$0xf] %vm2657, %v2621
        %2687 = vst.msk [vmem:[%s287 + $0x74] sm:$0xf] %vm2657, %v2622
        %2688 = vst.msk [vmem:[%s287 + $0x78] sm:$0xf] %vm2657, %v2623
        %2689 = vst.msk [vmem:[%s287 + $0x7c] sm:$0xf] %vm2657, %v2624
      $region40: #{transformer_forward.4} parent=31 // pred_fallthru
        _
      %s2690 = smul.u32 16, %s20
      %p2691 = scmp.lt.s32.totalorder %s19, 1
      %s2692 = scalar_select %p2691, %s19, 1
      %p2693 = scmp.lt.s32.totalorder %s2690, 15
      %s2694 = scalar_select %p2693, %s2690, 15
      %s2695 = smul.addr %s2692, 32
      %s2696 = sadd.s32 %s2694, %s2695
      %s2697 = smul.addr %s2696, 4
      %s2698 = scalar_lea.vmem %s3, %s2697
      // Predicated region
      $region41: #{transformer_forward.4} parent=31 // pred_check
        %p2699 = pneg %p137
      $region42: #{transformer_forward.4} parent=31 // pred_check_branch
        %2701 = sbr.rel (%p2699) target = $region44
      $region43: #{transformer_forward.4} parent=31 // pred_region
        %s2702 = smul.u32 16, %s20
      $region44: #{transformer_forward.4} parent=31 // pred_fallthru
        _
    $region32: #{transformer_forward.4} parent=5 // pred_fallthru
      _
    %p2703 = scmp.le.s32.totalorder 2, %s9
    // Predicated region
    $region45: #{transformer_forward.4} parent=5 // pred_check
      %p2704 = pneg %p2703
    $region46: #{transformer_forward.4} parent=5 // pred_check_branch
      %2706 = sbr.rel (%p2704) target = $region48
    $region47: #{transformer_forward.4} parent=5 // pred_region
      %s2707 = ssub.s32 %s9, 2
      // Predicated region
      $region49: #{transformer_forward.4} parent=47 // pred_check
        %p2708 = pneg %p143
      $region50: #{transformer_forward.4} parent=47 // pred_check_branch
        %2710 = sbr.rel (%p2708) target = $region52
      $region51: #{transformer_forward.4} parent=47 // pred_region
        %s2711 = smul.u32 16, %s23
        %p2712 = scmp.lt.s32.totalorder %s22, 1
        %s2713 = scalar_select %p2712, %s22, 1
        %p2714 = scmp.lt.s32.totalorder %s2711, 15
        %s2715 = scalar_select %p2714, %s2711, 15
        %s2716 = smul.addr %s2713, 32
        %s2717 = sadd.s32 %s2715, %s2716
        %s2718 = smul.addr %s2717, 4
        %s2719 = scalar_lea.vmem %s3, %s2718
      $region52: #{transformer_forward.4} parent=47 // pred_fallthru
        _
    $region48: #{transformer_forward.4} parent=5 // pred_fallthru
      _
  $region6: #{transformer_forward.4} parent=0 // loop_footer
    %s13 = sadd.s32 1, %s9
  $region7: #{transformer_forward.4} parent=0 // loop_footer_branch
    %8 = sbr.rel target = $region3
  $region8: #{transformer_forward.4} parent=0 // loop_exit
    _

</llo_original>
